<compile_context>
chip_gen: v5e
topology: v5e:2x2
jax: 0.10.0
libtpu: 0.0.40
codegen_flags: <defaults>
</compile_context>

<pallas_src>
import jax
import jax.numpy as jnp
from jax import lax
from jax.experimental import pallas as pl
from jax.experimental.pallas import tpu as pltpu

EPS = 1e-5          # nn.BatchNorm2d default
EXTRA = 8           # slack rows so every 3x3 tap slice stays in bounds


def _round_up(x, m):
    return (x + m - 1) // m * m


def _vmem_limit_bytes():
    # Generation-aware VMEM budget: ~3/4 of physical (v5e/v6e: 128 MiB,
    # v7x: 64 MiB), capped at 100 MiB; fall back to a universally-safe 32 MiB.
    try:
        cap = getattr(pltpu.get_tpu_info(), "vmem_capacity_bytes", None)
        if cap:
            return int(min(cap * 3 // 4, 100 * 1024 * 1024))
    except Exception:
        pass
    return 32 * 1024 * 1024


VMEM_LIMIT = _vmem_limit_bytes()


def _w_to_kcn(w_oihw):
    """(O, I, 3, 3) -> (9, I, O), tap index t = ky*3 + kx."""
    o, i = w_oihw.shape[0], w_oihw.shape[1]
    return jnp.transpose(w_oihw, (2, 3, 1, 0)).reshape(9, i, o)


def _pad_axis(a, axis, target, value=0.0):
    a = a.astype(jnp.float32)
    pad = target - a.shape[axis]
    if pad == 0:
        return a
    cfg = [(0, 0)] * a.ndim
    cfg[axis] = (0, pad)
    return jnp.pad(a, cfg, constant_values=value)


def _grid_maps(nj, n_batch, weight_major):
    """Grid order: weight-major keeps the (9,Cin,TN) weight tile resident across
    the inner batch axis; activation-major keeps the per-image activation block
    resident across the inner channel-tile axis."""
    if weight_major:
        return (nj, n_batch), (lambda j, n: n), (lambda j, n: j)
    return (n_batch, nj), (lambda n, j: n), (lambda n, j: j)


# ---------------------------------------------------------------------------
# Kernel A: implicit-GEMM 3x3 conv (stride 1, flat rows) + bias + BN partials
# ---------------------------------------------------------------------------
def _conv_bias_stats_kernel(Wp, Wo, HW):
    def kernel(x_ref, w_ref, b_ref, y_ref, st_ref):
        # x_ref : (1, rows, Cin) f32   flat rows (stride Wp) of the input image
        # w_ref : (9, Cin, TN)  bf16   per-tap weight matrices
        # b_ref : (1, TN)       f32    conv bias (0 where absent)
        # y_ref : (1, HW, TN)   bf16   pre-BN conv output, flat layout
        # st_ref: (1, 2, TN)    f32    rows 0/1 = partial sum / sum-of-squares
        tn = w_ref.shape[-1]
        acc = jnp.zeros((HW, tn), jnp.float32)
        for t in range(9):                         # unrolled 3x3 implicit GEMM
            ky, kx = divmod(t, 3)
            off = ky * Wp + kx                     # static offset
            # Slice in f32 (layout-safe at unaligned sublane offsets), then
            # cast to bf16 for the MXU; the cast overlaps the matmul.
            lhs = x_ref[0, pl.ds(off, HW), :].astype(jnp.bfloat16)
            acc = acc + jnp.dot(lhs, w_ref[t],
                                preferred_element_type=jnp.float32)
        y = acc + b_ref[...]
        y_ref[0] = y.astype(y_ref.dtype)
        row = lax.broadcasted_iota(jnp.int32, (HW, 1), 0)
        valid = (row % Wp) < Wo                    # mask wrap-around columns
        yv = jnp.where(valid, y, 0.0)
        st_ref[0, 0:1, :] = jnp.sum(yv, axis=0, keepdims=True)
        st_ref[0, 1:2, :] = jnp.sum(yv * yv, axis=0, keepdims=True)

    return kernel


def conv_stage1(x_flat, w_cat, b_cat, *, Wp, Wo, HW, TN):
    N, rows, Cin = x_flat.shape
    Ccat = w_cat.shape[-1]
    nj = Ccat // TN
    w_bytes = 9 * Cin * TN * w_cat.dtype.itemsize
    a_bytes = rows * Cin * x_flat.dtype.itemsize
    grid, n_of, j_of = _grid_maps(nj, N, w_bytes > a_bytes)

    return pl.pallas_call(
        _conv_bias_stats_kernel(Wp, Wo, HW),
        out_shape=(jax.ShapeDtypeStruct((N, HW, Ccat), jnp.bfloat16),
                   jax.ShapeDtypeStruct((N, 2, Ccat), jnp.float32)),
        grid=grid,
        in_specs=[
            pl.BlockSpec((1, rows, Cin), lambda *g: (n_of(*g), 0, 0)),
            pl.BlockSpec((9, Cin, TN), lambda *g: (0, 0, j_of(*g))),
            pl.BlockSpec((1, TN), lambda *g: (0, j_of(*g))),
        ],
        out_specs=(
            pl.BlockSpec((1, HW, TN), lambda *g: (n_of(*g), 0, j_of(*g))),
            pl.BlockSpec((1, 2, TN), lambda *g: (n_of(*g), 0, j_of(*g))),
        ),
        compiler_params=pltpu.CompilerParams(
            dimension_semantics=("parallel", "parallel"),
            vmem_limit_bytes=VMEM_LIMIT),
    )(x_flat, w_cat, b_cat)


# ---------------------------------------------------------------------------
# Kernel B: fused BN1+ReLU+zero-pad relayout (VMEM scratch) -> 3x3 conv (pad=1)
#           + BN2 partial statistics.  Reads only the left-branch channels of
#           the bf16 stage-1 output; emits only round_up(Cout,128) channels.
# ---------------------------------------------------------------------------
def _bnrelu_conv_stats_kernel(Wp, Wo, HW, S, rows_scr):
    tail = rows_scr - (S + HW)

    def kernel(y1_ref, sc_ref, sh_ref, w_ref, y2_ref, st_ref, a_scr):
        # y1_ref: (1, HW, Cin2) bf16   pre-BN left-branch conv1 output
        # sc/sh : (1, Cin2)     f32    BN1 affine (left-branch channels)
        # w_ref : (9, Cin2, TN) bf16   per-tap conv2 weights
        # y2_ref: (1, HW, TN)   bf16   pre-BN conv2 output, flat layout
        # st_ref: (1, 2, TN)    f32    partial sum / sum-of-squares
        # a_scr : (rows_scr, Cin2) f32 zero-padded post-BN1 activation image
        cin = y1_ref.shape[-1]
        tn = w_ref.shape[-1]

        row = lax.broadcasted_iota(jnp.int32, (HW, 1), 0)
        valid = (row % Wp) < Wo

        # BN1 + ReLU + zero the junk columns; place into the padded geometry.
        a = y1_ref[0].astype(jnp.float32) * sc_ref[...] + sh_ref[...]
        a = jnp.maximum(a, 0.0)
        a = jnp.where(valid, a, 0.0)
        a_scr[pl.ds(0, S), :] = jnp.zeros((S, cin), jnp.float32)        # head
        a_scr[pl.ds(S, HW), :] = a                                      # slab
        a_scr[pl.ds(S + HW, tail), :] = jnp.zeros((tail, cin), jnp.float32)

        acc = jnp.zeros((HW, tn), jnp.float32)
        for t in range(9):
            ky, kx = divmod(t, 3)
            off = S + (ky - 1) * Wp + (kx - 1)     # static, >= 0 by construction
            lhs = a_scr[pl.ds(off, HW), :].astype(jnp.bfloat16)
            acc = acc + jnp.dot(lhs, w_ref[t],
                                preferred_element_type=jnp.float32)

        y2_ref[0] = acc.astype(y2_ref.dtype)
        yv = jnp.where(valid, acc, 0.0)
        st_ref[0, 0:1, :] = jnp.sum(yv, axis=0, keepdims=True)
        st_ref[0, 1:2, :] = jnp.sum(yv * yv, axis=0, keepdims=True)

    return kernel


def conv_stage2(y1, sc_left, sh_left, w2, *, Wp, Wo, HW, Cp, TN):
    N = y1.shape[0]
    nj = Cp // TN
    S = _round_up(Wp + 1, 8)                 # aligned start of the data slab
    rows_scr = S + HW + Wp + 8               # multiple of 8 (Wp % 8 == 0)

    w_bytes = 9 * Cp * TN * w2.dtype.itemsize
    a_bytes = HW * Cp * y1.dtype.itemsize
    grid, n_of, j_of = _grid_maps(nj, N, w_bytes > a_bytes)

    return pl.pallas_call(
        _bnrelu_conv_stats_kernel(Wp, Wo, HW, S, rows_scr),
        out_shape=(jax.ShapeDtypeStruct((N, HW, Cp), jnp.bfloat16),
                   jax.ShapeDtypeStruct((N, 2, Cp), jnp.float32)),
        grid=grid,
        in_specs=[
            # block index 1 on the channel axis selects the left-branch half
            pl.BlockSpec((1, HW, Cp), lambda *g: (n_of(*g), 0, 1)),
            pl.BlockSpec((1, Cp), lambda *g: (0, 0)),
            pl.BlockSpec((1, Cp), lambda *g: (0, 0)),
            pl.BlockSpec((9, Cp, TN), lambda *g: (0, 0, j_of(*g))),
        ],
        out_specs=(
            pl.BlockSpec((1, HW, TN), lambda *g: (n_of(*g), 0, j_of(*g))),
            pl.BlockSpec((1, 2, TN), lambda *g: (n_of(*g), 0, j_of(*g))),
        ),
        scratch_shapes=[pltpu.VMEM((rows_scr, Cp), jnp.float32)],
        compiler_params=pltpu.CompilerParams(
            dimension_semantics=("parallel", "parallel"),
            vmem_limit_bytes=VMEM_LIMIT),
    )(y1, sc_left, sh_left, w2)


# ---------------------------------------------------------------------------
# Kernel C: final apply — BN2(y2) + BN_shortcut(y1[:, :, :Cp]) residual add
# ---------------------------------------------------------------------------
def _final_apply_kernel(y2_ref, sc2_ref, sh2_ref, y1s_ref, sc1_ref, sh1_ref,
                        o_ref):
    left = y2_ref[0].astype(jnp.float32) * sc2_ref[...] + sh2_ref[...]
    right = y1s_ref[0].astype(jnp.float32) * sc1_ref[...] + sh1_ref[...]
    o_ref[0] = (left + right).astype(o_ref.dtype)


def final_apply(y2, sc2, sh2, y1, sc1_s, sh1_s, *, TN):
    N, HW, Cp = y2.shape
    nj = Cp // TN
    return pl.pallas_call(
        _final_apply_kernel,
        out_shape=jax.ShapeDtypeStruct((N, HW, Cp), jnp.float32),
        grid=(N, nj),
        in_specs=[
            pl.BlockSpec((1, HW, TN), lambda n, j: (n, 0, j)),
            pl.BlockSpec((1, TN), lambda n, j: (0, j)),
            pl.BlockSpec((1, TN), lambda n, j: (0, j)),
            # shortcut half of y1 lives in channels [0, Cp), so block index j
            pl.BlockSpec((1, HW, TN), lambda n, j: (n, 0, j)),
            pl.BlockSpec((1, TN), lambda n, j: (0, j)),
            pl.BlockSpec((1, TN), lambda n, j: (0, j)),
        ],
        out_specs=pl.BlockSpec((1, HW, TN), lambda n, j: (n, 0, j)),
        compiler_params=pltpu.CompilerParams(
            dimension_semantics=("parallel", "parallel"),
            vmem_limit_bytes=VMEM_LIMIT),
    )(y2, sc2, sh2, y1, sc1_s, sh1_s)


def bn_scale_shift(stats, gamma_pad, beta_pad, count):
    """Turn partial (sum, sumsq) into per-channel affine scale/shift (f32)."""
    s = jnp.sum(stats[:, 0, :], axis=0)
    ss = jnp.sum(stats[:, 1, :], axis=0)
    mean = s / count
    var = jnp.maximum(ss / count - mean * mean, 0.0)       # biased variance
    inv = jax.lax.rsqrt(var + EPS)
    scale = gamma_pad.reshape(-1) * inv
    shift = beta_pad.reshape(-1) - mean * scale
    return scale.reshape(1, -1), shift.reshape(1, -1)


# ---------------------------------------------------------------------------
# ResidualBlock forward (NCHW in/out like PyTorch; NHWC + lane padding inside)
# ---------------------------------------------------------------------------
def residual_block(x_nchw, p):
    N, Cin, H, W = x_nchw.shape
    Cout = p["w1"].shape[0]
    Cp = _round_up(Cout, 128)          # per-branch lane-dense channel padding
    Ccat = 2 * Cp                      # [shortcut | left-conv1] concat
    TN1 = 256                          # Ccat is always a multiple of 256
    TN2 = 256 if Cp % 256 == 0 else 128

    Wp = _round_up(W, 8)               # flat row width (sublane-aligned stride)
    Ho, Wo = H - 2, W - 2
    HW = Ho * Wp                       # identical flat layout for both stages
    rows = H * Wp + EXTRA

    # ---- input prep: NCHW -> NHWC, pad width to Wp, flatten rows (f32) ----
    x = jnp.transpose(x_nchw, (0, 2, 3, 1)).astype(jnp.float32)
    x = jnp.pad(x, ((0, 0), (0, 0), (0, Wp - W), (0, 0)))
    x_flat = jnp.pad(x.reshape(N, H * Wp, Cin), ((0, 0), (0, EXTRA), (0, 0)))

    # ---- fused weights: channels [0:Cp)=shortcut conv, [Cp:2Cp)=left conv1 ----
    ws_k = _pad_axis(_w_to_kcn(p["ws"]), 2, Cp)
    w1_k = _pad_axis(_w_to_kcn(p["w1"]), 2, Cp)
    w_cat = jnp.concatenate([ws_k, w1_k], axis=-1).astype(jnp.bfloat16)
    b_cat = jnp.concatenate([jnp.zeros((Cp,), jnp.float32),
                             _pad_axis(p["b1"], 0, Cp)])[None, :]
    g_cat = jnp.concatenate([_pad_axis(p["gs"], 0, Cp, 1.0),
                             _pad_axis(p["g1"], 0, Cp, 1.0)])
    be_cat = jnp.concatenate([_pad_axis(p["betas"], 0, Cp),
                              _pad_axis(p["beta1"], 0, Cp)])

    # ---- stage 1: (shortcut conv ‖ conv1) + bias + batch statistics ----
    y1, st1 = conv_stage1(x_flat, w_cat, b_cat, Wp=Wp, Wo=Wo, HW=HW, TN=TN1)
    count = float(N * Ho * Wo)
    sc1, sh1 = bn_scale_shift(st1, g_cat, be_cat, count)
    sc1_s, sh1_s = sc1[:, :Cp], sh1[:, :Cp]     # shortcut half (no ReLU)
    sc1_l, sh1_l = sc1[:, Cp:], sh1[:, Cp:]     # left half (ReLU fused below)

    # ---- stage 2: fused BN1+ReLU+pad -> conv2(pad=1) + batch statistics ----
    w2_k = _pad_axis(_pad_axis(_w_to_kcn(p["w2"]), 1, Cp), 2, Cp)
    w2_k = w2_k.astype(jnp.bfloat16)
    y2, st2 = conv_stage2(y1, sc1_l, sh1_l, w2_k, Wp=Wp, Wo=Wo, HW=HW,
                          Cp=Cp, TN=TN2)
    g2 = _pad_axis(p["g2"], 0, Cp, 1.0)
    be2 = _pad_axis(p["beta2"], 0, Cp)
    sc2, sh2 = bn_scale_shift(st2, g2, be2, count)

    # ---- stage 3: BN2 + BN_shortcut + residual add ----
    out_flat = final_apply(y2, sc2, sh2, y1, sc1_s, sh1_s, TN=TN2)
    out = out_flat.reshape(N, Ho, Wp, Cp)[:, :, :Wo, :Cout]
    return jnp.transpose(out, (0, 3, 1, 2))

    # TODO(synk): add a spatial-row grid axis (with halo) for very large
    # feature maps; current blocks hold one image's rows per grid step.


# ---------------------------------------------------------------------------
# Deterministic parameter init (shapes from ResidualBlock.__init__)
# ---------------------------------------------------------------------------
def init_params(key, in_c, out_c):
    ks = jax.random.split(key, 4)
    s1 = 1.0 / jnp.sqrt(in_c * 9.0)
    s2 = 1.0 / jnp.sqrt(out_c * 9.0)
    return dict(
        w1=jax.random.uniform(ks[0], (out_c, in_c, 3, 3), jnp.float32, -s1, s1),
        b1=jax.random.uniform(ks[1], (out_c,), jnp.float32, -s1, s1),
        g1=jnp.ones((out_c,), jnp.float32),
        beta1=jnp.zeros((out_c,), jnp.float32),
        w2=jax.random.uniform(ks[2], (out_c, out_c, 3, 3), jnp.float32, -s2, s2),
        g2=jnp.ones((out_c,), jnp.float32),
        beta2=jnp.zeros((out_c,), jnp.float32),
        ws=jax.random.uniform(ks[3], (out_c, in_c, 3, 3), jnp.float32, -s1, s1),
        gs=jnp.ones((out_c,), jnp.float32),
        betas=jnp.zeros((out_c,), jnp.float32),
    )


# ---------------------------------------------------------------------------
# Pure-JAX reference (f32) for the numerical sanity check
# ---------------------------------------------------------------------------
def _conv_bn_ref(x_nhwc, w, bias, gamma, beta, pad, relu, residual=None):
    x_nchw = jnp.transpose(x_nhwc, (0, 3, 1, 2))
    y = jax.lax.conv_general_dilated(
        x_nchw, w, (1, 1), [(pad, pad), (pad, pad)],
        dimension_numbers=("NCHW", "OIHW", "NCHW"))
    if bias is not None:
        y = y + bias[None, :, None, None]
    mean = jnp.mean(y, axis=(0, 2, 3), keepdims=True)
    var = jnp.mean(jnp.square(y - mean), axis=(0, 2, 3), keepdims=True)
    y = (y - mean) * jax.lax.rsqrt(var + EPS)
    y = y * gamma[None, :, None, None] + beta[None, :, None, None]
    if relu:
        y = jnp.maximum(y, 0.0)
    y = jnp.transpose(y, (0, 2, 3, 1))
    if residual is not None:
        y = y + residual
    return y


def residual_block_ref(x_nchw, p):
    # TODO(synk): shortcut=None (identity) cannot type-check against the
    # pad=0 conv1 output (H-2, W-2); as in the validated baseline we use
    # right = Conv2d(inC,outC,3,1,0,bias=False) + BN.
    x = jnp.transpose(x_nchw, (0, 2, 3, 1))
    h = _conv_bn_ref(x, p["w1"], p["b1"], p["g1"], p["beta1"], 0, True)
    r = _conv_bn_ref(x, p["ws"], None, p["gs"], p["betas"], 0, False)
    o = _conv_bn_ref(h, p["w2"], None, p["g2"], p["beta2"], 1, False, residual=r)
    return jnp.transpose(o, (0, 3, 1, 2))
    # TODO(synk): BatchNorm running_mean/var tracking (eval mode) is not
    # implemented — forward uses training-mode batch statistics only.


if __name__ == "__main__":
    key = jax.random.PRNGKey(0)
    kx_, kp_ = jax.random.split(key)

    N, Cin, Cout, H, W = 2, 4, 8, 16, 16
    x = jax.random.normal(kx_, (N, Cin, H, W), jnp.float32)   # NCHW like PyTorch
    params = init_params(kp_, Cin, Cout)

    out = jax.jit(residual_block)(x, params)
    out = jax.block_until_ready(out)
    assert out.shape == (N, Cout, H - 2, W - 2), out.shape

    ref = residual_block_ref(x, params)
    max_err = float(jnp.max(jnp.abs(out - ref)))
    # bf16 MXU inputs + bf16 intermediates -> slightly looser tolerance.
    assert jnp.allclose(out, ref, atol=4e-2, rtol=4e-2), max_err

    print("KERNEL_OK")
</pallas_src>

<mosaic_0001>
module attributes {stable_mosaic.version = 11 : i64} {
  func.func @kernel(%arg0: i32, %arg1: i32, %arg2: memref<1x264x4xf32, #tpu.memory_space<vmem>>, %arg3: memref<9x4x256xbf16, #tpu.memory_space<vmem>>, %arg4: memref<1x256xf32, #tpu.memory_space<vmem>>, %arg5: memref<1x224x256xbf16, #tpu.memory_space<vmem>>, %arg6: memref<1x2x256xf32, #tpu.memory_space<vmem>>) attributes {dimension_semantics = [#tpu.dimension_semantics<parallel>, #tpu.dimension_semantics<parallel>], iteration_bounds = array<i64: 1, 2>, scalar_prefetch = 0 : i64, scratch_operands = 0 : i64, tpu.core_type = #tpu.core_type<tc>, window_params = [{transform_indices = @transform_0, window_bounds = array<i64: 1, 264, 4>}, {transform_indices = @transform_1, window_bounds = array<i64: 9, 4, 256>}, {transform_indices = @transform_2, window_bounds = array<i64: 1, 256>}, {transform_indices = @transform_3, window_bounds = array<i64: 1, 224, 256>}, {transform_indices = @transform_4, window_bounds = array<i64: 1, 2, 256>}]} {
    %cst = arith.constant 0.000000e+00 : f32
    %0 = vector.broadcast %cst : f32 to vector<224x256xf32>
    %c0 = arith.constant 0 : index
    %c0_0 = arith.constant 0 : index
    %c0_1 = arith.constant 0 : index
    %1 = vector.load %arg2[%c0, %c0_0, %c0_1] : memref<1x264x4xf32, #tpu.memory_space<vmem>>, vector<1x224x4xf32>
    %2 = vector.shape_cast %1 : vector<1x224x4xf32> to vector<224x4xf32>
    %3 = arith.truncf %2 : vector<224x4xf32> to vector<224x4xbf16>
    %c0_2 = arith.constant 0 : index
    %c0_3 = arith.constant 0 : index
    %c0_4 = arith.constant 0 : index
    %4 = vector.load %arg3[%c0_2, %c0_3, %c0_4] : memref<9x4x256xbf16, #tpu.memory_space<vmem>>, vector<1x4x256xbf16>
    %5 = vector.shape_cast %4 : vector<1x4x256xbf16> to vector<4x256xbf16>
    %cst_5 = arith.constant dense<0.000000e+00> : vector<224x256xf32>
    %6 = tpu.matmul %3, %5, %cst_5 {dimension_numbers = #tpu.dot_dimension_numbers<[1], [0], [0], [1], [0, 0, 1, 1], [], []>} : vector<224x4xbf16>, vector<4x256xbf16>, vector<224x256xf32> -> vector<224x256xf32>
    %7 = arith.addf %0, %6 : vector<224x256xf32>
    %c0_6 = arith.constant 0 : index
    %c1 = arith.constant 1 : index
    %c0_7 = arith.constant 0 : index
    %8 = vector.load %arg2[%c0_6, %c1, %c0_7] : memref<1x264x4xf32, #tpu.memory_space<vmem>>, vector<1x224x4xf32>
    %9 = vector.shape_cast %8 : vector<1x224x4xf32> to vector<224x4xf32>
    %10 = arith.truncf %9 : vector<224x4xf32> to vector<224x4xbf16>
    %c1_8 = arith.constant 1 : index
    %c0_9 = arith.constant 0 : index
    %c0_10 = arith.constant 0 : index
    %11 = vector.load %arg3[%c1_8, %c0_9, %c0_10] : memref<9x4x256xbf16, #tpu.memory_space<vmem>>, vector<1x4x256xbf16>
    %12 = vector.shape_cast %11 : vector<1x4x256xbf16> to vector<4x256xbf16>
    %cst_11 = arith.constant dense<0.000000e+00> : vector<224x256xf32>
    %13 = tpu.matmul %10, %12, %cst_11 {dimension_numbers = #tpu.dot_dimension_numbers<[1], [0], [0], [1], [0, 0, 1, 1], [], []>} : vector<224x4xbf16>, vector<4x256xbf16>, vector<224x256xf32> -> vector<224x256xf32>
    %14 = arith.addf %7, %13 : vector<224x256xf32>
    %c0_12 = arith.constant 0 : index
    %c2 = arith.constant 2 : index
    %c0_13 = arith.constant 0 : index
    %15 = vector.load %arg2[%c0_12, %c2, %c0_13] : memref<1x264x4xf32, #tpu.memory_space<vmem>>, vector<1x224x4xf32>
    %16 = vector.shape_cast %15 : vector<1x224x4xf32> to vector<224x4xf32>
    %17 = arith.truncf %16 : vector<224x4xf32> to vector<224x4xbf16>
    %c2_14 = arith.constant 2 : index
    %c0_15 = arith.constant 0 : index
    %c0_16 = arith.constant 0 : index
    %18 = vector.load %arg3[%c2_14, %c0_15, %c0_16] : memref<9x4x256xbf16, #tpu.memory_space<vmem>>, vector<1x4x256xbf16>
    %19 = vector.shape_cast %18 : vector<1x4x256xbf16> to vector<4x256xbf16>
    %cst_17 = arith.constant dense<0.000000e+00> : vector<224x256xf32>
    %20 = tpu.matmul %17, %19, %cst_17 {dimension_numbers = #tpu.dot_dimension_numbers<[1], [0], [0], [1], [0, 0, 1, 1], [], []>} : vector<224x4xbf16>, vector<4x256xbf16>, vector<224x256xf32> -> vector<224x256xf32>
    %21 = arith.addf %14, %20 : vector<224x256xf32>
    %c0_18 = arith.constant 0 : index
    %c16 = arith.constant 16 : index
    %c0_19 = arith.constant 0 : index
    %22 = vector.load %arg2[%c0_18, %c16, %c0_19] : memref<1x264x4xf32, #tpu.memory_space<vmem>>, vector<1x224x4xf32>
    %23 = vector.shape_cast %22 : vector<1x224x4xf32> to vector<224x4xf32>
    %24 = arith.truncf %23 : vector<224x4xf32> to vector<224x4xbf16>
    %c3 = arith.constant 3 : index
    %c0_20 = arith.constant 0 : index
    %c0_21 = arith.constant 0 : index
    %25 = vector.load %arg3[%c3, %c0_20, %c0_21] : memref<9x4x256xbf16, #tpu.memory_space<vmem>>, vector<1x4x256xbf16>
    %26 = vector.shape_cast %25 : vector<1x4x256xbf16> to vector<4x256xbf16>
    %cst_22 = arith.constant dense<0.000000e+00> : vector<224x256xf32>
    %27 = tpu.matmul %24, %26, %cst_22 {dimension_numbers = #tpu.dot_dimension_numbers<[1], [0], [0], [1], [0, 0, 1, 1], [], []>} : vector<224x4xbf16>, vector<4x256xbf16>, vector<224x256xf32> -> vector<224x256xf32>
    %28 = arith.addf %21, %27 : vector<224x256xf32>
    %c0_23 = arith.constant 0 : index
    %c17 = arith.constant 17 : index
    %c0_24 = arith.constant 0 : index
    %29 = vector.load %arg2[%c0_23, %c17, %c0_24] : memref<1x264x4xf32, #tpu.memory_space<vmem>>, vector<1x224x4xf32>
    %30 = vector.shape_cast %29 : vector<1x224x4xf32> to vector<224x4xf32>
    %31 = arith.truncf %30 : vector<224x4xf32> to vector<224x4xbf16>
    %c4 = arith.constant 4 : index
    %c0_25 = arith.constant 0 : index
    %c0_26 = arith.constant 0 : index
    %32 = vector.load %arg3[%c4, %c0_25, %c0_26] : memref<9x4x256xbf16, #tpu.memory_space<vmem>>, vector<1x4x256xbf16>
    %33 = vector.shape_cast %32 : vector<1x4x256xbf16> to vector<4x256xbf16>
    %cst_27 = arith.constant dense<0.000000e+00> : vector<224x256xf32>
    %34 = tpu.matmul %31, %33, %cst_27 {dimension_numbers = #tpu.dot_dimension_numbers<[1], [0], [0], [1], [0, 0, 1, 1], [], []>} : vector<224x4xbf16>, vector<4x256xbf16>, vector<224x256xf32> -> vector<224x256xf32>
    %35 = arith.addf %28, %34 : vector<224x256xf32>
    %c0_28 = arith.constant 0 : index
    %c18 = arith.constant 18 : index
    %c0_29 = arith.constant 0 : index
    %36 = vector.load %arg2[%c0_28, %c18, %c0_29] : memref<1x264x4xf32, #tpu.memory_space<vmem>>, vector<1x224x4xf32>
    %37 = vector.shape_cast %36 : vector<1x224x4xf32> to vector<224x4xf32>
    %38 = arith.truncf %37 : vector<224x4xf32> to vector<224x4xbf16>
    %c5 = arith.constant 5 : index
    %c0_30 = arith.constant 0 : index
    %c0_31 = arith.constant 0 : index
    %39 = vector.load %arg3[%c5, %c0_30, %c0_31] : memref<9x4x256xbf16, #tpu.memory_space<vmem>>, vector<1x4x256xbf16>
    %40 = vector.shape_cast %39 : vector<1x4x256xbf16> to vector<4x256xbf16>
    %cst_32 = arith.constant dense<0.000000e+00> : vector<224x256xf32>
    %41 = tpu.matmul %38, %40, %cst_32 {dimension_numbers = #tpu.dot_dimension_numbers<[1], [0], [0], [1], [0, 0, 1, 1], [], []>} : vector<224x4xbf16>, vector<4x256xbf16>, vector<224x256xf32> -> vector<224x256xf32>
    %42 = arith.addf %35, %41 : vector<224x256xf32>
    %c0_33 = arith.constant 0 : index
    %c32 = arith.constant 32 : index
    %c0_34 = arith.constant 0 : index
    %43 = vector.load %arg2[%c0_33, %c32, %c0_34] : memref<1x264x4xf32, #tpu.memory_space<vmem>>, vector<1x224x4xf32>
    %44 = vector.shape_cast %43 : vector<1x224x4xf32> to vector<224x4xf32>
    %45 = arith.truncf %44 : vector<224x4xf32> to vector<224x4xbf16>
    %c6 = arith.constant 6 : index
    %c0_35 = arith.constant 0 : index
    %c0_36 = arith.constant 0 : index
    %46 = vector.load %arg3[%c6, %c0_35, %c0_36] : memref<9x4x256xbf16, #tpu.memory_space<vmem>>, vector<1x4x256xbf16>
    %47 = vector.shape_cast %46 : vector<1x4x256xbf16> to vector<4x256xbf16>
    %cst_37 = arith.constant dense<0.000000e+00> : vector<224x256xf32>
    %48 = tpu.matmul %45, %47, %cst_37 {dimension_numbers = #tpu.dot_dimension_numbers<[1], [0], [0], [1], [0, 0, 1, 1], [], []>} : vector<224x4xbf16>, vector<4x256xbf16>, vector<224x256xf32> -> vector<224x256xf32>
    %49 = arith.addf %42, %48 : vector<224x256xf32>
    %c0_38 = arith.constant 0 : index
    %c33 = arith.constant 33 : index
    %c0_39 = arith.constant 0 : index
    %50 = vector.load %arg2[%c0_38, %c33, %c0_39] : memref<1x264x4xf32, #tpu.memory_space<vmem>>, vector<1x224x4xf32>
    %51 = vector.shape_cast %50 : vector<1x224x4xf32> to vector<224x4xf32>
    %52 = arith.truncf %51 : vector<224x4xf32> to vector<224x4xbf16>
    %c7 = arith.constant 7 : index
    %c0_40 = arith.constant 0 : index
    %c0_41 = arith.constant 0 : index
    %53 = vector.load %arg3[%c7, %c0_40, %c0_41] : memref<9x4x256xbf16, #tpu.memory_space<vmem>>, vector<1x4x256xbf16>
    %54 = vector.shape_cast %53 : vector<1x4x256xbf16> to vector<4x256xbf16>
    %cst_42 = arith.constant dense<0.000000e+00> : vector<224x256xf32>
    %55 = tpu.matmul %52, %54, %cst_42 {dimension_numbers = #tpu.dot_dimension_numbers<[1], [0], [0], [1], [0, 0, 1, 1], [], []>} : vector<224x4xbf16>, vector<4x256xbf16>, vector<224x256xf32> -> vector<224x256xf32>
    %56 = arith.addf %49, %55 : vector<224x256xf32>
    %c0_43 = arith.constant 0 : index
    %c34 = arith.constant 34 : index
    %c0_44 = arith.constant 0 : index
    %57 = vector.load %arg2[%c0_43, %c34, %c0_44] : memref<1x264x4xf32, #tpu.memory_space<vmem>>, vector<1x224x4xf32>
    %58 = vector.shape_cast %57 : vector<1x224x4xf32> to vector<224x4xf32>
    %59 = arith.truncf %58 : vector<224x4xf32> to vector<224x4xbf16>
    %c8 = arith.constant 8 : index
    %c0_45 = arith.constant 0 : index
    %c0_46 = arith.constant 0 : index
    %60 = vector.load %arg3[%c8, %c0_45, %c0_46] : memref<9x4x256xbf16, #tpu.memory_space<vmem>>, vector<1x4x256xbf16>
    %61 = vector.shape_cast %60 : vector<1x4x256xbf16> to vector<4x256xbf16>
    %cst_47 = arith.constant dense<0.000000e+00> : vector<224x256xf32>
    %62 = tpu.matmul %59, %61, %cst_47 {dimension_numbers = #tpu.dot_dimension_numbers<[1], [0], [0], [1], [0, 0, 1, 1], [], []>} : vector<224x4xbf16>, vector<4x256xbf16>, vector<224x256xf32> -> vector<224x256xf32>
    %63 = arith.addf %56, %62 : vector<224x256xf32>
    %c0_48 = arith.constant 0 : index
    %c0_49 = arith.constant 0 : index
    %64 = vector.load %arg4[%c0_48, %c0_49] : memref<1x256xf32, #tpu.memory_space<vmem>>, vector<1x256xf32>
    %65 = vector.broadcast %64 : vector<1x256xf32> to vector<224x256xf32>
    %66 = arith.addf %63, %65 : vector<224x256xf32>
    %67 = arith.truncf %66 : vector<224x256xf32> to vector<224x256xbf16>
    %c0_50 = arith.constant 0 : index
    %c0_51 = arith.constant 0 : index
    %c0_52 = arith.constant 0 : index
    %68 = vector.load %arg5[%c0_50, %c0_51, %c0_52] : memref<1x224x256xbf16, #tpu.memory_space<vmem>>, vector<1x224x256xbf16>
    %69 = vector.shape_cast %68 : vector<1x224x256xbf16> to vector<224x256xbf16>
    %70 = vector.shape_cast %67 : vector<224x256xbf16> to vector<1x224x256xbf16>
    tpu.vector_store %arg5[%c0_50, %c0_51, %c0_52], %70 {strides = array<i32>} : memref<1x224x256xbf16, #tpu.memory_space<vmem>>, vector<1x224x256xbf16>,
    %71 = tpu.iota {dimensions = array<i32: 0>} : vector<224x1xi32>
    %c16_i32 = arith.constant 16 : i32
    %c0_i32 = arith.constant 0 : i32
    %72 = arith.cmpi eq, %c16_i32, %c0_i32 : i32
    %c1_i32 = arith.constant 1 : i32
    %73 = arith.select %72, %c1_i32, %c16_i32 : i32
    %74 = vector.broadcast %73 : i32 to vector<224x1xi32>
    %75 = arith.remsi %71, %74 : vector<224x1xi32>
    %c0_i32_53 = arith.constant 0 : i32
    %76 = vector.broadcast %c0_i32_53 : i32 to vector<224x1xi32>
    %77 = arith.cmpi ne, %75, %76 : vector<224x1xi32>
    %c0_i32_54 = arith.constant 0 : i32
    %78 = vector.broadcast %c0_i32_54 : i32 to vector<224x1xi32>
    %79 = arith.cmpi slt, %75, %78 : vector<224x1xi32>
    %c0_i32_55 = arith.constant 0 : i32
    %80 = arith.cmpi slt, %73, %c0_i32_55 : i32
    %81 = vector.broadcast %80 : i1 to vector<224x1xi1>
    %82 = vector.broadcast %81 : vector<224x1xi1> to vector<224x1xi1>
    %83 = arith.xori %79, %82 : vector<224x1xi1>
    %84 = arith.andi %83, %77 : vector<224x1xi1>
    %85 = vector.broadcast %73 : i32 to vector<224x1xi32>
    %86 = arith.addi %75, %85 : vector<224x1xi32>
    %87 = arith.select %84, %86, %75 : vector<224x1xi1>, vector<224x1xi32>
    %c14_i32 = arith.constant 14 : i32
    %88 = vector.broadcast %c14_i32 : i32 to vector<224x1xi32>
    %89 = arith.cmpi slt, %87, %88 : vector<224x1xi32>
    %cst_56 = arith.constant 0.000000e+00 : f32
    %90 = vector.shape_cast %89 : vector<224x1xi1> to vector<224x1xi1>
    %91 = vector.broadcast %90 : vector<224x1xi1> to vector<224x256xi1>
    %92 = vector.broadcast %cst_56 : f32 to vector<224x256xf32>
    %93 = arith.select %91, %66, %92 : vector<224x256xi1>, vector<224x256xf32>
    %cst_57 = arith.constant dense<0.000000e+00> : vector<256xf32>
    %94 = vector.multi_reduction <add>, %93, %cst_57 [0] : vector<224x256xf32> to vector<256xf32>
    %95 = vector.shape_cast %94 : vector<256xf32> to vector<1x256xf32>
    %c0_58 = arith.constant 0 : index
    %c0_59 = arith.constant 0 : index
    %c0_60 = arith.constant 0 : index
    %96 = vector.load %arg6[%c0_58, %c0_59, %c0_60] : memref<1x2x256xf32, #tpu.memory_space<vmem>>, vector<1x1x256xf32>
    %97 = vector.shape_cast %96 : vector<1x1x256xf32> to vector<1x256xf32>
    %98 = vector.shape_cast %95 : vector<1x256xf32> to vector<1x1x256xf32>
    tpu.vector_store %arg6[%c0_58, %c0_59, %c0_60], %98 {strides = array<i32>} : memref<1x2x256xf32, #tpu.memory_space<vmem>>, vector<1x1x256xf32>,
    %99 = arith.mulf %93, %93 : vector<224x256xf32>
    %cst_61 = arith.constant dense<0.000000e+00> : vector<256xf32>
    %100 = vector.multi_reduction <add>, %99, %cst_61 [0] : vector<224x256xf32> to vector<256xf32>
    %101 = vector.shape_cast %100 : vector<256xf32> to vector<1x256xf32>
    %c0_62 = arith.constant 0 : index
    %c1_63 = arith.constant 1 : index
    %c0_64 = arith.constant 0 : index
    %102 = vector.load %arg6[%c0_62, %c1_63, %c0_64] : memref<1x2x256xf32, #tpu.memory_space<vmem>>, vector<1x1x256xf32>
    %103 = vector.shape_cast %102 : vector<1x1x256xf32> to vector<1x256xf32>
    %104 = vector.shape_cast %101 : vector<1x256xf32> to vector<1x1x256xf32>
    tpu.vector_store %arg6[%c0_62, %c1_63, %c0_64], %104 {strides = array<i32>} : memref<1x2x256xf32, #tpu.memory_space<vmem>>, vector<1x1x256xf32>,
    return
  }
  func.func @transform_0(%arg0: i32, %arg1: i32) -> (i32, i32, i32) {
    %c0_i32 = arith.constant 0 : i32
    %c0_i32_0 = arith.constant 0 : i32
    %c0_i32_1 = arith.constant 0 : i32
    return %arg1, %c0_i32, %c0_i32_0 : i32, i32, i32
  }
  func.func @transform_1(%arg0: i32, %arg1: i32) -> (i32, i32, i32) {
    %c0_i32 = arith.constant 0 : i32
    %c0_i32_0 = arith.constant 0 : i32
    %c0_i32_1 = arith.constant 0 : i32
    return %c0_i32, %c0_i32_0, %arg0 : i32, i32, i32
  }
  func.func @transform_2(%arg0: i32, %arg1: i32) -> (i32, i32) {
    %c0_i32 = arith.constant 0 : i32
    %c0_i32_0 = arith.constant 0 : i32
    return %c0_i32, %arg0 : i32, i32
  }
  func.func @transform_3(%arg0: i32, %arg1: i32) -> (i32, i32, i32) {
    %c0_i32 = arith.constant 0 : i32
    %c0_i32_0 = arith.constant 0 : i32
    return %arg1, %c0_i32, %arg0 : i32, i32, i32
  }
  func.func @transform_4(%arg0: i32, %arg1: i32) -> (i32, i32, i32) {
    %c0_i32 = arith.constant 0 : i32
    %c0_i32_0 = arith.constant 0 : i32
    return %arg1, %c0_i32, %arg0 : i32, i32, i32
  }
}

module attributes {stable_mosaic.version = 11 : i64} {
  func.func @kernel(%arg0: i32, %arg1: i32, %arg2: memref<1x224x128xbf16, #tpu.memory_space<vmem>>, %arg3: memref<1x128xf32, #tpu.memory_space<vmem>>, %arg4: memref<1x128xf32, #tpu.memory_space<vmem>>, %arg5: memref<9x128x128xbf16, #tpu.memory_space<vmem>>, %arg6: memref<1x224x128xbf16, #tpu.memory_space<vmem>>, %arg7: memref<1x2x128xf32, #tpu.memory_space<vmem>>, %arg8: memref<272x128xf32, #tpu.memory_space<vmem>>) attributes {dimension_semantics = [#tpu.dimension_semantics<parallel>, #tpu.dimension_semantics<parallel>], iteration_bounds = array<i64: 1, 2>, scalar_prefetch = 0 : i64, scratch_operands = 1 : i64, tpu.core_type = #tpu.core_type<tc>, window_params = [{transform_indices = @transform_0, window_bounds = array<i64: 1, 224, 128>}, {pipeline_mode = #tpu.pipeline_mode<synchronous>, transform_indices = @transform_1, window_bounds = array<i64: 1, 128>}, {pipeline_mode = #tpu.pipeline_mode<synchronous>, transform_indices = @transform_2, window_bounds = array<i64: 1, 128>}, {transform_indices = @transform_3, window_bounds = array<i64: 9, 128, 128>}, {transform_indices = @transform_4, window_bounds = array<i64: 1, 224, 128>}, {transform_indices = @transform_5, window_bounds = array<i64: 1, 2, 128>}]} {
    %0 = tpu.iota {dimensions = array<i32: 0>} : vector<224x1xi32>
    %c16_i32 = arith.constant 16 : i32
    %c0_i32 = arith.constant 0 : i32
    %1 = arith.cmpi eq, %c16_i32, %c0_i32 : i32
    %c1_i32 = arith.constant 1 : i32
    %2 = arith.select %1, %c1_i32, %c16_i32 : i32
    %3 = vector.broadcast %2 : i32 to vector<224x1xi32>
    %4 = arith.remsi %0, %3 : vector<224x1xi32>
    %c0_i32_0 = arith.constant 0 : i32
    %5 = vector.broadcast %c0_i32_0 : i32 to vector<224x1xi32>
    %6 = arith.cmpi ne, %4, %5 : vector<224x1xi32>
    %c0_i32_1 = arith.constant 0 : i32
    %7 = vector.broadcast %c0_i32_1 : i32 to vector<224x1xi32>
    %8 = arith.cmpi slt, %4, %7 : vector<224x1xi32>
    %c0_i32_2 = arith.constant 0 : i32
    %9 = arith.cmpi slt, %2, %c0_i32_2 : i32
    %10 = vector.broadcast %9 : i1 to vector<224x1xi1>
    %11 = vector.broadcast %10 : vector<224x1xi1> to vector<224x1xi1>
    %12 = arith.xori %8, %11 : vector<224x1xi1>
    %13 = arith.andi %12, %6 : vector<224x1xi1>
    %14 = vector.broadcast %2 : i32 to vector<224x1xi32>
    %15 = arith.addi %4, %14 : vector<224x1xi32>
    %16 = arith.select %13, %15, %4 : vector<224x1xi1>, vector<224x1xi32>
    %c14_i32 = arith.constant 14 : i32
    %17 = vector.broadcast %c14_i32 : i32 to vector<224x1xi32>
    %18 = arith.cmpi slt, %16, %17 : vector<224x1xi32>
    %c0 = arith.constant 0 : index
    %c0_3 = arith.constant 0 : index
    %c0_4 = arith.constant 0 : index
    %19 = vector.load %arg2[%c0, %c0_3, %c0_4] : memref<1x224x128xbf16, #tpu.memory_space<vmem>>, vector<1x224x128xbf16>
    %20 = vector.shape_cast %19 : vector<1x224x128xbf16> to vector<224x128xbf16>
    %21 = arith.extf %20 : vector<224x128xbf16> to vector<224x128xf32>
    %c0_5 = arith.constant 0 : index
    %c0_6 = arith.constant 0 : index
    %22 = vector.load %arg3[%c0_5, %c0_6] : memref<1x128xf32, #tpu.memory_space<vmem>>, vector<1x128xf32>
    %23 = vector.broadcast %22 : vector<1x128xf32> to vector<224x128xf32>
    %24 = arith.mulf %21, %23 : vector<224x128xf32>
    %c0_7 = arith.constant 0 : index
    %c0_8 = arith.constant 0 : index
    %25 = vector.load %arg4[%c0_7, %c0_8] : memref<1x128xf32, #tpu.memory_space<vmem>>, vector<1x128xf32>
    %26 = vector.broadcast %25 : vector<1x128xf32> to vector<224x128xf32>
    %27 = arith.addf %24, %26 : vector<224x128xf32>
    %cst = arith.constant 0.000000e+00 : f32
    %28 = vector.broadcast %cst : f32 to vector<224x128xf32>
    %29 = arith.maximumf %27, %28 : vector<224x128xf32>
    %cst_9 = arith.constant 0.000000e+00 : f32
    %30 = vector.shape_cast %18 : vector<224x1xi1> to vector<224x1xi1>
    %31 = vector.broadcast %30 : vector<224x1xi1> to vector<224x128xi1>
    %32 = vector.broadcast %cst_9 : f32 to vector<224x128xf32>
    %33 = arith.select %31, %29, %32 : vector<224x128xi1>, vector<224x128xf32>
    %cst_10 = arith.constant 0.000000e+00 : f32
    %34 = vector.broadcast %cst_10 : f32 to vector<24x128xf32>
    %c0_11 = arith.constant 0 : index
    %c0_12 = arith.constant 0 : index
    %35 = vector.load %arg8[%c0_11, %c0_12] : memref<272x128xf32, #tpu.memory_space<vmem>>, vector<24x128xf32>
    tpu.vector_store %arg8[%c0_11, %c0_12], %34 {strides = array<i32>} : memref<272x128xf32, #tpu.memory_space<vmem>>, vector<24x128xf32>,
    %c24 = arith.constant 24 : index
    %c0_13 = arith.constant 0 : index
    %36 = vector.load %arg8[%c24, %c0_13] : memref<272x128xf32, #tpu.memory_space<vmem>>, vector<224x128xf32>
    tpu.vector_store %arg8[%c24, %c0_13], %33 {strides = array<i32>} : memref<272x128xf32, #tpu.memory_space<vmem>>, vector<224x128xf32>,
    %cst_14 = arith.constant 0.000000e+00 : f32
    %37 = vector.broadcast %cst_14 : f32 to vector<24x128xf32>
    %c248 = arith.constant 248 : index
    %c0_15 = arith.constant 0 : index
    %38 = vector.load %arg8[%c248, %c0_15] : memref<272x128xf32, #tpu.memory_space<vmem>>, vector<24x128xf32>
    tpu.vector_store %arg8[%c248, %c0_15], %37 {strides = array<i32>} : memref<272x128xf32, #tpu.memory_space<vmem>>, vector<24x128xf32>,
    %cst_16 = arith.constant 0.000000e+00 : f32
    %39 = vector.broadcast %cst_16 : f32 to vector<224x128xf32>
    %c7 = arith.constant 7 : index
    %c0_17 = arith.constant 0 : index
    %40 = vector.load %arg8[%c7, %c0_17] : memref<272x128xf32, #tpu.memory_space<vmem>>, vector<224x128xf32>
    %41 = arith.truncf %40 : vector<224x128xf32> to vector<224x128xbf16>
    %c0_18 = arith.constant 0 : index
    %c0_19 = arith.constant 0 : index
    %c0_20 = arith.constant 0 : index
    %42 = vector.load %arg5[%c0_18, %c0_19, %c0_20] : memref<9x128x128xbf16, #tpu.memory_space<vmem>>, vector<1x128x128xbf16>
    %43 = vector.shape_cast %42 : vector<1x128x128xbf16> to vector<128x128xbf16>
    %cst_21 = arith.constant dense<0.000000e+00> : vector<224x128xf32>
    %44 = tpu.matmul %41, %43, %cst_21 {dimension_numbers = #tpu.dot_dimension_numbers<[1], [0], [0], [1], [0, 0, 1, 1], [], []>} : vector<224x128xbf16>, vector<128x128xbf16>, vector<224x128xf32> -> vector<224x128xf32>
    %45 = arith.addf %39, %44 : vector<224x128xf32>
    %c8 = arith.constant 8 : index
    %c0_22 = arith.constant 0 : index
    %46 = vector.load %arg8[%c8, %c0_22] : memref<272x128xf32, #tpu.memory_space<vmem>>, vector<224x128xf32>
    %47 = arith.truncf %46 : vector<224x128xf32> to vector<224x128xbf16>
    %c1 = arith.constant 1 : index
    %c0_23 = arith.constant 0 : index
    %c0_24 = arith.constant 0 : index
    %48 = vector.load %arg5[%c1, %c0_23, %c0_24] : memref<9x128x128xbf16, #tpu.memory_space<vmem>>, vector<1x128x128xbf16>
    %49 = vector.shape_cast %48 : vector<1x128x128xbf16> to vector<128x128xbf16>
    %cst_25 = arith.constant dense<0.000000e+00> : vector<224x128xf32>
    %50 = tpu.matmul %47, %49, %cst_25 {dimension_numbers = #tpu.dot_dimension_numbers<[1], [0], [0], [1], [0, 0, 1, 1], [], []>} : vector<224x128xbf16>, vector<128x128xbf16>, vector<224x128xf32> -> vector<224x128xf32>
    %51 = arith.addf %45, %50 : vector<224x128xf32>
    %c9 = arith.constant 9 : index
    %c0_26 = arith.constant 0 : index
    %52 = vector.load %arg8[%c9, %c0_26] : memref<272x128xf32, #tpu.memory_space<vmem>>, vector<224x128xf32>
    %53 = arith.truncf %52 : vector<224x128xf32> to vector<224x128xbf16>
    %c2 = arith.constant 2 : index
    %c0_27 = arith.constant 0 : index
    %c0_28 = arith.constant 0 : index
    %54 = vector.load %arg5[%c2, %c0_27, %c0_28] : memref<9x128x128xbf16, #tpu.memory_space<vmem>>, vector<1x128x128xbf16>
    %55 = vector.shape_cast %54 : vector<1x128x128xbf16> to vector<128x128xbf16>
    %cst_29 = arith.constant dense<0.000000e+00> : vector<224x128xf32>
    %56 = tpu.matmul %53, %55, %cst_29 {dimension_numbers = #tpu.dot_dimension_numbers<[1], [0], [0], [1], [0, 0, 1, 1], [], []>} : vector<224x128xbf16>, vector<128x128xbf16>, vector<224x128xf32> -> vector<224x128xf32>
    %57 = arith.addf %51, %56 : vector<224x128xf32>
    %c23 = arith.constant 23 : index
    %c0_30 = arith.constant 0 : index
    %58 = vector.load %arg8[%c23, %c0_30] : memref<272x128xf32, #tpu.memory_space<vmem>>, vector<224x128xf32>
    %59 = arith.truncf %58 : vector<224x128xf32> to vector<224x128xbf16>
    %c3 = arith.constant 3 : index
    %c0_31 = arith.constant 0 : index
    %c0_32 = arith.constant 0 : index
    %60 = vector.load %arg5[%c3, %c0_31, %c0_32] : memref<9x128x128xbf16, #tpu.memory_space<vmem>>, vector<1x128x128xbf16>
    %61 = vector.shape_cast %60 : vector<1x128x128xbf16> to vector<128x128xbf16>
    %cst_33 = arith.constant dense<0.000000e+00> : vector<224x128xf32>
    %62 = tpu.matmul %59, %61, %cst_33 {dimension_numbers = #tpu.dot_dimension_numbers<[1], [0], [0], [1], [0, 0, 1, 1], [], []>} : vector<224x128xbf16>, vector<128x128xbf16>, vector<224x128xf32> -> vector<224x128xf32>
    %63 = arith.addf %57, %62 : vector<224x128xf32>
    %c24_34 = arith.constant 24 : index
    %c0_35 = arith.constant 0 : index
    %64 = vector.load %arg8[%c24_34, %c0_35] : memref<272x128xf32, #tpu.memory_space<vmem>>, vector<224x128xf32>
    %65 = arith.truncf %64 : vector<224x128xf32> to vector<224x128xbf16>
    %c4 = arith.constant 4 : index
    %c0_36 = arith.constant 0 : index
    %c0_37 = arith.constant 0 : index
    %66 = vector.load %arg5[%c4, %c0_36, %c0_37] : memref<9x128x128xbf16, #tpu.memory_space<vmem>>, vector<1x128x128xbf16>
    %67 = vector.shape_cast %66 : vector<1x128x128xbf16> to vector<128x128xbf16>
    %cst_38 = arith.constant dense<0.000000e+00> : vector<224x128xf32>
    %68 = tpu.matmul %65, %67, %cst_38 {dimension_numbers = #tpu.dot_dimension_numbers<[1], [0], [0], [1], [0, 0, 1, 1], [], []>} : vector<224x128xbf16>, vector<128x128xbf16>, vector<224x128xf32> -> vector<224x128xf32>
    %69 = arith.addf %63, %68 : vector<224x128xf32>
    %c25 = arith.constant 25 : index
    %c0_39 = arith.constant 0 : index
    %70 = vector.load %arg8[%c25, %c0_39] : memref<272x128xf32, #tpu.memory_space<vmem>>, vector<224x128xf32>
    %71 = arith.truncf %70 : vector<224x128xf32> to vector<224x128xbf16>
    %c5 = arith.constant 5 : index
    %c0_40 = arith.constant 0 : index
    %c0_41 = arith.constant 0 : index
    %72 = vector.load %arg5[%c5, %c0_40, %c0_41] : memref<9x128x128xbf16, #tpu.memory_space<vmem>>, vector<1x128x128xbf16>
    %73 = vector.shape_cast %72 : vector<1x128x128xbf16> to vector<128x128xbf16>
    %cst_42 = arith.constant dense<0.000000e+00> : vector<224x128xf32>
    %74 = tpu.matmul %71, %73, %cst_42 {dimension_numbers = #tpu.dot_dimension_numbers<[1], [0], [0], [1], [0, 0, 1, 1], [], []>} : vector<224x128xbf16>, vector<128x128xbf16>, vector<224x128xf32> -> vector<224x128xf32>
    %75 = arith.addf %69, %74 : vector<224x128xf32>
    %c39 = arith.constant 39 : index
    %c0_43 = arith.constant 0 : index
    %76 = vector.load %arg8[%c39, %c0_43] : memref<272x128xf32, #tpu.memory_space<vmem>>, vector<224x128xf32>
    %77 = arith.truncf %76 : vector<224x128xf32> to vector<224x128xbf16>
    %c6 = arith.constant 6 : index
    %c0_44 = arith.constant 0 : index
    %c0_45 = arith.constant 0 : index
    %78 = vector.load %arg5[%c6, %c0_44, %c0_45] : memref<9x128x128xbf16, #tpu.memory_space<vmem>>, vector<1x128x128xbf16>
    %79 = vector.shape_cast %78 : vector<1x128x128xbf16> to vector<128x128xbf16>
    %cst_46 = arith.constant dense<0.000000e+00> : vector<224x128xf32>
    %80 = tpu.matmul %77, %79, %cst_46 {dimension_numbers = #tpu.dot_dimension_numbers<[1], [0], [0], [1], [0, 0, 1, 1], [], []>} : vector<224x128xbf16>, vector<128x128xbf16>, vector<224x128xf32> -> vector<224x128xf32>
    %81 = arith.addf %75, %80 : vector<224x128xf32>
    %c40 = arith.constant 40 : index
    %c0_47 = arith.constant 0 : index
    %82 = vector.load %arg8[%c40, %c0_47] : memref<272x128xf32, #tpu.memory_space<vmem>>, vector<224x128xf32>
    %83 = arith.truncf %82 : vector<224x128xf32> to vector<224x128xbf16>
    %c7_48 = arith.constant 7 : index
    %c0_49 = arith.constant 0 : index
    %c0_50 = arith.constant 0 : index
    %84 = vector.load %arg5[%c7_48, %c0_49, %c0_50] : memref<9x128x128xbf16, #tpu.memory_space<vmem>>, vector<1x128x128xbf16>
    %85 = vector.shape_cast %84 : vector<1x128x128xbf16> to vector<128x128xbf16>
    %cst_51 = arith.constant dense<0.000000e+00> : vector<224x128xf32>
    %86 = tpu.matmul %83, %85, %cst_51 {dimension_numbers = #tpu.dot_dimension_numbers<[1], [0], [0], [1], [0, 0, 1, 1], [], []>} : vector<224x128xbf16>, vector<128x128xbf16>, vector<224x128xf32> -> vector<224x128xf32>
    %87 = arith.addf %81, %86 : vector<224x128xf32>
    %c41 = arith.constant 41 : index
    %c0_52 = arith.constant 0 : index
    %88 = vector.load %arg8[%c41, %c0_52] : memref<272x128xf32, #tpu.memory_space<vmem>>, vector<224x128xf32>
    %89 = arith.truncf %88 : vector<224x128xf32> to vector<224x128xbf16>
    %c8_53 = arith.constant 8 : index
    %c0_54 = arith.constant 0 : index
    %c0_55 = arith.constant 0 : index
    %90 = vector.load %arg5[%c8_53, %c0_54, %c0_55] : memref<9x128x128xbf16, #tpu.memory_space<vmem>>, vector<1x128x128xbf16>
    %91 = vector.shape_cast %90 : vector<1x128x128xbf16> to vector<128x128xbf16>
    %cst_56 = arith.constant dense<0.000000e+00> : vector<224x128xf32>
    %92 = tpu.matmul %89, %91, %cst_56 {dimension_numbers = #tpu.dot_dimension_numbers<[1], [0], [0], [1], [0, 0, 1, 1], [], []>} : vector<224x128xbf16>, vector<128x128xbf16>, vector<224x128xf32> -> vector<224x128xf32>
    %93 = arith.addf %87, %92 : vector<224x128xf32>
    %94 = arith.truncf %93 : vector<224x128xf32> to vector<224x128xbf16>
    %c0_57 = arith.constant 0 : index
    %c0_58 = arith.constant 0 : index
    %c0_59 = arith.constant 0 : index
    %95 = vector.load %arg6[%c0_57, %c0_58, %c0_59] : memref<1x224x128xbf16, #tpu.memory_space<vmem>>, vector<1x224x128xbf16>
    %96 = vector.shape_cast %95 : vector<1x224x128xbf16> to vector<224x128xbf16>
    %97 = vector.shape_cast %94 : vector<224x128xbf16> to vector<1x224x128xbf16>
    tpu.vector_store %arg6[%c0_57, %c0_58, %c0_59], %97 {strides = array<i32>} : memref<1x224x128xbf16, #tpu.memory_space<vmem>>, vector<1x224x128xbf16>,
    %cst_60 = arith.constant 0.000000e+00 : f32
    %98 = vector.shape_cast %18 : vector<224x1xi1> to vector<224x1xi1>
    %99 = vector.broadcast %98 : vector<224x1xi1> to vector<224x128xi1>
    %100 = vector.broadcast %cst_60 : f32 to vector<224x128xf32>
    %101 = arith.select %99, %93, %100 : vector<224x128xi1>, vector<224x128xf32>
    %cst_61 = arith.constant dense<0.000000e+00> : vector<128xf32>
    %102 = vector.multi_reduction <add>, %101, %cst_61 [0] : vector<224x128xf32> to vector<128xf32>
    %103 = vector.shape_cast %102 : vector<128xf32> to vector<1x128xf32>
    %c0_62 = arith.constant 0 : index
    %c0_63 = arith.constant 0 : index
    %c0_64 = arith.constant 0 : index
    %104 = vector.load %arg7[%c0_62, %c0_63, %c0_64] : memref<1x2x128xf32, #tpu.memory_space<vmem>>, vector<1x1x128xf32>
    %105 = vector.shape_cast %104 : vector<1x1x128xf32> to vector<1x128xf32>
    %106 = vector.shape_cast %103 : vector<1x128xf32> to vector<1x1x128xf32>
    tpu.vector_store %arg7[%c0_62, %c0_63, %c0_64], %106 {strides = array<i32>} : memref<1x2x128xf32, #tpu.memory_space<vmem>>, vector<1x1x128xf32>,
    %107 = arith.mulf %101, %101 : vector<224x128xf32>
    %cst_65 = arith.constant dense<0.000000e+00> : vector<128xf32>
    %108 = vector.multi_reduction <add>, %107, %cst_65 [0] : vector<224x128xf32> to vector<128xf32>
    %109 = vector.shape_cast %108 : vector<128xf32> to vector<1x128xf32>
    %c0_66 = arith.constant 0 : index
    %c1_67 = arith.constant 1 : index
    %c0_68 = arith.constant 0 : index
    %110 = vector.load %arg7[%c0_66, %c1_67, %c0_68] : memref<1x2x128xf32, #tpu.memory_space<vmem>>, vector<1x1x128xf32>
    %111 = vector.shape_cast %110 : vector<1x1x128xf32> to vector<1x128xf32>
    %112 = vector.shape_cast %109 : vector<1x128xf32> to vector<1x1x128xf32>
    tpu.vector_store %arg7[%c0_66, %c1_67, %c0_68], %112 {strides = array<i32>} : memref<1x2x128xf32, #tpu.memory_space<vmem>>, vector<1x1x128xf32>,
    return
  }
  func.func @transform_0(%arg0: i32, %arg1: i32) -> (i32, i32, i32) {
    %c0_i32 = arith.constant 0 : i32
    %c1_i32 = arith.constant 1 : i32
    %c0_i32_0 = arith.constant 0 : i32
    return %arg1, %c0_i32, %c1_i32 : i32, i32, i32
  }
  func.func @transform_1(%arg0: i32, %arg1: i32) -> (i32, i32) {
    %c0_i32 = arith.constant 0 : i32
    %c0_i32_0 = arith.constant 0 : i32
    %c0_i32_1 = arith.constant 0 : i32
    return %c0_i32, %c0_i32_0 : i32, i32
  }
  func.func @transform_2(%arg0: i32, %arg1: i32) -> (i32, i32) {
    %c0_i32 = arith.constant 0 : i32
    %c0_i32_0 = arith.constant 0 : i32
    %c0_i32_1 = arith.constant 0 : i32
    return %c0_i32, %c0_i32_0 : i32, i32
  }
  func.func @transform_3(%arg0: i32, %arg1: i32) -> (i32, i32, i32) {
    %c0_i32 = arith.constant 0 : i32
    %c0_i32_0 = arith.constant 0 : i32
    %c0_i32_1 = arith.constant 0 : i32
    return %c0_i32, %c0_i32_0, %arg0 : i32, i32, i32
  }
  func.func @transform_4(%arg0: i32, %arg1: i32) -> (i32, i32, i32) {
    %c0_i32 = arith.constant 0 : i32
    %c0_i32_0 = arith.constant 0 : i32
    return %arg1, %c0_i32, %arg0 : i32, i32, i32
  }
  func.func @transform_5(%arg0: i32, %arg1: i32) -> (i32, i32, i32) {
    %c0_i32 = arith.constant 0 : i32
    %c0_i32_0 = arith.constant 0 : i32
    return %arg1, %c0_i32, %arg0 : i32, i32, i32
  }
}

module attributes {stable_mosaic.version = 11 : i64} {
  func.func @_final_apply_kernel(%arg0: i32, %arg1: i32, %arg2: memref<1x224x128xbf16, #tpu.memory_space<vmem>>, %arg3: memref<1x128xf32, #tpu.memory_space<vmem>>, %arg4: memref<1x128xf32, #tpu.memory_space<vmem>>, %arg5: memref<1x224x128xbf16, #tpu.memory_space<vmem>>, %arg6: memref<1x128xf32, #tpu.memory_space<vmem>>, %arg7: memref<1x128xf32, #tpu.memory_space<vmem>>, %arg8: memref<1x224x128xf32, #tpu.memory_space<vmem>>) attributes {dimension_semantics = [#tpu.dimension_semantics<parallel>, #tpu.dimension_semantics<parallel>], iteration_bounds = array<i64: 2, 1>, scalar_prefetch = 0 : i64, scratch_operands = 0 : i64, tpu.core_type = #tpu.core_type<tc>, window_params = [{transform_indices = @transform_0, window_bounds = array<i64: 1, 224, 128>}, {transform_indices = @transform_1, window_bounds = array<i64: 1, 128>}, {transform_indices = @transform_2, window_bounds = array<i64: 1, 128>}, {transform_indices = @transform_3, window_bounds = array<i64: 1, 224, 128>}, {transform_indices = @transform_4, window_bounds = array<i64: 1, 128>}, {transform_indices = @transform_5, window_bounds = array<i64: 1, 128>}, {transform_indices = @transform_6, window_bounds = array<i64: 1, 224, 128>}]} {
    %c0 = arith.constant 0 : index
    %c0_0 = arith.constant 0 : index
    %c0_1 = arith.constant 0 : index
    %0 = vector.load %arg2[%c0, %c0_0, %c0_1] : memref<1x224x128xbf16, #tpu.memory_space<vmem>>, vector<1x224x128xbf16>
    %1 = vector.shape_cast %0 : vector<1x224x128xbf16> to vector<224x128xbf16>
    %2 = arith.extf %1 : vector<224x128xbf16> to vector<224x128xf32>
    %c0_2 = arith.constant 0 : index
    %c0_3 = arith.constant 0 : index
    %3 = vector.load %arg3[%c0_2, %c0_3] : memref<1x128xf32, #tpu.memory_space<vmem>>, vector<1x128xf32>
    %4 = vector.broadcast %3 : vector<1x128xf32> to vector<224x128xf32>
    %5 = arith.mulf %2, %4 : vector<224x128xf32>
    %c0_4 = arith.constant 0 : index
    %c0_5 = arith.constant 0 : index
    %6 = vector.load %arg4[%c0_4, %c0_5] : memref<1x128xf32, #tpu.memory_space<vmem>>, vector<1x128xf32>
    %7 = vector.broadcast %6 : vector<1x128xf32> to vector<224x128xf32>
    %8 = arith.addf %5, %7 : vector<224x128xf32>
    %c0_6 = arith.constant 0 : index
    %c0_7 = arith.constant 0 : index
    %c0_8 = arith.constant 0 : index
    %9 = vector.load %arg5[%c0_6, %c0_7, %c0_8] : memref<1x224x128xbf16, #tpu.memory_space<vmem>>, vector<1x224x128xbf16>
    %10 = vector.shape_cast %9 : vector<1x224x128xbf16> to vector<224x128xbf16>
    %11 = arith.extf %10 : vector<224x128xbf16> to vector<224x128xf32>
    %c0_9 = arith.constant 0 : index
    %c0_10 = arith.constant 0 : index
    %12 = vector.load %arg6[%c0_9, %c0_10] : memref<1x128xf32, #tpu.memory_space<vmem>>, vector<1x128xf32>
    %13 = vector.broadcast %12 : vector<1x128xf32> to vector<224x128xf32>
    %14 = arith.mulf %11, %13 : vector<224x128xf32>
    %c0_11 = arith.constant 0 : index
    %c0_12 = arith.constant 0 : index
    %15 = vector.load %arg7[%c0_11, %c0_12] : memref<1x128xf32, #tpu.memory_space<vmem>>, vector<1x128xf32>
    %16 = vector.broadcast %15 : vector<1x128xf32> to vector<224x128xf32>
    %17 = arith.addf %14, %16 : vector<224x128xf32>
    %18 = arith.addf %8, %17 : vector<224x128xf32>
    %c0_13 = arith.constant 0 : index
    %c0_14 = arith.constant 0 : index
    %c0_15 = arith.constant 0 : index
    %19 = vector.load %arg8[%c0_13, %c0_14, %c0_15] : memref<1x224x128xf32, #tpu.memory_space<vmem>>, vector<1x224x128xf32>
    %20 = vector.shape_cast %19 : vector<1x224x128xf32> to vector<224x128xf32>
    %21 = vector.shape_cast %18 : vector<224x128xf32> to vector<1x224x128xf32>
    tpu.vector_store %arg8[%c0_13, %c0_14, %c0_15], %21 {strides = array<i32>} : memref<1x224x128xf32, #tpu.memory_space<vmem>>, vector<1x224x128xf32>,
    return
  }
  func.func @transform_0(%arg0: i32, %arg1: i32) -> (i32, i32, i32) {
    %c0_i32 = arith.constant 0 : i32
    %c0_i32_0 = arith.constant 0 : i32
    return %arg0, %c0_i32, %arg1 : i32, i32, i32
  }
  func.func @transform_1(%arg0: i32, %arg1: i32) -> (i32, i32) {
    %c0_i32 = arith.constant 0 : i32
    %c0_i32_0 = arith.constant 0 : i32
    return %c0_i32, %arg1 : i32, i32
  }
  func.func @transform_2(%arg0: i32, %arg1: i32) -> (i32, i32) {
    %c0_i32 = arith.constant 0 : i32
    %c0_i32_0 = arith.constant 0 : i32
    return %c0_i32, %arg1 : i32, i32
  }
  func.func @transform_3(%arg0: i32, %arg1: i32) -> (i32, i32, i32) {
    %c0_i32 = arith.constant 0 : i32
    %c0_i32_0 = arith.constant 0 : i32
    return %arg0, %c0_i32, %arg1 : i32, i32, i32
  }
  func.func @transform_4(%arg0: i32, %arg1: i32) -> (i32, i32) {
    %c0_i32 = arith.constant 0 : i32
    %c0_i32_0 = arith.constant 0 : i32
    return %c0_i32, %arg1 : i32, i32
  }
  func.func @transform_5(%arg0: i32, %arg1: i32) -> (i32, i32) {
    %c0_i32 = arith.constant 0 : i32
    %c0_i32_0 = arith.constant 0 : i32
    return %c0_i32, %arg1 : i32, i32
  }
  func.func @transform_6(%arg0: i32, %arg1: i32) -> (i32, i32, i32) {
    %c0_i32 = arith.constant 0 : i32
    %c0_i32_0 = arith.constant 0 : i32
    return %arg0, %c0_i32, %arg1 : i32, i32, i32
  }
}

</mosaic_0001>

<llo_original>
// kernel: residual_block.5
$region0: #{residual_block.5}
  #allocation0 [shape = 'u32[]', space=smem, size = 0x4, offset = 0x4, fixed_abs, tag = 'smem constant byte address 0x4 - core index']
  #allocation1 [shape = 'u32[72,128]{1,0:T(1,128)}', space=vmem, size = 0x9000, scoped, tag = 'internal scratch']
  %s0 = inlined_call_operand.vmem [shape: bf16[2,224,128], index: 0, kind: input, shape index: {}]
  %s1 = inlined_call_operand.vmem [shape: f32[1,128], index: 1, kind: input, shape index: {}]
  %s2 = inlined_call_operand.vmem [shape: f32[1,128], index: 2, kind: input, shape index: {}]
  %s3 = inlined_call_operand.vmem [shape: bf16[2,224,256], index: 3, kind: input, shape index: {}]
  %s4 = inlined_call_operand.vmem [shape: f32[1,128], index: 4, kind: input, shape index: {}]
  %s5 = inlined_call_operand.vmem [shape: f32[1,128], index: 5, kind: input, shape index: {}]
  %s6 = inlined_call_operand.vmem [shape: f32[2,224,128], index: 6, kind: output, shape index: {}]
  %s7 = sld [smem:[#allocation0]]
  $region98: #{residual_block.5} parent=0
    _
  %s9 = ssub.s32 1, %s7
  %s10 = scalar_select 0, %s9, %s7
  $region1: #{residual_block.5} parent=0
    #allocation2 [shape = 'u8[114688]{0}', space=vmem, size = 0x1c000, scoped, tag = 'input window, operand 3']
    loop: start=0, step=1, limit=4
    $region2: #{residual_block.5} parent=1 // loop_pre_header
      _
    $region3: #{residual_block.5} parent=1 // loop_header
      %s12 = sphi 0, %s16
      %p13 = scmp.ge.s32.totalorder %s12, 4
      %s19 = sphi 0, %s31
      %s20 = sphi 0, %s27
      %s21 = sphi 0, %s19
      %s22 = sphi 0, %s20
      %s23 = sphi 0, %s21
      %s24 = sphi 0, %s22
      %s36 = sphi 0, %s38
      %s39 = sphi 0, %s36
      %s40 = sphi 0, %s39
      %s56 = sphi 0, %s40
      %s62 = sphi 0, %s64
      %s65 = sphi 0, %s62
      %s66 = sphi 0, %s65
      %s82 = sphi 0, %s66
      %s88 = sphi 0, %s90
      %s91 = sphi 0, %s88
      %s92 = sphi 0, %s91
      %s108 = sphi 0, %s92
      %s116 = sphi 0, %s118
      %s119 = sphi 0, %s116
      %s120 = sphi 0, %s119
      %s136 = sphi 0, %s120
      %s142 = sphi 0, %s144
      %s145 = sphi 0, %s142
      %s146 = sphi 0, %s145
      %s162 = sphi 0, %s146
      %s168 = sphi 0, %s170
      %s171 = sphi 0, %s168
      %s172 = sphi 0, %s171
      %s188 = sphi 0, %s172
      %s196 = sphi 0, %s198
      %s199 = sphi 0, %s196
      %s200 = sphi 0, %s199
      %s216 = sphi 0, %s200
    $region4: #{residual_block.5} parent=1 // loop_header_branch
      %15 = sbr.rel (%p13) target = $region8
    $region5: #{residual_block.5} parent=1 // loop_body
      %s17 = ssub.s32 %s12, 1
      %s18 = ssub.s32 %s12, 2
      %s25 = sadd.s32 1, %s20
      %p26 = scmp.ge.s32.totalorder %s25, 1
      %s27 = scalar_select %p26, 0, %s25
      %s28 = sadd.s32 1, %s19
      %s29 = scalar_select %p26, %s28, %s19
      %p30 = scmp.ge.s32.totalorder %s29, 2
      %s31 = scalar_select %p30, 0, %s29
      %s32 = ssub.s32 %s19, %s31
      %s33 = ssub.s32 %s20, %s27
      %s34 = sor.u32 %s32, %s33
      %p35 = scmp.eq.s32.totalorder %s34, 0
      %s37 = sadd.s32 %s36, 1
      %s38 = scalar_select %p35, %s36, %s37
      %p41 = pneg %p35
      %p42 = scmp.eq.s32.totalorder %s12, 1
      %p43 = por %p41, %p42
      %p44 = scmp.ne.s32.totalorder %s36, %s39
      %p45 = scmp.eq.s32.totalorder %s12, 0
      %p46 = por %p44, %p45
      %p47 = scmp.ne.s32.totalorder %s36, %s39
      %p48 = scmp.eq.s32.totalorder %s17, 1
      %p49 = por %p47, %p48
      %p50 = scmp.ne.s32.totalorder %s39, %s40
      %p51 = scmp.eq.s32.totalorder %s17, 0
      %p52 = por %p50, %p51
      %p53 = scmp.ne.s32.totalorder %s39, %s40
      %p54 = scmp.eq.s32.totalorder %s18, 1
      %p55 = por %p53, %p54
      %p57 = scmp.ne.s32.totalorder %s40, %s56
      %p58 = scmp.eq.s32.totalorder %s18, 0
      %p59 = por %p57, %p58
      %s60 = ssub.s32 %s20, %s27
      %p61 = scmp.eq.s32.totalorder %s60, 0
      %s63 = sadd.s32 %s62, 1
      %s64 = scalar_select %p61, %s62, %s63
      %p67 = pneg %p61
      %p68 = scmp.eq.s32.totalorder %s12, 1
      %p69 = por %p67, %p68
      %p70 = scmp.ne.s32.totalorder %s62, %s65
      %p71 = scmp.eq.s32.totalorder %s12, 0
      %p72 = por %p70, %p71
      %p73 = scmp.ne.s32.totalorder %s62, %s65
      %p74 = scmp.eq.s32.totalorder %s17, 1
      %p75 = por %p73, %p74
      %p76 = scmp.ne.s32.totalorder %s65, %s66
      %p77 = scmp.eq.s32.totalorder %s17, 0
      %p78 = por %p76, %p77
      %p79 = scmp.ne.s32.totalorder %s65, %s66
      %p80 = scmp.eq.s32.totalorder %s18, 1
      %p81 = por %p79, %p80
      %p83 = scmp.ne.s32.totalorder %s66, %s82
      %p84 = scmp.eq.s32.totalorder %s18, 0
      %p85 = por %p83, %p84
      %s86 = ssub.s32 %s20, %s27
      %p87 = scmp.eq.s32.totalorder %s86, 0
      %s89 = sadd.s32 %s88, 1
      %s90 = scalar_select %p87, %s88, %s89
      %p93 = pneg %p87
      %p94 = scmp.eq.s32.totalorder %s12, 1
      %p95 = por %p93, %p94
      %p96 = scmp.ne.s32.totalorder %s88, %s91
      %p97 = scmp.eq.s32.totalorder %s12, 0
      %p98 = por %p96, %p97
      %p99 = scmp.ne.s32.totalorder %s88, %s91
      %p100 = scmp.eq.s32.totalorder %s17, 1
      %p101 = por %p99, %p100
      %p102 = scmp.ne.s32.totalorder %s91, %s92
      %p103 = scmp.eq.s32.totalorder %s17, 0
      %p104 = por %p102, %p103
      %p105 = scmp.ne.s32.totalorder %s91, %s92
      %p106 = scmp.eq.s32.totalorder %s18, 1
      %p107 = por %p105, %p106
      %p109 = scmp.ne.s32.totalorder %s92, %s108
      %p110 = scmp.eq.s32.totalorder %s18, 0
      %p111 = por %p109, %p110
      %s112 = ssub.s32 %s19, %s31
      %s113 = ssub.s32 %s20, %s27
      %s114 = sor.u32 %s112, %s113
      %p115 = scmp.eq.s32.totalorder %s114, 0
      %s117 = sadd.s32 %s116, 1
      %s118 = scalar_select %p115, %s116, %s117
      %p121 = pneg %p115
      %p122 = scmp.eq.s32.totalorder %s12, 1
      %p123 = por %p121, %p122
      %p124 = scmp.ne.s32.totalorder %s116, %s119
      %p125 = scmp.eq.s32.totalorder %s12, 0
      %p126 = por %p124, %p125
      %p127 = scmp.ne.s32.totalorder %s116, %s119
      %p128 = scmp.eq.s32.totalorder %s17, 1
      %p129 = por %p127, %p128
      %p130 = scmp.ne.s32.totalorder %s119, %s120
      %p131 = scmp.eq.s32.totalorder %s17, 0
      %p132 = por %p130, %p131
      %p133 = scmp.ne.s32.totalorder %s119, %s120
      %p134 = scmp.eq.s32.totalorder %s18, 1
      %p135 = por %p133, %p134
      %p137 = scmp.ne.s32.totalorder %s120, %s136
      %p138 = scmp.eq.s32.totalorder %s18, 0
      %p139 = por %p137, %p138
      %s140 = ssub.s32 %s20, %s27
      %p141 = scmp.eq.s32.totalorder %s140, 0
      %s143 = sadd.s32 %s142, 1
      %s144 = scalar_select %p141, %s142, %s143
      %p147 = pneg %p141
      %p148 = scmp.eq.s32.totalorder %s12, 1
      %p149 = por %p147, %p148
      %p150 = scmp.ne.s32.totalorder %s142, %s145
      %p151 = scmp.eq.s32.totalorder %s12, 0
      %p152 = por %p150, %p151
      %p153 = scmp.ne.s32.totalorder %s142, %s145
      %p154 = scmp.eq.s32.totalorder %s17, 1
      %p155 = por %p153, %p154
      %p156 = scmp.ne.s32.totalorder %s145, %s146
      %p157 = scmp.eq.s32.totalorder %s17, 0
      %p158 = por %p156, %p157
      %p159 = scmp.ne.s32.totalorder %s145, %s146
      %p160 = scmp.eq.s32.totalorder %s18, 1
      %p161 = por %p159, %p160
      %p163 = scmp.ne.s32.totalorder %s146, %s162
      %p164 = scmp.eq.s32.totalorder %s18, 0
      %p165 = por %p163, %p164
      %s166 = ssub.s32 %s20, %s27
      %p167 = scmp.eq.s32.totalorder %s166, 0
      %s169 = sadd.s32 %s168, 1
      %s170 = scalar_select %p167, %s168, %s169
      %p173 = pneg %p167
      %p174 = scmp.eq.s32.totalorder %s12, 1
      %p175 = por %p173, %p174
      %p176 = scmp.ne.s32.totalorder %s168, %s171
      %p177 = scmp.eq.s32.totalorder %s12, 0
      %p178 = por %p176, %p177
      %p179 = scmp.ne.s32.totalorder %s168, %s171
      %p180 = scmp.eq.s32.totalorder %s17, 1
      %p181 = por %p179, %p180
      %p182 = scmp.ne.s32.totalorder %s171, %s172
      %p183 = scmp.eq.s32.totalorder %s17, 0
      %p184 = por %p182, %p183
      %p185 = scmp.ne.s32.totalorder %s171, %s172
      %p186 = scmp.eq.s32.totalorder %s18, 1
      %p187 = por %p185, %p186
      %p189 = scmp.ne.s32.totalorder %s172, %s188
      %p190 = scmp.eq.s32.totalorder %s18, 0
      %p191 = por %p189, %p190
      %s192 = ssub.s32 %s19, %s31
      %s193 = ssub.s32 %s20, %s27
      %s194 = sor.u32 %s192, %s193
      %p195 = scmp.eq.s32.totalorder %s194, 0
      %s197 = sadd.s32 %s196, 1
      %s198 = scalar_select %p195, %s196, %s197
      %p201 = pneg %p195
      %p202 = scmp.eq.s32.totalorder %s12, 1
      %p203 = por %p201, %p202
      %p204 = scmp.ne.s32.totalorder %s196, %s199
      %p205 = scmp.eq.s32.totalorder %s12, 0
      %p206 = por %p204, %p205
      %p207 = scmp.ne.s32.totalorder %s196, %s199
      %p208 = scmp.eq.s32.totalorder %s17, 1
      %p209 = por %p207, %p208
      %p210 = scmp.ne.s32.totalorder %s199, %s200
      %p211 = scmp.eq.s32.totalorder %s17, 0
      %p212 = por %p210, %p211
      %p213 = scmp.ne.s32.totalorder %s199, %s200
      %p214 = scmp.eq.s32.totalorder %s18, 1
      %p215 = por %p213, %p214
      %p217 = scmp.ne.s32.totalorder %s200, %s216
      %p218 = scmp.eq.s32.totalorder %s18, 0
      %p219 = por %p217, %p218
      %p220 = scmp.le.s32.totalorder 1, %s12
      %p221 = scmp.lt.s32.totalorder %s12, 3
      %p222 = pnand %p220, %p221
      %p223 = pneg %p222
      // Predicated region
      $region9: #{residual_block.5} parent=5 // pred_check
        _
      $region10: #{residual_block.5} parent=5 // pred_check_branch
        %225 = sbr.rel (%p222) target = $region12
      $region11: #{residual_block.5} parent=5 // pred_region
        %s226 = ssub.s32 %s12, 1
        // Predicated region
        $region13: #{residual_block.5} parent=11 // pred_check
          %p227 = pneg %p78
        $region14: #{residual_block.5} parent=11 // pred_check_branch
          %229 = sbr.rel (%p227) target = $region16
        $region15: #{residual_block.5} parent=11 // pred_region
          %p230 = scmp.lt.s32.totalorder %s22, 0
          %s231 = scalar_select %p230, %s22, 0
          %s232 = scalar_lea.vmem %s1, %s231
        $region16: #{residual_block.5} parent=11 // pred_fallthru
          _
        // Predicated region
        $region17: #{residual_block.5} parent=11 // pred_check
          %p233 = pneg %p104
        $region18: #{residual_block.5} parent=11 // pred_check_branch
          %235 = sbr.rel (%p233) target = $region20
        $region19: #{residual_block.5} parent=11 // pred_region
          %p236 = scmp.lt.s32.totalorder %s22, 0
          %s237 = scalar_select %p236, %s22, 0
          %s238 = scalar_lea.vmem %s2, %s237
        $region20: #{residual_block.5} parent=11 // pred_fallthru
          _
        // Predicated region
        $region21: #{residual_block.5} parent=11 // pred_check
          %p239 = pneg %p158
        $region22: #{residual_block.5} parent=11 // pred_check_branch
          %241 = sbr.rel (%p239) target = $region24
        $region23: #{residual_block.5} parent=11 // pred_region
          %p242 = scmp.lt.s32.totalorder %s22, 0
          %s243 = scalar_select %p242, %s22, 0
          %s244 = scalar_lea.vmem %s4, %s243
        $region24: #{residual_block.5} parent=11 // pred_fallthru
          _
        // Predicated region
        $region25: #{residual_block.5} parent=11 // pred_check
          %p245 = pneg %p184
        $region26: #{residual_block.5} parent=11 // pred_check_branch
          %247 = sbr.rel (%p245) target = $region28
        $region27: #{residual_block.5} parent=11 // pred_region
          %p248 = scmp.lt.s32.totalorder %s22, 0
          %s249 = scalar_select %p248, %s22, 0
          %s250 = scalar_lea.vmem %s5, %s249
        $region28: #{residual_block.5} parent=11 // pred_fallthru
          _
      $region12: #{residual_block.5} parent=5 // pred_fallthru
        _
      %p251 = scmp.lt.s32.totalorder %s12, 2
      // Predicated region
      $region29: #{residual_block.5} parent=5 // pred_check
        %p252 = pneg %p251
      $region30: #{residual_block.5} parent=5 // pred_check_branch
        %254 = sbr.rel (%p252) target = $region32
      $region31: #{residual_block.5} parent=5 // pred_region
        // Predicated region
        $region33: #{residual_block.5} parent=31 // pred_check
          %p255 = pneg %p46
        $region34: #{residual_block.5} parent=31 // pred_check_branch
          %257 = sbr.rel (%p255) target = $region36
        $region35: #{residual_block.5} parent=31 // pred_region
          %p258 = scmp.lt.s32.totalorder %s19, 1
          %s259 = scalar_select %p258, %s19, 1
          %p260 = scmp.lt.s32.totalorder %s20, 0
          %s261 = scalar_select %p260, %s20, 0
          %s262 = smul.addr %s259, 28
          %s263 = sadd.s32 %s261, %s262
          %s264 = smul.addr %s263, 4
          %s265 = scalar_lea.vmem %s0, %s264
        $region36: #{residual_block.5} parent=31 // pred_fallthru
          _
        // Predicated region
        $region37: #{residual_block.5} parent=31 // pred_check
          %p266 = pneg %p126
        $region38: #{residual_block.5} parent=31 // pred_check_branch
          %268 = sbr.rel (%p266) target = $region40
        $region39: #{residual_block.5} parent=31 // pred_region
          %s269 = sand.u32 %s116, 1
          %s270 = sand.u32 %s116, 1
          %s271 = smul.addr %s270, 112
          %s272 = scalar_lea.vmem [#allocation2], %s271
          %s273 = smul.addr %s19, 56
          %s274 = sadd.s32 %s20, %s273
          %s275 = smul.addr %s274, 4
          %s276 = scalar_lea.vmem %s3, %s275
          // Predicated region
          $region41: #{residual_block.5} parent=39 // pred_check
            _
          $region42: #{residual_block.5} parent=39 // pred_check_branch
            %278 = sbr.rel (0) target = $region44
          $region43: #{residual_block.5} parent=39 // pred_region
            // Predicated region
            $region45: #{residual_block.5} parent=43 // pred_check
              _
            $region46: #{residual_block.5} parent=43 // pred_check_branch
              %280 = sbr.rel target = $region48
            $region47: #{residual_block.5} parent=43 // pred_region
              // Predicated region
              $region60: #{residual_block.5} parent=47 // pred_check
                _
              $region61: #{residual_block.5} parent=47 // pred_check_branch
                %350 = sbr.rel (0) target = $region63
              $region62: #{residual_block.5} parent=47 // pred_region
                loop: start=0, step=1, limit=1
                $region64: #{residual_block.5} parent=62 // loop_pre_header
                  _
                $region65: #{residual_block.5} parent=62 // loop_header
                  %s352 = sphi 0, %s356
                  %p353 = scmp.ge.s32.totalorder %s352, 1
                  %s357 = sphi %s276, %s276
                  %s358 = sphi %s272, %s272
                $region66: #{residual_block.5} parent=62 // loop_header_branch
                  %355 = sbr.rel (%p353) target = $region70
                $region67: #{residual_block.5} parent=62 // loop_body
                  _
                $region68: #{residual_block.5} parent=62 // loop_footer
                  %s356 = sadd.s32 1, %s352
                $region69: #{residual_block.5} parent=62 // loop_footer_branch
                  %351 = sbr.rel target = $region65
                $region70: #{residual_block.5} parent=62 // loop_exit
                  _
                %s360 = ssub.s32 16, 1
                loop: start=0, step=1, limit=1
                $region71: #{residual_block.5} parent=62 // loop_pre_header
                  _
                $region72: #{residual_block.5} parent=62 // loop_header
                  %s362 = sphi 0, %s366
                  %p363 = scmp.ge.s32.totalorder %s362, 1
                  %s367 = sphi %s276, %s276
                  %s368 = sphi %s272, %s272
                $region73: #{residual_block.5} parent=62 // loop_header_branch
                  %365 = sbr.rel (%p363) target = $region77
                $region74: #{residual_block.5} parent=62 // loop_body
                  %v369 = vld [vmem:[%s367] sm:%s360]
                  %370 = vst [vmem:[%s368] sm:%s360] %v369
                  %v371 = vld [vmem:[%s367 + $0x8] sm:%s360]
                  %372 = vst [vmem:[%s368 + $0x4] sm:%s360] %v371
                  %v373 = vld [vmem:[%s367 + $0x10] sm:%s360]
                  %374 = vst [vmem:[%s368 + $0x8] sm:%s360] %v373
                  %v375 = vld [vmem:[%s367 + $0x18] sm:%s360]
                  %376 = vst [vmem:[%s368 + $0xc] sm:%s360] %v375
                  %v377 = vld [vmem:[%s367 + $0x20] sm:%s360]
                  %378 = vst [vmem:[%s368 + $0x10] sm:%s360] %v377
                  %v379 = vld [vmem:[%s367 + $0x28] sm:%s360]
                  %380 = vst [vmem:[%s368 + $0x14] sm:%s360] %v379
                  %v381 = vld [vmem:[%s367 + $0x30] sm:%s360]
                  %382 = vst [vmem:[%s368 + $0x18] sm:%s360] %v381
                  %v383 = vld [vmem:[%s367 + $0x38] sm:%s360]
                  %384 = vst [vmem:[%s368 + $0x1c] sm:%s360] %v383
                  %v385 = vld [vmem:[%s367 + $0x40] sm:%s360]
                  %386 = vst [vmem:[%s368 + $0x20] sm:%s360] %v385
                  %v387 = vld [vmem:[%s367 + $0x48] sm:%s360]
                  %388 = vst [vmem:[%s368 + $0x24] sm:%s360] %v387
                  %v389 = vld [vmem:[%s367 + $0x50] sm:%s360]
                  %390 = vst [vmem:[%s368 + $0x28] sm:%s360] %v389
                  %v391 = vld [vmem:[%s367 + $0x58] sm:%s360]
                  %392 = vst [vmem:[%s368 + $0x2c] sm:%s360] %v391
                  %v393 = vld [vmem:[%s367 + $0x60] sm:%s360]
                  %394 = vst [vmem:[%s368 + $0x30] sm:%s360] %v393
                  %v395 = vld [vmem:[%s367 + $0x68] sm:%s360]
                  %396 = vst [vmem:[%s368 + $0x34] sm:%s360] %v395
                  %v397 = vld [vmem:[%s367 + $0x70] sm:%s360]
                  %398 = vst [vmem:[%s368 + $0x38] sm:%s360] %v397
                  %v399 = vld [vmem:[%s367 + $0x78] sm:%s360]
                  %400 = vst [vmem:[%s368 + $0x3c] sm:%s360] %v399
                  %v401 = vld [vmem:[%s367 + $0x80] sm:%s360]
                  %402 = vst [vmem:[%s368 + $0x40] sm:%s360] %v401
                  %v403 = vld [vmem:[%s367 + $0x88] sm:%s360]
                  %404 = vst [vmem:[%s368 + $0x44] sm:%s360] %v403
                  %v405 = vld [vmem:[%s367 + $0x90] sm:%s360]
                  %406 = vst [vmem:[%s368 + $0x48] sm:%s360] %v405
                  %v407 = vld [vmem:[%s367 + $0x98] sm:%s360]
                  %408 = vst [vmem:[%s368 + $0x4c] sm:%s360] %v407
                  %v409 = vld [vmem:[%s367 + $0xa0] sm:%s360]
                  %410 = vst [vmem:[%s368 + $0x50] sm:%s360] %v409
                  %v411 = vld [vmem:[%s367 + $0xa8] sm:%s360]
                  %412 = vst [vmem:[%s368 + $0x54] sm:%s360] %v411
                  %v413 = vld [vmem:[%s367 + $0xb0] sm:%s360]
                  %414 = vst [vmem:[%s368 + $0x58] sm:%s360] %v413
                  %v415 = vld [vmem:[%s367 + $0xb8] sm:%s360]
                  %416 = vst [vmem:[%s368 + $0x5c] sm:%s360] %v415
                  %v417 = vld [vmem:[%s367 + $0xc0] sm:%s360]
                  %418 = vst [vmem:[%s368 + $0x60] sm:%s360] %v417
                  %v419 = vld [vmem:[%s367 + $0xc8] sm:%s360]
                  %420 = vst [vmem:[%s368 + $0x64] sm:%s360] %v419
                  %v421 = vld [vmem:[%s367 + $0xd0] sm:%s360]
                  %422 = vst [vmem:[%s368 + $0x68] sm:%s360] %v421
                  %v423 = vld [vmem:[%s367 + $0xd8] sm:%s360]
                  %424 = vst [vmem:[%s368 + $0x6c] sm:%s360] %v423
                $region75: #{residual_block.5} parent=62 // loop_footer
                  %s366 = sadd.s32 1, %s362
                $region76: #{residual_block.5} parent=62 // loop_footer_branch
                  %361 = sbr.rel target = $region72
                $region77: #{residual_block.5} parent=62 // loop_exit
                  _
              $region63: #{residual_block.5} parent=47 // pred_fallthru
                _
            $region48: #{residual_block.5} parent=43 // pred_fallthru
              _
            // Predicated region
            $region49: #{residual_block.5} parent=43 // pred_check
              _
            $region50: #{residual_block.5} parent=43 // pred_check_branch
              %282 = sbr.rel (0) target = $region52
            $region51: #{residual_block.5} parent=43 // pred_region
              %s284 = ssub.s32 16, 1
              loop: start=0, step=1, limit=1
              $region53: #{residual_block.5} parent=51 // loop_pre_header
                _
              $region54: #{residual_block.5} parent=51 // loop_header
                %s286 = sphi 0, %s290
                %p287 = scmp.ge.s32.totalorder %s286, 1
                %s291 = sphi %s276, %s276
                %s292 = sphi %s272, %s272
              $region55: #{residual_block.5} parent=51 // loop_header_branch
                %289 = sbr.rel (%p287) target = $region59
              $region56: #{residual_block.5} parent=51 // loop_body
                %v293 = vld [vmem:[%s291] sm:%s284]
                %294 = vst [vmem:[%s292] sm:%s284] %v293
                %v295 = vld [vmem:[%s291 + $0x8] sm:%s284]
                %296 = vst [vmem:[%s292 + $0x4] sm:%s284] %v295
                %v297 = vld [vmem:[%s291 + $0x10] sm:%s284]
                %298 = vst [vmem:[%s292 + $0x8] sm:%s284] %v297
                %v299 = vld [vmem:[%s291 + $0x18] sm:%s284]
                %300 = vst [vmem:[%s292 + $0xc] sm:%s284] %v299
                %v301 = vld [vmem:[%s291 + $0x20] sm:%s284]
                %302 = vst [vmem:[%s292 + $0x10] sm:%s284] %v301
                %v303 = vld [vmem:[%s291 + $0x28] sm:%s284]
                %304 = vst [vmem:[%s292 + $0x14] sm:%s284] %v303
                %v305 = vld [vmem:[%s291 + $0x30] sm:%s284]
                %306 = vst [vmem:[%s292 + $0x18] sm:%s284] %v305
                %v307 = vld [vmem:[%s291 + $0x38] sm:%s284]
                %308 = vst [vmem:[%s292 + $0x1c] sm:%s284] %v307
                %v309 = vld [vmem:[%s291 + $0x40] sm:%s284]
                %310 = vst [vmem:[%s292 + $0x20] sm:%s284] %v309
                %v311 = vld [vmem:[%s291 + $0x48] sm:%s284]
                %312 = vst [vmem:[%s292 + $0x24] sm:%s284] %v311
                %v313 = vld [vmem:[%s291 + $0x50] sm:%s284]
                %314 = vst [vmem:[%s292 + $0x28] sm:%s284] %v313
                %v315 = vld [vmem:[%s291 + $0x58] sm:%s284]
                %316 = vst [vmem:[%s292 + $0x2c] sm:%s284] %v315
                %v317 = vld [vmem:[%s291 + $0x60] sm:%s284]
                %318 = vst [vmem:[%s292 + $0x30] sm:%s284] %v317
                %v319 = vld [vmem:[%s291 + $0x68] sm:%s284]
                %320 = vst [vmem:[%s292 + $0x34] sm:%s284] %v319
                %v321 = vld [vmem:[%s291 + $0x70] sm:%s284]
                %322 = vst [vmem:[%s292 + $0x38] sm:%s284] %v321
                %v323 = vld [vmem:[%s291 + $0x78] sm:%s284]
                %324 = vst [vmem:[%s292 + $0x3c] sm:%s284] %v323
                %v325 = vld [vmem:[%s291 + $0x80] sm:%s284]
                %326 = vst [vmem:[%s292 + $0x40] sm:%s284] %v325
                %v327 = vld [vmem:[%s291 + $0x88] sm:%s284]
                %328 = vst [vmem:[%s292 + $0x44] sm:%s284] %v327
                %v329 = vld [vmem:[%s291 + $0x90] sm:%s284]
                %330 = vst [vmem:[%s292 + $0x48] sm:%s284] %v329
                %v331 = vld [vmem:[%s291 + $0x98] sm:%s284]
                %332 = vst [vmem:[%s292 + $0x4c] sm:%s284] %v331
                %v333 = vld [vmem:[%s291 + $0xa0] sm:%s284]
                %334 = vst [vmem:[%s292 + $0x50] sm:%s284] %v333
                %v335 = vld [vmem:[%s291 + $0xa8] sm:%s284]
                %336 = vst [vmem:[%s292 + $0x54] sm:%s284] %v335
                %v337 = vld [vmem:[%s291 + $0xb0] sm:%s284]
                %338 = vst [vmem:[%s292 + $0x58] sm:%s284] %v337
                %v339 = vld [vmem:[%s291 + $0xb8] sm:%s284]
                %340 = vst [vmem:[%s292 + $0x5c] sm:%s284] %v339
                %v341 = vld [vmem:[%s291 + $0xc0] sm:%s284]
                %342 = vst [vmem:[%s292 + $0x60] sm:%s284] %v341
                %v343 = vld [vmem:[%s291 + $0xc8] sm:%s284]
                %344 = vst [vmem:[%s292 + $0x64] sm:%s284] %v343
                %v345 = vld [vmem:[%s291 + $0xd0] sm:%s284]
                %346 = vst [vmem:[%s292 + $0x68] sm:%s284] %v345
                %v347 = vld [vmem:[%s291 + $0xd8] sm:%s284]
                %348 = vst [vmem:[%s292 + $0x6c] sm:%s284] %v347
              $region57: #{residual_block.5} parent=51 // loop_footer
                %s290 = sadd.s32 1, %s286
              $region58: #{residual_block.5} parent=51 // loop_footer_branch
                %285 = sbr.rel target = $region54
              $region59: #{residual_block.5} parent=51 // loop_exit
                _
            $region52: #{residual_block.5} parent=43 // pred_fallthru
              _
          $region44: #{residual_block.5} parent=39 // pred_fallthru
            _
          %425 = vnop
        $region40: #{residual_block.5} parent=31 // pred_fallthru
          _
      $region32: #{residual_block.5} parent=5 // pred_fallthru
        _
      %p426 = scmp.le.s32.totalorder 1, %s12
      %p427 = scmp.lt.s32.totalorder %s12, 3
      %p428 = pnand %p426, %p427
      %p429 = pneg %p428
      // Predicated region
      $region78: #{residual_block.5} parent=5 // pred_check
        _
      $region79: #{residual_block.5} parent=5 // pred_check_branch
        %431 = sbr.rel (%p428) target = $region81
      $region80: #{residual_block.5} parent=5 // pred_region
        %s432 = ssub.s32 %s12, 1
        %s433 = sand.u32 %s119, 1
        %s434 = sand.u32 %s119, 1
        %s435 = smul.addr %s434, 112
        %s436 = scalar_lea.vmem [#allocation2], %s435
        // Predicated region
        $region82: #{residual_block.5} parent=80 // pred_check
          %p437 = pneg %p132
        $region83: #{residual_block.5} parent=80 // pred_check_branch
          %439 = sbr.rel (%p437) target = $region85
        $region84: #{residual_block.5} parent=80 // pred_region
          _
        $region85: #{residual_block.5} parent=80 // pred_fallthru
          _
        %p440 = scmp.lt.s32.totalorder %s21, 1
        %s441 = scalar_select %p440, %s21, 1
        %p442 = scmp.lt.s32.totalorder %s22, 0
        %s443 = scalar_select %p442, %s22, 0
        %s444 = smul.addr %s441, 28
        %s445 = sadd.s32 %s443, %s444
        %s446 = smul.addr %s445, 4
        %s447 = scalar_lea.vmem %s0, %s446
        %p448 = pneg %p52
        %p449 = pneg %p49
        %p450 = scmp.lt.s32.totalorder %s22, 0
        %s451 = scalar_select %p450, %s22, 0
        %s452 = scalar_lea.vmem %s1, %s451
        %p453 = pneg %p78
        %p454 = pneg %p75
        %p455 = scmp.lt.s32.totalorder %s22, 0
        %s456 = scalar_select %p455, %s22, 0
        %s457 = scalar_lea.vmem %s2, %s456
        %p458 = pneg %p104
        %p459 = pneg %p101
        %s460 = sand.u32 %s119, 1
        %s461 = sand.u32 %s119, 1
        %s462 = smul.addr %s461, 112
        %s463 = scalar_lea.vmem [#allocation2], %s462
        %p464 = pneg %p132
        %p465 = pneg %p129
        %p466 = scmp.lt.s32.totalorder %s22, 0
        %s467 = scalar_select %p466, %s22, 0
        %s468 = scalar_lea.vmem %s4, %s467
        %p469 = pneg %p158
        %p470 = pneg %p155
        %p471 = scmp.lt.s32.totalorder %s22, 0
        %s472 = scalar_select %p471, %s22, 0
        %s473 = scalar_lea.vmem %s5, %s472
        %p474 = pneg %p184
        %p475 = pneg %p181
        %p476 = pneg %p212
        %p477 = pneg %p209
        %p478 = scmp.lt.s32.totalorder %s21, 1
        %s479 = scalar_select %p478, %s21, 1
        %p480 = scmp.lt.s32.totalorder %s22, 0
        %s481 = scalar_select %p480, %s22, 0
        %s482 = smul.addr %s479, 28
        %s483 = sadd.s32 %s481, %s482
        %s484 = smul.addr %s483, 8
        %s485 = scalar_lea.vmem %s6, %s484
        %p486 = scmp.lt.s32.totalorder %s21, 1
        %s487 = scalar_select %p486, %s21, 1
        %p488 = scmp.lt.s32.totalorder %s22, 0
        %s489 = scalar_select %p488, %s22, 0
        %s490 = smul.addr %s487, 28
        %s491 = sadd.s32 %s489, %s490
        %s492 = smul.addr %s491, 4
        %s493 = scalar_lea.vmem %s0, %s492
        %p494 = scmp.lt.s32.totalorder %s22, 0
        %s495 = scalar_select %p494, %s22, 0
        %s496 = scalar_lea.vmem %s1, %s495
        %p497 = scmp.lt.s32.totalorder %s22, 0
        %s498 = scalar_select %p497, %s22, 0
        %s499 = scalar_lea.vmem %s2, %s498
        %p500 = scmp.lt.s32.totalorder %s22, 0
        %s501 = scalar_select %p500, %s22, 0
        %s502 = scalar_lea.vmem %s4, %s501
        %p503 = scmp.lt.s32.totalorder %s22, 0
        %s504 = scalar_select %p503, %s22, 0
        %s505 = scalar_lea.vmem %s5, %s504
        %p506 = scmp.lt.s32.totalorder %s21, 1
        %s507 = scalar_select %p506, %s21, 1
        %p508 = scmp.lt.s32.totalorder %s22, 0
        %s509 = scalar_select %p508, %s22, 0
        %s510 = smul.addr %s507, 28
        %s511 = sadd.s32 %s509, %s510
        %s512 = smul.addr %s511, 8
        %s513 = scalar_lea.vmem %s6, %s512
        %v514 = vld [vmem:[%s493] sm:$0xf]
        %v515 = vld [vmem:[%s493 + $0x4] sm:$0xf]
        %v516 = vld [vmem:[%s493 + $0x8] sm:$0xf]
        %v517 = vld [vmem:[%s493 + $0xc] sm:$0xf]
        %v518 = vld [vmem:[%s493 + $0x10] sm:$0xf]
        %v519 = vld [vmem:[%s493 + $0x14] sm:$0xf]
        %v520 = vld [vmem:[%s493 + $0x18] sm:$0xf]
        %v521 = vld [vmem:[%s493 + $0x1c] sm:$0xf]
        %v522 = vld [vmem:[%s493 + $0x20] sm:$0xf]
        %v523 = vld [vmem:[%s493 + $0x24] sm:$0xf]
        %v524 = vld [vmem:[%s493 + $0x28] sm:$0xf]
        %v525 = vld [vmem:[%s493 + $0x2c] sm:$0xf]
        %v526 = vld [vmem:[%s493 + $0x30] sm:$0xf]
        %v527 = vld [vmem:[%s493 + $0x34] sm:$0xf]
        %v528 = vld [vmem:[%s493 + $0x38] sm:$0xf]
        %v529 = vld [vmem:[%s493 + $0x3c] sm:$0xf]
        %v530 = vld [vmem:[%s493 + $0x40] sm:$0xf]
        %v531 = vld [vmem:[%s493 + $0x44] sm:$0xf]
        %v532 = vld [vmem:[%s493 + $0x48] sm:$0xf]
        %v533 = vld [vmem:[%s493 + $0x4c] sm:$0xf]
        %v534 = vld [vmem:[%s493 + $0x50] sm:$0xf]
        %v535 = vld [vmem:[%s493 + $0x54] sm:$0xf]
        %v536 = vld [vmem:[%s493 + $0x58] sm:$0xf]
        %v537 = vld [vmem:[%s493 + $0x5c] sm:$0xf]
        %v538 = vld [vmem:[%s493 + $0x60] sm:$0xf]
        %v539 = vld [vmem:[%s493 + $0x64] sm:$0xf]
        %v540 = vld [vmem:[%s493 + $0x68] sm:$0xf]
        %v541 = vld [vmem:[%s493 + $0x6c] sm:$0xf]
        %v542 = vunpack.c.l.bf16 %v514
        %v543 = vunpack.c.l.bf16 %v515
        %v544 = vunpack.c.l.bf16 %v516
        %v545 = vunpack.c.l.bf16 %v517
        %v546 = vunpack.c.l.bf16 %v518
        %v547 = vunpack.c.l.bf16 %v519
        %v548 = vunpack.c.l.bf16 %v520
        %v549 = vunpack.c.l.bf16 %v521
        %v550 = vunpack.c.l.bf16 %v522
        %v551 = vunpack.c.l.bf16 %v523
        %v552 = vunpack.c.l.bf16 %v524
        %v553 = vunpack.c.l.bf16 %v525
        %v554 = vunpack.c.l.bf16 %v526
        %v555 = vunpack.c.l.bf16 %v527
        %v556 = vunpack.c.l.bf16 %v528
        %v557 = vunpack.c.l.bf16 %v529
        %v558 = vunpack.c.l.bf16 %v530
        %v559 = vunpack.c.l.bf16 %v531
        %v560 = vunpack.c.l.bf16 %v532
        %v561 = vunpack.c.l.bf16 %v533
        %v562 = vunpack.c.l.bf16 %v534
        %v563 = vunpack.c.l.bf16 %v535
        %v564 = vunpack.c.l.bf16 %v536
        %v565 = vunpack.c.l.bf16 %v537
        %v566 = vunpack.c.l.bf16 %v538
        %v567 = vunpack.c.l.bf16 %v539
        %v568 = vunpack.c.l.bf16 %v540
        %v569 = vunpack.c.l.bf16 %v541
        %v570 = vld [vmem:[%s496] sm:$0x1]
        %v572 = vperm.slane %v570, 0
        %v574 = vmul.f32 %v542, %v572
        %v575 = vmul.f32 %v543, %v572
        %v576 = vmul.f32 %v544, %v572
        %v577 = vmul.f32 %v545, %v572
        %v578 = vmul.f32 %v546, %v572
        %v579 = vmul.f32 %v547, %v572
        %v580 = vmul.f32 %v548, %v572
        %v581 = vmul.f32 %v549, %v572
        %v582 = vmul.f32 %v550, %v572
        %v583 = vmul.f32 %v551, %v572
        %v584 = vmul.f32 %v552, %v572
        %v585 = vmul.f32 %v553, %v572
        %v586 = vmul.f32 %v554, %v572
        %v587 = vmul.f32 %v555, %v572
        %v588 = vmul.f32 %v556, %v572
        %v589 = vmul.f32 %v557, %v572
        %v590 = vmul.f32 %v558, %v572
        %v591 = vmul.f32 %v559, %v572
        %v592 = vmul.f32 %v560, %v572
        %v593 = vmul.f32 %v561, %v572
        %v594 = vmul.f32 %v562, %v572
        %v595 = vmul.f32 %v563, %v572
        %v596 = vmul.f32 %v564, %v572
        %v597 = vmul.f32 %v565, %v572
        %v598 = vmul.f32 %v566, %v572
        %v599 = vmul.f32 %v567, %v572
        %v600 = vmul.f32 %v568, %v572
        %v601 = vmul.f32 %v569, %v572
        %v602 = vld [vmem:[%s499] sm:$0x1]
        %v604 = vperm.slane %v602, 0
        %v606 = vadd.f32 %v574, %v604
        %v607 = vadd.f32 %v575, %v604
        %v608 = vadd.f32 %v576, %v604
        %v609 = vadd.f32 %v577, %v604
        %v610 = vadd.f32 %v578, %v604
        %v611 = vadd.f32 %v579, %v604
        %v612 = vadd.f32 %v580, %v604
        %v613 = vadd.f32 %v581, %v604
        %v614 = vadd.f32 %v582, %v604
        %v615 = vadd.f32 %v583, %v604
        %v616 = vadd.f32 %v584, %v604
        %v617 = vadd.f32 %v585, %v604
        %v618 = vadd.f32 %v586, %v604
        %v619 = vadd.f32 %v587, %v604
        %v620 = vadd.f32 %v588, %v604
        %v621 = vadd.f32 %v589, %v604
        %v622 = vadd.f32 %v590, %v604
        %v623 = vadd.f32 %v591, %v604
        %v624 = vadd.f32 %v592, %v604
        %v625 = vadd.f32 %v593, %v604
        %v626 = vadd.f32 %v594, %v604
        %v627 = vadd.f32 %v595, %v604
        %v628 = vadd.f32 %v596, %v604
        %v629 = vadd.f32 %v597, %v604
        %v630 = vadd.f32 %v598, %v604
        %v631 = vadd.f32 %v599, %v604
        %v632 = vadd.f32 %v600, %v604
        %v633 = vadd.f32 %v601, %v604
        %v634 = vld [vmem:[%s436] sm:$0xf]
        %v635 = vld [vmem:[%s436 + $0x4] sm:$0xf]
        %v636 = vld [vmem:[%s436 + $0x8] sm:$0xf]
        %v637 = vld [vmem:[%s436 + $0xc] sm:$0xf]
        %v638 = vld [vmem:[%s436 + $0x10] sm:$0xf]
        %v639 = vld [vmem:[%s436 + $0x14] sm:$0xf]
        %v640 = vld [vmem:[%s436 + $0x18] sm:$0xf]
        %v641 = vld [vmem:[%s436 + $0x1c] sm:$0xf]
        %v642 = vld [vmem:[%s436 + $0x20] sm:$0xf]
        %v643 = vld [vmem:[%s436 + $0x24] sm:$0xf]
        %v644 = vld [vmem:[%s436 + $0x28] sm:$0xf]
        %v645 = vld [vmem:[%s436 + $0x2c] sm:$0xf]
        %v646 = vld [vmem:[%s436 + $0x30] sm:$0xf]
        %v647 = vld [vmem:[%s436 + $0x34] sm:$0xf]
        %v648 = vld [vmem:[%s436 + $0x38] sm:$0xf]
        %v649 = vld [vmem:[%s436 + $0x3c] sm:$0xf]
        %v650 = vld [vmem:[%s436 + $0x40] sm:$0xf]
        %v651 = vld [vmem:[%s436 + $0x44] sm:$0xf]
        %v652 = vld [vmem:[%s436 + $0x48] sm:$0xf]
        %v653 = vld [vmem:[%s436 + $0x4c] sm:$0xf]
        %v654 = vld [vmem:[%s436 + $0x50] sm:$0xf]
        %v655 = vld [vmem:[%s436 + $0x54] sm:$0xf]
        %v656 = vld [vmem:[%s436 + $0x58] sm:$0xf]
        %v657 = vld [vmem:[%s436 + $0x5c] sm:$0xf]
        %v658 = vld [vmem:[%s436 + $0x60] sm:$0xf]
        %v659 = vld [vmem:[%s436 + $0x64] sm:$0xf]
        %v660 = vld [vmem:[%s436 + $0x68] sm:$0xf]
        %v661 = vld [vmem:[%s436 + $0x6c] sm:$0xf]
        %v662 = vunpack.c.l.bf16 %v634
        %v663 = vunpack.c.l.bf16 %v635
        %v664 = vunpack.c.l.bf16 %v636
        %v665 = vunpack.c.l.bf16 %v637
        %v666 = vunpack.c.l.bf16 %v638
        %v667 = vunpack.c.l.bf16 %v639
        %v668 = vunpack.c.l.bf16 %v640
        %v669 = vunpack.c.l.bf16 %v641
        %v670 = vunpack.c.l.bf16 %v642
        %v671 = vunpack.c.l.bf16 %v643
        %v672 = vunpack.c.l.bf16 %v644
        %v673 = vunpack.c.l.bf16 %v645
        %v674 = vunpack.c.l.bf16 %v646
        %v675 = vunpack.c.l.bf16 %v647
        %v676 = vunpack.c.l.bf16 %v648
        %v677 = vunpack.c.l.bf16 %v649
        %v678 = vunpack.c.l.bf16 %v650
        %v679 = vunpack.c.l.bf16 %v651
        %v680 = vunpack.c.l.bf16 %v652
        %v681 = vunpack.c.l.bf16 %v653
        %v682 = vunpack.c.l.bf16 %v654
        %v683 = vunpack.c.l.bf16 %v655
        %v684 = vunpack.c.l.bf16 %v656
        %v685 = vunpack.c.l.bf16 %v657
        %v686 = vunpack.c.l.bf16 %v658
        %v687 = vunpack.c.l.bf16 %v659
        %v688 = vunpack.c.l.bf16 %v660
        %v689 = vunpack.c.l.bf16 %v661
        %v690 = vld [vmem:[%s502] sm:$0x1]
        %v692 = vperm.slane %v690, 0
        %v694 = vmul.f32 %v662, %v692
        %v695 = vmul.f32 %v663, %v692
        %v696 = vmul.f32 %v664, %v692
        %v697 = vmul.f32 %v665, %v692
        %v698 = vmul.f32 %v666, %v692
        %v699 = vmul.f32 %v667, %v692
        %v700 = vmul.f32 %v668, %v692
        %v701 = vmul.f32 %v669, %v692
        %v702 = vmul.f32 %v670, %v692
        %v703 = vmul.f32 %v671, %v692
        %v704 = vmul.f32 %v672, %v692
        %v705 = vmul.f32 %v673, %v692
        %v706 = vmul.f32 %v674, %v692
        %v707 = vmul.f32 %v675, %v692
        %v708 = vmul.f32 %v676, %v692
        %v709 = vmul.f32 %v677, %v692
        %v710 = vmul.f32 %v678, %v692
        %v711 = vmul.f32 %v679, %v692
        %v712 = vmul.f32 %v680, %v692
        %v713 = vmul.f32 %v681, %v692
        %v714 = vmul.f32 %v682, %v692
        %v715 = vmul.f32 %v683, %v692
        %v716 = vmul.f32 %v684, %v692
        %v717 = vmul.f32 %v685, %v692
        %v718 = vmul.f32 %v686, %v692
        %v719 = vmul.f32 %v687, %v692
        %v720 = vmul.f32 %v688, %v692
        %v721 = vmul.f32 %v689, %v692
        %v722 = vld [vmem:[%s505] sm:$0x1]
        %v724 = vperm.slane %v722, 0
        %v726 = vadd.f32 %v694, %v724
        %v727 = vadd.f32 %v695, %v724
        %v728 = vadd.f32 %v696, %v724
        %v729 = vadd.f32 %v697, %v724
        %v730 = vadd.f32 %v698, %v724
        %v731 = vadd.f32 %v699, %v724
        %v732 = vadd.f32 %v700, %v724
        %v733 = vadd.f32 %v701, %v724
        %v734 = vadd.f32 %v702, %v724
        %v735 = vadd.f32 %v703, %v724
        %v736 = vadd.f32 %v704, %v724
        %v737 = vadd.f32 %v705, %v724
        %v738 = vadd.f32 %v706, %v724
        %v739 = vadd.f32 %v707, %v724
        %v740 = vadd.f32 %v708, %v724
        %v741 = vadd.f32 %v709, %v724
        %v742 = vadd.f32 %v710, %v724
        %v743 = vadd.f32 %v711, %v724
        %v744 = vadd.f32 %v712, %v724
        %v745 = vadd.f32 %v713, %v724
        %v746 = vadd.f32 %v714, %v724
        %v747 = vadd.f32 %v715, %v724
        %v748 = vadd.f32 %v716, %v724
        %v749 = vadd.f32 %v717, %v724
        %v750 = vadd.f32 %v718, %v724
        %v751 = vadd.f32 %v719, %v724
        %v752 = vadd.f32 %v720, %v724
        %v753 = vadd.f32 %v721, %v724
        %v754 = vadd.f32 %v606, %v726
        %v755 = vadd.f32 %v607, %v727
        %v756 = vadd.f32 %v608, %v728
        %v757 = vadd.f32 %v609, %v729
        %v758 = vadd.f32 %v610, %v730
        %v759 = vadd.f32 %v611, %v731
        %v760 = vadd.f32 %v612, %v732
        %v761 = vadd.f32 %v613, %v733
        %v762 = vadd.f32 %v614, %v734
        %v763 = vadd.f32 %v615, %v735
        %v764 = vadd.f32 %v616, %v736
        %v765 = vadd.f32 %v617, %v737
        %v766 = vadd.f32 %v618, %v738
        %v767 = vadd.f32 %v619, %v739
        %v768 = vadd.f32 %v620, %v740
        %v769 = vadd.f32 %v621, %v741
        %v770 = vadd.f32 %v622, %v742
        %v771 = vadd.f32 %v623, %v743
        %v772 = vadd.f32 %v624, %v744
        %v773 = vadd.f32 %v625, %v745
        %v774 = vadd.f32 %v626, %v746
        %v775 = vadd.f32 %v627, %v747
        %v776 = vadd.f32 %v628, %v748
        %v777 = vadd.f32 %v629, %v749
        %v778 = vadd.f32 %v630, %v750
        %v779 = vadd.f32 %v631, %v751
        %v780 = vadd.f32 %v632, %v752
        %v781 = vadd.f32 %v633, %v753
        %782 = vst [vmem:[%s513] sm:$0xff] %v754
        %783 = vst [vmem:[%s513 + $0x8] sm:$0xff] %v755
        %784 = vst [vmem:[%s513 + $0x10] sm:$0xff] %v756
        %785 = vst [vmem:[%s513 + $0x18] sm:$0xff] %v757
        %786 = vst [vmem:[%s513 + $0x20] sm:$0xff] %v758
        %787 = vst [vmem:[%s513 + $0x28] sm:$0xff] %v759
        %788 = vst [vmem:[%s513 + $0x30] sm:$0xff] %v760
        %789 = vst [vmem:[%s513 + $0x38] sm:$0xff] %v761
        %790 = vst [vmem:[%s513 + $0x40] sm:$0xff] %v762
        %791 = vst [vmem:[%s513 + $0x48] sm:$0xff] %v763
        %792 = vst [vmem:[%s513 + $0x50] sm:$0xff] %v764
        %793 = vst [vmem:[%s513 + $0x58] sm:$0xff] %v765
        %794 = vst [vmem:[%s513 + $0x60] sm:$0xff] %v766
        %795 = vst [vmem:[%s513 + $0x68] sm:$0xff] %v767
        %796 = vst [vmem:[%s513 + $0x70] sm:$0xff] %v768
        %797 = vst [vmem:[%s513 + $0x78] sm:$0xff] %v769
        %798 = vst [vmem:[%s513 + $0x80] sm:$0xff] %v770
        %799 = vst [vmem:[%s513 + $0x88] sm:$0xff] %v771
        %800 = vst [vmem:[%s513 + $0x90] sm:$0xff] %v772
        %801 = vst [vmem:[%s513 + $0x98] sm:$0xff] %v773
        %802 = vst [vmem:[%s513 + $0xa0] sm:$0xff] %v774
        %803 = vst [vmem:[%s513 + $0xa8] sm:$0xff] %v775
        %804 = vst [vmem:[%s513 + $0xb0] sm:$0xff] %v776
        %805 = vst [vmem:[%s513 + $0xb8] sm:$0xff] %v777
        %806 = vst [vmem:[%s513 + $0xc0] sm:$0xff] %v778
        %807 = vst [vmem:[%s513 + $0xc8] sm:$0xff] %v779
        %808 = vst [vmem:[%s513 + $0xd0] sm:$0xff] %v780
        %809 = vst [vmem:[%s513 + $0xd8] sm:$0xff] %v781
        %p810 = scmp.lt.s32.totalorder %s21, 1
        %s811 = scalar_select %p810, %s21, 1
        %p812 = scmp.lt.s32.totalorder %s22, 0
        %s813 = scalar_select %p812, %s22, 0
        %s814 = smul.addr %s811, 28
        %s815 = sadd.s32 %s813, %s814
        %s816 = smul.addr %s815, 8
        %s817 = scalar_lea.vmem %s6, %s816
        // Predicated region
        $region86: #{residual_block.5} parent=80 // pred_check
          %p818 = pneg %p209
        $region87: #{residual_block.5} parent=80 // pred_check_branch
          %820 = sbr.rel (%p818) target = $region89
        $region88: #{residual_block.5} parent=80 // pred_region
          _
        $region89: #{residual_block.5} parent=80 // pred_fallthru
          _
      $region81: #{residual_block.5} parent=5 // pred_fallthru
        _
      %p821 = scmp.le.s32.totalorder 2, %s12
      // Predicated region
      $region90: #{residual_block.5} parent=5 // pred_check
        %p822 = pneg %p821
      $region91: #{residual_block.5} parent=5 // pred_check_branch
        %824 = sbr.rel (%p822) target = $region93
      $region92: #{residual_block.5} parent=5 // pred_region
        %s825 = ssub.s32 %s12, 2
        // Predicated region
        $region94: #{residual_block.5} parent=92 // pred_check
          %p826 = pneg %p215
        $region95: #{residual_block.5} parent=92 // pred_check_branch
          %828 = sbr.rel (%p826) target = $region97
        $region96: #{residual_block.5} parent=92 // pred_region
          %p829 = scmp.lt.s32.totalorder %s23, 1
          %s830 = scalar_select %p829, %s23, 1
          %p831 = scmp.lt.s32.totalorder %s24, 0
          %s832 = scalar_select %p831, %s24, 0
          %s833 = smul.addr %s830, 28
          %s834 = sadd.s32 %s832, %s833
          %s835 = smul.addr %s834, 8
          %s836 = scalar_lea.vmem %s6, %s835
        $region97: #{residual_block.5} parent=92 // pred_fallthru
          _
      $region93: #{residual_block.5} parent=5 // pred_fallthru
        _
    $region6: #{residual_block.5} parent=1 // loop_footer
      %s16 = sadd.s32 1, %s12
    $region7: #{residual_block.5} parent=1 // loop_footer_branch
      %11 = sbr.rel target = $region3
    $region8: #{residual_block.5} parent=1 // loop_exit
      _

// kernel: residual_block.3
$region0: #{residual_block.3}
  #allocation0 [shape = 'u32[]', space=smem, size = 0x4, offset = 0x4, fixed_abs, tag = 'smem constant byte address 0x4 - core index']
  #allocation1 [shape = 'u32[72,128]{1,0:T(1,128)}', space=vmem, size = 0x9000, scoped, tag = 'internal scratch']
  %s0 = inlined_call_operand.vmem [shape: f32[2,264,4], index: 0, kind: input, shape index: {}]
  %s1 = inlined_call_operand.vmem [shape: bf16[9,4,256], index: 1, kind: input, shape index: {}]
  %s2 = inlined_call_operand.vmem [shape: f32[1,256], index: 2, kind: input, shape index: {}]
  %s3 = inlined_call_operand.vmem [shape: bf16[2,224,256], index: 3, kind: output, shape index: {0}]
  %s4 = inlined_call_operand.vmem [shape: f32[2,2,256], index: 4, kind: output, shape index: {1}]
  %5 = xla_tuple %s3, %s4
  %s6 = sld [smem:[#allocation0]]
  $region53: #{residual_block.3} parent=0
    _
  %s8 = ssub.s32 1, %s6
  %s9 = scalar_select 0, %s8, %s6
  loop: start=0, step=1, limit=4
  $region2: #{residual_block.3} parent=0 // loop_pre_header
    _
  $region3: #{residual_block.3} parent=0 // loop_header
    %s11 = sphi 0, %s15
    %p12 = scmp.ge.s32.totalorder %s11, 4
    %s18 = sphi 0, %s30
    %s19 = sphi 0, %s26
    %s20 = sphi 0, %s18
    %s21 = sphi 0, %s19
    %s22 = sphi 0, %s20
    %s23 = sphi 0, %s21
    %s33 = sphi 0, %s35
    %s36 = sphi 0, %s33
    %s37 = sphi 0, %s36
    %s53 = sphi 0, %s37
    %s59 = sphi 0, %s61
    %s62 = sphi 0, %s59
    %s63 = sphi 0, %s62
    %s79 = sphi 0, %s63
    %s85 = sphi 0, %s87
    %s88 = sphi 0, %s85
    %s89 = sphi 0, %s88
    %s105 = sphi 0, %s89
    %s113 = sphi 0, %s115
    %s116 = sphi 0, %s113
    %s117 = sphi 0, %s116
    %s133 = sphi 0, %s117
    %s141 = sphi 0, %s143
    %s144 = sphi 0, %s141
    %s145 = sphi 0, %s144
    %s161 = sphi 0, %s145
  $region4: #{residual_block.3} parent=0 // loop_header_branch
    %14 = sbr.rel (%p12) target = $region8
  $region5: #{residual_block.3} parent=0 // loop_body
    %s16 = ssub.s32 %s11, 1
    %s17 = ssub.s32 %s11, 2
    %s24 = sadd.s32 1, %s19
    %p25 = scmp.ge.s32.totalorder %s24, 2
    %s26 = scalar_select %p25, 0, %s24
    %s27 = sadd.s32 1, %s18
    %s28 = scalar_select %p25, %s27, %s18
    %p29 = scmp.ge.s32.totalorder %s28, 1
    %s30 = scalar_select %p29, 0, %s28
    %s31 = ssub.s32 %s19, %s26
    %p32 = scmp.eq.s32.totalorder %s31, 0
    %s34 = sadd.s32 %s33, 1
    %s35 = scalar_select %p32, %s33, %s34
    %p38 = pneg %p32
    %p39 = scmp.eq.s32.totalorder %s11, 1
    %p40 = por %p38, %p39
    %p41 = scmp.ne.s32.totalorder %s33, %s36
    %p42 = scmp.eq.s32.totalorder %s11, 0
    %p43 = por %p41, %p42
    %p44 = scmp.ne.s32.totalorder %s33, %s36
    %p45 = scmp.eq.s32.totalorder %s16, 1
    %p46 = por %p44, %p45
    %p47 = scmp.ne.s32.totalorder %s36, %s37
    %p48 = scmp.eq.s32.totalorder %s16, 0
    %p49 = por %p47, %p48
    %p50 = scmp.ne.s32.totalorder %s36, %s37
    %p51 = scmp.eq.s32.totalorder %s17, 1
    %p52 = por %p50, %p51
    %p54 = scmp.ne.s32.totalorder %s37, %s53
    %p55 = scmp.eq.s32.totalorder %s17, 0
    %p56 = por %p54, %p55
    %s57 = ssub.s32 %s18, %s30
    %p58 = scmp.eq.s32.totalorder %s57, 0
    %s60 = sadd.s32 %s59, 1
    %s61 = scalar_select %p58, %s59, %s60
    %p64 = pneg %p58
    %p65 = scmp.eq.s32.totalorder %s11, 1
    %p66 = por %p64, %p65
    %p67 = scmp.ne.s32.totalorder %s59, %s62
    %p68 = scmp.eq.s32.totalorder %s11, 0
    %p69 = por %p67, %p68
    %p70 = scmp.ne.s32.totalorder %s59, %s62
    %p71 = scmp.eq.s32.totalorder %s16, 1
    %p72 = por %p70, %p71
    %p73 = scmp.ne.s32.totalorder %s62, %s63
    %p74 = scmp.eq.s32.totalorder %s16, 0
    %p75 = por %p73, %p74
    %p76 = scmp.ne.s32.totalorder %s62, %s63
    %p77 = scmp.eq.s32.totalorder %s17, 1
    %p78 = por %p76, %p77
    %p80 = scmp.ne.s32.totalorder %s63, %s79
    %p81 = scmp.eq.s32.totalorder %s17, 0
    %p82 = por %p80, %p81
    %s83 = ssub.s32 %s18, %s30
    %p84 = scmp.eq.s32.totalorder %s83, 0
    %s86 = sadd.s32 %s85, 1
    %s87 = scalar_select %p84, %s85, %s86
    %p90 = pneg %p84
    %p91 = scmp.eq.s32.totalorder %s11, 1
    %p92 = por %p90, %p91
    %p93 = scmp.ne.s32.totalorder %s85, %s88
    %p94 = scmp.eq.s32.totalorder %s11, 0
    %p95 = por %p93, %p94
    %p96 = scmp.ne.s32.totalorder %s85, %s88
    %p97 = scmp.eq.s32.totalorder %s16, 1
    %p98 = por %p96, %p97
    %p99 = scmp.ne.s32.totalorder %s88, %s89
    %p100 = scmp.eq.s32.totalorder %s16, 0
    %p101 = por %p99, %p100
    %p102 = scmp.ne.s32.totalorder %s88, %s89
    %p103 = scmp.eq.s32.totalorder %s17, 1
    %p104 = por %p102, %p103
    %p106 = scmp.ne.s32.totalorder %s89, %s105
    %p107 = scmp.eq.s32.totalorder %s17, 0
    %p108 = por %p106, %p107
    %s109 = ssub.s32 %s19, %s26
    %s110 = ssub.s32 %s18, %s30
    %s111 = sor.u32 %s109, %s110
    %p112 = scmp.eq.s32.totalorder %s111, 0
    %s114 = sadd.s32 %s113, 1
    %s115 = scalar_select %p112, %s113, %s114
    %p118 = pneg %p112
    %p119 = scmp.eq.s32.totalorder %s11, 1
    %p120 = por %p118, %p119
    %p121 = scmp.ne.s32.totalorder %s113, %s116
    %p122 = scmp.eq.s32.totalorder %s11, 0
    %p123 = por %p121, %p122
    %p124 = scmp.ne.s32.totalorder %s113, %s116
    %p125 = scmp.eq.s32.totalorder %s16, 1
    %p126 = por %p124, %p125
    %p127 = scmp.ne.s32.totalorder %s116, %s117
    %p128 = scmp.eq.s32.totalorder %s16, 0
    %p129 = por %p127, %p128
    %p130 = scmp.ne.s32.totalorder %s116, %s117
    %p131 = scmp.eq.s32.totalorder %s17, 1
    %p132 = por %p130, %p131
    %p134 = scmp.ne.s32.totalorder %s117, %s133
    %p135 = scmp.eq.s32.totalorder %s17, 0
    %p136 = por %p134, %p135
    %s137 = ssub.s32 %s19, %s26
    %s138 = ssub.s32 %s18, %s30
    %s139 = sor.u32 %s137, %s138
    %p140 = scmp.eq.s32.totalorder %s139, 0
    %s142 = sadd.s32 %s141, 1
    %s143 = scalar_select %p140, %s141, %s142
    %p146 = pneg %p140
    %p147 = scmp.eq.s32.totalorder %s11, 1
    %p148 = por %p146, %p147
    %p149 = scmp.ne.s32.totalorder %s141, %s144
    %p150 = scmp.eq.s32.totalorder %s11, 0
    %p151 = por %p149, %p150
    %p152 = scmp.ne.s32.totalorder %s141, %s144
    %p153 = scmp.eq.s32.totalorder %s16, 1
    %p154 = por %p152, %p153
    %p155 = scmp.ne.s32.totalorder %s144, %s145
    %p156 = scmp.eq.s32.totalorder %s16, 0
    %p157 = por %p155, %p156
    %p158 = scmp.ne.s32.totalorder %s144, %s145
    %p159 = scmp.eq.s32.totalorder %s17, 1
    %p160 = por %p158, %p159
    %p162 = scmp.ne.s32.totalorder %s145, %s161
    %p163 = scmp.eq.s32.totalorder %s17, 0
    %p164 = por %p162, %p163
    %p165 = scmp.le.s32.totalorder 1, %s11
    %p166 = scmp.lt.s32.totalorder %s11, 3
    %p167 = pnand %p165, %p166
    %p168 = pneg %p167
    // Predicated region
    $region9: #{residual_block.3} parent=5 // pred_check
      _
    $region10: #{residual_block.3} parent=5 // pred_check_branch
      %170 = sbr.rel (%p167) target = $region12
    $region11: #{residual_block.3} parent=5 // pred_region
      %s171 = ssub.s32 %s11, 1
      // Predicated region
      $region13: #{residual_block.3} parent=11 // pred_check
        %p172 = pneg %p75
      $region14: #{residual_block.3} parent=11 // pred_check_branch
        %174 = sbr.rel (%p172) target = $region16
      $region15: #{residual_block.3} parent=11 // pred_region
        %s175 = smul.u32 2, %s20
        %p176 = scmp.lt.s32.totalorder %s175, 1
        %s177 = scalar_select %p176, %s175, 1
        %s178 = smul.addr %s177, 2
        %s179 = scalar_lea.vmem %s1, %s178
        %s180 = smul.u32 2, %s20
      $region16: #{residual_block.3} parent=11 // pred_fallthru
        _
      // Predicated region
      $region17: #{residual_block.3} parent=11 // pred_check
        %p181 = pneg %p101
      $region18: #{residual_block.3} parent=11 // pred_check_branch
        %183 = sbr.rel (%p181) target = $region20
      $region19: #{residual_block.3} parent=11 // pred_region
        %s184 = smul.u32 2, %s20
        %p185 = scmp.lt.s32.totalorder %s184, 1
        %s186 = scalar_select %p185, %s184, 1
        %s187 = scalar_lea.vmem %s2, %s186
        %s188 = smul.u32 2, %s20
      $region20: #{residual_block.3} parent=11 // pred_fallthru
        _
    $region12: #{residual_block.3} parent=5 // pred_fallthru
      _
    %p189 = scmp.lt.s32.totalorder %s11, 2
    // Predicated region
    $region21: #{residual_block.3} parent=5 // pred_check
      %p190 = pneg %p189
    $region22: #{residual_block.3} parent=5 // pred_check_branch
      %192 = sbr.rel (%p190) target = $region24
    $region23: #{residual_block.3} parent=5 // pred_region
      // Predicated region
      $region25: #{residual_block.3} parent=23 // pred_check
        %p193 = pneg %p43
      $region26: #{residual_block.3} parent=23 // pred_check_branch
        %195 = sbr.rel (%p193) target = $region28
      $region27: #{residual_block.3} parent=23 // pred_region
        %p196 = scmp.lt.s32.totalorder %s19, 1
        %s197 = scalar_select %p196, %s19, 1
        %s198 = smul.addr %s197, 33
        %s199 = smul.addr %s198, 8
        %s200 = scalar_lea.vmem %s0, %s199
      $region28: #{residual_block.3} parent=23 // pred_fallthru
        _
    $region24: #{residual_block.3} parent=5 // pred_fallthru
      _
    %p201 = scmp.le.s32.totalorder 1, %s11
    %p202 = scmp.lt.s32.totalorder %s11, 3
    %p203 = pnand %p201, %p202
    %p204 = pneg %p203
    // Predicated region
    $region29: #{residual_block.3} parent=5 // pred_check
      _
    $region30: #{residual_block.3} parent=5 // pred_check_branch
      %206 = sbr.rel (%p203) target = $region32
    $region31: #{residual_block.3} parent=5 // pred_region
      %s207 = ssub.s32 %s11, 1
      %p208 = scmp.lt.s32.totalorder %s21, 1
      %s209 = scalar_select %p208, %s21, 1
      %s210 = smul.addr %s209, 33
      %s211 = smul.addr %s210, 8
      %s212 = scalar_lea.vmem %s0, %s211
      %p213 = pneg %p49
      %p214 = pneg %p46
      %s215 = smul.u32 2, %s20
      %p216 = scmp.lt.s32.totalorder %s215, 1
      %s217 = scalar_select %p216, %s215, 1
      %s218 = smul.addr %s217, 2
      %s219 = scalar_lea.vmem %s1, %s218
      %p220 = pneg %p75
      %p221 = pneg %p72
      %s222 = smul.u32 2, %s20
      %p223 = scmp.lt.s32.totalorder %s222, 1
      %s224 = scalar_select %p223, %s222, 1
      %s225 = scalar_lea.vmem %s2, %s224
      %p226 = pneg %p101
      %p227 = pneg %p98
      %p228 = pneg %p129
      %p229 = pneg %p126
      %s230 = smul.u32 2, %s20
      %p231 = scmp.lt.s32.totalorder %s21, 1
      %s232 = scalar_select %p231, %s21, 1
      %p233 = scmp.lt.s32.totalorder %s230, 1
      %s234 = scalar_select %p233, %s230, 1
      %s235 = smul.addr %s232, 56
      %s236 = sadd.s32 %s234, %s235
      %s237 = smul.addr %s236, 4
      %s238 = scalar_lea.vmem %s3, %s237
      %p239 = pneg %p157
      %p240 = pneg %p154
      %s241 = smul.u32 2, %s20
      %p242 = scmp.lt.s32.totalorder %s21, 1
      %s243 = scalar_select %p242, %s21, 1
      %p244 = scmp.lt.s32.totalorder %s241, 1
      %s245 = scalar_select %p244, %s241, 1
      %s246 = smul.addr %s243, 2
      %s247 = sadd.s32 %s245, %s246
      %s248 = smul.addr %s247, 2
      %s249 = scalar_lea.vmem %s4, %s248
      %p250 = scmp.lt.s32.totalorder %s21, 1
      %s251 = scalar_select %p250, %s21, 1
      %s252 = smul.addr %s251, 33
      %s253 = smul.addr %s252, 8
      %s254 = scalar_lea.vmem %s0, %s253
      %s255 = smul.u32 2, %s20
      %p256 = scmp.lt.s32.totalorder %s255, 1
      %s257 = scalar_select %p256, %s255, 1
      %s258 = smul.addr %s257, 2
      %s259 = scalar_lea.vmem %s1, %s258
      %s260 = smul.u32 2, %s20
      %s261 = smul.u32 2, %s20
      %p262 = scmp.lt.s32.totalorder %s261, 1
      %s263 = scalar_select %p262, %s261, 1
      %s264 = scalar_lea.vmem %s2, %s263
      %s265 = smul.u32 2, %s20
      %s266 = smul.u32 2, %s20
      %p267 = scmp.lt.s32.totalorder %s21, 1
      %s268 = scalar_select %p267, %s21, 1
      %p269 = scmp.lt.s32.totalorder %s266, 1
      %s270 = scalar_select %p269, %s266, 1
      %s271 = smul.addr %s268, 56
      %s272 = sadd.s32 %s270, %s271
      %s273 = smul.addr %s272, 4
      %s274 = scalar_lea.vmem %s3, %s273
      %s275 = smul.u32 2, %s20
      %s276 = smul.u32 2, %s20
      %p277 = scmp.lt.s32.totalorder %s21, 1
      %s278 = scalar_select %p277, %s21, 1
      %p279 = scmp.lt.s32.totalorder %s276, 1
      %s280 = scalar_select %p279, %s276, 1
      %s281 = smul.addr %s278, 2
      %s282 = sadd.s32 %s280, %s281
      %s283 = smul.addr %s282, 2
      %s284 = scalar_lea.vmem %s4, %s283
      %s285 = smul.u32 2, %s20
      %v287 = vld [vmem:[%s254] sm:$0xff]
      %v288 = vld [vmem:[%s254 + $0x8] sm:$0xff]
      %v289 = vld [vmem:[%s254 + $0x10] sm:$0xff]
      %v290 = vld [vmem:[%s254 + $0x18] sm:$0xff]
      %v291 = vld [vmem:[%s254 + $0x20] sm:$0xff]
      %v292 = vld [vmem:[%s254 + $0x28] sm:$0xff]
      %v293 = vld [vmem:[%s254 + $0x30] sm:$0xff]
      %v294 = vld [vmem:[%s254 + $0x38] sm:$0xff]
      %v295 = vld [vmem:[%s254 + $0x40] sm:$0xff]
      %v296 = vld [vmem:[%s254 + $0x48] sm:$0xff]
      %v297 = vld [vmem:[%s254 + $0x50] sm:$0xff]
      %v298 = vld [vmem:[%s254 + $0x58] sm:$0xff]
      %v299 = vld [vmem:[%s254 + $0x60] sm:$0xff]
      %v300 = vld [vmem:[%s254 + $0x68] sm:$0xff]
      %v301 = vld [vmem:[%s254 + $0x70] sm:$0xff]
      %v302 = vld [vmem:[%s254 + $0x78] sm:$0xff]
      %v303 = vld [vmem:[%s254 + $0x80] sm:$0xff]
      %v304 = vld [vmem:[%s254 + $0x88] sm:$0xff]
      %v305 = vld [vmem:[%s254 + $0x90] sm:$0xff]
      %v306 = vld [vmem:[%s254 + $0x98] sm:$0xff]
      %v307 = vld [vmem:[%s254 + $0xa0] sm:$0xff]
      %v308 = vld [vmem:[%s254 + $0xa8] sm:$0xff]
      %v309 = vld [vmem:[%s254 + $0xb0] sm:$0xff]
      %v310 = vld [vmem:[%s254 + $0xb8] sm:$0xff]
      %v311 = vld [vmem:[%s254 + $0xc0] sm:$0xff]
      %v312 = vld [vmem:[%s254 + $0xc8] sm:$0xff]
      %v313 = vld [vmem:[%s254 + $0xd0] sm:$0xff]
      %v314 = vld [vmem:[%s254 + $0xd8] sm:$0xff]
      %v315 = vpack.c.bf16 %v288, %v287
      %v316 = vpack.c.bf16 %v290, %v289
      %v317 = vpack.c.bf16 %v292, %v291
      %v318 = vpack.c.bf16 %v294, %v293
      %v319 = vpack.c.bf16 %v296, %v295
      %v320 = vpack.c.bf16 %v298, %v297
      %v321 = vpack.c.bf16 %v300, %v299
      %v322 = vpack.c.bf16 %v302, %v301
      %v323 = vpack.c.bf16 %v304, %v303
      %v324 = vpack.c.bf16 %v306, %v305
      %v325 = vpack.c.bf16 %v308, %v307
      %v326 = vpack.c.bf16 %v310, %v309
      %v327 = vpack.c.bf16 %v312, %v311
      %v328 = vpack.c.bf16 %v314, %v313
      %v329 = vld [vmem:[%s259] sm:$0xf]
      %v330 = vld [vmem:[%s254 + $0x1] sm:$0xff]
      %v331 = vld [vmem:[%s254 + $0x9] sm:$0xff]
      %v332 = vld [vmem:[%s254 + $0x11] sm:$0xff]
      %v333 = vld [vmem:[%s254 + $0x19] sm:$0xff]
      %v334 = vld [vmem:[%s254 + $0x21] sm:$0xff]
      %v335 = vld [vmem:[%s254 + $0x29] sm:$0xff]
      %v336 = vld [vmem:[%s254 + $0x31] sm:$0xff]
      %v337 = vld [vmem:[%s254 + $0x39] sm:$0xff]
      %v338 = vld [vmem:[%s254 + $0x41] sm:$0xff]
      %v339 = vld [vmem:[%s254 + $0x49] sm:$0xff]
      %v340 = vld [vmem:[%s254 + $0x51] sm:$0xff]
      %v341 = vld [vmem:[%s254 + $0x59] sm:$0xff]
      %v342 = vld [vmem:[%s254 + $0x61] sm:$0xff]
      %v343 = vld [vmem:[%s254 + $0x69] sm:$0xff]
      %v344 = vld [vmem:[%s254 + $0x71] sm:$0xff]
      %v345 = vld [vmem:[%s254 + $0x79] sm:$0xff]
      %v346 = vld [vmem:[%s254 + $0x81] sm:$0xff]
      %v347 = vld [vmem:[%s254 + $0x89] sm:$0xff]
      %v348 = vld [vmem:[%s254 + $0x91] sm:$0xff]
      %v349 = vld [vmem:[%s254 + $0x99] sm:$0xff]
      %v350 = vld [vmem:[%s254 + $0xa1] sm:$0xff]
      %v351 = vld [vmem:[%s254 + $0xa9] sm:$0xff]
      %v352 = vld [vmem:[%s254 + $0xb1] sm:$0xff]
      %v353 = vld [vmem:[%s254 + $0xb9] sm:$0xff]
      %v354 = vld [vmem:[%s254 + $0xc1] sm:$0xff]
      %v355 = vld [vmem:[%s254 + $0xc9] sm:$0xff]
      %v356 = vld [vmem:[%s254 + $0xd1] sm:$0xff]
      %v357 = vld [vmem:[%s254 + $0xd9] sm:$0xff]
      %v358 = vpack.c.bf16 %v331, %v330
      %v359 = vpack.c.bf16 %v333, %v332
      %v360 = vpack.c.bf16 %v335, %v334
      %v361 = vpack.c.bf16 %v337, %v336
      %v362 = vpack.c.bf16 %v339, %v338
      %v363 = vpack.c.bf16 %v341, %v340
      %v364 = vpack.c.bf16 %v343, %v342
      %v365 = vpack.c.bf16 %v345, %v344
      %v366 = vpack.c.bf16 %v347, %v346
      %v367 = vpack.c.bf16 %v349, %v348
      %v368 = vpack.c.bf16 %v351, %v350
      %v369 = vpack.c.bf16 %v353, %v352
      %v370 = vpack.c.bf16 %v355, %v354
      %v371 = vpack.c.bf16 %v357, %v356
      %s372 = scalar_lea.vmem %s259, 4
      %v373 = vld [vmem:[%s372] sm:$0xf]
      %375 = vst [vmem:[#allocation1] ss:$4 sm:$0xff] %v373
      %v376 = vld.sshfl [vmem:[#allocation1] sm:$0xff pattern:$0x73625140]
      %v377 = vld.sshfl [vmem:[#allocation1 + $0x8] sm:$0xff pattern:$0x73625140]
      %vm378 = vcmask 31744
      %v380 = vsel %vm378, %v358, 0
      %v383 = vsel %vm378, %v359, 0
      %v386 = vsel %vm378, %v360, 0
      %v389 = vsel %vm378, %v361, 0
      %v392 = vsel %vm378, %v362, 0
      %v395 = vsel %vm378, %v363, 0
      %v398 = vsel %vm378, %v364, 0
      %v401 = vsel %vm378, %v365, 0
      %v404 = vsel %vm378, %v366, 0
      %v407 = vsel %vm378, %v367, 0
      %v410 = vsel %vm378, %v368, 0
      %v413 = vsel %vm378, %v369, 0
      %v416 = vsel %vm378, %v370, 0
      %v419 = vsel %vm378, %v371, 0
      %vm421 = vcmask 1041408
      %v422 = vsel %vm421, %v376, 0
      %v424 = vsel %vm421, %v377, 0
      %426 = vmatpush.bf16.msra.mxu0 0
      %427 = vmatpush.bf16.msra.mxu0 0
      %428 = vmatpush.bf16.msra.mxu0 0
      %429 = vmatpush.bf16.msra.mxu0 0
      %430 = vmatpush.bf16.msra.mxu0 0
      %431 = vmatpush.bf16.msra.mxu0 0
      %432 = vmatpush.bf16.msra.mxu0 0
      %433 = vmatpush.bf16.msra.mxu0 %v422
      %434 = vmatmul.bf16.gmra.mxu0 %v380
      %v435 = vpop.f32.mrf.mxu0
      %v436 = vadd.f32 0.0, %v435
      %v437 = vpop.f32.mrf.mxu0
      %v438 = vadd.f32 0.0, %v437
      %439 = vmatmul.bf16.gmra.mxu0 %v383
      %v440 = vpop.f32.mrf.mxu0
      %v441 = vadd.f32 0.0, %v440
      %v442 = vpop.f32.mrf.mxu0
      %v443 = vadd.f32 0.0, %v442
      %444 = vmatmul.bf16.gmra.mxu0 %v386
      %v445 = vpop.f32.mrf.mxu0
      %v446 = vadd.f32 0.0, %v445
      %v447 = vpop.f32.mrf.mxu0
      %v448 = vadd.f32 0.0, %v447
      %449 = vmatmul.bf16.gmra.mxu0 %v389
      %v450 = vpop.f32.mrf.mxu0
      %v451 = vadd.f32 0.0, %v450
      %v452 = vpop.f32.mrf.mxu0
      %v453 = vadd.f32 0.0, %v452
      %454 = vmatmul.bf16.gmra.mxu0 %v392
      %v455 = vpop.f32.mrf.mxu0
      %v456 = vadd.f32 0.0, %v455
      %v457 = vpop.f32.mrf.mxu0
      %v458 = vadd.f32 0.0, %v457
      %459 = vmatmul.bf16.gmra.mxu0 %v395
      %v460 = vpop.f32.mrf.mxu0
      %v461 = vadd.f32 0.0, %v460
      %v462 = vpop.f32.mrf.mxu0
      %v463 = vadd.f32 0.0, %v462
      %464 = vmatmul.bf16.gmra.mxu0 %v398
      %v465 = vpop.f32.mrf.mxu0
      %v466 = vadd.f32 0.0, %v465
      %v467 = vpop.f32.mrf.mxu0
      %v468 = vadd.f32 0.0, %v467
      %469 = vmatmul.bf16.gmra.mxu0 %v401
      %v470 = vpop.f32.mrf.mxu0
      %v471 = vadd.f32 0.0, %v470
      %v472 = vpop.f32.mrf.mxu0
      %v473 = vadd.f32 0.0, %v472
      %474 = vmatmul.bf16.gmra.mxu0 %v404
      %v475 = vpop.f32.mrf.mxu0
      %v476 = vadd.f32 0.0, %v475
      %v477 = vpop.f32.mrf.mxu0
      %v478 = vadd.f32 0.0, %v477
      %479 = vmatmul.bf16.gmra.mxu0 %v407
      %v480 = vpop.f32.mrf.mxu0
      %v481 = vadd.f32 0.0, %v480
      %v482 = vpop.f32.mrf.mxu0
      %v483 = vadd.f32 0.0, %v482
      %484 = vmatmul.bf16.gmra.mxu0 %v410
      %v485 = vpop.f32.mrf.mxu0
      %v486 = vadd.f32 0.0, %v485
      %v487 = vpop.f32.mrf.mxu0
      %v488 = vadd.f32 0.0, %v487
      %489 = vmatmul.bf16.gmra.mxu0 %v413
      %v490 = vpop.f32.mrf.mxu0
      %v491 = vadd.f32 0.0, %v490
      %v492 = vpop.f32.mrf.mxu0
      %v493 = vadd.f32 0.0, %v492
      %494 = vmatmul.bf16.gmra.mxu0 %v416
      %v495 = vpop.f32.mrf.mxu0
      %v496 = vadd.f32 0.0, %v495
      %v497 = vpop.f32.mrf.mxu0
      %v498 = vadd.f32 0.0, %v497
      %499 = vmatmul.bf16.gmra.mxu0 %v419
      %v500 = vpop.f32.mrf.mxu0
      %v501 = vadd.f32 0.0, %v500
      %v502 = vpop.f32.mrf.mxu0
      %v503 = vadd.f32 0.0, %v502
      %504 = vdwg.mxu0
      %505 = vmatpush.bf16.msra.mxu0 0
      %506 = vmatpush.bf16.msra.mxu0 0
      %507 = vmatpush.bf16.msra.mxu0 0
      %508 = vmatpush.bf16.msra.mxu0 0
      %509 = vmatpush.bf16.msra.mxu0 0
      %510 = vmatpush.bf16.msra.mxu0 0
      %511 = vmatpush.bf16.msra.mxu0 0
      %512 = vmatpush.bf16.msra.mxu0 %v424
      %513 = vmatmul.bf16.gmra.mxu0 %v380
      %v514 = vpop.f32.mrf.mxu0
      %v515 = vadd.f32 0.0, %v514
      %v516 = vpop.f32.mrf.mxu0
      %v517 = vadd.f32 0.0, %v516
      %518 = vmatmul.bf16.gmra.mxu0 %v383
      %v519 = vpop.f32.mrf.mxu0
      %v520 = vadd.f32 0.0, %v519
      %v521 = vpop.f32.mrf.mxu0
      %v522 = vadd.f32 0.0, %v521
      %523 = vmatmul.bf16.gmra.mxu0 %v386
      %v524 = vpop.f32.mrf.mxu0
      %v525 = vadd.f32 0.0, %v524
      %v526 = vpop.f32.mrf.mxu0
      %v527 = vadd.f32 0.0, %v526
      %528 = vmatmul.bf16.gmra.mxu0 %v389
      %v529 = vpop.f32.mrf.mxu0
      %v530 = vadd.f32 0.0, %v529
      %v531 = vpop.f32.mrf.mxu0
      %v532 = vadd.f32 0.0, %v531
      %533 = vmatmul.bf16.gmra.mxu0 %v392
      %v534 = vpop.f32.mrf.mxu0
      %v535 = vadd.f32 0.0, %v534
      %v536 = vpop.f32.mrf.mxu0
      %v537 = vadd.f32 0.0, %v536
      %538 = vmatmul.bf16.gmra.mxu0 %v395
      %v539 = vpop.f32.mrf.mxu0
      %v540 = vadd.f32 0.0, %v539
      %v541 = vpop.f32.mrf.mxu0
      %v542 = vadd.f32 0.0, %v541
      %543 = vmatmul.bf16.gmra.mxu0 %v398
      %v544 = vpop.f32.mrf.mxu0
      %v545 = vadd.f32 0.0, %v544
      %v546 = vpop.f32.mrf.mxu0
      %v547 = vadd.f32 0.0, %v546
      %548 = vmatmul.bf16.gmra.mxu0 %v401
      %v549 = vpop.f32.mrf.mxu0
      %v550 = vadd.f32 0.0, %v549
      %v551 = vpop.f32.mrf.mxu0
      %v552 = vadd.f32 0.0, %v551
      %553 = vmatmul.bf16.gmra.mxu0 %v404
      %v554 = vpop.f32.mrf.mxu0
      %v555 = vadd.f32 0.0, %v554
      %v556 = vpop.f32.mrf.mxu0
      %v557 = vadd.f32 0.0, %v556
      %558 = vmatmul.bf16.gmra.mxu0 %v407
      %v559 = vpop.f32.mrf.mxu0
      %v560 = vadd.f32 0.0, %v559
      %v561 = vpop.f32.mrf.mxu0
      %v562 = vadd.f32 0.0, %v561
      %563 = vmatmul.bf16.gmra.mxu0 %v410
      %v564 = vpop.f32.mrf.mxu0
      %v565 = vadd.f32 0.0, %v564
      %v566 = vpop.f32.mrf.mxu0
      %v567 = vadd.f32 0.0, %v566
      %568 = vmatmul.bf16.gmra.mxu0 %v413
      %v569 = vpop.f32.mrf.mxu0
      %v570 = vadd.f32 0.0, %v569
      %v571 = vpop.f32.mrf.mxu0
      %v572 = vadd.f32 0.0, %v571
      %573 = vmatmul.bf16.gmra.mxu0 %v416
      %v574 = vpop.f32.mrf.mxu0
      %v575 = vadd.f32 0.0, %v574
      %v576 = vpop.f32.mrf.mxu0
      %v577 = vadd.f32 0.0, %v576
      %578 = vmatmul.bf16.gmra.mxu0 %v419
      %v579 = vpop.f32.mrf.mxu0
      %v580 = vadd.f32 0.0, %v579
      %v581 = vpop.f32.mrf.mxu0
      %v582 = vadd.f32 0.0, %v581
      %583 = vdwg.mxu0
      %585 = vst [vmem:[#allocation1] ss:$4 sm:$0xff] %v329
      %v586 = vld.sshfl [vmem:[#allocation1] sm:$0xff pattern:$0x73625140]
      %v587 = vld.sshfl [vmem:[#allocation1 + $0x8] sm:$0xff pattern:$0x73625140]
      %v589 = vsel %vm378, %v315, 0
      %v592 = vsel %vm378, %v316, 0
      %v595 = vsel %vm378, %v317, 0
      %v598 = vsel %vm378, %v318, 0
      %v601 = vsel %vm378, %v319, 0
      %v604 = vsel %vm378, %v320, 0
      %v607 = vsel %vm378, %v321, 0
      %v610 = vsel %vm378, %v322, 0
      %v613 = vsel %vm378, %v323, 0
      %v616 = vsel %vm378, %v324, 0
      %v619 = vsel %vm378, %v325, 0
      %v622 = vsel %vm378, %v326, 0
      %v625 = vsel %vm378, %v327, 0
      %v628 = vsel %vm378, %v328, 0
      %v630 = vsel %vm421, %v586, 0
      %v632 = vsel %vm421, %v587, 0
      %634 = vmatpush.bf16.msra.mxu0 0
      %635 = vmatpush.bf16.msra.mxu0 0
      %636 = vmatpush.bf16.msra.mxu0 0
      %637 = vmatpush.bf16.msra.mxu0 0
      %638 = vmatpush.bf16.msra.mxu0 0
      %639 = vmatpush.bf16.msra.mxu0 0
      %640 = vmatpush.bf16.msra.mxu0 0
      %641 = vmatpush.bf16.msra.mxu0 %v630
      %642 = vmatmul.bf16.gmra.mxu0 %v589
      %v643 = vpop.f32.mrf.mxu0
      %v644 = vadd.f32 %v436, %v643
      %v645 = vpop.f32.mrf.mxu0
      %v646 = vadd.f32 %v438, %v645
      %647 = vmatmul.bf16.gmra.mxu0 %v592
      %v648 = vpop.f32.mrf.mxu0
      %v649 = vadd.f32 %v441, %v648
      %v650 = vpop.f32.mrf.mxu0
      %v651 = vadd.f32 %v443, %v650
      %652 = vmatmul.bf16.gmra.mxu0 %v595
      %v653 = vpop.f32.mrf.mxu0
      %v654 = vadd.f32 %v446, %v653
      %v655 = vpop.f32.mrf.mxu0
      %v656 = vadd.f32 %v448, %v655
      %657 = vmatmul.bf16.gmra.mxu0 %v598
      %v658 = vpop.f32.mrf.mxu0
      %v659 = vadd.f32 %v451, %v658
      %v660 = vpop.f32.mrf.mxu0
      %v661 = vadd.f32 %v453, %v660
      %662 = vmatmul.bf16.gmra.mxu0 %v601
      %v663 = vpop.f32.mrf.mxu0
      %v664 = vadd.f32 %v456, %v663
      %v665 = vpop.f32.mrf.mxu0
      %v666 = vadd.f32 %v458, %v665
      %667 = vmatmul.bf16.gmra.mxu0 %v604
      %v668 = vpop.f32.mrf.mxu0
      %v669 = vadd.f32 %v461, %v668
      %v670 = vpop.f32.mrf.mxu0
      %v671 = vadd.f32 %v463, %v670
      %672 = vmatmul.bf16.gmra.mxu0 %v607
      %v673 = vpop.f32.mrf.mxu0
      %v674 = vadd.f32 %v466, %v673
      %v675 = vpop.f32.mrf.mxu0
      %v676 = vadd.f32 %v468, %v675
      %677 = vmatmul.bf16.gmra.mxu0 %v610
      %v678 = vpop.f32.mrf.mxu0
      %v679 = vadd.f32 %v471, %v678
      %v680 = vpop.f32.mrf.mxu0
      %v681 = vadd.f32 %v473, %v680
      %682 = vmatmul.bf16.gmra.mxu0 %v613
      %v683 = vpop.f32.mrf.mxu0
      %v684 = vadd.f32 %v476, %v683
      %v685 = vpop.f32.mrf.mxu0
      %v686 = vadd.f32 %v478, %v685
      %687 = vmatmul.bf16.gmra.mxu0 %v616
      %v688 = vpop.f32.mrf.mxu0
      %v689 = vadd.f32 %v481, %v688
      %v690 = vpop.f32.mrf.mxu0
      %v691 = vadd.f32 %v483, %v690
      %692 = vmatmul.bf16.gmra.mxu0 %v619
      %v693 = vpop.f32.mrf.mxu0
      %v694 = vadd.f32 %v486, %v693
      %v695 = vpop.f32.mrf.mxu0
      %v696 = vadd.f32 %v488, %v695
      %697 = vmatmul.bf16.gmra.mxu0 %v622
      %v698 = vpop.f32.mrf.mxu0
      %v699 = vadd.f32 %v491, %v698
      %v700 = vpop.f32.mrf.mxu0
      %v701 = vadd.f32 %v493, %v700
      %702 = vmatmul.bf16.gmra.mxu0 %v625
      %v703 = vpop.f32.mrf.mxu0
      %v704 = vadd.f32 %v496, %v703
      %v705 = vpop.f32.mrf.mxu0
      %v706 = vadd.f32 %v498, %v705
      %707 = vmatmul.bf16.gmra.mxu0 %v628
      %v708 = vpop.f32.mrf.mxu0
      %v709 = vadd.f32 %v501, %v708
      %v710 = vpop.f32.mrf.mxu0
      %v711 = vadd.f32 %v503, %v710
      %712 = vdwg.mxu0
      %713 = vmatpush.bf16.msra.mxu0 0
      %714 = vmatpush.bf16.msra.mxu0 0
      %715 = vmatpush.bf16.msra.mxu0 0
      %716 = vmatpush.bf16.msra.mxu0 0
      %717 = vmatpush.bf16.msra.mxu0 0
      %718 = vmatpush.bf16.msra.mxu0 0
      %719 = vmatpush.bf16.msra.mxu0 0
      %720 = vmatpush.bf16.msra.mxu0 %v632
      %721 = vmatmul.bf16.gmra.mxu0 %v589
      %v722 = vpop.f32.mrf.mxu0
      %v723 = vadd.f32 %v515, %v722
      %v724 = vpop.f32.mrf.mxu0
      %v725 = vadd.f32 %v517, %v724
      %726 = vmatmul.bf16.gmra.mxu0 %v592
      %v727 = vpop.f32.mrf.mxu0
      %v728 = vadd.f32 %v520, %v727
      %v729 = vpop.f32.mrf.mxu0
      %v730 = vadd.f32 %v522, %v729
      %731 = vmatmul.bf16.gmra.mxu0 %v595
      %v732 = vpop.f32.mrf.mxu0
      %v733 = vadd.f32 %v525, %v732
      %v734 = vpop.f32.mrf.mxu0
      %v735 = vadd.f32 %v527, %v734
      %736 = vmatmul.bf16.gmra.mxu0 %v598
      %v737 = vpop.f32.mrf.mxu0
      %v738 = vadd.f32 %v530, %v737
      %v739 = vpop.f32.mrf.mxu0
      %v740 = vadd.f32 %v532, %v739
      %741 = vmatmul.bf16.gmra.mxu0 %v601
      %v742 = vpop.f32.mrf.mxu0
      %v743 = vadd.f32 %v535, %v742
      %v744 = vpop.f32.mrf.mxu0
      %v745 = vadd.f32 %v537, %v744
      %746 = vmatmul.bf16.gmra.mxu0 %v604
      %v747 = vpop.f32.mrf.mxu0
      %v748 = vadd.f32 %v540, %v747
      %v749 = vpop.f32.mrf.mxu0
      %v750 = vadd.f32 %v542, %v749
      %751 = vmatmul.bf16.gmra.mxu0 %v607
      %v752 = vpop.f32.mrf.mxu0
      %v753 = vadd.f32 %v545, %v752
      %v754 = vpop.f32.mrf.mxu0
      %v755 = vadd.f32 %v547, %v754
      %756 = vmatmul.bf16.gmra.mxu0 %v610
      %v757 = vpop.f32.mrf.mxu0
      %v758 = vadd.f32 %v550, %v757
      %v759 = vpop.f32.mrf.mxu0
      %v760 = vadd.f32 %v552, %v759
      %761 = vmatmul.bf16.gmra.mxu0 %v613
      %v762 = vpop.f32.mrf.mxu0
      %v763 = vadd.f32 %v555, %v762
      %v764 = vpop.f32.mrf.mxu0
      %v765 = vadd.f32 %v557, %v764
      %766 = vmatmul.bf16.gmra.mxu0 %v616
      %v767 = vpop.f32.mrf.mxu0
      %v768 = vadd.f32 %v560, %v767
      %v769 = vpop.f32.mrf.mxu0
      %v770 = vadd.f32 %v562, %v769
      %771 = vmatmul.bf16.gmra.mxu0 %v619
      %v772 = vpop.f32.mrf.mxu0
      %v773 = vadd.f32 %v565, %v772
      %v774 = vpop.f32.mrf.mxu0
      %v775 = vadd.f32 %v567, %v774
      %776 = vmatmul.bf16.gmra.mxu0 %v622
      %v777 = vpop.f32.mrf.mxu0
      %v778 = vadd.f32 %v570, %v777
      %v779 = vpop.f32.mrf.mxu0
      %v780 = vadd.f32 %v572, %v779
      %781 = vmatmul.bf16.gmra.mxu0 %v625
      %v782 = vpop.f32.mrf.mxu0
      %v783 = vadd.f32 %v575, %v782
      %v784 = vpop.f32.mrf.mxu0
      %v785 = vadd.f32 %v577, %v784
      %786 = vmatmul.bf16.gmra.mxu0 %v628
      %v787 = vpop.f32.mrf.mxu0
      %v788 = vadd.f32 %v580, %v787
      %v789 = vpop.f32.mrf.mxu0
      %v790 = vadd.f32 %v582, %v789
      %791 = vdwg.mxu0
      %v792 = vld [vmem:[%s254 + $0x2] sm:$0xff]
      %v793 = vld [vmem:[%s254 + $0xa] sm:$0xff]
      %v794 = vld [vmem:[%s254 + $0x12] sm:$0xff]
      %v795 = vld [vmem:[%s254 + $0x1a] sm:$0xff]
      %v796 = vld [vmem:[%s254 + $0x22] sm:$0xff]
      %v797 = vld [vmem:[%s254 + $0x2a] sm:$0xff]
      %v798 = vld [vmem:[%s254 + $0x32] sm:$0xff]
      %v799 = vld [vmem:[%s254 + $0x3a] sm:$0xff]
      %v800 = vld [vmem:[%s254 + $0x42] sm:$0xff]
      %v801 = vld [vmem:[%s254 + $0x4a] sm:$0xff]
      %v802 = vld [vmem:[%s254 + $0x52] sm:$0xff]
      %v803 = vld [vmem:[%s254 + $0x5a] sm:$0xff]
      %v804 = vld [vmem:[%s254 + $0x62] sm:$0xff]
      %v805 = vld [vmem:[%s254 + $0x6a] sm:$0xff]
      %v806 = vld [vmem:[%s254 + $0x72] sm:$0xff]
      %v807 = vld [vmem:[%s254 + $0x7a] sm:$0xff]
      %v808 = vld [vmem:[%s254 + $0x82] sm:$0xff]
      %v809 = vld [vmem:[%s254 + $0x8a] sm:$0xff]
      %v810 = vld [vmem:[%s254 + $0x92] sm:$0xff]
      %v811 = vld [vmem:[%s254 + $0x9a] sm:$0xff]
      %v812 = vld [vmem:[%s254 + $0xa2] sm:$0xff]
      %v813 = vld [vmem:[%s254 + $0xaa] sm:$0xff]
      %v814 = vld [vmem:[%s254 + $0xb2] sm:$0xff]
      %v815 = vld [vmem:[%s254 + $0xba] sm:$0xff]
      %v816 = vld [vmem:[%s254 + $0xc2] sm:$0xff]
      %v817 = vld [vmem:[%s254 + $0xca] sm:$0xff]
      %v818 = vld [vmem:[%s254 + $0xd2] sm:$0xff]
      %v819 = vld [vmem:[%s254 + $0xda] sm:$0xff]
      %v820 = vpack.c.bf16 %v793, %v792
      %v821 = vpack.c.bf16 %v795, %v794
      %v822 = vpack.c.bf16 %v797, %v796
      %v823 = vpack.c.bf16 %v799, %v798
      %v824 = vpack.c.bf16 %v801, %v800
      %v825 = vpack.c.bf16 %v803, %v802
      %v826 = vpack.c.bf16 %v805, %v804
      %v827 = vpack.c.bf16 %v807, %v806
      %v828 = vpack.c.bf16 %v809, %v808
      %v829 = vpack.c.bf16 %v811, %v810
      %v830 = vpack.c.bf16 %v813, %v812
      %v831 = vpack.c.bf16 %v815, %v814
      %v832 = vpack.c.bf16 %v817, %v816
      %v833 = vpack.c.bf16 %v819, %v818
      %s834 = scalar_lea.vmem %s259, 8
      %v835 = vld [vmem:[%s834] sm:$0xf]
      %837 = vst [vmem:[#allocation1] ss:$4 sm:$0xff] %v835
      %v838 = vld.sshfl [vmem:[#allocation1] sm:$0xff pattern:$0x73625140]
      %v839 = vld.sshfl [vmem:[#allocation1 + $0x8] sm:$0xff pattern:$0x73625140]
      %v841 = vsel %vm378, %v820, 0
      %v844 = vsel %vm378, %v821, 0
      %v847 = vsel %vm378, %v822, 0
      %v850 = vsel %vm378, %v823, 0
      %v853 = vsel %vm378, %v824, 0
      %v856 = vsel %vm378, %v825, 0
      %v859 = vsel %vm378, %v826, 0
      %v862 = vsel %vm378, %v827, 0
      %v865 = vsel %vm378, %v828, 0
      %v868 = vsel %vm378, %v829, 0
      %v871 = vsel %vm378, %v830, 0
      %v874 = vsel %vm378, %v831, 0
      %v877 = vsel %vm378, %v832, 0
      %v880 = vsel %vm378, %v833, 0
      %v882 = vsel %vm421, %v838, 0
      %v884 = vsel %vm421, %v839, 0
      %886 = vmatpush.bf16.msra.mxu0 0
      %887 = vmatpush.bf16.msra.mxu0 0
      %888 = vmatpush.bf16.msra.mxu0 0
      %889 = vmatpush.bf16.msra.mxu0 0
      %890 = vmatpush.bf16.msra.mxu0 0
      %891 = vmatpush.bf16.msra.mxu0 0
      %892 = vmatpush.bf16.msra.mxu0 0
      %893 = vmatpush.bf16.msra.mxu0 %v882
      %894 = vmatmul.bf16.gmra.mxu0 %v841
      %v895 = vpop.f32.mrf.mxu0
      %v896 = vadd.f32 0.0, %v895
      %v897 = vpop.f32.mrf.mxu0
      %v898 = vadd.f32 0.0, %v897
      %899 = vmatmul.bf16.gmra.mxu0 %v844
      %v900 = vpop.f32.mrf.mxu0
      %v901 = vadd.f32 0.0, %v900
      %v902 = vpop.f32.mrf.mxu0
      %v903 = vadd.f32 0.0, %v902
      %904 = vmatmul.bf16.gmra.mxu0 %v847
      %v905 = vpop.f32.mrf.mxu0
      %v906 = vadd.f32 0.0, %v905
      %v907 = vpop.f32.mrf.mxu0
      %v908 = vadd.f32 0.0, %v907
      %909 = vmatmul.bf16.gmra.mxu0 %v850
      %v910 = vpop.f32.mrf.mxu0
      %v911 = vadd.f32 0.0, %v910
      %v912 = vpop.f32.mrf.mxu0
      %v913 = vadd.f32 0.0, %v912
      %914 = vmatmul.bf16.gmra.mxu0 %v853
      %v915 = vpop.f32.mrf.mxu0
      %v916 = vadd.f32 0.0, %v915
      %v917 = vpop.f32.mrf.mxu0
      %v918 = vadd.f32 0.0, %v917
      %919 = vmatmul.bf16.gmra.mxu0 %v856
      %v920 = vpop.f32.mrf.mxu0
      %v921 = vadd.f32 0.0, %v920
      %v922 = vpop.f32.mrf.mxu0
      %v923 = vadd.f32 0.0, %v922
      %924 = vmatmul.bf16.gmra.mxu0 %v859
      %v925 = vpop.f32.mrf.mxu0
      %v926 = vadd.f32 0.0, %v925
      %v927 = vpop.f32.mrf.mxu0
      %v928 = vadd.f32 0.0, %v927
      %929 = vmatmul.bf16.gmra.mxu0 %v862
      %v930 = vpop.f32.mrf.mxu0
      %v931 = vadd.f32 0.0, %v930
      %v932 = vpop.f32.mrf.mxu0
      %v933 = vadd.f32 0.0, %v932
      %934 = vmatmul.bf16.gmra.mxu0 %v865
      %v935 = vpop.f32.mrf.mxu0
      %v936 = vadd.f32 0.0, %v935
      %v937 = vpop.f32.mrf.mxu0
      %v938 = vadd.f32 0.0, %v937
      %939 = vmatmul.bf16.gmra.mxu0 %v868
      %v940 = vpop.f32.mrf.mxu0
      %v941 = vadd.f32 0.0, %v940
      %v942 = vpop.f32.mrf.mxu0
      %v943 = vadd.f32 0.0, %v942
      %944 = vmatmul.bf16.gmra.mxu0 %v871
      %v945 = vpop.f32.mrf.mxu0
      %v946 = vadd.f32 0.0, %v945
      %v947 = vpop.f32.mrf.mxu0
      %v948 = vadd.f32 0.0, %v947
      %949 = vmatmul.bf16.gmra.mxu0 %v874
      %v950 = vpop.f32.mrf.mxu0
      %v951 = vadd.f32 0.0, %v950
      %v952 = vpop.f32.mrf.mxu0
      %v953 = vadd.f32 0.0, %v952
      %954 = vmatmul.bf16.gmra.mxu0 %v877
      %v955 = vpop.f32.mrf.mxu0
      %v956 = vadd.f32 0.0, %v955
      %v957 = vpop.f32.mrf.mxu0
      %v958 = vadd.f32 0.0, %v957
      %959 = vmatmul.bf16.gmra.mxu0 %v880
      %v960 = vpop.f32.mrf.mxu0
      %v961 = vadd.f32 0.0, %v960
      %v962 = vpop.f32.mrf.mxu0
      %v963 = vadd.f32 0.0, %v962
      %964 = vdwg.mxu0
      %965 = vmatpush.bf16.msra.mxu0 0
      %966 = vmatpush.bf16.msra.mxu0 0
      %967 = vmatpush.bf16.msra.mxu0 0
      %968 = vmatpush.bf16.msra.mxu0 0
      %969 = vmatpush.bf16.msra.mxu0 0
      %970 = vmatpush.bf16.msra.mxu0 0
      %971 = vmatpush.bf16.msra.mxu0 0
      %972 = vmatpush.bf16.msra.mxu0 %v884
      %973 = vmatmul.bf16.gmra.mxu0 %v841
      %v974 = vpop.f32.mrf.mxu0
      %v975 = vadd.f32 0.0, %v974
      %v976 = vpop.f32.mrf.mxu0
      %v977 = vadd.f32 0.0, %v976
      %978 = vmatmul.bf16.gmra.mxu0 %v844
      %v979 = vpop.f32.mrf.mxu0
      %v980 = vadd.f32 0.0, %v979
      %v981 = vpop.f32.mrf.mxu0
      %v982 = vadd.f32 0.0, %v981
      %983 = vmatmul.bf16.gmra.mxu0 %v847
      %v984 = vpop.f32.mrf.mxu0
      %v985 = vadd.f32 0.0, %v984
      %v986 = vpop.f32.mrf.mxu0
      %v987 = vadd.f32 0.0, %v986
      %988 = vmatmul.bf16.gmra.mxu0 %v850
      %v989 = vpop.f32.mrf.mxu0
      %v990 = vadd.f32 0.0, %v989
      %v991 = vpop.f32.mrf.mxu0
      %v992 = vadd.f32 0.0, %v991
      %993 = vmatmul.bf16.gmra.mxu0 %v853
      %v994 = vpop.f32.mrf.mxu0
      %v995 = vadd.f32 0.0, %v994
      %v996 = vpop.f32.mrf.mxu0
      %v997 = vadd.f32 0.0, %v996
      %998 = vmatmul.bf16.gmra.mxu0 %v856
      %v999 = vpop.f32.mrf.mxu0
      %v1000 = vadd.f32 0.0, %v999
      %v1001 = vpop.f32.mrf.mxu0
      %v1002 = vadd.f32 0.0, %v1001
      %1003 = vmatmul.bf16.gmra.mxu0 %v859
      %v1004 = vpop.f32.mrf.mxu0
      %v1005 = vadd.f32 0.0, %v1004
      %v1006 = vpop.f32.mrf.mxu0
      %v1007 = vadd.f32 0.0, %v1006
      %1008 = vmatmul.bf16.gmra.mxu0 %v862
      %v1009 = vpop.f32.mrf.mxu0
      %v1010 = vadd.f32 0.0, %v1009
      %v1011 = vpop.f32.mrf.mxu0
      %v1012 = vadd.f32 0.0, %v1011
      %1013 = vmatmul.bf16.gmra.mxu0 %v865
      %v1014 = vpop.f32.mrf.mxu0
      %v1015 = vadd.f32 0.0, %v1014
      %v1016 = vpop.f32.mrf.mxu0
      %v1017 = vadd.f32 0.0, %v1016
      %1018 = vmatmul.bf16.gmra.mxu0 %v868
      %v1019 = vpop.f32.mrf.mxu0
      %v1020 = vadd.f32 0.0, %v1019
      %v1021 = vpop.f32.mrf.mxu0
      %v1022 = vadd.f32 0.0, %v1021
      %1023 = vmatmul.bf16.gmra.mxu0 %v871
      %v1024 = vpop.f32.mrf.mxu0
      %v1025 = vadd.f32 0.0, %v1024
      %v1026 = vpop.f32.mrf.mxu0
      %v1027 = vadd.f32 0.0, %v1026
      %1028 = vmatmul.bf16.gmra.mxu0 %v874
      %v1029 = vpop.f32.mrf.mxu0
      %v1030 = vadd.f32 0.0, %v1029
      %v1031 = vpop.f32.mrf.mxu0
      %v1032 = vadd.f32 0.0, %v1031
      %1033 = vmatmul.bf16.gmra.mxu0 %v877
      %v1034 = vpop.f32.mrf.mxu0
      %v1035 = vadd.f32 0.0, %v1034
      %v1036 = vpop.f32.mrf.mxu0
      %v1037 = vadd.f32 0.0, %v1036
      %1038 = vmatmul.bf16.gmra.mxu0 %v880
      %v1039 = vpop.f32.mrf.mxu0
      %v1040 = vadd.f32 0.0, %v1039
      %v1041 = vpop.f32.mrf.mxu0
      %v1042 = vadd.f32 0.0, %v1041
      %1043 = vdwg.mxu0
      %v1044 = vadd.f32 %v644, %v896
      %v1045 = vadd.f32 %v723, %v975
      %v1046 = vadd.f32 %v646, %v898
      %v1047 = vadd.f32 %v725, %v977
      %v1048 = vadd.f32 %v649, %v901
      %v1049 = vadd.f32 %v728, %v980
      %v1050 = vadd.f32 %v651, %v903
      %v1051 = vadd.f32 %v730, %v982
      %v1052 = vadd.f32 %v654, %v906
      %v1053 = vadd.f32 %v733, %v985
      %v1054 = vadd.f32 %v656, %v908
      %v1055 = vadd.f32 %v735, %v987
      %v1056 = vadd.f32 %v659, %v911
      %v1057 = vadd.f32 %v738, %v990
      %v1058 = vadd.f32 %v661, %v913
      %v1059 = vadd.f32 %v740, %v992
      %v1060 = vadd.f32 %v664, %v916
      %v1061 = vadd.f32 %v743, %v995
      %v1062 = vadd.f32 %v666, %v918
      %v1063 = vadd.f32 %v745, %v997
      %v1064 = vadd.f32 %v669, %v921
      %v1065 = vadd.f32 %v748, %v1000
      %v1066 = vadd.f32 %v671, %v923
      %v1067 = vadd.f32 %v750, %v1002
      %v1068 = vadd.f32 %v674, %v926
      %v1069 = vadd.f32 %v753, %v1005
      %v1070 = vadd.f32 %v676, %v928
      %v1071 = vadd.f32 %v755, %v1007
      %v1072 = vadd.f32 %v679, %v931
      %v1073 = vadd.f32 %v758, %v1010
      %v1074 = vadd.f32 %v681, %v933
      %v1075 = vadd.f32 %v760, %v1012
      %v1076 = vadd.f32 %v684, %v936
      %v1077 = vadd.f32 %v763, %v1015
      %v1078 = vadd.f32 %v686, %v938
      %v1079 = vadd.f32 %v765, %v1017
      %v1080 = vadd.f32 %v689, %v941
      %v1081 = vadd.f32 %v768, %v1020
      %v1082 = vadd.f32 %v691, %v943
      %v1083 = vadd.f32 %v770, %v1022
      %v1084 = vadd.f32 %v694, %v946
      %v1085 = vadd.f32 %v773, %v1025
      %v1086 = vadd.f32 %v696, %v948
      %v1087 = vadd.f32 %v775, %v1027
      %v1088 = vadd.f32 %v699, %v951
      %v1089 = vadd.f32 %v778, %v1030
      %v1090 = vadd.f32 %v701, %v953
      %v1091 = vadd.f32 %v780, %v1032
      %v1092 = vadd.f32 %v704, %v956
      %v1093 = vadd.f32 %v783, %v1035
      %v1094 = vadd.f32 %v706, %v958
      %v1095 = vadd.f32 %v785, %v1037
      %v1096 = vadd.f32 %v709, %v961
      %v1097 = vadd.f32 %v788, %v1040
      %v1098 = vadd.f32 %v711, %v963
      %v1099 = vadd.f32 %v790, %v1042
      %v1100 = vld [vmem:[%s254 + $0x10] sm:$0xff]
      %v1101 = vld [vmem:[%s254 + $0x18] sm:$0xff]
      %v1102 = vld [vmem:[%s254 + $0x20] sm:$0xff]
      %v1103 = vld [vmem:[%s254 + $0x28] sm:$0xff]
      %v1104 = vld [vmem:[%s254 + $0x30] sm:$0xff]
      %v1105 = vld [vmem:[%s254 + $0x38] sm:$0xff]
      %v1106 = vld [vmem:[%s254 + $0x40] sm:$0xff]
      %v1107 = vld [vmem:[%s254 + $0x48] sm:$0xff]
      %v1108 = vld [vmem:[%s254 + $0x50] sm:$0xff]
      %v1109 = vld [vmem:[%s254 + $0x58] sm:$0xff]
      %v1110 = vld [vmem:[%s254 + $0x60] sm:$0xff]
      %v1111 = vld [vmem:[%s254 + $0x68] sm:$0xff]
      %v1112 = vld [vmem:[%s254 + $0x70] sm:$0xff]
      %v1113 = vld [vmem:[%s254 + $0x78] sm:$0xff]
      %v1114 = vld [vmem:[%s254 + $0x80] sm:$0xff]
      %v1115 = vld [vmem:[%s254 + $0x88] sm:$0xff]
      %v1116 = vld [vmem:[%s254 + $0x90] sm:$0xff]
      %v1117 = vld [vmem:[%s254 + $0x98] sm:$0xff]
      %v1118 = vld [vmem:[%s254 + $0xa0] sm:$0xff]
      %v1119 = vld [vmem:[%s254 + $0xa8] sm:$0xff]
      %v1120 = vld [vmem:[%s254 + $0xb0] sm:$0xff]
      %v1121 = vld [vmem:[%s254 + $0xb8] sm:$0xff]
      %v1122 = vld [vmem:[%s254 + $0xc0] sm:$0xff]
      %v1123 = vld [vmem:[%s254 + $0xc8] sm:$0xff]
      %v1124 = vld [vmem:[%s254 + $0xd0] sm:$0xff]
      %v1125 = vld [vmem:[%s254 + $0xd8] sm:$0xff]
      %v1126 = vld [vmem:[%s254 + $0xe0] sm:$0xff]
      %v1127 = vld [vmem:[%s254 + $0xe8] sm:$0xff]
      %v1128 = vpack.c.bf16 %v1101, %v1100
      %v1129 = vpack.c.bf16 %v1103, %v1102
      %v1130 = vpack.c.bf16 %v1105, %v1104
      %v1131 = vpack.c.bf16 %v1107, %v1106
      %v1132 = vpack.c.bf16 %v1109, %v1108
      %v1133 = vpack.c.bf16 %v1111, %v1110
      %v1134 = vpack.c.bf16 %v1113, %v1112
      %v1135 = vpack.c.bf16 %v1115, %v1114
      %v1136 = vpack.c.bf16 %v1117, %v1116
      %v1137 = vpack.c.bf16 %v1119, %v1118
      %v1138 = vpack.c.bf16 %v1121, %v1120
      %v1139 = vpack.c.bf16 %v1123, %v1122
      %v1140 = vpack.c.bf16 %v1125, %v1124
      %v1141 = vpack.c.bf16 %v1127, %v1126
      %s1142 = scalar_lea.vmem %s259, 12
      %v1143 = vld [vmem:[%s1142] sm:$0xf]
      %1145 = vst [vmem:[#allocation1] ss:$4 sm:$0xff] %v1143
      %v1146 = vld.sshfl [vmem:[#allocation1] sm:$0xff pattern:$0x73625140]
      %v1147 = vld.sshfl [vmem:[#allocation1 + $0x8] sm:$0xff pattern:$0x73625140]
      %v1149 = vsel %vm378, %v1128, 0
      %v1152 = vsel %vm378, %v1129, 0
      %v1155 = vsel %vm378, %v1130, 0
      %v1158 = vsel %vm378, %v1131, 0
      %v1161 = vsel %vm378, %v1132, 0
      %v1164 = vsel %vm378, %v1133, 0
      %v1167 = vsel %vm378, %v1134, 0
      %v1170 = vsel %vm378, %v1135, 0
      %v1173 = vsel %vm378, %v1136, 0
      %v1176 = vsel %vm378, %v1137, 0
      %v1179 = vsel %vm378, %v1138, 0
      %v1182 = vsel %vm378, %v1139, 0
      %v1185 = vsel %vm378, %v1140, 0
      %v1188 = vsel %vm378, %v1141, 0
      %v1190 = vsel %vm421, %v1146, 0
      %v1192 = vsel %vm421, %v1147, 0
      %1194 = vmatpush.bf16.msra.mxu0 0
      %1195 = vmatpush.bf16.msra.mxu0 0
      %1196 = vmatpush.bf16.msra.mxu0 0
      %1197 = vmatpush.bf16.msra.mxu0 0
      %1198 = vmatpush.bf16.msra.mxu0 0
      %1199 = vmatpush.bf16.msra.mxu0 0
      %1200 = vmatpush.bf16.msra.mxu0 0
      %1201 = vmatpush.bf16.msra.mxu0 %v1190
      %1202 = vmatmul.bf16.gmra.mxu0 %v1149
      %v1203 = vpop.f32.mrf.mxu0
      %v1204 = vadd.f32 0.0, %v1203
      %v1205 = vpop.f32.mrf.mxu0
      %v1206 = vadd.f32 0.0, %v1205
      %1207 = vmatmul.bf16.gmra.mxu0 %v1152
      %v1208 = vpop.f32.mrf.mxu0
      %v1209 = vadd.f32 0.0, %v1208
      %v1210 = vpop.f32.mrf.mxu0
      %v1211 = vadd.f32 0.0, %v1210
      %1212 = vmatmul.bf16.gmra.mxu0 %v1155
      %v1213 = vpop.f32.mrf.mxu0
      %v1214 = vadd.f32 0.0, %v1213
      %v1215 = vpop.f32.mrf.mxu0
      %v1216 = vadd.f32 0.0, %v1215
      %1217 = vmatmul.bf16.gmra.mxu0 %v1158
      %v1218 = vpop.f32.mrf.mxu0
      %v1219 = vadd.f32 0.0, %v1218
      %v1220 = vpop.f32.mrf.mxu0
      %v1221 = vadd.f32 0.0, %v1220
      %1222 = vmatmul.bf16.gmra.mxu0 %v1161
      %v1223 = vpop.f32.mrf.mxu0
      %v1224 = vadd.f32 0.0, %v1223
      %v1225 = vpop.f32.mrf.mxu0
      %v1226 = vadd.f32 0.0, %v1225
      %1227 = vmatmul.bf16.gmra.mxu0 %v1164
      %v1228 = vpop.f32.mrf.mxu0
      %v1229 = vadd.f32 0.0, %v1228
      %v1230 = vpop.f32.mrf.mxu0
      %v1231 = vadd.f32 0.0, %v1230
      %1232 = vmatmul.bf16.gmra.mxu0 %v1167
      %v1233 = vpop.f32.mrf.mxu0
      %v1234 = vadd.f32 0.0, %v1233
      %v1235 = vpop.f32.mrf.mxu0
      %v1236 = vadd.f32 0.0, %v1235
      %1237 = vmatmul.bf16.gmra.mxu0 %v1170
      %v1238 = vpop.f32.mrf.mxu0
      %v1239 = vadd.f32 0.0, %v1238
      %v1240 = vpop.f32.mrf.mxu0
      %v1241 = vadd.f32 0.0, %v1240
      %1242 = vmatmul.bf16.gmra.mxu0 %v1173
      %v1243 = vpop.f32.mrf.mxu0
      %v1244 = vadd.f32 0.0, %v1243
      %v1245 = vpop.f32.mrf.mxu0
      %v1246 = vadd.f32 0.0, %v1245
      %1247 = vmatmul.bf16.gmra.mxu0 %v1176
      %v1248 = vpop.f32.mrf.mxu0
      %v1249 = vadd.f32 0.0, %v1248
      %v1250 = vpop.f32.mrf.mxu0
      %v1251 = vadd.f32 0.0, %v1250
      %1252 = vmatmul.bf16.gmra.mxu0 %v1179
      %v1253 = vpop.f32.mrf.mxu0
      %v1254 = vadd.f32 0.0, %v1253
      %v1255 = vpop.f32.mrf.mxu0
      %v1256 = vadd.f32 0.0, %v1255
      %1257 = vmatmul.bf16.gmra.mxu0 %v1182
      %v1258 = vpop.f32.mrf.mxu0
      %v1259 = vadd.f32 0.0, %v1258
      %v1260 = vpop.f32.mrf.mxu0
      %v1261 = vadd.f32 0.0, %v1260
      %1262 = vmatmul.bf16.gmra.mxu0 %v1185
      %v1263 = vpop.f32.mrf.mxu0
      %v1264 = vadd.f32 0.0, %v1263
      %v1265 = vpop.f32.mrf.mxu0
      %v1266 = vadd.f32 0.0, %v1265
      %1267 = vmatmul.bf16.gmra.mxu0 %v1188
      %v1268 = vpop.f32.mrf.mxu0
      %v1269 = vadd.f32 0.0, %v1268
      %v1270 = vpop.f32.mrf.mxu0
      %v1271 = vadd.f32 0.0, %v1270
      %1272 = vdwg.mxu0
      %1273 = vmatpush.bf16.msra.mxu0 0
      %1274 = vmatpush.bf16.msra.mxu0 0
      %1275 = vmatpush.bf16.msra.mxu0 0
      %1276 = vmatpush.bf16.msra.mxu0 0
      %1277 = vmatpush.bf16.msra.mxu0 0
      %1278 = vmatpush.bf16.msra.mxu0 0
      %1279 = vmatpush.bf16.msra.mxu0 0
      %1280 = vmatpush.bf16.msra.mxu0 %v1192
      %1281 = vmatmul.bf16.gmra.mxu0 %v1149
      %v1282 = vpop.f32.mrf.mxu0
      %v1283 = vadd.f32 0.0, %v1282
      %v1284 = vpop.f32.mrf.mxu0
      %v1285 = vadd.f32 0.0, %v1284
      %1286 = vmatmul.bf16.gmra.mxu0 %v1152
      %v1287 = vpop.f32.mrf.mxu0
      %v1288 = vadd.f32 0.0, %v1287
      %v1289 = vpop.f32.mrf.mxu0
      %v1290 = vadd.f32 0.0, %v1289
      %1291 = vmatmul.bf16.gmra.mxu0 %v1155
      %v1292 = vpop.f32.mrf.mxu0
      %v1293 = vadd.f32 0.0, %v1292
      %v1294 = vpop.f32.mrf.mxu0
      %v1295 = vadd.f32 0.0, %v1294
      %1296 = vmatmul.bf16.gmra.mxu0 %v1158
      %v1297 = vpop.f32.mrf.mxu0
      %v1298 = vadd.f32 0.0, %v1297
      %v1299 = vpop.f32.mrf.mxu0
      %v1300 = vadd.f32 0.0, %v1299
      %1301 = vmatmul.bf16.gmra.mxu0 %v1161
      %v1302 = vpop.f32.mrf.mxu0
      %v1303 = vadd.f32 0.0, %v1302
      %v1304 = vpop.f32.mrf.mxu0
      %v1305 = vadd.f32 0.0, %v1304
      %1306 = vmatmul.bf16.gmra.mxu0 %v1164
      %v1307 = vpop.f32.mrf.mxu0
      %v1308 = vadd.f32 0.0, %v1307
      %v1309 = vpop.f32.mrf.mxu0
      %v1310 = vadd.f32 0.0, %v1309
      %1311 = vmatmul.bf16.gmra.mxu0 %v1167
      %v1312 = vpop.f32.mrf.mxu0
      %v1313 = vadd.f32 0.0, %v1312
      %v1314 = vpop.f32.mrf.mxu0
      %v1315 = vadd.f32 0.0, %v1314
      %1316 = vmatmul.bf16.gmra.mxu0 %v1170
      %v1317 = vpop.f32.mrf.mxu0
      %v1318 = vadd.f32 0.0, %v1317
      %v1319 = vpop.f32.mrf.mxu0
      %v1320 = vadd.f32 0.0, %v1319
      %1321 = vmatmul.bf16.gmra.mxu0 %v1173
      %v1322 = vpop.f32.mrf.mxu0
      %v1323 = vadd.f32 0.0, %v1322
      %v1324 = vpop.f32.mrf.mxu0
      %v1325 = vadd.f32 0.0, %v1324
      %1326 = vmatmul.bf16.gmra.mxu0 %v1176
      %v1327 = vpop.f32.mrf.mxu0
      %v1328 = vadd.f32 0.0, %v1327
      %v1329 = vpop.f32.mrf.mxu0
      %v1330 = vadd.f32 0.0, %v1329
      %1331 = vmatmul.bf16.gmra.mxu0 %v1179
      %v1332 = vpop.f32.mrf.mxu0
      %v1333 = vadd.f32 0.0, %v1332
      %v1334 = vpop.f32.mrf.mxu0
      %v1335 = vadd.f32 0.0, %v1334
      %1336 = vmatmul.bf16.gmra.mxu0 %v1182
      %v1337 = vpop.f32.mrf.mxu0
      %v1338 = vadd.f32 0.0, %v1337
      %v1339 = vpop.f32.mrf.mxu0
      %v1340 = vadd.f32 0.0, %v1339
      %1341 = vmatmul.bf16.gmra.mxu0 %v1185
      %v1342 = vpop.f32.mrf.mxu0
      %v1343 = vadd.f32 0.0, %v1342
      %v1344 = vpop.f32.mrf.mxu0
      %v1345 = vadd.f32 0.0, %v1344
      %1346 = vmatmul.bf16.gmra.mxu0 %v1188
      %v1347 = vpop.f32.mrf.mxu0
      %v1348 = vadd.f32 0.0, %v1347
      %v1349 = vpop.f32.mrf.mxu0
      %v1350 = vadd.f32 0.0, %v1349
      %1351 = vdwg.mxu0
      %v1352 = vadd.f32 %v1044, %v1204
      %v1353 = vadd.f32 %v1045, %v1283
      %v1354 = vadd.f32 %v1046, %v1206
      %v1355 = vadd.f32 %v1047, %v1285
      %v1356 = vadd.f32 %v1048, %v1209
      %v1357 = vadd.f32 %v1049, %v1288
      %v1358 = vadd.f32 %v1050, %v1211
      %v1359 = vadd.f32 %v1051, %v1290
      %v1360 = vadd.f32 %v1052, %v1214
      %v1361 = vadd.f32 %v1053, %v1293
      %v1362 = vadd.f32 %v1054, %v1216
      %v1363 = vadd.f32 %v1055, %v1295
      %v1364 = vadd.f32 %v1056, %v1219
      %v1365 = vadd.f32 %v1057, %v1298
      %v1366 = vadd.f32 %v1058, %v1221
      %v1367 = vadd.f32 %v1059, %v1300
      %v1368 = vadd.f32 %v1060, %v1224
      %v1369 = vadd.f32 %v1061, %v1303
      %v1370 = vadd.f32 %v1062, %v1226
      %v1371 = vadd.f32 %v1063, %v1305
      %v1372 = vadd.f32 %v1064, %v1229
      %v1373 = vadd.f32 %v1065, %v1308
      %v1374 = vadd.f32 %v1066, %v1231
      %v1375 = vadd.f32 %v1067, %v1310
      %v1376 = vadd.f32 %v1068, %v1234
      %v1377 = vadd.f32 %v1069, %v1313
      %v1378 = vadd.f32 %v1070, %v1236
      %v1379 = vadd.f32 %v1071, %v1315
      %v1380 = vadd.f32 %v1072, %v1239
      %v1381 = vadd.f32 %v1073, %v1318
      %v1382 = vadd.f32 %v1074, %v1241
      %v1383 = vadd.f32 %v1075, %v1320
      %v1384 = vadd.f32 %v1076, %v1244
      %v1385 = vadd.f32 %v1077, %v1323
      %v1386 = vadd.f32 %v1078, %v1246
      %v1387 = vadd.f32 %v1079, %v1325
      %v1388 = vadd.f32 %v1080, %v1249
      %v1389 = vadd.f32 %v1081, %v1328
      %v1390 = vadd.f32 %v1082, %v1251
      %v1391 = vadd.f32 %v1083, %v1330
      %v1392 = vadd.f32 %v1084, %v1254
      %v1393 = vadd.f32 %v1085, %v1333
      %v1394 = vadd.f32 %v1086, %v1256
      %v1395 = vadd.f32 %v1087, %v1335
      %v1396 = vadd.f32 %v1088, %v1259
      %v1397 = vadd.f32 %v1089, %v1338
      %v1398 = vadd.f32 %v1090, %v1261
      %v1399 = vadd.f32 %v1091, %v1340
      %v1400 = vadd.f32 %v1092, %v1264
      %v1401 = vadd.f32 %v1093, %v1343
      %v1402 = vadd.f32 %v1094, %v1266
      %v1403 = vadd.f32 %v1095, %v1345
      %v1404 = vadd.f32 %v1096, %v1269
      %v1405 = vadd.f32 %v1097, %v1348
      %v1406 = vadd.f32 %v1098, %v1271
      %v1407 = vadd.f32 %v1099, %v1350
      %v1408 = vld [vmem:[%s254 + $0x11] sm:$0xff]
      %v1409 = vld [vmem:[%s254 + $0x19] sm:$0xff]
      %v1410 = vld [vmem:[%s254 + $0x21] sm:$0xff]
      %v1411 = vld [vmem:[%s254 + $0x29] sm:$0xff]
      %v1412 = vld [vmem:[%s254 + $0x31] sm:$0xff]
      %v1413 = vld [vmem:[%s254 + $0x39] sm:$0xff]
      %v1414 = vld [vmem:[%s254 + $0x41] sm:$0xff]
      %v1415 = vld [vmem:[%s254 + $0x49] sm:$0xff]
      %v1416 = vld [vmem:[%s254 + $0x51] sm:$0xff]
      %v1417 = vld [vmem:[%s254 + $0x59] sm:$0xff]
      %v1418 = vld [vmem:[%s254 + $0x61] sm:$0xff]
      %v1419 = vld [vmem:[%s254 + $0x69] sm:$0xff]
      %v1420 = vld [vmem:[%s254 + $0x71] sm:$0xff]
      %v1421 = vld [vmem:[%s254 + $0x79] sm:$0xff]
      %v1422 = vld [vmem:[%s254 + $0x81] sm:$0xff]
      %v1423 = vld [vmem:[%s254 + $0x89] sm:$0xff]
      %v1424 = vld [vmem:[%s254 + $0x91] sm:$0xff]
      %v1425 = vld [vmem:[%s254 + $0x99] sm:$0xff]
      %v1426 = vld [vmem:[%s254 + $0xa1] sm:$0xff]
      %v1427 = vld [vmem:[%s254 + $0xa9] sm:$0xff]
      %v1428 = vld [vmem:[%s254 + $0xb1] sm:$0xff]
      %v1429 = vld [vmem:[%s254 + $0xb9] sm:$0xff]
      %v1430 = vld [vmem:[%s254 + $0xc1] sm:$0xff]
      %v1431 = vld [vmem:[%s254 + $0xc9] sm:$0xff]
      %v1432 = vld [vmem:[%s254 + $0xd1] sm:$0xff]
      %v1433 = vld [vmem:[%s254 + $0xd9] sm:$0xff]
      %v1434 = vld [vmem:[%s254 + $0xe1] sm:$0xff]
      %v1435 = vld [vmem:[%s254 + $0xe9] sm:$0xff]
      %v1436 = vpack.c.bf16 %v1409, %v1408
      %v1437 = vpack.c.bf16 %v1411, %v1410
      %v1438 = vpack.c.bf16 %v1413, %v1412
      %v1439 = vpack.c.bf16 %v1415, %v1414
      %v1440 = vpack.c.bf16 %v1417, %v1416
      %v1441 = vpack.c.bf16 %v1419, %v1418
      %v1442 = vpack.c.bf16 %v1421, %v1420
      %v1443 = vpack.c.bf16 %v1423, %v1422
      %v1444 = vpack.c.bf16 %v1425, %v1424
      %v1445 = vpack.c.bf16 %v1427, %v1426
      %v1446 = vpack.c.bf16 %v1429, %v1428
      %v1447 = vpack.c.bf16 %v1431, %v1430
      %v1448 = vpack.c.bf16 %v1433, %v1432
      %v1449 = vpack.c.bf16 %v1435, %v1434
      %s1450 = scalar_lea.vmem %s259, 16
      %v1451 = vld [vmem:[%s1450] sm:$0xf]
      %1453 = vst [vmem:[#allocation1] ss:$4 sm:$0xff] %v1451
      %v1454 = vld.sshfl [vmem:[#allocation1] sm:$0xff pattern:$0x73625140]
      %v1455 = vld.sshfl [vmem:[#allocation1 + $0x8] sm:$0xff pattern:$0x73625140]
      %v1457 = vsel %vm378, %v1436, 0
      %v1460 = vsel %vm378, %v1437, 0
      %v1463 = vsel %vm378, %v1438, 0
      %v1466 = vsel %vm378, %v1439, 0
      %v1469 = vsel %vm378, %v1440, 0
      %v1472 = vsel %vm378, %v1441, 0
      %v1475 = vsel %vm378, %v1442, 0
      %v1478 = vsel %vm378, %v1443, 0
      %v1481 = vsel %vm378, %v1444, 0
      %v1484 = vsel %vm378, %v1445, 0
      %v1487 = vsel %vm378, %v1446, 0
      %v1490 = vsel %vm378, %v1447, 0
      %v1493 = vsel %vm378, %v1448, 0
      %v1496 = vsel %vm378, %v1449, 0
      %v1498 = vsel %vm421, %v1454, 0
      %v1500 = vsel %vm421, %v1455, 0
      %1502 = vmatpush.bf16.msra.mxu0 0
      %1503 = vmatpush.bf16.msra.mxu0 0
      %1504 = vmatpush.bf16.msra.mxu0 0
      %1505 = vmatpush.bf16.msra.mxu0 0
      %1506 = vmatpush.bf16.msra.mxu0 0
      %1507 = vmatpush.bf16.msra.mxu0 0
      %1508 = vmatpush.bf16.msra.mxu0 0
      %1509 = vmatpush.bf16.msra.mxu0 %v1498
      %1510 = vmatmul.bf16.gmra.mxu0 %v1457
      %v1511 = vpop.f32.mrf.mxu0
      %v1512 = vadd.f32 0.0, %v1511
      %v1513 = vpop.f32.mrf.mxu0
      %v1514 = vadd.f32 0.0, %v1513
      %1515 = vmatmul.bf16.gmra.mxu0 %v1460
      %v1516 = vpop.f32.mrf.mxu0
      %v1517 = vadd.f32 0.0, %v1516
      %v1518 = vpop.f32.mrf.mxu0
      %v1519 = vadd.f32 0.0, %v1518
      %1520 = vmatmul.bf16.gmra.mxu0 %v1463
      %v1521 = vpop.f32.mrf.mxu0
      %v1522 = vadd.f32 0.0, %v1521
      %v1523 = vpop.f32.mrf.mxu0
      %v1524 = vadd.f32 0.0, %v1523
      %1525 = vmatmul.bf16.gmra.mxu0 %v1466
      %v1526 = vpop.f32.mrf.mxu0
      %v1527 = vadd.f32 0.0, %v1526
      %v1528 = vpop.f32.mrf.mxu0
      %v1529 = vadd.f32 0.0, %v1528
      %1530 = vmatmul.bf16.gmra.mxu0 %v1469
      %v1531 = vpop.f32.mrf.mxu0
      %v1532 = vadd.f32 0.0, %v1531
      %v1533 = vpop.f32.mrf.mxu0
      %v1534 = vadd.f32 0.0, %v1533
      %1535 = vmatmul.bf16.gmra.mxu0 %v1472
      %v1536 = vpop.f32.mrf.mxu0
      %v1537 = vadd.f32 0.0, %v1536
      %v1538 = vpop.f32.mrf.mxu0
      %v1539 = vadd.f32 0.0, %v1538
      %1540 = vmatmul.bf16.gmra.mxu0 %v1475
      %v1541 = vpop.f32.mrf.mxu0
      %v1542 = vadd.f32 0.0, %v1541
      %v1543 = vpop.f32.mrf.mxu0
      %v1544 = vadd.f32 0.0, %v1543
      %1545 = vmatmul.bf16.gmra.mxu0 %v1478
      %v1546 = vpop.f32.mrf.mxu0
      %v1547 = vadd.f32 0.0, %v1546
      %v1548 = vpop.f32.mrf.mxu0
      %v1549 = vadd.f32 0.0, %v1548
      %1550 = vmatmul.bf16.gmra.mxu0 %v1481
      %v1551 = vpop.f32.mrf.mxu0
      %v1552 = vadd.f32 0.0, %v1551
      %v1553 = vpop.f32.mrf.mxu0
      %v1554 = vadd.f32 0.0, %v1553
      %1555 = vmatmul.bf16.gmra.mxu0 %v1484
      %v1556 = vpop.f32.mrf.mxu0
      %v1557 = vadd.f32 0.0, %v1556
      %v1558 = vpop.f32.mrf.mxu0
      %v1559 = vadd.f32 0.0, %v1558
      %1560 = vmatmul.bf16.gmra.mxu0 %v1487
      %v1561 = vpop.f32.mrf.mxu0
      %v1562 = vadd.f32 0.0, %v1561
      %v1563 = vpop.f32.mrf.mxu0
      %v1564 = vadd.f32 0.0, %v1563
      %1565 = vmatmul.bf16.gmra.mxu0 %v1490
      %v1566 = vpop.f32.mrf.mxu0
      %v1567 = vadd.f32 0.0, %v1566
      %v1568 = vpop.f32.mrf.mxu0
      %v1569 = vadd.f32 0.0, %v1568
      %1570 = vmatmul.bf16.gmra.mxu0 %v1493
      %v1571 = vpop.f32.mrf.mxu0
      %v1572 = vadd.f32 0.0, %v1571
      %v1573 = vpop.f32.mrf.mxu0
      %v1574 = vadd.f32 0.0, %v1573
      %1575 = vmatmul.bf16.gmra.mxu0 %v1496
      %v1576 = vpop.f32.mrf.mxu0
      %v1577 = vadd.f32 0.0, %v1576
      %v1578 = vpop.f32.mrf.mxu0
      %v1579 = vadd.f32 0.0, %v1578
      %1580 = vdwg.mxu0
      %1581 = vmatpush.bf16.msra.mxu0 0
      %1582 = vmatpush.bf16.msra.mxu0 0
      %1583 = vmatpush.bf16.msra.mxu0 0
      %1584 = vmatpush.bf16.msra.mxu0 0
      %1585 = vmatpush.bf16.msra.mxu0 0
      %1586 = vmatpush.bf16.msra.mxu0 0
      %1587 = vmatpush.bf16.msra.mxu0 0
      %1588 = vmatpush.bf16.msra.mxu0 %v1500
      %1589 = vmatmul.bf16.gmra.mxu0 %v1457
      %v1590 = vpop.f32.mrf.mxu0
      %v1591 = vadd.f32 0.0, %v1590
      %v1592 = vpop.f32.mrf.mxu0
      %v1593 = vadd.f32 0.0, %v1592
      %1594 = vmatmul.bf16.gmra.mxu0 %v1460
      %v1595 = vpop.f32.mrf.mxu0
      %v1596 = vadd.f32 0.0, %v1595
      %v1597 = vpop.f32.mrf.mxu0
      %v1598 = vadd.f32 0.0, %v1597
      %1599 = vmatmul.bf16.gmra.mxu0 %v1463
      %v1600 = vpop.f32.mrf.mxu0
      %v1601 = vadd.f32 0.0, %v1600
      %v1602 = vpop.f32.mrf.mxu0
      %v1603 = vadd.f32 0.0, %v1602
      %1604 = vmatmul.bf16.gmra.mxu0 %v1466
      %v1605 = vpop.f32.mrf.mxu0
      %v1606 = vadd.f32 0.0, %v1605
      %v1607 = vpop.f32.mrf.mxu0
      %v1608 = vadd.f32 0.0, %v1607
      %1609 = vmatmul.bf16.gmra.mxu0 %v1469
      %v1610 = vpop.f32.mrf.mxu0
      %v1611 = vadd.f32 0.0, %v1610
      %v1612 = vpop.f32.mrf.mxu0
      %v1613 = vadd.f32 0.0, %v1612
      %1614 = vmatmul.bf16.gmra.mxu0 %v1472
      %v1615 = vpop.f32.mrf.mxu0
      %v1616 = vadd.f32 0.0, %v1615
      %v1617 = vpop.f32.mrf.mxu0
      %v1618 = vadd.f32 0.0, %v1617
      %1619 = vmatmul.bf16.gmra.mxu0 %v1475
      %v1620 = vpop.f32.mrf.mxu0
      %v1621 = vadd.f32 0.0, %v1620
      %v1622 = vpop.f32.mrf.mxu0
      %v1623 = vadd.f32 0.0, %v1622
      %1624 = vmatmul.bf16.gmra.mxu0 %v1478
      %v1625 = vpop.f32.mrf.mxu0
      %v1626 = vadd.f32 0.0, %v1625
      %v1627 = vpop.f32.mrf.mxu0
      %v1628 = vadd.f32 0.0, %v1627
      %1629 = vmatmul.bf16.gmra.mxu0 %v1481
      %v1630 = vpop.f32.mrf.mxu0
      %v1631 = vadd.f32 0.0, %v1630
      %v1632 = vpop.f32.mrf.mxu0
      %v1633 = vadd.f32 0.0, %v1632
      %1634 = vmatmul.bf16.gmra.mxu0 %v1484
      %v1635 = vpop.f32.mrf.mxu0
      %v1636 = vadd.f32 0.0, %v1635
      %v1637 = vpop.f32.mrf.mxu0
      %v1638 = vadd.f32 0.0, %v1637
      %1639 = vmatmul.bf16.gmra.mxu0 %v1487
      %v1640 = vpop.f32.mrf.mxu0
      %v1641 = vadd.f32 0.0, %v1640
      %v1642 = vpop.f32.mrf.mxu0
      %v1643 = vadd.f32 0.0, %v1642
      %1644 = vmatmul.bf16.gmra.mxu0 %v1490
      %v1645 = vpop.f32.mrf.mxu0
      %v1646 = vadd.f32 0.0, %v1645
      %v1647 = vpop.f32.mrf.mxu0
      %v1648 = vadd.f32 0.0, %v1647
      %1649 = vmatmul.bf16.gmra.mxu0 %v1493
      %v1650 = vpop.f32.mrf.mxu0
      %v1651 = vadd.f32 0.0, %v1650
      %v1652 = vpop.f32.mrf.mxu0
      %v1653 = vadd.f32 0.0, %v1652
      %1654 = vmatmul.bf16.gmra.mxu0 %v1496
      %v1655 = vpop.f32.mrf.mxu0
      %v1656 = vadd.f32 0.0, %v1655
      %v1657 = vpop.f32.mrf.mxu0
      %v1658 = vadd.f32 0.0, %v1657
      %1659 = vdwg.mxu0
      %v1660 = vadd.f32 %v1352, %v1512
      %v1661 = vadd.f32 %v1353, %v1591
      %v1662 = vadd.f32 %v1354, %v1514
      %v1663 = vadd.f32 %v1355, %v1593
      %v1664 = vadd.f32 %v1356, %v1517
      %v1665 = vadd.f32 %v1357, %v1596
      %v1666 = vadd.f32 %v1358, %v1519
      %v1667 = vadd.f32 %v1359, %v1598
      %v1668 = vadd.f32 %v1360, %v1522
      %v1669 = vadd.f32 %v1361, %v1601
      %v1670 = vadd.f32 %v1362, %v1524
      %v1671 = vadd.f32 %v1363, %v1603
      %v1672 = vadd.f32 %v1364, %v1527
      %v1673 = vadd.f32 %v1365, %v1606
      %v1674 = vadd.f32 %v1366, %v1529
      %v1675 = vadd.f32 %v1367, %v1608
      %v1676 = vadd.f32 %v1368, %v1532
      %v1677 = vadd.f32 %v1369, %v1611
      %v1678 = vadd.f32 %v1370, %v1534
      %v1679 = vadd.f32 %v1371, %v1613
      %v1680 = vadd.f32 %v1372, %v1537
      %v1681 = vadd.f32 %v1373, %v1616
      %v1682 = vadd.f32 %v1374, %v1539
      %v1683 = vadd.f32 %v1375, %v1618
      %v1684 = vadd.f32 %v1376, %v1542
      %v1685 = vadd.f32 %v1377, %v1621
      %v1686 = vadd.f32 %v1378, %v1544
      %v1687 = vadd.f32 %v1379, %v1623
      %v1688 = vadd.f32 %v1380, %v1547
      %v1689 = vadd.f32 %v1381, %v1626
      %v1690 = vadd.f32 %v1382, %v1549
      %v1691 = vadd.f32 %v1383, %v1628
      %v1692 = vadd.f32 %v1384, %v1552
      %v1693 = vadd.f32 %v1385, %v1631
      %v1694 = vadd.f32 %v1386, %v1554
      %v1695 = vadd.f32 %v1387, %v1633
      %v1696 = vadd.f32 %v1388, %v1557
      %v1697 = vadd.f32 %v1389, %v1636
      %v1698 = vadd.f32 %v1390, %v1559
      %v1699 = vadd.f32 %v1391, %v1638
      %v1700 = vadd.f32 %v1392, %v1562
      %v1701 = vadd.f32 %v1393, %v1641
      %v1702 = vadd.f32 %v1394, %v1564
      %v1703 = vadd.f32 %v1395, %v1643
      %v1704 = vadd.f32 %v1396, %v1567
      %v1705 = vadd.f32 %v1397, %v1646
      %v1706 = vadd.f32 %v1398, %v1569
      %v1707 = vadd.f32 %v1399, %v1648
      %v1708 = vadd.f32 %v1400, %v1572
      %v1709 = vadd.f32 %v1401, %v1651
      %v1710 = vadd.f32 %v1402, %v1574
      %v1711 = vadd.f32 %v1403, %v1653
      %v1712 = vadd.f32 %v1404, %v1577
      %v1713 = vadd.f32 %v1405, %v1656
      %v1714 = vadd.f32 %v1406, %v1579
      %v1715 = vadd.f32 %v1407, %v1658
      %v1716 = vld [vmem:[%s254 + $0x12] sm:$0xff]
      %v1717 = vld [vmem:[%s254 + $0x1a] sm:$0xff]
      %v1718 = vld [vmem:[%s254 + $0x22] sm:$0xff]
      %v1719 = vld [vmem:[%s254 + $0x2a] sm:$0xff]
      %v1720 = vld [vmem:[%s254 + $0x32] sm:$0xff]
      %v1721 = vld [vmem:[%s254 + $0x3a] sm:$0xff]
      %v1722 = vld [vmem:[%s254 + $0x42] sm:$0xff]
      %v1723 = vld [vmem:[%s254 + $0x4a] sm:$0xff]
      %v1724 = vld [vmem:[%s254 + $0x52] sm:$0xff]
      %v1725 = vld [vmem:[%s254 + $0x5a] sm:$0xff]
      %v1726 = vld [vmem:[%s254 + $0x62] sm:$0xff]
      %v1727 = vld [vmem:[%s254 + $0x6a] sm:$0xff]
      %v1728 = vld [vmem:[%s254 + $0x72] sm:$0xff]
      %v1729 = vld [vmem:[%s254 + $0x7a] sm:$0xff]
      %v1730 = vld [vmem:[%s254 + $0x82] sm:$0xff]
      %v1731 = vld [vmem:[%s254 + $0x8a] sm:$0xff]
      %v1732 = vld [vmem:[%s254 + $0x92] sm:$0xff]
      %v1733 = vld [vmem:[%s254 + $0x9a] sm:$0xff]
      %v1734 = vld [vmem:[%s254 + $0xa2] sm:$0xff]
      %v1735 = vld [vmem:[%s254 + $0xaa] sm:$0xff]
      %v1736 = vld [vmem:[%s254 + $0xb2] sm:$0xff]
      %v1737 = vld [vmem:[%s254 + $0xba] sm:$0xff]
      %v1738 = vld [vmem:[%s254 + $0xc2] sm:$0xff]
      %v1739 = vld [vmem:[%s254 + $0xca] sm:$0xff]
      %v1740 = vld [vmem:[%s254 + $0xd2] sm:$0xff]
      %v1741 = vld [vmem:[%s254 + $0xda] sm:$0xff]
      %v1742 = vld [vmem:[%s254 + $0xe2] sm:$0xff]
      %v1743 = vld [vmem:[%s254 + $0xea] sm:$0xff]
      %v1744 = vpack.c.bf16 %v1717, %v1716
      %v1745 = vpack.c.bf16 %v1719, %v1718
      %v1746 = vpack.c.bf16 %v1721, %v1720
      %v1747 = vpack.c.bf16 %v1723, %v1722
      %v1748 = vpack.c.bf16 %v1725, %v1724
      %v1749 = vpack.c.bf16 %v1727, %v1726
      %v1750 = vpack.c.bf16 %v1729, %v1728
      %v1751 = vpack.c.bf16 %v1731, %v1730
      %v1752 = vpack.c.bf16 %v1733, %v1732
      %v1753 = vpack.c.bf16 %v1735, %v1734
      %v1754 = vpack.c.bf16 %v1737, %v1736
      %v1755 = vpack.c.bf16 %v1739, %v1738
      %v1756 = vpack.c.bf16 %v1741, %v1740
      %v1757 = vpack.c.bf16 %v1743, %v1742
      %s1758 = scalar_lea.vmem %s259, 20
      %v1759 = vld [vmem:[%s1758] sm:$0xf]
      %1761 = vst [vmem:[#allocation1] ss:$4 sm:$0xff] %v1759
      %v1762 = vld.sshfl [vmem:[#allocation1] sm:$0xff pattern:$0x73625140]
      %v1763 = vld.sshfl [vmem:[#allocation1 + $0x8] sm:$0xff pattern:$0x73625140]
      %v1765 = vsel %vm378, %v1744, 0
      %v1768 = vsel %vm378, %v1745, 0
      %v1771 = vsel %vm378, %v1746, 0
      %v1774 = vsel %vm378, %v1747, 0
      %v1777 = vsel %vm378, %v1748, 0
      %v1780 = vsel %vm378, %v1749, 0
      %v1783 = vsel %vm378, %v1750, 0
      %v1786 = vsel %vm378, %v1751, 0
      %v1789 = vsel %vm378, %v1752, 0
      %v1792 = vsel %vm378, %v1753, 0
      %v1795 = vsel %vm378, %v1754, 0
      %v1798 = vsel %vm378, %v1755, 0
      %v1801 = vsel %vm378, %v1756, 0
      %v1804 = vsel %vm378, %v1757, 0
      %v1806 = vsel %vm421, %v1762, 0
      %v1808 = vsel %vm421, %v1763, 0
      %1810 = vmatpush.bf16.msra.mxu0 0
      %1811 = vmatpush.bf16.msra.mxu0 0
      %1812 = vmatpush.bf16.msra.mxu0 0
      %1813 = vmatpush.bf16.msra.mxu0 0
      %1814 = vmatpush.bf16.msra.mxu0 0
      %1815 = vmatpush.bf16.msra.mxu0 0
      %1816 = vmatpush.bf16.msra.mxu0 0
      %1817 = vmatpush.bf16.msra.mxu0 %v1806
      %1818 = vmatmul.bf16.gmra.mxu0 %v1765
      %v1819 = vpop.f32.mrf.mxu0
      %v1820 = vadd.f32 0.0, %v1819
      %v1821 = vpop.f32.mrf.mxu0
      %v1822 = vadd.f32 0.0, %v1821
      %1823 = vmatmul.bf16.gmra.mxu0 %v1768
      %v1824 = vpop.f32.mrf.mxu0
      %v1825 = vadd.f32 0.0, %v1824
      %v1826 = vpop.f32.mrf.mxu0
      %v1827 = vadd.f32 0.0, %v1826
      %1828 = vmatmul.bf16.gmra.mxu0 %v1771
      %v1829 = vpop.f32.mrf.mxu0
      %v1830 = vadd.f32 0.0, %v1829
      %v1831 = vpop.f32.mrf.mxu0
      %v1832 = vadd.f32 0.0, %v1831
      %1833 = vmatmul.bf16.gmra.mxu0 %v1774
      %v1834 = vpop.f32.mrf.mxu0
      %v1835 = vadd.f32 0.0, %v1834
      %v1836 = vpop.f32.mrf.mxu0
      %v1837 = vadd.f32 0.0, %v1836
      %1838 = vmatmul.bf16.gmra.mxu0 %v1777
      %v1839 = vpop.f32.mrf.mxu0
      %v1840 = vadd.f32 0.0, %v1839
      %v1841 = vpop.f32.mrf.mxu0
      %v1842 = vadd.f32 0.0, %v1841
      %1843 = vmatmul.bf16.gmra.mxu0 %v1780
      %v1844 = vpop.f32.mrf.mxu0
      %v1845 = vadd.f32 0.0, %v1844
      %v1846 = vpop.f32.mrf.mxu0
      %v1847 = vadd.f32 0.0, %v1846
      %1848 = vmatmul.bf16.gmra.mxu0 %v1783
      %v1849 = vpop.f32.mrf.mxu0
      %v1850 = vadd.f32 0.0, %v1849
      %v1851 = vpop.f32.mrf.mxu0
      %v1852 = vadd.f32 0.0, %v1851
      %1853 = vmatmul.bf16.gmra.mxu0 %v1786
      %v1854 = vpop.f32.mrf.mxu0
      %v1855 = vadd.f32 0.0, %v1854
      %v1856 = vpop.f32.mrf.mxu0
      %v1857 = vadd.f32 0.0, %v1856
      %1858 = vmatmul.bf16.gmra.mxu0 %v1789
      %v1859 = vpop.f32.mrf.mxu0
      %v1860 = vadd.f32 0.0, %v1859
      %v1861 = vpop.f32.mrf.mxu0
      %v1862 = vadd.f32 0.0, %v1861
      %1863 = vmatmul.bf16.gmra.mxu0 %v1792
      %v1864 = vpop.f32.mrf.mxu0
      %v1865 = vadd.f32 0.0, %v1864
      %v1866 = vpop.f32.mrf.mxu0
      %v1867 = vadd.f32 0.0, %v1866
      %1868 = vmatmul.bf16.gmra.mxu0 %v1795
      %v1869 = vpop.f32.mrf.mxu0
      %v1870 = vadd.f32 0.0, %v1869
      %v1871 = vpop.f32.mrf.mxu0
      %v1872 = vadd.f32 0.0, %v1871
      %1873 = vmatmul.bf16.gmra.mxu0 %v1798
      %v1874 = vpop.f32.mrf.mxu0
      %v1875 = vadd.f32 0.0, %v1874
      %v1876 = vpop.f32.mrf.mxu0
      %v1877 = vadd.f32 0.0, %v1876
      %1878 = vmatmul.bf16.gmra.mxu0 %v1801
      %v1879 = vpop.f32.mrf.mxu0
      %v1880 = vadd.f32 0.0, %v1879
      %v1881 = vpop.f32.mrf.mxu0
      %v1882 = vadd.f32 0.0, %v1881
      %1883 = vmatmul.bf16.gmra.mxu0 %v1804
      %v1884 = vpop.f32.mrf.mxu0
      %v1885 = vadd.f32 0.0, %v1884
      %v1886 = vpop.f32.mrf.mxu0
      %v1887 = vadd.f32 0.0, %v1886
      %1888 = vdwg.mxu0
      %1889 = vmatpush.bf16.msra.mxu0 0
      %1890 = vmatpush.bf16.msra.mxu0 0
      %1891 = vmatpush.bf16.msra.mxu0 0
      %1892 = vmatpush.bf16.msra.mxu0 0
      %1893 = vmatpush.bf16.msra.mxu0 0
      %1894 = vmatpush.bf16.msra.mxu0 0
      %1895 = vmatpush.bf16.msra.mxu0 0
      %1896 = vmatpush.bf16.msra.mxu0 %v1808
      %1897 = vmatmul.bf16.gmra.mxu0 %v1765
      %v1898 = vpop.f32.mrf.mxu0
      %v1899 = vadd.f32 0.0, %v1898
      %v1900 = vpop.f32.mrf.mxu0
      %v1901 = vadd.f32 0.0, %v1900
      %1902 = vmatmul.bf16.gmra.mxu0 %v1768
      %v1903 = vpop.f32.mrf.mxu0
      %v1904 = vadd.f32 0.0, %v1903
      %v1905 = vpop.f32.mrf.mxu0
      %v1906 = vadd.f32 0.0, %v1905
      %1907 = vmatmul.bf16.gmra.mxu0 %v1771
      %v1908 = vpop.f32.mrf.mxu0
      %v1909 = vadd.f32 0.0, %v1908
      %v1910 = vpop.f32.mrf.mxu0
      %v1911 = vadd.f32 0.0, %v1910
      %1912 = vmatmul.bf16.gmra.mxu0 %v1774
      %v1913 = vpop.f32.mrf.mxu0
      %v1914 = vadd.f32 0.0, %v1913
      %v1915 = vpop.f32.mrf.mxu0
      %v1916 = vadd.f32 0.0, %v1915
      %1917 = vmatmul.bf16.gmra.mxu0 %v1777
      %v1918 = vpop.f32.mrf.mxu0
      %v1919 = vadd.f32 0.0, %v1918
      %v1920 = vpop.f32.mrf.mxu0
      %v1921 = vadd.f32 0.0, %v1920
      %1922 = vmatmul.bf16.gmra.mxu0 %v1780
      %v1923 = vpop.f32.mrf.mxu0
      %v1924 = vadd.f32 0.0, %v1923
      %v1925 = vpop.f32.mrf.mxu0
      %v1926 = vadd.f32 0.0, %v1925
      %1927 = vmatmul.bf16.gmra.mxu0 %v1783
      %v1928 = vpop.f32.mrf.mxu0
      %v1929 = vadd.f32 0.0, %v1928
      %v1930 = vpop.f32.mrf.mxu0
      %v1931 = vadd.f32 0.0, %v1930
      %1932 = vmatmul.bf16.gmra.mxu0 %v1786
      %v1933 = vpop.f32.mrf.mxu0
      %v1934 = vadd.f32 0.0, %v1933
      %v1935 = vpop.f32.mrf.mxu0
      %v1936 = vadd.f32 0.0, %v1935
      %1937 = vmatmul.bf16.gmra.mxu0 %v1789
      %v1938 = vpop.f32.mrf.mxu0
      %v1939 = vadd.f32 0.0, %v1938
      %v1940 = vpop.f32.mrf.mxu0
      %v1941 = vadd.f32 0.0, %v1940
      %1942 = vmatmul.bf16.gmra.mxu0 %v1792
      %v1943 = vpop.f32.mrf.mxu0
      %v1944 = vadd.f32 0.0, %v1943
      %v1945 = vpop.f32.mrf.mxu0
      %v1946 = vadd.f32 0.0, %v1945
      %1947 = vmatmul.bf16.gmra.mxu0 %v1795
      %v1948 = vpop.f32.mrf.mxu0
      %v1949 = vadd.f32 0.0, %v1948
      %v1950 = vpop.f32.mrf.mxu0
      %v1951 = vadd.f32 0.0, %v1950
      %1952 = vmatmul.bf16.gmra.mxu0 %v1798
      %v1953 = vpop.f32.mrf.mxu0
      %v1954 = vadd.f32 0.0, %v1953
      %v1955 = vpop.f32.mrf.mxu0
      %v1956 = vadd.f32 0.0, %v1955
      %1957 = vmatmul.bf16.gmra.mxu0 %v1801
      %v1958 = vpop.f32.mrf.mxu0
      %v1959 = vadd.f32 0.0, %v1958
      %v1960 = vpop.f32.mrf.mxu0
      %v1961 = vadd.f32 0.0, %v1960
      %1962 = vmatmul.bf16.gmra.mxu0 %v1804
      %v1963 = vpop.f32.mrf.mxu0
      %v1964 = vadd.f32 0.0, %v1963
      %v1965 = vpop.f32.mrf.mxu0
      %v1966 = vadd.f32 0.0, %v1965
      %1967 = vdwg.mxu0
      %v1968 = vadd.f32 %v1660, %v1820
      %v1969 = vadd.f32 %v1661, %v1899
      %v1970 = vadd.f32 %v1662, %v1822
      %v1971 = vadd.f32 %v1663, %v1901
      %v1972 = vadd.f32 %v1664, %v1825
      %v1973 = vadd.f32 %v1665, %v1904
      %v1974 = vadd.f32 %v1666, %v1827
      %v1975 = vadd.f32 %v1667, %v1906
      %v1976 = vadd.f32 %v1668, %v1830
      %v1977 = vadd.f32 %v1669, %v1909
      %v1978 = vadd.f32 %v1670, %v1832
      %v1979 = vadd.f32 %v1671, %v1911
      %v1980 = vadd.f32 %v1672, %v1835
      %v1981 = vadd.f32 %v1673, %v1914
      %v1982 = vadd.f32 %v1674, %v1837
      %v1983 = vadd.f32 %v1675, %v1916
      %v1984 = vadd.f32 %v1676, %v1840
      %v1985 = vadd.f32 %v1677, %v1919
      %v1986 = vadd.f32 %v1678, %v1842
      %v1987 = vadd.f32 %v1679, %v1921
      %v1988 = vadd.f32 %v1680, %v1845
      %v1989 = vadd.f32 %v1681, %v1924
      %v1990 = vadd.f32 %v1682, %v1847
      %v1991 = vadd.f32 %v1683, %v1926
      %v1992 = vadd.f32 %v1684, %v1850
      %v1993 = vadd.f32 %v1685, %v1929
      %v1994 = vadd.f32 %v1686, %v1852
      %v1995 = vadd.f32 %v1687, %v1931
      %v1996 = vadd.f32 %v1688, %v1855
      %v1997 = vadd.f32 %v1689, %v1934
      %v1998 = vadd.f32 %v1690, %v1857
      %v1999 = vadd.f32 %v1691, %v1936
      %v2000 = vadd.f32 %v1692, %v1860
      %v2001 = vadd.f32 %v1693, %v1939
      %v2002 = vadd.f32 %v1694, %v1862
      %v2003 = vadd.f32 %v1695, %v1941
      %v2004 = vadd.f32 %v1696, %v1865
      %v2005 = vadd.f32 %v1697, %v1944
      %v2006 = vadd.f32 %v1698, %v1867
      %v2007 = vadd.f32 %v1699, %v1946
      %v2008 = vadd.f32 %v1700, %v1870
      %v2009 = vadd.f32 %v1701, %v1949
      %v2010 = vadd.f32 %v1702, %v1872
      %v2011 = vadd.f32 %v1703, %v1951
      %v2012 = vadd.f32 %v1704, %v1875
      %v2013 = vadd.f32 %v1705, %v1954
      %v2014 = vadd.f32 %v1706, %v1877
      %v2015 = vadd.f32 %v1707, %v1956
      %v2016 = vadd.f32 %v1708, %v1880
      %v2017 = vadd.f32 %v1709, %v1959
      %v2018 = vadd.f32 %v1710, %v1882
      %v2019 = vadd.f32 %v1711, %v1961
      %v2020 = vadd.f32 %v1712, %v1885
      %v2021 = vadd.f32 %v1713, %v1964
      %v2022 = vadd.f32 %v1714, %v1887
      %v2023 = vadd.f32 %v1715, %v1966
      %v2024 = vld [vmem:[%s254 + $0x20] sm:$0xff]
      %v2025 = vld [vmem:[%s254 + $0x28] sm:$0xff]
      %v2026 = vld [vmem:[%s254 + $0x30] sm:$0xff]
      %v2027 = vld [vmem:[%s254 + $0x38] sm:$0xff]
      %v2028 = vld [vmem:[%s254 + $0x40] sm:$0xff]
      %v2029 = vld [vmem:[%s254 + $0x48] sm:$0xff]
      %v2030 = vld [vmem:[%s254 + $0x50] sm:$0xff]
      %v2031 = vld [vmem:[%s254 + $0x58] sm:$0xff]
      %v2032 = vld [vmem:[%s254 + $0x60] sm:$0xff]
      %v2033 = vld [vmem:[%s254 + $0x68] sm:$0xff]
      %v2034 = vld [vmem:[%s254 + $0x70] sm:$0xff]
      %v2035 = vld [vmem:[%s254 + $0x78] sm:$0xff]
      %v2036 = vld [vmem:[%s254 + $0x80] sm:$0xff]
      %v2037 = vld [vmem:[%s254 + $0x88] sm:$0xff]
      %v2038 = vld [vmem:[%s254 + $0x90] sm:$0xff]
      %v2039 = vld [vmem:[%s254 + $0x98] sm:$0xff]
      %v2040 = vld [vmem:[%s254 + $0xa0] sm:$0xff]
      %v2041 = vld [vmem:[%s254 + $0xa8] sm:$0xff]
      %v2042 = vld [vmem:[%s254 + $0xb0] sm:$0xff]
      %v2043 = vld [vmem:[%s254 + $0xb8] sm:$0xff]
      %v2044 = vld [vmem:[%s254 + $0xc0] sm:$0xff]
      %v2045 = vld [vmem:[%s254 + $0xc8] sm:$0xff]
      %v2046 = vld [vmem:[%s254 + $0xd0] sm:$0xff]
      %v2047 = vld [vmem:[%s254 + $0xd8] sm:$0xff]
      %v2048 = vld [vmem:[%s254 + $0xe0] sm:$0xff]
      %v2049 = vld [vmem:[%s254 + $0xe8] sm:$0xff]
      %v2050 = vld [vmem:[%s254 + $0xf0] sm:$0xff]
      %v2051 = vld [vmem:[%s254 + $0xf8] sm:$0xff]
      %v2052 = vpack.c.bf16 %v2025, %v2024
      %v2053 = vpack.c.bf16 %v2027, %v2026
      %v2054 = vpack.c.bf16 %v2029, %v2028
      %v2055 = vpack.c.bf16 %v2031, %v2030
      %v2056 = vpack.c.bf16 %v2033, %v2032
      %v2057 = vpack.c.bf16 %v2035, %v2034
      %v2058 = vpack.c.bf16 %v2037, %v2036
      %v2059 = vpack.c.bf16 %v2039, %v2038
      %v2060 = vpack.c.bf16 %v2041, %v2040
      %v2061 = vpack.c.bf16 %v2043, %v2042
      %v2062 = vpack.c.bf16 %v2045, %v2044
      %v2063 = vpack.c.bf16 %v2047, %v2046
      %v2064 = vpack.c.bf16 %v2049, %v2048
      %v2065 = vpack.c.bf16 %v2051, %v2050
      %s2066 = scalar_lea.vmem %s259, 24
      %v2067 = vld [vmem:[%s2066] sm:$0xf]
      %2069 = vst [vmem:[#allocation1] ss:$4 sm:$0xff] %v2067
      %v2070 = vld.sshfl [vmem:[#allocation1] sm:$0xff pattern:$0x73625140]
      %v2071 = vld.sshfl [vmem:[#allocation1 + $0x8] sm:$0xff pattern:$0x73625140]
      %v2073 = vsel %vm378, %v2052, 0
      %v2076 = vsel %vm378, %v2053, 0
      %v2079 = vsel %vm378, %v2054, 0
      %v2082 = vsel %vm378, %v2055, 0
      %v2085 = vsel %vm378, %v2056, 0
      %v2088 = vsel %vm378, %v2057, 0
      %v2091 = vsel %vm378, %v2058, 0
      %v2094 = vsel %vm378, %v2059, 0
      %v2097 = vsel %vm378, %v2060, 0
      %v2100 = vsel %vm378, %v2061, 0
      %v2103 = vsel %vm378, %v2062, 0
      %v2106 = vsel %vm378, %v2063, 0
      %v2109 = vsel %vm378, %v2064, 0
      %v2112 = vsel %vm378, %v2065, 0
      %v2114 = vsel %vm421, %v2070, 0
      %v2116 = vsel %vm421, %v2071, 0
      %2118 = vmatpush.bf16.msra.mxu0 0
      %2119 = vmatpush.bf16.msra.mxu0 0
      %2120 = vmatpush.bf16.msra.mxu0 0
      %2121 = vmatpush.bf16.msra.mxu0 0
      %2122 = vmatpush.bf16.msra.mxu0 0
      %2123 = vmatpush.bf16.msra.mxu0 0
      %2124 = vmatpush.bf16.msra.mxu0 0
      %2125 = vmatpush.bf16.msra.mxu0 %v2114
      %2126 = vmatmul.bf16.gmra.mxu0 %v2073
      %v2127 = vpop.f32.mrf.mxu0
      %v2128 = vadd.f32 0.0, %v2127
      %v2129 = vpop.f32.mrf.mxu0
      %v2130 = vadd.f32 0.0, %v2129
      %2131 = vmatmul.bf16.gmra.mxu0 %v2076
      %v2132 = vpop.f32.mrf.mxu0
      %v2133 = vadd.f32 0.0, %v2132
      %v2134 = vpop.f32.mrf.mxu0
      %v2135 = vadd.f32 0.0, %v2134
      %2136 = vmatmul.bf16.gmra.mxu0 %v2079
      %v2137 = vpop.f32.mrf.mxu0
      %v2138 = vadd.f32 0.0, %v2137
      %v2139 = vpop.f32.mrf.mxu0
      %v2140 = vadd.f32 0.0, %v2139
      %2141 = vmatmul.bf16.gmra.mxu0 %v2082
      %v2142 = vpop.f32.mrf.mxu0
      %v2143 = vadd.f32 0.0, %v2142
      %v2144 = vpop.f32.mrf.mxu0
      %v2145 = vadd.f32 0.0, %v2144
      %2146 = vmatmul.bf16.gmra.mxu0 %v2085
      %v2147 = vpop.f32.mrf.mxu0
      %v2148 = vadd.f32 0.0, %v2147
      %v2149 = vpop.f32.mrf.mxu0
      %v2150 = vadd.f32 0.0, %v2149
      %2151 = vmatmul.bf16.gmra.mxu0 %v2088
      %v2152 = vpop.f32.mrf.mxu0
      %v2153 = vadd.f32 0.0, %v2152
      %v2154 = vpop.f32.mrf.mxu0
      %v2155 = vadd.f32 0.0, %v2154
      %2156 = vmatmul.bf16.gmra.mxu0 %v2091
      %v2157 = vpop.f32.mrf.mxu0
      %v2158 = vadd.f32 0.0, %v2157
      %v2159 = vpop.f32.mrf.mxu0
      %v2160 = vadd.f32 0.0, %v2159
      %2161 = vmatmul.bf16.gmra.mxu0 %v2094
      %v2162 = vpop.f32.mrf.mxu0
      %v2163 = vadd.f32 0.0, %v2162
      %v2164 = vpop.f32.mrf.mxu0
      %v2165 = vadd.f32 0.0, %v2164
      %2166 = vmatmul.bf16.gmra.mxu0 %v2097
      %v2167 = vpop.f32.mrf.mxu0
      %v2168 = vadd.f32 0.0, %v2167
      %v2169 = vpop.f32.mrf.mxu0
      %v2170 = vadd.f32 0.0, %v2169
      %2171 = vmatmul.bf16.gmra.mxu0 %v2100
      %v2172 = vpop.f32.mrf.mxu0
      %v2173 = vadd.f32 0.0, %v2172
      %v2174 = vpop.f32.mrf.mxu0
      %v2175 = vadd.f32 0.0, %v2174
      %2176 = vmatmul.bf16.gmra.mxu0 %v2103
      %v2177 = vpop.f32.mrf.mxu0
      %v2178 = vadd.f32 0.0, %v2177
      %v2179 = vpop.f32.mrf.mxu0
      %v2180 = vadd.f32 0.0, %v2179
      %2181 = vmatmul.bf16.gmra.mxu0 %v2106
      %v2182 = vpop.f32.mrf.mxu0
      %v2183 = vadd.f32 0.0, %v2182
      %v2184 = vpop.f32.mrf.mxu0
      %v2185 = vadd.f32 0.0, %v2184
      %2186 = vmatmul.bf16.gmra.mxu0 %v2109
      %v2187 = vpop.f32.mrf.mxu0
      %v2188 = vadd.f32 0.0, %v2187
      %v2189 = vpop.f32.mrf.mxu0
      %v2190 = vadd.f32 0.0, %v2189
      %2191 = vmatmul.bf16.gmra.mxu0 %v2112
      %v2192 = vpop.f32.mrf.mxu0
      %v2193 = vadd.f32 0.0, %v2192
      %v2194 = vpop.f32.mrf.mxu0
      %v2195 = vadd.f32 0.0, %v2194
      %2196 = vdwg.mxu0
      %2197 = vmatpush.bf16.msra.mxu0 0
      %2198 = vmatpush.bf16.msra.mxu0 0
      %2199 = vmatpush.bf16.msra.mxu0 0
      %2200 = vmatpush.bf16.msra.mxu0 0
      %2201 = vmatpush.bf16.msra.mxu0 0
      %2202 = vmatpush.bf16.msra.mxu0 0
      %2203 = vmatpush.bf16.msra.mxu0 0
      %2204 = vmatpush.bf16.msra.mxu0 %v2116
      %2205 = vmatmul.bf16.gmra.mxu0 %v2073
      %v2206 = vpop.f32.mrf.mxu0
      %v2207 = vadd.f32 0.0, %v2206
      %v2208 = vpop.f32.mrf.mxu0
      %v2209 = vadd.f32 0.0, %v2208
      %2210 = vmatmul.bf16.gmra.mxu0 %v2076
      %v2211 = vpop.f32.mrf.mxu0
      %v2212 = vadd.f32 0.0, %v2211
      %v2213 = vpop.f32.mrf.mxu0
      %v2214 = vadd.f32 0.0, %v2213
      %2215 = vmatmul.bf16.gmra.mxu0 %v2079
      %v2216 = vpop.f32.mrf.mxu0
      %v2217 = vadd.f32 0.0, %v2216
      %v2218 = vpop.f32.mrf.mxu0
      %v2219 = vadd.f32 0.0, %v2218
      %2220 = vmatmul.bf16.gmra.mxu0 %v2082
      %v2221 = vpop.f32.mrf.mxu0
      %v2222 = vadd.f32 0.0, %v2221
      %v2223 = vpop.f32.mrf.mxu0
      %v2224 = vadd.f32 0.0, %v2223
      %2225 = vmatmul.bf16.gmra.mxu0 %v2085
      %v2226 = vpop.f32.mrf.mxu0
      %v2227 = vadd.f32 0.0, %v2226
      %v2228 = vpop.f32.mrf.mxu0
      %v2229 = vadd.f32 0.0, %v2228
      %2230 = vmatmul.bf16.gmra.mxu0 %v2088
      %v2231 = vpop.f32.mrf.mxu0
      %v2232 = vadd.f32 0.0, %v2231
      %v2233 = vpop.f32.mrf.mxu0
      %v2234 = vadd.f32 0.0, %v2233
      %2235 = vmatmul.bf16.gmra.mxu0 %v2091
      %v2236 = vpop.f32.mrf.mxu0
      %v2237 = vadd.f32 0.0, %v2236
      %v2238 = vpop.f32.mrf.mxu0
      %v2239 = vadd.f32 0.0, %v2238
      %2240 = vmatmul.bf16.gmra.mxu0 %v2094
      %v2241 = vpop.f32.mrf.mxu0
      %v2242 = vadd.f32 0.0, %v2241
      %v2243 = vpop.f32.mrf.mxu0
      %v2244 = vadd.f32 0.0, %v2243
      %2245 = vmatmul.bf16.gmra.mxu0 %v2097
      %v2246 = vpop.f32.mrf.mxu0
      %v2247 = vadd.f32 0.0, %v2246
      %v2248 = vpop.f32.mrf.mxu0
      %v2249 = vadd.f32 0.0, %v2248
      %2250 = vmatmul.bf16.gmra.mxu0 %v2100
      %v2251 = vpop.f32.mrf.mxu0
      %v2252 = vadd.f32 0.0, %v2251
      %v2253 = vpop.f32.mrf.mxu0
      %v2254 = vadd.f32 0.0, %v2253
      %2255 = vmatmul.bf16.gmra.mxu0 %v2103
      %v2256 = vpop.f32.mrf.mxu0
      %v2257 = vadd.f32 0.0, %v2256
      %v2258 = vpop.f32.mrf.mxu0
      %v2259 = vadd.f32 0.0, %v2258
      %2260 = vmatmul.bf16.gmra.mxu0 %v2106
      %v2261 = vpop.f32.mrf.mxu0
      %v2262 = vadd.f32 0.0, %v2261
      %v2263 = vpop.f32.mrf.mxu0
      %v2264 = vadd.f32 0.0, %v2263
      %2265 = vmatmul.bf16.gmra.mxu0 %v2109
      %v2266 = vpop.f32.mrf.mxu0
      %v2267 = vadd.f32 0.0, %v2266
      %v2268 = vpop.f32.mrf.mxu0
      %v2269 = vadd.f32 0.0, %v2268
      %2270 = vmatmul.bf16.gmra.mxu0 %v2112
      %v2271 = vpop.f32.mrf.mxu0
      %v2272 = vadd.f32 0.0, %v2271
      %v2273 = vpop.f32.mrf.mxu0
      %v2274 = vadd.f32 0.0, %v2273
      %2275 = vdwg.mxu0
      %v2276 = vadd.f32 %v1968, %v2128
      %v2277 = vadd.f32 %v1969, %v2207
      %v2278 = vadd.f32 %v1970, %v2130
      %v2279 = vadd.f32 %v1971, %v2209
      %v2280 = vadd.f32 %v1972, %v2133
      %v2281 = vadd.f32 %v1973, %v2212
      %v2282 = vadd.f32 %v1974, %v2135
      %v2283 = vadd.f32 %v1975, %v2214
      %v2284 = vadd.f32 %v1976, %v2138
      %v2285 = vadd.f32 %v1977, %v2217
      %v2286 = vadd.f32 %v1978, %v2140
      %v2287 = vadd.f32 %v1979, %v2219
      %v2288 = vadd.f32 %v1980, %v2143
      %v2289 = vadd.f32 %v1981, %v2222
      %v2290 = vadd.f32 %v1982, %v2145
      %v2291 = vadd.f32 %v1983, %v2224
      %v2292 = vadd.f32 %v1984, %v2148
      %v2293 = vadd.f32 %v1985, %v2227
      %v2294 = vadd.f32 %v1986, %v2150
      %v2295 = vadd.f32 %v1987, %v2229
      %v2296 = vadd.f32 %v1988, %v2153
      %v2297 = vadd.f32 %v1989, %v2232
      %v2298 = vadd.f32 %v1990, %v2155
      %v2299 = vadd.f32 %v1991, %v2234
      %v2300 = vadd.f32 %v1992, %v2158
      %v2301 = vadd.f32 %v1993, %v2237
      %v2302 = vadd.f32 %v1994, %v2160
      %v2303 = vadd.f32 %v1995, %v2239
      %v2304 = vadd.f32 %v1996, %v2163
      %v2305 = vadd.f32 %v1997, %v2242
      %v2306 = vadd.f32 %v1998, %v2165
      %v2307 = vadd.f32 %v1999, %v2244
      %v2308 = vadd.f32 %v2000, %v2168
      %v2309 = vadd.f32 %v2001, %v2247
      %v2310 = vadd.f32 %v2002, %v2170
      %v2311 = vadd.f32 %v2003, %v2249
      %v2312 = vadd.f32 %v2004, %v2173
      %v2313 = vadd.f32 %v2005, %v2252
      %v2314 = vadd.f32 %v2006, %v2175
      %v2315 = vadd.f32 %v2007, %v2254
      %v2316 = vadd.f32 %v2008, %v2178
      %v2317 = vadd.f32 %v2009, %v2257
      %v2318 = vadd.f32 %v2010, %v2180
      %v2319 = vadd.f32 %v2011, %v2259
      %v2320 = vadd.f32 %v2012, %v2183
      %v2321 = vadd.f32 %v2013, %v2262
      %v2322 = vadd.f32 %v2014, %v2185
      %v2323 = vadd.f32 %v2015, %v2264
      %v2324 = vadd.f32 %v2016, %v2188
      %v2325 = vadd.f32 %v2017, %v2267
      %v2326 = vadd.f32 %v2018, %v2190
      %v2327 = vadd.f32 %v2019, %v2269
      %v2328 = vadd.f32 %v2020, %v2193
      %v2329 = vadd.f32 %v2021, %v2272
      %v2330 = vadd.f32 %v2022, %v2195
      %v2331 = vadd.f32 %v2023, %v2274
      %v2332 = vld [vmem:[%s254 + $0x21] sm:$0xff]
      %v2333 = vld [vmem:[%s254 + $0x29] sm:$0xff]
      %v2334 = vld [vmem:[%s254 + $0x31] sm:$0xff]
      %v2335 = vld [vmem:[%s254 + $0x39] sm:$0xff]
      %v2336 = vld [vmem:[%s254 + $0x41] sm:$0xff]
      %v2337 = vld [vmem:[%s254 + $0x49] sm:$0xff]
      %v2338 = vld [vmem:[%s254 + $0x51] sm:$0xff]
      %v2339 = vld [vmem:[%s254 + $0x59] sm:$0xff]
      %v2340 = vld [vmem:[%s254 + $0x61] sm:$0xff]
      %v2341 = vld [vmem:[%s254 + $0x69] sm:$0xff]
      %v2342 = vld [vmem:[%s254 + $0x71] sm:$0xff]
      %v2343 = vld [vmem:[%s254 + $0x79] sm:$0xff]
      %v2344 = vld [vmem:[%s254 + $0x81] sm:$0xff]
      %v2345 = vld [vmem:[%s254 + $0x89] sm:$0xff]
      %v2346 = vld [vmem:[%s254 + $0x91] sm:$0xff]
      %v2347 = vld [vmem:[%s254 + $0x99] sm:$0xff]
      %v2348 = vld [vmem:[%s254 + $0xa1] sm:$0xff]
      %v2349 = vld [vmem:[%s254 + $0xa9] sm:$0xff]
      %v2350 = vld [vmem:[%s254 + $0xb1] sm:$0xff]
      %v2351 = vld [vmem:[%s254 + $0xb9] sm:$0xff]
      %v2352 = vld [vmem:[%s254 + $0xc1] sm:$0xff]
      %v2353 = vld [vmem:[%s254 + $0xc9] sm:$0xff]
      %v2354 = vld [vmem:[%s254 + $0xd1] sm:$0xff]
      %v2355 = vld [vmem:[%s254 + $0xd9] sm:$0xff]
      %v2356 = vld [vmem:[%s254 + $0xe1] sm:$0xff]
      %v2357 = vld [vmem:[%s254 + $0xe9] sm:$0xff]
      %v2358 = vld [vmem:[%s254 + $0xf1] sm:$0xff]
      %v2359 = vld [vmem:[%s254 + $0xf9] sm:$0xff]
      %v2360 = vpack.c.bf16 %v2333, %v2332
      %v2361 = vpack.c.bf16 %v2335, %v2334
      %v2362 = vpack.c.bf16 %v2337, %v2336
      %v2363 = vpack.c.bf16 %v2339, %v2338
      %v2364 = vpack.c.bf16 %v2341, %v2340
      %v2365 = vpack.c.bf16 %v2343, %v2342
      %v2366 = vpack.c.bf16 %v2345, %v2344
      %v2367 = vpack.c.bf16 %v2347, %v2346
      %v2368 = vpack.c.bf16 %v2349, %v2348
      %v2369 = vpack.c.bf16 %v2351, %v2350
      %v2370 = vpack.c.bf16 %v2353, %v2352
      %v2371 = vpack.c.bf16 %v2355, %v2354
      %v2372 = vpack.c.bf16 %v2357, %v2356
      %v2373 = vpack.c.bf16 %v2359, %v2358
      %s2374 = scalar_lea.vmem %s259, 28
      %v2375 = vld [vmem:[%s2374] sm:$0xf]
      %2377 = vst [vmem:[#allocation1] ss:$4 sm:$0xff] %v2375
      %v2378 = vld.sshfl [vmem:[#allocation1] sm:$0xff pattern:$0x73625140]
      %v2379 = vld.sshfl [vmem:[#allocation1 + $0x8] sm:$0xff pattern:$0x73625140]
      %v2381 = vsel %vm378, %v2360, 0
      %v2384 = vsel %vm378, %v2361, 0
      %v2387 = vsel %vm378, %v2362, 0
      %v2390 = vsel %vm378, %v2363, 0
      %v2393 = vsel %vm378, %v2364, 0
      %v2396 = vsel %vm378, %v2365, 0
      %v2399 = vsel %vm378, %v2366, 0
      %v2402 = vsel %vm378, %v2367, 0
      %v2405 = vsel %vm378, %v2368, 0
      %v2408 = vsel %vm378, %v2369, 0
      %v2411 = vsel %vm378, %v2370, 0
      %v2414 = vsel %vm378, %v2371, 0
      %v2417 = vsel %vm378, %v2372, 0
      %v2420 = vsel %vm378, %v2373, 0
      %v2422 = vsel %vm421, %v2378, 0
      %v2424 = vsel %vm421, %v2379, 0
      %2426 = vmatpush.bf16.msra.mxu0 0
      %2427 = vmatpush.bf16.msra.mxu0 0
      %2428 = vmatpush.bf16.msra.mxu0 0
      %2429 = vmatpush.bf16.msra.mxu0 0
      %2430 = vmatpush.bf16.msra.mxu0 0
      %2431 = vmatpush.bf16.msra.mxu0 0
      %2432 = vmatpush.bf16.msra.mxu0 0
      %2433 = vmatpush.bf16.msra.mxu0 %v2422
      %2434 = vmatmul.bf16.gmra.mxu0 %v2381
      %v2435 = vpop.f32.mrf.mxu0
      %v2436 = vadd.f32 0.0, %v2435
      %v2437 = vpop.f32.mrf.mxu0
      %v2438 = vadd.f32 0.0, %v2437
      %2439 = vmatmul.bf16.gmra.mxu0 %v2384
      %v2440 = vpop.f32.mrf.mxu0
      %v2441 = vadd.f32 0.0, %v2440
      %v2442 = vpop.f32.mrf.mxu0
      %v2443 = vadd.f32 0.0, %v2442
      %2444 = vmatmul.bf16.gmra.mxu0 %v2387
      %v2445 = vpop.f32.mrf.mxu0
      %v2446 = vadd.f32 0.0, %v2445
      %v2447 = vpop.f32.mrf.mxu0
      %v2448 = vadd.f32 0.0, %v2447
      %2449 = vmatmul.bf16.gmra.mxu0 %v2390
      %v2450 = vpop.f32.mrf.mxu0
      %v2451 = vadd.f32 0.0, %v2450
      %v2452 = vpop.f32.mrf.mxu0
      %v2453 = vadd.f32 0.0, %v2452
      %2454 = vmatmul.bf16.gmra.mxu0 %v2393
      %v2455 = vpop.f32.mrf.mxu0
      %v2456 = vadd.f32 0.0, %v2455
      %v2457 = vpop.f32.mrf.mxu0
      %v2458 = vadd.f32 0.0, %v2457
      %2459 = vmatmul.bf16.gmra.mxu0 %v2396
      %v2460 = vpop.f32.mrf.mxu0
      %v2461 = vadd.f32 0.0, %v2460
      %v2462 = vpop.f32.mrf.mxu0
      %v2463 = vadd.f32 0.0, %v2462
      %2464 = vmatmul.bf16.gmra.mxu0 %v2399
      %v2465 = vpop.f32.mrf.mxu0
      %v2466 = vadd.f32 0.0, %v2465
      %v2467 = vpop.f32.mrf.mxu0
      %v2468 = vadd.f32 0.0, %v2467
      %2469 = vmatmul.bf16.gmra.mxu0 %v2402
      %v2470 = vpop.f32.mrf.mxu0
      %v2471 = vadd.f32 0.0, %v2470
      %v2472 = vpop.f32.mrf.mxu0
      %v2473 = vadd.f32 0.0, %v2472
      %2474 = vmatmul.bf16.gmra.mxu0 %v2405
      %v2475 = vpop.f32.mrf.mxu0
      %v2476 = vadd.f32 0.0, %v2475
      %v2477 = vpop.f32.mrf.mxu0
      %v2478 = vadd.f32 0.0, %v2477
      %2479 = vmatmul.bf16.gmra.mxu0 %v2408
      %v2480 = vpop.f32.mrf.mxu0
      %v2481 = vadd.f32 0.0, %v2480
      %v2482 = vpop.f32.mrf.mxu0
      %v2483 = vadd.f32 0.0, %v2482
      %2484 = vmatmul.bf16.gmra.mxu0 %v2411
      %v2485 = vpop.f32.mrf.mxu0
      %v2486 = vadd.f32 0.0, %v2485
      %v2487 = vpop.f32.mrf.mxu0
      %v2488 = vadd.f32 0.0, %v2487
      %2489 = vmatmul.bf16.gmra.mxu0 %v2414
      %v2490 = vpop.f32.mrf.mxu0
      %v2491 = vadd.f32 0.0, %v2490
      %v2492 = vpop.f32.mrf.mxu0
      %v2493 = vadd.f32 0.0, %v2492
      %2494 = vmatmul.bf16.gmra.mxu0 %v2417
      %v2495 = vpop.f32.mrf.mxu0
      %v2496 = vadd.f32 0.0, %v2495
      %v2497 = vpop.f32.mrf.mxu0
      %v2498 = vadd.f32 0.0, %v2497
      %2499 = vmatmul.bf16.gmra.mxu0 %v2420
      %v2500 = vpop.f32.mrf.mxu0
      %v2501 = vadd.f32 0.0, %v2500
      %v2502 = vpop.f32.mrf.mxu0
      %v2503 = vadd.f32 0.0, %v2502
      %2504 = vdwg.mxu0
      %2505 = vmatpush.bf16.msra.mxu0 0
      %2506 = vmatpush.bf16.msra.mxu0 0
      %2507 = vmatpush.bf16.msra.mxu0 0
      %2508 = vmatpush.bf16.msra.mxu0 0
      %2509 = vmatpush.bf16.msra.mxu0 0
      %2510 = vmatpush.bf16.msra.mxu0 0
      %2511 = vmatpush.bf16.msra.mxu0 0
      %2512 = vmatpush.bf16.msra.mxu0 %v2424
      %2513 = vmatmul.bf16.gmra.mxu0 %v2381
      %v2514 = vpop.f32.mrf.mxu0
      %v2515 = vadd.f32 0.0, %v2514
      %v2516 = vpop.f32.mrf.mxu0
      %v2517 = vadd.f32 0.0, %v2516
      %2518 = vmatmul.bf16.gmra.mxu0 %v2384
      %v2519 = vpop.f32.mrf.mxu0
      %v2520 = vadd.f32 0.0, %v2519
      %v2521 = vpop.f32.mrf.mxu0
      %v2522 = vadd.f32 0.0, %v2521
      %2523 = vmatmul.bf16.gmra.mxu0 %v2387
      %v2524 = vpop.f32.mrf.mxu0
      %v2525 = vadd.f32 0.0, %v2524
      %v2526 = vpop.f32.mrf.mxu0
      %v2527 = vadd.f32 0.0, %v2526
      %2528 = vmatmul.bf16.gmra.mxu0 %v2390
      %v2529 = vpop.f32.mrf.mxu0
      %v2530 = vadd.f32 0.0, %v2529
      %v2531 = vpop.f32.mrf.mxu0
      %v2532 = vadd.f32 0.0, %v2531
      %2533 = vmatmul.bf16.gmra.mxu0 %v2393
      %v2534 = vpop.f32.mrf.mxu0
      %v2535 = vadd.f32 0.0, %v2534
      %v2536 = vpop.f32.mrf.mxu0
      %v2537 = vadd.f32 0.0, %v2536
      %2538 = vmatmul.bf16.gmra.mxu0 %v2396
      %v2539 = vpop.f32.mrf.mxu0
      %v2540 = vadd.f32 0.0, %v2539
      %v2541 = vpop.f32.mrf.mxu0
      %v2542 = vadd.f32 0.0, %v2541
      %2543 = vmatmul.bf16.gmra.mxu0 %v2399
      %v2544 = vpop.f32.mrf.mxu0
      %v2545 = vadd.f32 0.0, %v2544
      %v2546 = vpop.f32.mrf.mxu0
      %v2547 = vadd.f32 0.0, %v2546
      %2548 = vmatmul.bf16.gmra.mxu0 %v2402
      %v2549 = vpop.f32.mrf.mxu0
      %v2550 = vadd.f32 0.0, %v2549
      %v2551 = vpop.f32.mrf.mxu0
      %v2552 = vadd.f32 0.0, %v2551
      %2553 = vmatmul.bf16.gmra.mxu0 %v2405
      %v2554 = vpop.f32.mrf.mxu0
      %v2555 = vadd.f32 0.0, %v2554
      %v2556 = vpop.f32.mrf.mxu0
      %v2557 = vadd.f32 0.0, %v2556
      %2558 = vmatmul.bf16.gmra.mxu0 %v2408
      %v2559 = vpop.f32.mrf.mxu0
      %v2560 = vadd.f32 0.0, %v2559
      %v2561 = vpop.f32.mrf.mxu0
      %v2562 = vadd.f32 0.0, %v2561
      %2563 = vmatmul.bf16.gmra.mxu0 %v2411
      %v2564 = vpop.f32.mrf.mxu0
      %v2565 = vadd.f32 0.0, %v2564
      %v2566 = vpop.f32.mrf.mxu0
      %v2567 = vadd.f32 0.0, %v2566
      %2568 = vmatmul.bf16.gmra.mxu0 %v2414
      %v2569 = vpop.f32.mrf.mxu0
      %v2570 = vadd.f32 0.0, %v2569
      %v2571 = vpop.f32.mrf.mxu0
      %v2572 = vadd.f32 0.0, %v2571
      %2573 = vmatmul.bf16.gmra.mxu0 %v2417
      %v2574 = vpop.f32.mrf.mxu0
      %v2575 = vadd.f32 0.0, %v2574
      %v2576 = vpop.f32.mrf.mxu0
      %v2577 = vadd.f32 0.0, %v2576
      %2578 = vmatmul.bf16.gmra.mxu0 %v2420
      %v2579 = vpop.f32.mrf.mxu0
      %v2580 = vadd.f32 0.0, %v2579
      %v2581 = vpop.f32.mrf.mxu0
      %v2582 = vadd.f32 0.0, %v2581
      %2583 = vdwg.mxu0
      %v2584 = vadd.f32 %v2276, %v2436
      %v2585 = vadd.f32 %v2277, %v2515
      %v2586 = vadd.f32 %v2278, %v2438
      %v2587 = vadd.f32 %v2279, %v2517
      %v2588 = vadd.f32 %v2280, %v2441
      %v2589 = vadd.f32 %v2281, %v2520
      %v2590 = vadd.f32 %v2282, %v2443
      %v2591 = vadd.f32 %v2283, %v2522
      %v2592 = vadd.f32 %v2284, %v2446
      %v2593 = vadd.f32 %v2285, %v2525
      %v2594 = vadd.f32 %v2286, %v2448
      %v2595 = vadd.f32 %v2287, %v2527
      %v2596 = vadd.f32 %v2288, %v2451
      %v2597 = vadd.f32 %v2289, %v2530
      %v2598 = vadd.f32 %v2290, %v2453
      %v2599 = vadd.f32 %v2291, %v2532
      %v2600 = vadd.f32 %v2292, %v2456
      %v2601 = vadd.f32 %v2293, %v2535
      %v2602 = vadd.f32 %v2294, %v2458
      %v2603 = vadd.f32 %v2295, %v2537
      %v2604 = vadd.f32 %v2296, %v2461
      %v2605 = vadd.f32 %v2297, %v2540
      %v2606 = vadd.f32 %v2298, %v2463
      %v2607 = vadd.f32 %v2299, %v2542
      %v2608 = vadd.f32 %v2300, %v2466
      %v2609 = vadd.f32 %v2301, %v2545
      %v2610 = vadd.f32 %v2302, %v2468
      %v2611 = vadd.f32 %v2303, %v2547
      %v2612 = vadd.f32 %v2304, %v2471
      %v2613 = vadd.f32 %v2305, %v2550
      %v2614 = vadd.f32 %v2306, %v2473
      %v2615 = vadd.f32 %v2307, %v2552
      %v2616 = vadd.f32 %v2308, %v2476
      %v2617 = vadd.f32 %v2309, %v2555
      %v2618 = vadd.f32 %v2310, %v2478
      %v2619 = vadd.f32 %v2311, %v2557
      %v2620 = vadd.f32 %v2312, %v2481
      %v2621 = vadd.f32 %v2313, %v2560
      %v2622 = vadd.f32 %v2314, %v2483
      %v2623 = vadd.f32 %v2315, %v2562
      %v2624 = vadd.f32 %v2316, %v2486
      %v2625 = vadd.f32 %v2317, %v2565
      %v2626 = vadd.f32 %v2318, %v2488
      %v2627 = vadd.f32 %v2319, %v2567
      %v2628 = vadd.f32 %v2320, %v2491
      %v2629 = vadd.f32 %v2321, %v2570
      %v2630 = vadd.f32 %v2322, %v2493
      %v2631 = vadd.f32 %v2323, %v2572
      %v2632 = vadd.f32 %v2324, %v2496
      %v2633 = vadd.f32 %v2325, %v2575
      %v2634 = vadd.f32 %v2326, %v2498
      %v2635 = vadd.f32 %v2327, %v2577
      %v2636 = vadd.f32 %v2328, %v2501
      %v2637 = vadd.f32 %v2329, %v2580
      %v2638 = vadd.f32 %v2330, %v2503
      %v2639 = vadd.f32 %v2331, %v2582
      %v2640 = vld [vmem:[%s254 + $0x22] sm:$0xff]
      %v2641 = vld [vmem:[%s254 + $0x2a] sm:$0xff]
      %v2642 = vld [vmem:[%s254 + $0x32] sm:$0xff]
      %v2643 = vld [vmem:[%s254 + $0x3a] sm:$0xff]
      %v2644 = vld [vmem:[%s254 + $0x42] sm:$0xff]
      %v2645 = vld [vmem:[%s254 + $0x4a] sm:$0xff]
      %v2646 = vld [vmem:[%s254 + $0x52] sm:$0xff]
      %v2647 = vld [vmem:[%s254 + $0x5a] sm:$0xff]
      %v2648 = vld [vmem:[%s254 + $0x62] sm:$0xff]
      %v2649 = vld [vmem:[%s254 + $0x6a] sm:$0xff]
      %v2650 = vld [vmem:[%s254 + $0x72] sm:$0xff]
      %v2651 = vld [vmem:[%s254 + $0x7a] sm:$0xff]
      %v2652 = vld [vmem:[%s254 + $0x82] sm:$0xff]
      %v2653 = vld [vmem:[%s254 + $0x8a] sm:$0xff]
      %v2654 = vld [vmem:[%s254 + $0x92] sm:$0xff]
      %v2655 = vld [vmem:[%s254 + $0x9a] sm:$0xff]
      %v2656 = vld [vmem:[%s254 + $0xa2] sm:$0xff]
      %v2657 = vld [vmem:[%s254 + $0xaa] sm:$0xff]
      %v2658 = vld [vmem:[%s254 + $0xb2] sm:$0xff]
      %v2659 = vld [vmem:[%s254 + $0xba] sm:$0xff]
      %v2660 = vld [vmem:[%s254 + $0xc2] sm:$0xff]
      %v2661 = vld [vmem:[%s254 + $0xca] sm:$0xff]
      %v2662 = vld [vmem:[%s254 + $0xd2] sm:$0xff]
      %v2663 = vld [vmem:[%s254 + $0xda] sm:$0xff]
      %v2664 = vld [vmem:[%s254 + $0xe2] sm:$0xff]
      %v2665 = vld [vmem:[%s254 + $0xea] sm:$0xff]
      %v2666 = vld [vmem:[%s254 + $0xf2] sm:$0xff]
      %v2667 = vld [vmem:[%s254 + $0xfa] sm:$0xff]
      %v2668 = vpack.c.bf16 %v2641, %v2640
      %v2669 = vpack.c.bf16 %v2643, %v2642
      %v2670 = vpack.c.bf16 %v2645, %v2644
      %v2671 = vpack.c.bf16 %v2647, %v2646
      %v2672 = vpack.c.bf16 %v2649, %v2648
      %v2673 = vpack.c.bf16 %v2651, %v2650
      %v2674 = vpack.c.bf16 %v2653, %v2652
      %v2675 = vpack.c.bf16 %v2655, %v2654
      %v2676 = vpack.c.bf16 %v2657, %v2656
      %v2677 = vpack.c.bf16 %v2659, %v2658
      %v2678 = vpack.c.bf16 %v2661, %v2660
      %v2679 = vpack.c.bf16 %v2663, %v2662
      %v2680 = vpack.c.bf16 %v2665, %v2664
      %v2681 = vpack.c.bf16 %v2667, %v2666
      %s2682 = scalar_lea.vmem %s259, 32
      %v2683 = vld [vmem:[%s2682] sm:$0xf]
      %2685 = vst [vmem:[#allocation1] ss:$4 sm:$0xff] %v2683
      %v2686 = vld.sshfl [vmem:[#allocation1] sm:$0xff pattern:$0x73625140]
      %v2687 = vld.sshfl [vmem:[#allocation1 + $0x8] sm:$0xff pattern:$0x73625140]
      %v2689 = vsel %vm378, %v2668, 0
      %v2692 = vsel %vm378, %v2669, 0
      %v2695 = vsel %vm378, %v2670, 0
      %v2698 = vsel %vm378, %v2671, 0
      %v2701 = vsel %vm378, %v2672, 0
      %v2704 = vsel %vm378, %v2673, 0
      %v2707 = vsel %vm378, %v2674, 0
      %v2710 = vsel %vm378, %v2675, 0
      %v2713 = vsel %vm378, %v2676, 0
      %v2716 = vsel %vm378, %v2677, 0
      %v2719 = vsel %vm378, %v2678, 0
      %v2722 = vsel %vm378, %v2679, 0
      %v2725 = vsel %vm378, %v2680, 0
      %v2728 = vsel %vm378, %v2681, 0
      %v2730 = vsel %vm421, %v2686, 0
      %v2732 = vsel %vm421, %v2687, 0
      %2734 = vmatpush.bf16.msra.mxu0 0
      %2735 = vmatpush.bf16.msra.mxu0 0
      %2736 = vmatpush.bf16.msra.mxu0 0
      %2737 = vmatpush.bf16.msra.mxu0 0
      %2738 = vmatpush.bf16.msra.mxu0 0
      %2739 = vmatpush.bf16.msra.mxu0 0
      %2740 = vmatpush.bf16.msra.mxu0 0
      %2741 = vmatpush.bf16.msra.mxu0 %v2730
      %2742 = vmatmul.bf16.gmra.mxu0 %v2689
      %v2743 = vpop.f32.mrf.mxu0
      %v2744 = vadd.f32 0.0, %v2743
      %v2745 = vpop.f32.mrf.mxu0
      %v2746 = vadd.f32 0.0, %v2745
      %2747 = vmatmul.bf16.gmra.mxu0 %v2692
      %v2748 = vpop.f32.mrf.mxu0
      %v2749 = vadd.f32 0.0, %v2748
      %v2750 = vpop.f32.mrf.mxu0
      %v2751 = vadd.f32 0.0, %v2750
      %2752 = vmatmul.bf16.gmra.mxu0 %v2695
      %v2753 = vpop.f32.mrf.mxu0
      %v2754 = vadd.f32 0.0, %v2753
      %v2755 = vpop.f32.mrf.mxu0
      %v2756 = vadd.f32 0.0, %v2755
      %2757 = vmatmul.bf16.gmra.mxu0 %v2698
      %v2758 = vpop.f32.mrf.mxu0
      %v2759 = vadd.f32 0.0, %v2758
      %v2760 = vpop.f32.mrf.mxu0
      %v2761 = vadd.f32 0.0, %v2760
      %2762 = vmatmul.bf16.gmra.mxu0 %v2701
      %v2763 = vpop.f32.mrf.mxu0
      %v2764 = vadd.f32 0.0, %v2763
      %v2765 = vpop.f32.mrf.mxu0
      %v2766 = vadd.f32 0.0, %v2765
      %2767 = vmatmul.bf16.gmra.mxu0 %v2704
      %v2768 = vpop.f32.mrf.mxu0
      %v2769 = vadd.f32 0.0, %v2768
      %v2770 = vpop.f32.mrf.mxu0
      %v2771 = vadd.f32 0.0, %v2770
      %2772 = vmatmul.bf16.gmra.mxu0 %v2707
      %v2773 = vpop.f32.mrf.mxu0
      %v2774 = vadd.f32 0.0, %v2773
      %v2775 = vpop.f32.mrf.mxu0
      %v2776 = vadd.f32 0.0, %v2775
      %2777 = vmatmul.bf16.gmra.mxu0 %v2710
      %v2778 = vpop.f32.mrf.mxu0
      %v2779 = vadd.f32 0.0, %v2778
      %v2780 = vpop.f32.mrf.mxu0
      %v2781 = vadd.f32 0.0, %v2780
      %2782 = vmatmul.bf16.gmra.mxu0 %v2713
      %v2783 = vpop.f32.mrf.mxu0
      %v2784 = vadd.f32 0.0, %v2783
      %v2785 = vpop.f32.mrf.mxu0
      %v2786 = vadd.f32 0.0, %v2785
      %2787 = vmatmul.bf16.gmra.mxu0 %v2716
      %v2788 = vpop.f32.mrf.mxu0
      %v2789 = vadd.f32 0.0, %v2788
      %v2790 = vpop.f32.mrf.mxu0
      %v2791 = vadd.f32 0.0, %v2790
      %2792 = vmatmul.bf16.gmra.mxu0 %v2719
      %v2793 = vpop.f32.mrf.mxu0
      %v2794 = vadd.f32 0.0, %v2793
      %v2795 = vpop.f32.mrf.mxu0
      %v2796 = vadd.f32 0.0, %v2795
      %2797 = vmatmul.bf16.gmra.mxu0 %v2722
      %v2798 = vpop.f32.mrf.mxu0
      %v2799 = vadd.f32 0.0, %v2798
      %v2800 = vpop.f32.mrf.mxu0
      %v2801 = vadd.f32 0.0, %v2800
      %2802 = vmatmul.bf16.gmra.mxu0 %v2725
      %v2803 = vpop.f32.mrf.mxu0
      %v2804 = vadd.f32 0.0, %v2803
      %v2805 = vpop.f32.mrf.mxu0
      %v2806 = vadd.f32 0.0, %v2805
      %2807 = vmatmul.bf16.gmra.mxu0 %v2728
      %v2808 = vpop.f32.mrf.mxu0
      %v2809 = vadd.f32 0.0, %v2808
      %v2810 = vpop.f32.mrf.mxu0
      %v2811 = vadd.f32 0.0, %v2810
      %2812 = vdwg.mxu0
      %2813 = vmatpush.bf16.msra.mxu0 0
      %2814 = vmatpush.bf16.msra.mxu0 0
      %2815 = vmatpush.bf16.msra.mxu0 0
      %2816 = vmatpush.bf16.msra.mxu0 0
      %2817 = vmatpush.bf16.msra.mxu0 0
      %2818 = vmatpush.bf16.msra.mxu0 0
      %2819 = vmatpush.bf16.msra.mxu0 0
      %2820 = vmatpush.bf16.msra.mxu0 %v2732
      %2821 = vmatmul.bf16.gmra.mxu0 %v2689
      %v2822 = vpop.f32.mrf.mxu0
      %v2823 = vadd.f32 0.0, %v2822
      %v2824 = vpop.f32.mrf.mxu0
      %v2825 = vadd.f32 0.0, %v2824
      %2826 = vmatmul.bf16.gmra.mxu0 %v2692
      %v2827 = vpop.f32.mrf.mxu0
      %v2828 = vadd.f32 0.0, %v2827
      %v2829 = vpop.f32.mrf.mxu0
      %v2830 = vadd.f32 0.0, %v2829
      %2831 = vmatmul.bf16.gmra.mxu0 %v2695
      %v2832 = vpop.f32.mrf.mxu0
      %v2833 = vadd.f32 0.0, %v2832
      %v2834 = vpop.f32.mrf.mxu0
      %v2835 = vadd.f32 0.0, %v2834
      %2836 = vmatmul.bf16.gmra.mxu0 %v2698
      %v2837 = vpop.f32.mrf.mxu0
      %v2838 = vadd.f32 0.0, %v2837
      %v2839 = vpop.f32.mrf.mxu0
      %v2840 = vadd.f32 0.0, %v2839
      %2841 = vmatmul.bf16.gmra.mxu0 %v2701
      %v2842 = vpop.f32.mrf.mxu0
      %v2843 = vadd.f32 0.0, %v2842
      %v2844 = vpop.f32.mrf.mxu0
      %v2845 = vadd.f32 0.0, %v2844
      %2846 = vmatmul.bf16.gmra.mxu0 %v2704
      %v2847 = vpop.f32.mrf.mxu0
      %v2848 = vadd.f32 0.0, %v2847
      %v2849 = vpop.f32.mrf.mxu0
      %v2850 = vadd.f32 0.0, %v2849
      %2851 = vmatmul.bf16.gmra.mxu0 %v2707
      %v2852 = vpop.f32.mrf.mxu0
      %v2853 = vadd.f32 0.0, %v2852
      %v2854 = vpop.f32.mrf.mxu0
      %v2855 = vadd.f32 0.0, %v2854
      %2856 = vmatmul.bf16.gmra.mxu0 %v2710
      %v2857 = vpop.f32.mrf.mxu0
      %v2858 = vadd.f32 0.0, %v2857
      %v2859 = vpop.f32.mrf.mxu0
      %v2860 = vadd.f32 0.0, %v2859
      %2861 = vmatmul.bf16.gmra.mxu0 %v2713
      %v2862 = vpop.f32.mrf.mxu0
      %v2863 = vadd.f32 0.0, %v2862
      %v2864 = vpop.f32.mrf.mxu0
      %v2865 = vadd.f32 0.0, %v2864
      %2866 = vmatmul.bf16.gmra.mxu0 %v2716
      %v2867 = vpop.f32.mrf.mxu0
      %v2868 = vadd.f32 0.0, %v2867
      %v2869 = vpop.f32.mrf.mxu0
      %v2870 = vadd.f32 0.0, %v2869
      %2871 = vmatmul.bf16.gmra.mxu0 %v2719
      %v2872 = vpop.f32.mrf.mxu0
      %v2873 = vadd.f32 0.0, %v2872
      %v2874 = vpop.f32.mrf.mxu0
      %v2875 = vadd.f32 0.0, %v2874
      %2876 = vmatmul.bf16.gmra.mxu0 %v2722
      %v2877 = vpop.f32.mrf.mxu0
      %v2878 = vadd.f32 0.0, %v2877
      %v2879 = vpop.f32.mrf.mxu0
      %v2880 = vadd.f32 0.0, %v2879
      %2881 = vmatmul.bf16.gmra.mxu0 %v2725
      %v2882 = vpop.f32.mrf.mxu0
      %v2883 = vadd.f32 0.0, %v2882
      %v2884 = vpop.f32.mrf.mxu0
      %v2885 = vadd.f32 0.0, %v2884
      %2886 = vmatmul.bf16.gmra.mxu0 %v2728
      %v2887 = vpop.f32.mrf.mxu0
      %v2888 = vadd.f32 0.0, %v2887
      %v2889 = vpop.f32.mrf.mxu0
      %v2890 = vadd.f32 0.0, %v2889
      %2891 = vdwg.mxu0
      %v2892 = vadd.f32 %v2584, %v2744
      %v2893 = vadd.f32 %v2585, %v2823
      %v2894 = vadd.f32 %v2586, %v2746
      %v2895 = vadd.f32 %v2587, %v2825
      %v2896 = vadd.f32 %v2588, %v2749
      %v2897 = vadd.f32 %v2589, %v2828
      %v2898 = vadd.f32 %v2590, %v2751
      %v2899 = vadd.f32 %v2591, %v2830
      %v2900 = vadd.f32 %v2592, %v2754
      %v2901 = vadd.f32 %v2593, %v2833
      %v2902 = vadd.f32 %v2594, %v2756
      %v2903 = vadd.f32 %v2595, %v2835
      %v2904 = vadd.f32 %v2596, %v2759
      %v2905 = vadd.f32 %v2597, %v2838
      %v2906 = vadd.f32 %v2598, %v2761
      %v2907 = vadd.f32 %v2599, %v2840
      %v2908 = vadd.f32 %v2600, %v2764
      %v2909 = vadd.f32 %v2601, %v2843
      %v2910 = vadd.f32 %v2602, %v2766
      %v2911 = vadd.f32 %v2603, %v2845
      %v2912 = vadd.f32 %v2604, %v2769
      %v2913 = vadd.f32 %v2605, %v2848
      %v2914 = vadd.f32 %v2606, %v2771
      %v2915 = vadd.f32 %v2607, %v2850
      %v2916 = vadd.f32 %v2608, %v2774
      %v2917 = vadd.f32 %v2609, %v2853
      %v2918 = vadd.f32 %v2610, %v2776
      %v2919 = vadd.f32 %v2611, %v2855
      %v2920 = vadd.f32 %v2612, %v2779
      %v2921 = vadd.f32 %v2613, %v2858
      %v2922 = vadd.f32 %v2614, %v2781
      %v2923 = vadd.f32 %v2615, %v2860
      %v2924 = vadd.f32 %v2616, %v2784
      %v2925 = vadd.f32 %v2617, %v2863
      %v2926 = vadd.f32 %v2618, %v2786
      %v2927 = vadd.f32 %v2619, %v2865
      %v2928 = vadd.f32 %v2620, %v2789
      %v2929 = vadd.f32 %v2621, %v2868
      %v2930 = vadd.f32 %v2622, %v2791
      %v2931 = vadd.f32 %v2623, %v2870
      %v2932 = vadd.f32 %v2624, %v2794
      %v2933 = vadd.f32 %v2625, %v2873
      %v2934 = vadd.f32 %v2626, %v2796
      %v2935 = vadd.f32 %v2627, %v2875
      %v2936 = vadd.f32 %v2628, %v2799
      %v2937 = vadd.f32 %v2629, %v2878
      %v2938 = vadd.f32 %v2630, %v2801
      %v2939 = vadd.f32 %v2631, %v2880
      %v2940 = vadd.f32 %v2632, %v2804
      %v2941 = vadd.f32 %v2633, %v2883
      %v2942 = vadd.f32 %v2634, %v2806
      %v2943 = vadd.f32 %v2635, %v2885
      %v2944 = vadd.f32 %v2636, %v2809
      %v2945 = vadd.f32 %v2637, %v2888
      %v2946 = vadd.f32 %v2638, %v2811
      %v2947 = vadd.f32 %v2639, %v2890
      %v2948 = vld [vmem:[%s264] sm:$0x3]
      %v2950 = vperm.slane %v2948, 0
      %v2951 = vperm.slane %v2948, 1
      %v2954 = vadd.f32 %v2892, %v2950
      %v2955 = vadd.f32 %v2893, %v2951
      %v2956 = vadd.f32 %v2894, %v2950
      %v2957 = vadd.f32 %v2895, %v2951
      %v2958 = vadd.f32 %v2896, %v2950
      %v2959 = vadd.f32 %v2897, %v2951
      %v2960 = vadd.f32 %v2898, %v2950
      %v2961 = vadd.f32 %v2899, %v2951
      %v2962 = vadd.f32 %v2900, %v2950
      %v2963 = vadd.f32 %v2901, %v2951
      %v2964 = vadd.f32 %v2902, %v2950
      %v2965 = vadd.f32 %v2903, %v2951
      %v2966 = vadd.f32 %v2904, %v2950
      %v2967 = vadd.f32 %v2905, %v2951
      %v2968 = vadd.f32 %v2906, %v2950
      %v2969 = vadd.f32 %v2907, %v2951
      %v2970 = vadd.f32 %v2908, %v2950
      %v2971 = vadd.f32 %v2909, %v2951
      %v2972 = vadd.f32 %v2910, %v2950
      %v2973 = vadd.f32 %v2911, %v2951
      %v2974 = vadd.f32 %v2912, %v2950
      %v2975 = vadd.f32 %v2913, %v2951
      %v2976 = vadd.f32 %v2914, %v2950
      %v2977 = vadd.f32 %v2915, %v2951
      %v2978 = vadd.f32 %v2916, %v2950
      %v2979 = vadd.f32 %v2917, %v2951
      %v2980 = vadd.f32 %v2918, %v2950
      %v2981 = vadd.f32 %v2919, %v2951
      %v2982 = vadd.f32 %v2920, %v2950
      %v2983 = vadd.f32 %v2921, %v2951
      %v2984 = vadd.f32 %v2922, %v2950
      %v2985 = vadd.f32 %v2923, %v2951
      %v2986 = vadd.f32 %v2924, %v2950
      %v2987 = vadd.f32 %v2925, %v2951
      %v2988 = vadd.f32 %v2926, %v2950
      %v2989 = vadd.f32 %v2927, %v2951
      %v2990 = vadd.f32 %v2928, %v2950
      %v2991 = vadd.f32 %v2929, %v2951
      %v2992 = vadd.f32 %v2930, %v2950
      %v2993 = vadd.f32 %v2931, %v2951
      %v2994 = vadd.f32 %v2932, %v2950
      %v2995 = vadd.f32 %v2933, %v2951
      %v2996 = vadd.f32 %v2934, %v2950
      %v2997 = vadd.f32 %v2935, %v2951
      %v2998 = vadd.f32 %v2936, %v2950
      %v2999 = vadd.f32 %v2937, %v2951
      %v3000 = vadd.f32 %v2938, %v2950
      %v3001 = vadd.f32 %v2939, %v2951
      %v3002 = vadd.f32 %v2940, %v2950
      %v3003 = vadd.f32 %v2941, %v2951
      %v3004 = vadd.f32 %v2942, %v2950
      %v3005 = vadd.f32 %v2943, %v2951
      %v3006 = vadd.f32 %v2944, %v2950
      %v3007 = vadd.f32 %v2945, %v2951
      %v3008 = vadd.f32 %v2946, %v2950
      %v3009 = vadd.f32 %v2947, %v2951
      %v3010 = vpack.c.bf16 %v2955, %v2954
      %v3011 = vpack.c.bf16 %v2957, %v2956
      %v3012 = vpack.c.bf16 %v2959, %v2958
      %v3013 = vpack.c.bf16 %v2961, %v2960
      %v3014 = vpack.c.bf16 %v2963, %v2962
      %v3015 = vpack.c.bf16 %v2965, %v2964
      %v3016 = vpack.c.bf16 %v2967, %v2966
      %v3017 = vpack.c.bf16 %v2969, %v2968
      %v3018 = vpack.c.bf16 %v2971, %v2970
      %v3019 = vpack.c.bf16 %v2973, %v2972
      %v3020 = vpack.c.bf16 %v2975, %v2974
      %v3021 = vpack.c.bf16 %v2977, %v2976
      %v3022 = vpack.c.bf16 %v2979, %v2978
      %v3023 = vpack.c.bf16 %v2981, %v2980
      %v3024 = vpack.c.bf16 %v2983, %v2982
      %v3025 = vpack.c.bf16 %v2985, %v2984
      %v3026 = vpack.c.bf16 %v2987, %v2986
      %v3027 = vpack.c.bf16 %v2989, %v2988
      %v3028 = vpack.c.bf16 %v2991, %v2990
      %v3029 = vpack.c.bf16 %v2993, %v2992
      %v3030 = vpack.c.bf16 %v2995, %v2994
      %v3031 = vpack.c.bf16 %v2997, %v2996
      %v3032 = vpack.c.bf16 %v2999, %v2998
      %v3033 = vpack.c.bf16 %v3001, %v3000
      %v3034 = vpack.c.bf16 %v3003, %v3002
      %v3035 = vpack.c.bf16 %v3005, %v3004
      %v3036 = vpack.c.bf16 %v3007, %v3006
      %v3037 = vpack.c.bf16 %v3009, %v3008
      %3038 = vst [vmem:[%s274] sm:$0xff] %v3010
      %3039 = vst [vmem:[%s274 + $0x8] sm:$0xff] %v3011
      %3040 = vst [vmem:[%s274 + $0x10] sm:$0xff] %v3012
      %3041 = vst [vmem:[%s274 + $0x18] sm:$0xff] %v3013
      %3042 = vst [vmem:[%s274 + $0x20] sm:$0xff] %v3014
      %3043 = vst [vmem:[%s274 + $0x28] sm:$0xff] %v3015
      %3044 = vst [vmem:[%s274 + $0x30] sm:$0xff] %v3016
      %3045 = vst [vmem:[%s274 + $0x38] sm:$0xff] %v3017
      %3046 = vst [vmem:[%s274 + $0x40] sm:$0xff] %v3018
      %3047 = vst [vmem:[%s274 + $0x48] sm:$0xff] %v3019
      %3048 = vst [vmem:[%s274 + $0x50] sm:$0xff] %v3020
      %3049 = vst [vmem:[%s274 + $0x58] sm:$0xff] %v3021
      %3050 = vst [vmem:[%s274 + $0x60] sm:$0xff] %v3022
      %3051 = vst [vmem:[%s274 + $0x68] sm:$0xff] %v3023
      %3052 = vst [vmem:[%s274 + $0x70] sm:$0xff] %v3024
      %3053 = vst [vmem:[%s274 + $0x78] sm:$0xff] %v3025
      %3054 = vst [vmem:[%s274 + $0x80] sm:$0xff] %v3026
      %3055 = vst [vmem:[%s274 + $0x88] sm:$0xff] %v3027
      %3056 = vst [vmem:[%s274 + $0x90] sm:$0xff] %v3028
      %3057 = vst [vmem:[%s274 + $0x98] sm:$0xff] %v3029
      %3058 = vst [vmem:[%s274 + $0xa0] sm:$0xff] %v3030
      %3059 = vst [vmem:[%s274 + $0xa8] sm:$0xff] %v3031
      %3060 = vst [vmem:[%s274 + $0xb0] sm:$0xff] %v3032
      %3061 = vst [vmem:[%s274 + $0xb8] sm:$0xff] %v3033
      %3062 = vst [vmem:[%s274 + $0xc0] sm:$0xff] %v3034
      %3063 = vst [vmem:[%s274 + $0xc8] sm:$0xff] %v3035
      %3064 = vst [vmem:[%s274 + $0xd0] sm:$0xff] %v3036
      %3065 = vst [vmem:[%s274 + $0xd8] sm:$0xff] %v3037
      %v3066 = vlaneseq
      %v3067 = vshrl.u32 %v3066, 7
      %v3068 = vadd.s32 %v3067, 8
      %v3069 = vadd.s32 %v3067, 16
      %v3070 = vadd.s32 %v3067, 24
      %v3071 = vadd.s32 %v3067, 32
      %v3072 = vadd.s32 %v3067, 40
      %v3073 = vadd.s32 %v3067, 48
      %v3074 = vadd.s32 %v3067, 56
      %v3075 = vadd.s32 %v3067, 64
      %v3076 = vadd.s32 %v3067, 72
      %v3077 = vadd.s32 %v3067, 80
      %v3078 = vadd.s32 %v3067, 88
      %v3079 = vadd.s32 %v3067, 96
      %v3080 = vadd.s32 %v3067, 104
      %v3081 = vadd.s32 %v3067, 112
      %v3082 = vadd.s32 %v3067, 120
      %v3083 = vadd.s32 %v3067, 128
      %v3084 = vadd.s32 %v3067, 136
      %v3085 = vadd.s32 %v3067, 144
      %v3086 = vadd.s32 %v3067, 152
      %v3087 = vadd.s32 %v3067, 160
      %v3088 = vadd.s32 %v3067, 168
      %v3089 = vadd.s32 %v3067, 176
      %v3090 = vadd.s32 %v3067, 184
      %v3091 = vadd.s32 %v3067, 192
      %v3092 = vadd.s32 %v3067, 200
      %v3093 = vadd.s32 %v3067, 208
      %v3094 = vadd.s32 %v3067, 216
      %vm3095 = vcmp.lt.s32.totalorder %v3067, 0
      %v3096 = vsub.s32 0, %v3067
      %v3097 = vsel %vm3095, %v3096, %v3067
      %v3098 = vshrl.u32 %v3097, 4
      %v3099 = vand.u32 %v3097, 15
      %v3100 = vsub.s32 0, %v3099
      %v3101 = vsel %vm3095, %v3100, %v3099
      %vm3102 = vcmp.lt.s32.totalorder %v3068, 0
      %v3103 = vsub.s32 0, %v3068
      %v3104 = vsel %vm3102, %v3103, %v3068
      %v3105 = vshrl.u32 %v3104, 4
      %v3106 = vand.u32 %v3104, 15
      %v3107 = vsub.s32 0, %v3106
      %v3108 = vsel %vm3102, %v3107, %v3106
      %vm3109 = vcmp.lt.s32.totalorder %v3069, 0
      %v3110 = vsub.s32 0, %v3069
      %v3111 = vsel %vm3109, %v3110, %v3069
      %v3112 = vshrl.u32 %v3111, 4
      %v3113 = vand.u32 %v3111, 15
      %v3114 = vsub.s32 0, %v3113
      %v3115 = vsel %vm3109, %v3114, %v3113
      %vm3116 = vcmp.lt.s32.totalorder %v3070, 0
      %v3117 = vsub.s32 0, %v3070
      %v3118 = vsel %vm3116, %v3117, %v3070
      %v3119 = vshrl.u32 %v3118, 4
      %v3120 = vand.u32 %v3118, 15
      %v3121 = vsub.s32 0, %v3120
      %v3122 = vsel %vm3116, %v3121, %v3120
      %vm3123 = vcmp.lt.s32.totalorder %v3071, 0
      %v3124 = vsub.s32 0, %v3071
      %v3125 = vsel %vm3123, %v3124, %v3071
      %v3126 = vshrl.u32 %v3125, 4
      %v3127 = vand.u32 %v3125, 15
      %v3128 = vsub.s32 0, %v3127
      %v3129 = vsel %vm3123, %v3128, %v3127
      %vm3130 = vcmp.lt.s32.totalorder %v3072, 0
      %v3131 = vsub.s32 0, %v3072
      %v3132 = vsel %vm3130, %v3131, %v3072
      %v3133 = vshrl.u32 %v3132, 4
      %v3134 = vand.u32 %v3132, 15
      %v3135 = vsub.s32 0, %v3134
      %v3136 = vsel %vm3130, %v3135, %v3134
      %vm3137 = vcmp.lt.s32.totalorder %v3073, 0
      %v3138 = vsub.s32 0, %v3073
      %v3139 = vsel %vm3137, %v3138, %v3073
      %v3140 = vshrl.u32 %v3139, 4
      %v3141 = vand.u32 %v3139, 15
      %v3142 = vsub.s32 0, %v3141
      %v3143 = vsel %vm3137, %v3142, %v3141
      %vm3144 = vcmp.lt.s32.totalorder %v3074, 0
      %v3145 = vsub.s32 0, %v3074
      %v3146 = vsel %vm3144, %v3145, %v3074
      %v3147 = vshrl.u32 %v3146, 4
      %v3148 = vand.u32 %v3146, 15
      %v3149 = vsub.s32 0, %v3148
      %v3150 = vsel %vm3144, %v3149, %v3148
      %vm3151 = vcmp.lt.s32.totalorder %v3075, 0
      %v3152 = vsub.s32 0, %v3075
      %v3153 = vsel %vm3151, %v3152, %v3075
      %v3154 = vshrl.u32 %v3153, 4
      %v3155 = vand.u32 %v3153, 15
      %v3156 = vsub.s32 0, %v3155
      %v3157 = vsel %vm3151, %v3156, %v3155
      %vm3158 = vcmp.lt.s32.totalorder %v3076, 0
      %v3159 = vsub.s32 0, %v3076
      %v3160 = vsel %vm3158, %v3159, %v3076
      %v3161 = vshrl.u32 %v3160, 4
      %v3162 = vand.u32 %v3160, 15
      %v3163 = vsub.s32 0, %v3162
      %v3164 = vsel %vm3158, %v3163, %v3162
      %vm3165 = vcmp.lt.s32.totalorder %v3077, 0
      %v3166 = vsub.s32 0, %v3077
      %v3167 = vsel %vm3165, %v3166, %v3077
      %v3168 = vshrl.u32 %v3167, 4
      %v3169 = vand.u32 %v3167, 15
      %v3170 = vsub.s32 0, %v3169
      %v3171 = vsel %vm3165, %v3170, %v3169
      %vm3172 = vcmp.lt.s32.totalorder %v3078, 0
      %v3173 = vsub.s32 0, %v3078
      %v3174 = vsel %vm3172, %v3173, %v3078
      %v3175 = vshrl.u32 %v3174, 4
      %v3176 = vand.u32 %v3174, 15
      %v3177 = vsub.s32 0, %v3176
      %v3178 = vsel %vm3172, %v3177, %v3176
      %vm3179 = vcmp.lt.s32.totalorder %v3079, 0
      %v3180 = vsub.s32 0, %v3079
      %v3181 = vsel %vm3179, %v3180, %v3079
      %v3182 = vshrl.u32 %v3181, 4
      %v3183 = vand.u32 %v3181, 15
      %v3184 = vsub.s32 0, %v3183
      %v3185 = vsel %vm3179, %v3184, %v3183
      %vm3186 = vcmp.lt.s32.totalorder %v3080, 0
      %v3187 = vsub.s32 0, %v3080
      %v3188 = vsel %vm3186, %v3187, %v3080
      %v3189 = vshrl.u32 %v3188, 4
      %v3190 = vand.u32 %v3188, 15
      %v3191 = vsub.s32 0, %v3190
      %v3192 = vsel %vm3186, %v3191, %v3190
      %vm3193 = vcmp.lt.s32.totalorder %v3081, 0
      %v3194 = vsub.s32 0, %v3081
      %v3195 = vsel %vm3193, %v3194, %v3081
      %v3196 = vshrl.u32 %v3195, 4
      %v3197 = vand.u32 %v3195, 15
      %v3198 = vsub.s32 0, %v3197
      %v3199 = vsel %vm3193, %v3198, %v3197
      %vm3200 = vcmp.lt.s32.totalorder %v3082, 0
      %v3201 = vsub.s32 0, %v3082
      %v3202 = vsel %vm3200, %v3201, %v3082
      %v3203 = vshrl.u32 %v3202, 4
      %v3204 = vand.u32 %v3202, 15
      %v3205 = vsub.s32 0, %v3204
      %v3206 = vsel %vm3200, %v3205, %v3204
      %vm3207 = vcmp.lt.s32.totalorder %v3083, 0
      %v3208 = vsub.s32 0, %v3083
      %v3209 = vsel %vm3207, %v3208, %v3083
      %v3210 = vshrl.u32 %v3209, 4
      %v3211 = vand.u32 %v3209, 15
      %v3212 = vsub.s32 0, %v3211
      %v3213 = vsel %vm3207, %v3212, %v3211
      %vm3214 = vcmp.lt.s32.totalorder %v3084, 0
      %v3215 = vsub.s32 0, %v3084
      %v3216 = vsel %vm3214, %v3215, %v3084
      %v3217 = vshrl.u32 %v3216, 4
      %v3218 = vand.u32 %v3216, 15
      %v3219 = vsub.s32 0, %v3218
      %v3220 = vsel %vm3214, %v3219, %v3218
      %vm3221 = vcmp.lt.s32.totalorder %v3085, 0
      %v3222 = vsub.s32 0, %v3085
      %v3223 = vsel %vm3221, %v3222, %v3085
      %v3224 = vshrl.u32 %v3223, 4
      %v3225 = vand.u32 %v3223, 15
      %v3226 = vsub.s32 0, %v3225
      %v3227 = vsel %vm3221, %v3226, %v3225
      %vm3228 = vcmp.lt.s32.totalorder %v3086, 0
      %v3229 = vsub.s32 0, %v3086
      %v3230 = vsel %vm3228, %v3229, %v3086
      %v3231 = vshrl.u32 %v3230, 4
      %v3232 = vand.u32 %v3230, 15
      %v3233 = vsub.s32 0, %v3232
      %v3234 = vsel %vm3228, %v3233, %v3232
      %vm3235 = vcmp.lt.s32.totalorder %v3087, 0
      %v3236 = vsub.s32 0, %v3087
      %v3237 = vsel %vm3235, %v3236, %v3087
      %v3238 = vshrl.u32 %v3237, 4
      %v3239 = vand.u32 %v3237, 15
      %v3240 = vsub.s32 0, %v3239
      %v3241 = vsel %vm3235, %v3240, %v3239
      %vm3242 = vcmp.lt.s32.totalorder %v3088, 0
      %v3243 = vsub.s32 0, %v3088
      %v3244 = vsel %vm3242, %v3243, %v3088
      %v3245 = vshrl.u32 %v3244, 4
      %v3246 = vand.u32 %v3244, 15
      %v3247 = vsub.s32 0, %v3246
      %v3248 = vsel %vm3242, %v3247, %v3246
      %vm3249 = vcmp.lt.s32.totalorder %v3089, 0
      %v3250 = vsub.s32 0, %v3089
      %v3251 = vsel %vm3249, %v3250, %v3089
      %v3252 = vshrl.u32 %v3251, 4
      %v3253 = vand.u32 %v3251, 15
      %v3254 = vsub.s32 0, %v3253
      %v3255 = vsel %vm3249, %v3254, %v3253
      %vm3256 = vcmp.lt.s32.totalorder %v3090, 0
      %v3257 = vsub.s32 0, %v3090
      %v3258 = vsel %vm3256, %v3257, %v3090
      %v3259 = vshrl.u32 %v3258, 4
      %v3260 = vand.u32 %v3258, 15
      %v3261 = vsub.s32 0, %v3260
      %v3262 = vsel %vm3256, %v3261, %v3260
      %vm3263 = vcmp.lt.s32.totalorder %v3091, 0
      %v3264 = vsub.s32 0, %v3091
      %v3265 = vsel %vm3263, %v3264, %v3091
      %v3266 = vshrl.u32 %v3265, 4
      %v3267 = vand.u32 %v3265, 15
      %v3268 = vsub.s32 0, %v3267
      %v3269 = vsel %vm3263, %v3268, %v3267
      %vm3270 = vcmp.lt.s32.totalorder %v3092, 0
      %v3271 = vsub.s32 0, %v3092
      %v3272 = vsel %vm3270, %v3271, %v3092
      %v3273 = vshrl.u32 %v3272, 4
      %v3274 = vand.u32 %v3272, 15
      %v3275 = vsub.s32 0, %v3274
      %v3276 = vsel %vm3270, %v3275, %v3274
      %vm3277 = vcmp.lt.s32.totalorder %v3093, 0
      %v3278 = vsub.s32 0, %v3093
      %v3279 = vsel %vm3277, %v3278, %v3093
      %v3280 = vshrl.u32 %v3279, 4
      %v3281 = vand.u32 %v3279, 15
      %v3282 = vsub.s32 0, %v3281
      %v3283 = vsel %vm3277, %v3282, %v3281
      %vm3284 = vcmp.lt.s32.totalorder %v3094, 0
      %v3285 = vsub.s32 0, %v3094
      %v3286 = vsel %vm3284, %v3285, %v3094
      %v3287 = vshrl.u32 %v3286, 4
      %v3288 = vand.u32 %v3286, 15
      %v3289 = vsub.s32 0, %v3288
      %v3290 = vsel %vm3284, %v3289, %v3288
      %vm3291 = vcmp.ne.s32.totalorder %v3101, 0
      %vm3292 = vcmp.ne.s32.totalorder %v3108, 0
      %vm3293 = vcmp.ne.s32.totalorder %v3115, 0
      %vm3294 = vcmp.ne.s32.totalorder %v3122, 0
      %vm3295 = vcmp.ne.s32.totalorder %v3129, 0
      %vm3296 = vcmp.ne.s32.totalorder %v3136, 0
      %vm3297 = vcmp.ne.s32.totalorder %v3143, 0
      %vm3298 = vcmp.ne.s32.totalorder %v3150, 0
      %vm3299 = vcmp.ne.s32.totalorder %v3157, 0
      %vm3300 = vcmp.ne.s32.totalorder %v3164, 0
      %vm3301 = vcmp.ne.s32.totalorder %v3171, 0
      %vm3302 = vcmp.ne.s32.totalorder %v3178, 0
      %vm3303 = vcmp.ne.s32.totalorder %v3185, 0
      %vm3304 = vcmp.ne.s32.totalorder %v3192, 0
      %vm3305 = vcmp.ne.s32.totalorder %v3199, 0
      %vm3306 = vcmp.ne.s32.totalorder %v3206, 0
      %vm3307 = vcmp.ne.s32.totalorder %v3213, 0
      %vm3308 = vcmp.ne.s32.totalorder %v3220, 0
      %vm3309 = vcmp.ne.s32.totalorder %v3227, 0
      %vm3310 = vcmp.ne.s32.totalorder %v3234, 0
      %vm3311 = vcmp.ne.s32.totalorder %v3241, 0
      %vm3312 = vcmp.ne.s32.totalorder %v3248, 0
      %vm3313 = vcmp.ne.s32.totalorder %v3255, 0
      %vm3314 = vcmp.ne.s32.totalorder %v3262, 0
      %vm3315 = vcmp.ne.s32.totalorder %v3269, 0
      %vm3316 = vcmp.ne.s32.totalorder %v3276, 0
      %vm3317 = vcmp.ne.s32.totalorder %v3283, 0
      %vm3318 = vcmp.ne.s32.totalorder %v3290, 0
      %vm3319 = vcmp.lt.s32.totalorder %v3101, 0
      %vm3320 = vcmp.lt.s32.totalorder %v3108, 0
      %vm3321 = vcmp.lt.s32.totalorder %v3115, 0
      %vm3322 = vcmp.lt.s32.totalorder %v3122, 0
      %vm3323 = vcmp.lt.s32.totalorder %v3129, 0
      %vm3324 = vcmp.lt.s32.totalorder %v3136, 0
      %vm3325 = vcmp.lt.s32.totalorder %v3143, 0
      %vm3326 = vcmp.lt.s32.totalorder %v3150, 0
      %vm3327 = vcmp.lt.s32.totalorder %v3157, 0
      %vm3328 = vcmp.lt.s32.totalorder %v3164, 0
      %vm3329 = vcmp.lt.s32.totalorder %v3171, 0
      %vm3330 = vcmp.lt.s32.totalorder %v3178, 0
      %vm3331 = vcmp.lt.s32.totalorder %v3185, 0
      %vm3332 = vcmp.lt.s32.totalorder %v3192, 0
      %vm3333 = vcmp.lt.s32.totalorder %v3199, 0
      %vm3334 = vcmp.lt.s32.totalorder %v3206, 0
      %vm3335 = vcmp.lt.s32.totalorder %v3213, 0
      %vm3336 = vcmp.lt.s32.totalorder %v3220, 0
      %vm3337 = vcmp.lt.s32.totalorder %v3227, 0
      %vm3338 = vcmp.lt.s32.totalorder %v3234, 0
      %vm3339 = vcmp.lt.s32.totalorder %v3241, 0
      %vm3340 = vcmp.lt.s32.totalorder %v3248, 0
      %vm3341 = vcmp.lt.s32.totalorder %v3255, 0
      %vm3342 = vcmp.lt.s32.totalorder %v3262, 0
      %vm3343 = vcmp.lt.s32.totalorder %v3269, 0
      %vm3344 = vcmp.lt.s32.totalorder %v3276, 0
      %vm3345 = vcmp.lt.s32.totalorder %v3283, 0
      %vm3346 = vcmp.lt.s32.totalorder %v3290, 0
      %vm3347 = vmand %vm3319, %vm3291
      %vm3348 = vmand %vm3320, %vm3292
      %vm3349 = vmand %vm3321, %vm3293
      %vm3350 = vmand %vm3322, %vm3294
      %vm3351 = vmand %vm3323, %vm3295
      %vm3352 = vmand %vm3324, %vm3296
      %vm3353 = vmand %vm3325, %vm3297
      %vm3354 = vmand %vm3326, %vm3298
      %vm3355 = vmand %vm3327, %vm3299
      %vm3356 = vmand %vm3328, %vm3300
      %vm3357 = vmand %vm3329, %vm3301
      %vm3358 = vmand %vm3330, %vm3302
      %vm3359 = vmand %vm3331, %vm3303
      %vm3360 = vmand %vm3332, %vm3304
      %vm3361 = vmand %vm3333, %vm3305
      %vm3362 = vmand %vm3334, %vm3306
      %vm3363 = vmand %vm3335, %vm3307
      %vm3364 = vmand %vm3336, %vm3308
      %vm3365 = vmand %vm3337, %vm3309
      %vm3366 = vmand %vm3338, %vm3310
      %vm3367 = vmand %vm3339, %vm3311
      %vm3368 = vmand %vm3340, %vm3312
      %vm3369 = vmand %vm3341, %vm3313
      %vm3370 = vmand %vm3342, %vm3314
      %vm3371 = vmand %vm3343, %vm3315
      %vm3372 = vmand %vm3344, %vm3316
      %vm3373 = vmand %vm3345, %vm3317
      %vm3374 = vmand %vm3346, %vm3318
      %v3375 = vadd.s32 %v3101, 16
      %v3376 = vadd.s32 %v3108, 16
      %v3377 = vadd.s32 %v3115, 16
      %v3378 = vadd.s32 %v3122, 16
      %v3379 = vadd.s32 %v3129, 16
      %v3380 = vadd.s32 %v3136, 16
      %v3381 = vadd.s32 %v3143, 16
      %v3382 = vadd.s32 %v3150, 16
      %v3383 = vadd.s32 %v3157, 16
      %v3384 = vadd.s32 %v3164, 16
      %v3385 = vadd.s32 %v3171, 16
      %v3386 = vadd.s32 %v3178, 16
      %v3387 = vadd.s32 %v3185, 16
      %v3388 = vadd.s32 %v3192, 16
      %v3389 = vadd.s32 %v3199, 16
      %v3390 = vadd.s32 %v3206, 16
      %v3391 = vadd.s32 %v3213, 16
      %v3392 = vadd.s32 %v3220, 16
      %v3393 = vadd.s32 %v3227, 16
      %v3394 = vadd.s32 %v3234, 16
      %v3395 = vadd.s32 %v3241, 16
      %v3396 = vadd.s32 %v3248, 16
      %v3397 = vadd.s32 %v3255, 16
      %v3398 = vadd.s32 %v3262, 16
      %v3399 = vadd.s32 %v3269, 16
      %v3400 = vadd.s32 %v3276, 16
      %v3401 = vadd.s32 %v3283, 16
      %v3402 = vadd.s32 %v3290, 16
      %v3403 = vsel %vm3347, %v3375, %v3101
      %v3404 = vsel %vm3348, %v3376, %v3108
      %v3405 = vsel %vm3349, %v3377, %v3115
      %v3406 = vsel %vm3350, %v3378, %v3122
      %v3407 = vsel %vm3351, %v3379, %v3129
      %v3408 = vsel %vm3352, %v3380, %v3136
      %v3409 = vsel %vm3353, %v3381, %v3143
      %v3410 = vsel %vm3354, %v3382, %v3150
      %v3411 = vsel %vm3355, %v3383, %v3157
      %v3412 = vsel %vm3356, %v3384, %v3164
      %v3413 = vsel %vm3357, %v3385, %v3171
      %v3414 = vsel %vm3358, %v3386, %v3178
      %v3415 = vsel %vm3359, %v3387, %v3185
      %v3416 = vsel %vm3360, %v3388, %v3192
      %v3417 = vsel %vm3361, %v3389, %v3199
      %v3418 = vsel %vm3362, %v3390, %v3206
      %v3419 = vsel %vm3363, %v3391, %v3213
      %v3420 = vsel %vm3364, %v3392, %v3220
      %v3421 = vsel %vm3365, %v3393, %v3227
      %v3422 = vsel %vm3366, %v3394, %v3234
      %v3423 = vsel %vm3367, %v3395, %v3241
      %v3424 = vsel %vm3368, %v3396, %v3248
      %v3425 = vsel %vm3369, %v3397, %v3255
      %v3426 = vsel %vm3370, %v3398, %v3262
      %v3427 = vsel %vm3371, %v3399, %v3269
      %v3428 = vsel %vm3372, %v3400, %v3276
      %v3429 = vsel %vm3373, %v3401, %v3283
      %v3430 = vsel %vm3374, %v3402, %v3290
      %vm3431 = vcmp.lt.s32.totalorder %v3403, 14
      %vm3432 = vcmp.lt.s32.totalorder %v3404, 14
      %vm3433 = vcmp.lt.s32.totalorder %v3405, 14
      %vm3434 = vcmp.lt.s32.totalorder %v3406, 14
      %vm3435 = vcmp.lt.s32.totalorder %v3407, 14
      %vm3436 = vcmp.lt.s32.totalorder %v3408, 14
      %vm3437 = vcmp.lt.s32.totalorder %v3409, 14
      %vm3438 = vcmp.lt.s32.totalorder %v3410, 14
      %vm3439 = vcmp.lt.s32.totalorder %v3411, 14
      %vm3440 = vcmp.lt.s32.totalorder %v3412, 14
      %vm3441 = vcmp.lt.s32.totalorder %v3413, 14
      %vm3442 = vcmp.lt.s32.totalorder %v3414, 14
      %vm3443 = vcmp.lt.s32.totalorder %v3415, 14
      %vm3444 = vcmp.lt.s32.totalorder %v3416, 14
      %vm3445 = vcmp.lt.s32.totalorder %v3417, 14
      %vm3446 = vcmp.lt.s32.totalorder %v3418, 14
      %vm3447 = vcmp.lt.s32.totalorder %v3419, 14
      %vm3448 = vcmp.lt.s32.totalorder %v3420, 14
      %vm3449 = vcmp.lt.s32.totalorder %v3421, 14
      %vm3450 = vcmp.lt.s32.totalorder %v3422, 14
      %vm3451 = vcmp.lt.s32.totalorder %v3423, 14
      %vm3452 = vcmp.lt.s32.totalorder %v3424, 14
      %vm3453 = vcmp.lt.s32.totalorder %v3425, 14
      %vm3454 = vcmp.lt.s32.totalorder %v3426, 14
      %vm3455 = vcmp.lt.s32.totalorder %v3427, 14
      %vm3456 = vcmp.lt.s32.totalorder %v3428, 14
      %vm3457 = vcmp.lt.s32.totalorder %v3429, 14
      %vm3458 = vcmp.lt.s32.totalorder %v3430, 14
      %v3459 = vsel %vm3431, 1, 0
      %v3460 = vsel %vm3432, 1, 0
      %v3461 = vsel %vm3433, 1, 0
      %v3462 = vsel %vm3434, 1, 0
      %v3463 = vsel %vm3435, 1, 0
      %v3464 = vsel %vm3436, 1, 0
      %v3465 = vsel %vm3437, 1, 0
      %v3466 = vsel %vm3438, 1, 0
      %v3467 = vsel %vm3439, 1, 0
      %v3468 = vsel %vm3440, 1, 0
      %v3469 = vsel %vm3441, 1, 0
      %v3470 = vsel %vm3442, 1, 0
      %v3471 = vsel %vm3443, 1, 0
      %v3472 = vsel %vm3444, 1, 0
      %v3473 = vsel %vm3445, 1, 0
      %v3474 = vsel %vm3446, 1, 0
      %v3475 = vsel %vm3447, 1, 0
      %v3476 = vsel %vm3448, 1, 0
      %v3477 = vsel %vm3449, 1, 0
      %v3478 = vsel %vm3450, 1, 0
      %v3479 = vsel %vm3451, 1, 0
      %v3480 = vsel %vm3452, 1, 0
      %v3481 = vsel %vm3453, 1, 0
      %v3482 = vsel %vm3454, 1, 0
      %v3483 = vsel %vm3455, 1, 0
      %v3484 = vsel %vm3456, 1, 0
      %v3485 = vsel %vm3457, 1, 0
      %v3486 = vsel %vm3458, 1, 0
      %vm3487 = vcmp.eq.s32.totalorder %v3459, 1
      %vm3488 = vcmp.eq.s32.totalorder %v3460, 1
      %vm3489 = vcmp.eq.s32.totalorder %v3461, 1
      %vm3490 = vcmp.eq.s32.totalorder %v3462, 1
      %vm3491 = vcmp.eq.s32.totalorder %v3463, 1
      %vm3492 = vcmp.eq.s32.totalorder %v3464, 1
      %vm3493 = vcmp.eq.s32.totalorder %v3465, 1
      %vm3494 = vcmp.eq.s32.totalorder %v3466, 1
      %vm3495 = vcmp.eq.s32.totalorder %v3467, 1
      %vm3496 = vcmp.eq.s32.totalorder %v3468, 1
      %vm3497 = vcmp.eq.s32.totalorder %v3469, 1
      %vm3498 = vcmp.eq.s32.totalorder %v3470, 1
      %vm3499 = vcmp.eq.s32.totalorder %v3471, 1
      %vm3500 = vcmp.eq.s32.totalorder %v3472, 1
      %vm3501 = vcmp.eq.s32.totalorder %v3473, 1
      %vm3502 = vcmp.eq.s32.totalorder %v3474, 1
      %vm3503 = vcmp.eq.s32.totalorder %v3475, 1
      %vm3504 = vcmp.eq.s32.totalorder %v3476, 1
      %vm3505 = vcmp.eq.s32.totalorder %v3477, 1
      %vm3506 = vcmp.eq.s32.totalorder %v3478, 1
      %vm3507 = vcmp.eq.s32.totalorder %v3479, 1
      %vm3508 = vcmp.eq.s32.totalorder %v3480, 1
      %vm3509 = vcmp.eq.s32.totalorder %v3481, 1
      %vm3510 = vcmp.eq.s32.totalorder %v3482, 1
      %vm3511 = vcmp.eq.s32.totalorder %v3483, 1
      %vm3512 = vcmp.eq.s32.totalorder %v3484, 1
      %vm3513 = vcmp.eq.s32.totalorder %v3485, 1
      %vm3514 = vcmp.eq.s32.totalorder %v3486, 1
      %v3515 = vsel %vm3487, %v2954, 0.0
      %v3516 = vsel %vm3487, %v2955, 0.0
      %v3517 = vsel %vm3488, %v2956, 0.0
      %v3518 = vsel %vm3488, %v2957, 0.0
      %v3519 = vsel %vm3489, %v2958, 0.0
      %v3520 = vsel %vm3489, %v2959, 0.0
      %v3521 = vsel %vm3490, %v2960, 0.0
      %v3522 = vsel %vm3490, %v2961, 0.0
      %v3523 = vsel %vm3491, %v2962, 0.0
      %v3524 = vsel %vm3491, %v2963, 0.0
      %v3525 = vsel %vm3492, %v2964, 0.0
      %v3526 = vsel %vm3492, %v2965, 0.0
      %v3527 = vsel %vm3493, %v2966, 0.0
      %v3528 = vsel %vm3493, %v2967, 0.0
      %v3529 = vsel %vm3494, %v2968, 0.0
      %v3530 = vsel %vm3494, %v2969, 0.0
      %v3531 = vsel %vm3495, %v2970, 0.0
      %v3532 = vsel %vm3495, %v2971, 0.0
      %v3533 = vsel %vm3496, %v2972, 0.0
      %v3534 = vsel %vm3496, %v2973, 0.0
      %v3535 = vsel %vm3497, %v2974, 0.0
      %v3536 = vsel %vm3497, %v2975, 0.0
      %v3537 = vsel %vm3498, %v2976, 0.0
      %v3538 = vsel %vm3498, %v2977, 0.0
      %v3539 = vsel %vm3499, %v2978, 0.0
      %v3540 = vsel %vm3499, %v2979, 0.0
      %v3541 = vsel %vm3500, %v2980, 0.0
      %v3542 = vsel %vm3500, %v2981, 0.0
      %v3543 = vsel %vm3501, %v2982, 0.0
      %v3544 = vsel %vm3501, %v2983, 0.0
      %v3545 = vsel %vm3502, %v2984, 0.0
      %v3546 = vsel %vm3502, %v2985, 0.0
      %v3547 = vsel %vm3503, %v2986, 0.0
      %v3548 = vsel %vm3503, %v2987, 0.0
      %v3549 = vsel %vm3504, %v2988, 0.0
      %v3550 = vsel %vm3504, %v2989, 0.0
      %v3551 = vsel %vm3505, %v2990, 0.0
      %v3552 = vsel %vm3505, %v2991, 0.0
      %v3553 = vsel %vm3506, %v2992, 0.0
      %v3554 = vsel %vm3506, %v2993, 0.0
      %v3555 = vsel %vm3507, %v2994, 0.0
      %v3556 = vsel %vm3507, %v2995, 0.0
      %v3557 = vsel %vm3508, %v2996, 0.0
      %v3558 = vsel %vm3508, %v2997, 0.0
      %v3559 = vsel %vm3509, %v2998, 0.0
      %v3560 = vsel %vm3509, %v2999, 0.0
      %v3561 = vsel %vm3510, %v3000, 0.0
      %v3562 = vsel %vm3510, %v3001, 0.0
      %v3563 = vsel %vm3511, %v3002, 0.0
      %v3564 = vsel %vm3511, %v3003, 0.0
      %v3565 = vsel %vm3512, %v3004, 0.0
      %v3566 = vsel %vm3512, %v3005, 0.0
      %v3567 = vsel %vm3513, %v3006, 0.0
      %v3568 = vsel %vm3513, %v3007, 0.0
      %v3569 = vsel %vm3514, %v3008, 0.0
      %v3570 = vsel %vm3514, %v3009, 0.0
      %v3571 = vadd.f32 %v3515, %v3517
      %v3572 = vadd.f32 %v3571, %v3519
      %v3573 = vadd.f32 %v3572, %v3521
      %v3574 = vadd.f32 %v3573, %v3523
      %v3575 = vadd.f32 %v3574, %v3525
      %v3576 = vadd.f32 %v3575, %v3527
      %v3577 = vadd.f32 %v3576, %v3529
      %v3578 = vadd.f32 %v3577, %v3531
      %v3579 = vadd.f32 %v3578, %v3533
      %v3580 = vadd.f32 %v3579, %v3535
      %v3581 = vadd.f32 %v3580, %v3537
      %v3582 = vadd.f32 %v3581, %v3539
      %v3583 = vadd.f32 %v3582, %v3541
      %v3584 = vadd.f32 %v3583, %v3543
      %v3585 = vadd.f32 %v3584, %v3545
      %v3586 = vadd.f32 %v3585, %v3547
      %v3587 = vadd.f32 %v3586, %v3549
      %v3588 = vadd.f32 %v3587, %v3551
      %v3589 = vadd.f32 %v3588, %v3553
      %v3590 = vadd.f32 %v3589, %v3555
      %v3591 = vadd.f32 %v3590, %v3557
      %v3592 = vadd.f32 %v3591, %v3559
      %v3593 = vadd.f32 %v3592, %v3561
      %v3594 = vadd.f32 %v3593, %v3563
      %v3595 = vadd.f32 %v3594, %v3565
      %v3596 = vadd.f32 %v3595, %v3567
      %v3597 = vadd.f32 %v3596, %v3569
      %v3598 = vrot.slane %v3597, 4
      %v3599 = vadd.f32 %v3597, %v3598
      %v3600 = vrot.slane %v3599, 2
      %v3601 = vadd.f32 %v3599, %v3600
      %v3602 = vrot.slane %v3601, 1
      %v3603 = vadd.f32 %v3601, %v3602
      %v3604 = vadd.f32 %v3516, %v3518
      %v3605 = vadd.f32 %v3604, %v3520
      %v3606 = vadd.f32 %v3605, %v3522
      %v3607 = vadd.f32 %v3606, %v3524
      %v3608 = vadd.f32 %v3607, %v3526
      %v3609 = vadd.f32 %v3608, %v3528
      %v3610 = vadd.f32 %v3609, %v3530
      %v3611 = vadd.f32 %v3610, %v3532
      %v3612 = vadd.f32 %v3611, %v3534
      %v3613 = vadd.f32 %v3612, %v3536
      %v3614 = vadd.f32 %v3613, %v3538
      %v3615 = vadd.f32 %v3614, %v3540
      %v3616 = vadd.f32 %v3615, %v3542
      %v3617 = vadd.f32 %v3616, %v3544
      %v3618 = vadd.f32 %v3617, %v3546
      %v3619 = vadd.f32 %v3618, %v3548
      %v3620 = vadd.f32 %v3619, %v3550
      %v3621 = vadd.f32 %v3620, %v3552
      %v3622 = vadd.f32 %v3621, %v3554
      %v3623 = vadd.f32 %v3622, %v3556
      %v3624 = vadd.f32 %v3623, %v3558
      %v3625 = vadd.f32 %v3624, %v3560
      %v3626 = vadd.f32 %v3625, %v3562
      %v3627 = vadd.f32 %v3626, %v3564
      %v3628 = vadd.f32 %v3627, %v3566
      %v3629 = vadd.f32 %v3628, %v3568
      %v3630 = vadd.f32 %v3629, %v3570
      %v3631 = vrot.slane %v3630, 4
      %v3632 = vadd.f32 %v3630, %v3631
      %v3633 = vrot.slane %v3632, 2
      %v3634 = vadd.f32 %v3632, %v3633
      %v3635 = vrot.slane %v3634, 1
      %v3636 = vadd.f32 %v3634, %v3635
      %v3639 = vrot.slane %v3636, 7
      %vm3640 = vcmask 1040384
      %v3641 = vsel %vm3640, %v3603, %v3639
      %v3643 = vlaneseq
      %vm3644 = vcmp.ge.s32.totalorder %v3643, 0
      %vm3645 = vcmp.lt.s32.totalorder %v3643, 256
      %vm3646 = vmand %vm3644, %vm3645
      %3647 = vst.msk [vmem:[%s284] ss:$2 sm:$0x3] %vm3646, %v3641
      %v3648 = vmul.f32 %v3515, %v3515
      %v3649 = vmul.f32 %v3516, %v3516
      %v3650 = vmul.f32 %v3517, %v3517
      %v3651 = vmul.f32 %v3518, %v3518
      %v3652 = vmul.f32 %v3519, %v3519
      %v3653 = vmul.f32 %v3520, %v3520
      %v3654 = vmul.f32 %v3521, %v3521
      %v3655 = vmul.f32 %v3522, %v3522
      %v3656 = vmul.f32 %v3523, %v3523
      %v3657 = vmul.f32 %v3524, %v3524
      %v3658 = vmul.f32 %v3525, %v3525
      %v3659 = vmul.f32 %v3526, %v3526
      %v3660 = vmul.f32 %v3527, %v3527
      %v3661 = vmul.f32 %v3528, %v3528
      %v3662 = vmul.f32 %v3529, %v3529
      %v3663 = vmul.f32 %v3530, %v3530
      %v3664 = vmul.f32 %v3531, %v3531
      %v3665 = vmul.f32 %v3532, %v3532
      %v3666 = vmul.f32 %v3533, %v3533
      %v3667 = vmul.f32 %v3534, %v3534
      %v3668 = vmul.f32 %v3535, %v3535
      %v3669 = vmul.f32 %v3536, %v3536
      %v3670 = vmul.f32 %v3537, %v3537
      %v3671 = vmul.f32 %v3538, %v3538
      %v3672 = vmul.f32 %v3539, %v3539
      %v3673 = vmul.f32 %v3540, %v3540
      %v3674 = vmul.f32 %v3541, %v3541
      %v3675 = vmul.f32 %v3542, %v3542
      %v3676 = vmul.f32 %v3543, %v3543
      %v3677 = vmul.f32 %v3544, %v3544
      %v3678 = vmul.f32 %v3545, %v3545
      %v3679 = vmul.f32 %v3546, %v3546
      %v3680 = vmul.f32 %v3547, %v3547
      %v3681 = vmul.f32 %v3548, %v3548
      %v3682 = vmul.f32 %v3549, %v3549
      %v3683 = vmul.f32 %v3550, %v3550
      %v3684 = vmul.f32 %v3551, %v3551
      %v3685 = vmul.f32 %v3552, %v3552
      %v3686 = vmul.f32 %v3553, %v3553
      %v3687 = vmul.f32 %v3554, %v3554
      %v3688 = vmul.f32 %v3555, %v3555
      %v3689 = vmul.f32 %v3556, %v3556
      %v3690 = vmul.f32 %v3557, %v3557
      %v3691 = vmul.f32 %v3558, %v3558
      %v3692 = vmul.f32 %v3559, %v3559
      %v3693 = vmul.f32 %v3560, %v3560
      %v3694 = vmul.f32 %v3561, %v3561
      %v3695 = vmul.f32 %v3562, %v3562
      %v3696 = vmul.f32 %v3563, %v3563
      %v3697 = vmul.f32 %v3564, %v3564
      %v3698 = vmul.f32 %v3565, %v3565
      %v3699 = vmul.f32 %v3566, %v3566
      %v3700 = vmul.f32 %v3567, %v3567
      %v3701 = vmul.f32 %v3568, %v3568
      %v3702 = vmul.f32 %v3569, %v3569
      %v3703 = vmul.f32 %v3570, %v3570
      %v3704 = vadd.f32 %v3648, %v3650
      %v3705 = vadd.f32 %v3704, %v3652
      %v3706 = vadd.f32 %v3705, %v3654
      %v3707 = vadd.f32 %v3706, %v3656
      %v3708 = vadd.f32 %v3707, %v3658
      %v3709 = vadd.f32 %v3708, %v3660
      %v3710 = vadd.f32 %v3709, %v3662
      %v3711 = vadd.f32 %v3710, %v3664
      %v3712 = vadd.f32 %v3711, %v3666
      %v3713 = vadd.f32 %v3712, %v3668
      %v3714 = vadd.f32 %v3713, %v3670
      %v3715 = vadd.f32 %v3714, %v3672
      %v3716 = vadd.f32 %v3715, %v3674
      %v3717 = vadd.f32 %v3716, %v3676
      %v3718 = vadd.f32 %v3717, %v3678
      %v3719 = vadd.f32 %v3718, %v3680
      %v3720 = vadd.f32 %v3719, %v3682
      %v3721 = vadd.f32 %v3720, %v3684
      %v3722 = vadd.f32 %v3721, %v3686
      %v3723 = vadd.f32 %v3722, %v3688
      %v3724 = vadd.f32 %v3723, %v3690
      %v3725 = vadd.f32 %v3724, %v3692
      %v3726 = vadd.f32 %v3725, %v3694
      %v3727 = vadd.f32 %v3726, %v3696
      %v3728 = vadd.f32 %v3727, %v3698
      %v3729 = vadd.f32 %v3728, %v3700
      %v3730 = vadd.f32 %v3729, %v3702
      %v3731 = vrot.slane %v3730, 4
      %v3732 = vadd.f32 %v3730, %v3731
      %v3733 = vrot.slane %v3732, 2
      %v3734 = vadd.f32 %v3732, %v3733
      %v3735 = vrot.slane %v3734, 1
      %v3736 = vadd.f32 %v3734, %v3735
      %v3737 = vadd.f32 %v3649, %v3651
      %v3738 = vadd.f32 %v3737, %v3653
      %v3739 = vadd.f32 %v3738, %v3655
      %v3740 = vadd.f32 %v3739, %v3657
      %v3741 = vadd.f32 %v3740, %v3659
      %v3742 = vadd.f32 %v3741, %v3661
      %v3743 = vadd.f32 %v3742, %v3663
      %v3744 = vadd.f32 %v3743, %v3665
      %v3745 = vadd.f32 %v3744, %v3667
      %v3746 = vadd.f32 %v3745, %v3669
      %v3747 = vadd.f32 %v3746, %v3671
      %v3748 = vadd.f32 %v3747, %v3673
      %v3749 = vadd.f32 %v3748, %v3675
      %v3750 = vadd.f32 %v3749, %v3677
      %v3751 = vadd.f32 %v3750, %v3679
      %v3752 = vadd.f32 %v3751, %v3681
      %v3753 = vadd.f32 %v3752, %v3683
      %v3754 = vadd.f32 %v3753, %v3685
      %v3755 = vadd.f32 %v3754, %v3687
      %v3756 = vadd.f32 %v3755, %v3689
      %v3757 = vadd.f32 %v3756, %v3691
      %v3758 = vadd.f32 %v3757, %v3693
      %v3759 = vadd.f32 %v3758, %v3695
      %v3760 = vadd.f32 %v3759, %v3697
      %v3761 = vadd.f32 %v3760, %v3699
      %v3762 = vadd.f32 %v3761, %v3701
      %v3763 = vadd.f32 %v3762, %v3703
      %v3764 = vrot.slane %v3763, 4
      %v3765 = vadd.f32 %v3763, %v3764
      %v3766 = vrot.slane %v3765, 2
      %v3767 = vadd.f32 %v3765, %v3766
      %v3768 = vrot.slane %v3767, 1
      %v3769 = vadd.f32 %v3767, %v3768
      %v3772 = vrot.slane %v3769, 7
      %v3773 = vsel %vm3640, %v3736, %v3772
      %s3775 = scalar_lea.vmem %s284, 1
      %3776 = vst.msk [vmem:[%s3775] ss:$2 sm:$0x3] %vm3646, %v3773
      %s3777 = smul.u32 2, %s20
      %p3778 = scmp.lt.s32.totalorder %s21, 1
      %s3779 = scalar_select %p3778, %s21, 1
      %p3780 = scmp.lt.s32.totalorder %s3777, 1
      %s3781 = scalar_select %p3780, %s3777, 1
      %s3782 = smul.addr %s3779, 56
      %s3783 = sadd.s32 %s3781, %s3782
      %s3784 = smul.addr %s3783, 4
      %s3785 = scalar_lea.vmem %s3, %s3784
      %s3786 = smul.u32 2, %s20
      %p3787 = scmp.lt.s32.totalorder %s21, 1
      %s3788 = scalar_select %p3787, %s21, 1
      %p3789 = scmp.lt.s32.totalorder %s3786, 1
      %s3790 = scalar_select %p3789, %s3786, 1
      %s3791 = smul.addr %s3788, 2
      %s3792 = sadd.s32 %s3790, %s3791
      %s3793 = smul.addr %s3792, 2
      %s3794 = scalar_lea.vmem %s4, %s3793
      // Predicated region
      $region33: #{residual_block.3} parent=31 // pred_check
        %p3795 = pneg %p126
      $region34: #{residual_block.3} parent=31 // pred_check_branch
        %3797 = sbr.rel (%p3795) target = $region36
      $region35: #{residual_block.3} parent=31 // pred_region
        %s3798 = smul.u32 2, %s20
      $region36: #{residual_block.3} parent=31 // pred_fallthru
        _
      // Predicated region
      $region37: #{residual_block.3} parent=31 // pred_check
        %p3799 = pneg %p154
      $region38: #{residual_block.3} parent=31 // pred_check_branch
        %3801 = sbr.rel (%p3799) target = $region40
      $region39: #{residual_block.3} parent=31 // pred_region
        %s3802 = smul.u32 2, %s20
      $region40: #{residual_block.3} parent=31 // pred_fallthru
        _
    $region32: #{residual_block.3} parent=5 // pred_fallthru
      _
    %p3803 = scmp.le.s32.totalorder 2, %s11
    // Predicated region
    $region41: #{residual_block.3} parent=5 // pred_check
      %p3804 = pneg %p3803
    $region42: #{residual_block.3} parent=5 // pred_check_branch
      %3806 = sbr.rel (%p3804) target = $region44
    $region43: #{residual_block.3} parent=5 // pred_region
      %s3807 = ssub.s32 %s11, 2
      // Predicated region
      $region45: #{residual_block.3} parent=43 // pred_check
        %p3808 = pneg %p132
      $region46: #{residual_block.3} parent=43 // pred_check_branch
        %3810 = sbr.rel (%p3808) target = $region48
      $region47: #{residual_block.3} parent=43 // pred_region
        %s3811 = smul.u32 2, %s22
        %p3812 = scmp.lt.s32.totalorder %s23, 1
        %s3813 = scalar_select %p3812, %s23, 1
        %p3814 = scmp.lt.s32.totalorder %s3811, 1
        %s3815 = scalar_select %p3814, %s3811, 1
        %s3816 = smul.addr %s3813, 56
        %s3817 = sadd.s32 %s3815, %s3816
        %s3818 = smul.addr %s3817, 4
        %s3819 = scalar_lea.vmem %s3, %s3818
      $region48: #{residual_block.3} parent=43 // pred_fallthru
        _
      // Predicated region
      $region49: #{residual_block.3} parent=43 // pred_check
        %p3820 = pneg %p160
      $region50: #{residual_block.3} parent=43 // pred_check_branch
        %3822 = sbr.rel (%p3820) target = $region52
      $region51: #{residual_block.3} parent=43 // pred_region
        %s3823 = smul.u32 2, %s22
        %p3824 = scmp.lt.s32.totalorder %s23, 1
        %s3825 = scalar_select %p3824, %s23, 1
        %p3826 = scmp.lt.s32.totalorder %s3823, 1
        %s3827 = scalar_select %p3826, %s3823, 1
        %s3828 = smul.addr %s3825, 2
        %s3829 = sadd.s32 %s3827, %s3828
        %s3830 = smul.addr %s3829, 2
        %s3831 = scalar_lea.vmem %s4, %s3830
      $region52: #{residual_block.3} parent=43 // pred_fallthru
        _
    $region44: #{residual_block.3} parent=5 // pred_fallthru
      _
  $region6: #{residual_block.3} parent=0 // loop_footer
    %s15 = sadd.s32 1, %s11
  $region7: #{residual_block.3} parent=0 // loop_footer_branch
    %10 = sbr.rel target = $region3
  $region8: #{residual_block.3} parent=0 // loop_exit
    _

// kernel: residual_block.4
$region0: #{residual_block.4}
  #allocation0 [shape = 'u32[]', space=smem, size = 0x4, offset = 0x4, fixed_abs, tag = 'smem constant byte address 0x4 - core index']
  #allocation1 [shape = 'u32[72,128]{1,0:T(1,128)}', space=vmem, size = 0x9000, scoped, tag = 'internal scratch']
  #allocation2 [shape = 'f32[272,128]{1,0:T(8,128)}', space=vmem, size = 0x22000, scoped, tag = 'scratch operand']
  %s0 = inlined_call_operand.vmem [shape: bf16[2,224,256], index: 0, kind: input, shape index: {}]
  %s1 = inlined_call_operand.vmem [shape: f32[1,128], index: 1, kind: input, shape index: {}]
  %s2 = inlined_call_operand.vmem [shape: f32[1,128], index: 2, kind: input, shape index: {}]
  %s3 = inlined_call_operand.vmem [shape: bf16[9,128,128], index: 3, kind: input, shape index: {}]
  %s4 = inlined_call_operand.vmem [shape: bf16[2,224,128], index: 4, kind: output, shape index: {0}]
  %s5 = inlined_call_operand.vmem [shape: f32[2,2,128], index: 5, kind: output, shape index: {1}]
  %6 = xla_tuple %s4, %s5
  %s7 = sld [smem:[#allocation0]]
  $region98: #{residual_block.4} parent=0
    _
  %s9 = ssub.s32 1, %s7
  %s10 = scalar_select 0, %s9, %s7
  $region1: #{residual_block.4} parent=0
    #allocation3 [shape = 'u8[114688]{0}', space=vmem, size = 0x1c000, scoped, tag = 'input window, operand 0']
    loop: start=0, step=1, limit=4
    $region2: #{residual_block.4} parent=1 // loop_pre_header
      _
    $region3: #{residual_block.4} parent=1 // loop_header
      %s12 = sphi 0, %s16
      %p13 = scmp.ge.s32.totalorder %s12, 4
      %s19 = sphi 0, %s31
      %s20 = sphi 0, %s27
      %s21 = sphi 0, %s19
      %s22 = sphi 0, %s20
      %s23 = sphi 0, %s21
      %s24 = sphi 0, %s22
      %s34 = sphi 0, %s36
      %s37 = sphi 0, %s34
      %s38 = sphi 0, %s37
      %s54 = sphi 0, %s38
      %s58 = sphi 0, %s58
      %s60 = sphi 0, %s58
      %s61 = sphi 0, %s60
      %s75 = sphi 0, %s61
      %s79 = sphi 0, %s79
      %s81 = sphi 0, %s79
      %s82 = sphi 0, %s81
      %s96 = sphi 0, %s82
      %s102 = sphi 0, %s104
      %s105 = sphi 0, %s102
      %s106 = sphi 0, %s105
      %s122 = sphi 0, %s106
      %s130 = sphi 0, %s132
      %s133 = sphi 0, %s130
      %s134 = sphi 0, %s133
      %s150 = sphi 0, %s134
      %s158 = sphi 0, %s160
      %s161 = sphi 0, %s158
      %s162 = sphi 0, %s161
      %s178 = sphi 0, %s162
    $region4: #{residual_block.4} parent=1 // loop_header_branch
      %15 = sbr.rel (%p13) target = $region8
    $region5: #{residual_block.4} parent=1 // loop_body
      %s17 = ssub.s32 %s12, 1
      %s18 = ssub.s32 %s12, 2
      %s25 = sadd.s32 1, %s20
      %p26 = scmp.ge.s32.totalorder %s25, 2
      %s27 = scalar_select %p26, 0, %s25
      %s28 = sadd.s32 1, %s19
      %s29 = scalar_select %p26, %s28, %s19
      %p30 = scmp.ge.s32.totalorder %s29, 1
      %s31 = scalar_select %p30, 0, %s29
      %s32 = ssub.s32 %s20, %s27
      %p33 = scmp.eq.s32.totalorder %s32, 0
      %s35 = sadd.s32 %s34, 1
      %s36 = scalar_select %p33, %s34, %s35
      %p39 = pneg %p33
      %p40 = scmp.eq.s32.totalorder %s12, 1
      %p41 = por %p39, %p40
      %p42 = scmp.ne.s32.totalorder %s34, %s37
      %p43 = scmp.eq.s32.totalorder %s12, 0
      %p44 = por %p42, %p43
      %p45 = scmp.ne.s32.totalorder %s34, %s37
      %p46 = scmp.eq.s32.totalorder %s17, 1
      %p47 = por %p45, %p46
      %p48 = scmp.ne.s32.totalorder %s37, %s38
      %p49 = scmp.eq.s32.totalorder %s17, 0
      %p50 = por %p48, %p49
      %p51 = scmp.ne.s32.totalorder %s37, %s38
      %p52 = scmp.eq.s32.totalorder %s18, 1
      %p53 = por %p51, %p52
      %p55 = scmp.ne.s32.totalorder %s38, %s54
      %p56 = scmp.eq.s32.totalorder %s18, 0
      %p57 = por %p55, %p56
      %s59 = sadd.s32 %s58, 1
      %p62 = scmp.eq.s32.totalorder %s12, 1
      %p63 = scmp.ne.s32.totalorder %s58, %s60
      %p64 = scmp.eq.s32.totalorder %s12, 0
      %p65 = por %p63, %p64
      %p66 = scmp.ne.s32.totalorder %s58, %s60
      %p67 = scmp.eq.s32.totalorder %s17, 1
      %p68 = por %p66, %p67
      %p69 = scmp.ne.s32.totalorder %s60, %s61
      %p70 = scmp.eq.s32.totalorder %s17, 0
      %p71 = por %p69, %p70
      %p72 = scmp.ne.s32.totalorder %s60, %s61
      %p73 = scmp.eq.s32.totalorder %s18, 1
      %p74 = por %p72, %p73
      %p76 = scmp.ne.s32.totalorder %s61, %s75
      %p77 = scmp.eq.s32.totalorder %s18, 0
      %p78 = por %p76, %p77
      %s80 = sadd.s32 %s79, 1
      %p83 = scmp.eq.s32.totalorder %s12, 1
      %p84 = scmp.ne.s32.totalorder %s79, %s81
      %p85 = scmp.eq.s32.totalorder %s12, 0
      %p86 = por %p84, %p85
      %p87 = scmp.ne.s32.totalorder %s79, %s81
      %p88 = scmp.eq.s32.totalorder %s17, 1
      %p89 = por %p87, %p88
      %p90 = scmp.ne.s32.totalorder %s81, %s82
      %p91 = scmp.eq.s32.totalorder %s17, 0
      %p92 = por %p90, %p91
      %p93 = scmp.ne.s32.totalorder %s81, %s82
      %p94 = scmp.eq.s32.totalorder %s18, 1
      %p95 = por %p93, %p94
      %p97 = scmp.ne.s32.totalorder %s82, %s96
      %p98 = scmp.eq.s32.totalorder %s18, 0
      %p99 = por %p97, %p98
      %s100 = ssub.s32 %s19, %s31
      %p101 = scmp.eq.s32.totalorder %s100, 0
      %s103 = sadd.s32 %s102, 1
      %s104 = scalar_select %p101, %s102, %s103
      %p107 = pneg %p101
      %p108 = scmp.eq.s32.totalorder %s12, 1
      %p109 = por %p107, %p108
      %p110 = scmp.ne.s32.totalorder %s102, %s105
      %p111 = scmp.eq.s32.totalorder %s12, 0
      %p112 = por %p110, %p111
      %p113 = scmp.ne.s32.totalorder %s102, %s105
      %p114 = scmp.eq.s32.totalorder %s17, 1
      %p115 = por %p113, %p114
      %p116 = scmp.ne.s32.totalorder %s105, %s106
      %p117 = scmp.eq.s32.totalorder %s17, 0
      %p118 = por %p116, %p117
      %p119 = scmp.ne.s32.totalorder %s105, %s106
      %p120 = scmp.eq.s32.totalorder %s18, 1
      %p121 = por %p119, %p120
      %p123 = scmp.ne.s32.totalorder %s106, %s122
      %p124 = scmp.eq.s32.totalorder %s18, 0
      %p125 = por %p123, %p124
      %s126 = ssub.s32 %s20, %s27
      %s127 = ssub.s32 %s19, %s31
      %s128 = sor.u32 %s126, %s127
      %p129 = scmp.eq.s32.totalorder %s128, 0
      %s131 = sadd.s32 %s130, 1
      %s132 = scalar_select %p129, %s130, %s131
      %p135 = pneg %p129
      %p136 = scmp.eq.s32.totalorder %s12, 1
      %p137 = por %p135, %p136
      %p138 = scmp.ne.s32.totalorder %s130, %s133
      %p139 = scmp.eq.s32.totalorder %s12, 0
      %p140 = por %p138, %p139
      %p141 = scmp.ne.s32.totalorder %s130, %s133
      %p142 = scmp.eq.s32.totalorder %s17, 1
      %p143 = por %p141, %p142
      %p144 = scmp.ne.s32.totalorder %s133, %s134
      %p145 = scmp.eq.s32.totalorder %s17, 0
      %p146 = por %p144, %p145
      %p147 = scmp.ne.s32.totalorder %s133, %s134
      %p148 = scmp.eq.s32.totalorder %s18, 1
      %p149 = por %p147, %p148
      %p151 = scmp.ne.s32.totalorder %s134, %s150
      %p152 = scmp.eq.s32.totalorder %s18, 0
      %p153 = por %p151, %p152
      %s154 = ssub.s32 %s20, %s27
      %s155 = ssub.s32 %s19, %s31
      %s156 = sor.u32 %s154, %s155
      %p157 = scmp.eq.s32.totalorder %s156, 0
      %s159 = sadd.s32 %s158, 1
      %s160 = scalar_select %p157, %s158, %s159
      %p163 = pneg %p157
      %p164 = scmp.eq.s32.totalorder %s12, 1
      %p165 = por %p163, %p164
      %p166 = scmp.ne.s32.totalorder %s158, %s161
      %p167 = scmp.eq.s32.totalorder %s12, 0
      %p168 = por %p166, %p167
      %p169 = scmp.ne.s32.totalorder %s158, %s161
      %p170 = scmp.eq.s32.totalorder %s17, 1
      %p171 = por %p169, %p170
      %p172 = scmp.ne.s32.totalorder %s161, %s162
      %p173 = scmp.eq.s32.totalorder %s17, 0
      %p174 = por %p172, %p173
      %p175 = scmp.ne.s32.totalorder %s161, %s162
      %p176 = scmp.eq.s32.totalorder %s18, 1
      %p177 = por %p175, %p176
      %p179 = scmp.ne.s32.totalorder %s162, %s178
      %p180 = scmp.eq.s32.totalorder %s18, 0
      %p181 = por %p179, %p180
      %p182 = scmp.le.s32.totalorder 1, %s12
      %p183 = scmp.lt.s32.totalorder %s12, 3
      %p184 = pnand %p182, %p183
      %p185 = pneg %p184
      // Predicated region
      $region9: #{residual_block.4} parent=5 // pred_check
        _
      $region10: #{residual_block.4} parent=5 // pred_check_branch
        %187 = sbr.rel (%p184) target = $region12
      $region11: #{residual_block.4} parent=5 // pred_region
        %s188 = ssub.s32 %s12, 1
        // Predicated region
        $region13: #{residual_block.4} parent=11 // pred_check
          %p189 = pneg %p71
        $region14: #{residual_block.4} parent=11 // pred_check_branch
          %191 = sbr.rel (%p189) target = $region16
        $region15: #{residual_block.4} parent=11 // pred_region
          _
        $region16: #{residual_block.4} parent=11 // pred_fallthru
          _
        // Predicated region
        $region17: #{residual_block.4} parent=11 // pred_check
          %p192 = pneg %p92
        $region18: #{residual_block.4} parent=11 // pred_check_branch
          %194 = sbr.rel (%p192) target = $region20
        $region19: #{residual_block.4} parent=11 // pred_region
          _
        $region20: #{residual_block.4} parent=11 // pred_fallthru
          _
        // Predicated region
        $region21: #{residual_block.4} parent=11 // pred_check
          %p195 = pneg %p118
        $region22: #{residual_block.4} parent=11 // pred_check_branch
          %197 = sbr.rel (%p195) target = $region24
        $region23: #{residual_block.4} parent=11 // pred_region
          %p198 = scmp.lt.s32.totalorder %s21, 0
          %s199 = scalar_select %p198, %s21, 0
          %s200 = smul.addr %s199, 4
          %s201 = scalar_lea.vmem %s3, %s200
        $region24: #{residual_block.4} parent=11 // pred_fallthru
          _
      $region12: #{residual_block.4} parent=5 // pred_fallthru
        _
      %p202 = scmp.lt.s32.totalorder %s12, 2
      // Predicated region
      $region25: #{residual_block.4} parent=5 // pred_check
        %p203 = pneg %p202
      $region26: #{residual_block.4} parent=5 // pred_check_branch
        %205 = sbr.rel (%p203) target = $region28
      $region27: #{residual_block.4} parent=5 // pred_region
        // Predicated region
        $region29: #{residual_block.4} parent=27 // pred_check
          %p206 = pneg %p44
        $region30: #{residual_block.4} parent=27 // pred_check_branch
          %208 = sbr.rel (%p206) target = $region32
        $region31: #{residual_block.4} parent=27 // pred_region
          %s209 = sand.u32 %s34, 1
          %s210 = sand.u32 %s34, 1
          %s211 = smul.addr %s210, 112
          %s212 = scalar_lea.vmem [#allocation3], %s211
          %s213 = smul.addr %s20, 56
          %s214 = sadd.s32 1, %s213
          %s215 = smul.addr %s214, 4
          %s216 = scalar_lea.vmem %s0, %s215
          // Predicated region
          $region33: #{residual_block.4} parent=31 // pred_check
            _
          $region34: #{residual_block.4} parent=31 // pred_check_branch
            %218 = sbr.rel (0) target = $region36
          $region35: #{residual_block.4} parent=31 // pred_region
            // Predicated region
            $region37: #{residual_block.4} parent=35 // pred_check
              _
            $region38: #{residual_block.4} parent=35 // pred_check_branch
              %220 = sbr.rel target = $region40
            $region39: #{residual_block.4} parent=35 // pred_region
              // Predicated region
              $region52: #{residual_block.4} parent=39 // pred_check
                _
              $region53: #{residual_block.4} parent=39 // pred_check_branch
                %290 = sbr.rel (0) target = $region55
              $region54: #{residual_block.4} parent=39 // pred_region
                loop: start=0, step=1, limit=1
                $region56: #{residual_block.4} parent=54 // loop_pre_header
                  _
                $region57: #{residual_block.4} parent=54 // loop_header
                  %s292 = sphi 0, %s296
                  %p293 = scmp.ge.s32.totalorder %s292, 1
                  %s297 = sphi %s216, %s216
                  %s298 = sphi %s212, %s212
                $region58: #{residual_block.4} parent=54 // loop_header_branch
                  %295 = sbr.rel (%p293) target = $region62
                $region59: #{residual_block.4} parent=54 // loop_body
                  _
                $region60: #{residual_block.4} parent=54 // loop_footer
                  %s296 = sadd.s32 1, %s292
                $region61: #{residual_block.4} parent=54 // loop_footer_branch
                  %291 = sbr.rel target = $region57
                $region62: #{residual_block.4} parent=54 // loop_exit
                  _
                %s300 = ssub.s32 16, 1
                loop: start=0, step=1, limit=1
                $region63: #{residual_block.4} parent=54 // loop_pre_header
                  _
                $region64: #{residual_block.4} parent=54 // loop_header
                  %s302 = sphi 0, %s306
                  %p303 = scmp.ge.s32.totalorder %s302, 1
                  %s307 = sphi %s216, %s216
                  %s308 = sphi %s212, %s212
                $region65: #{residual_block.4} parent=54 // loop_header_branch
                  %305 = sbr.rel (%p303) target = $region69
                $region66: #{residual_block.4} parent=54 // loop_body
                  %v309 = vld [vmem:[%s307] sm:%s300]
                  %310 = vst [vmem:[%s308] sm:%s300] %v309
                  %v311 = vld [vmem:[%s307 + $0x8] sm:%s300]
                  %312 = vst [vmem:[%s308 + $0x4] sm:%s300] %v311
                  %v313 = vld [vmem:[%s307 + $0x10] sm:%s300]
                  %314 = vst [vmem:[%s308 + $0x8] sm:%s300] %v313
                  %v315 = vld [vmem:[%s307 + $0x18] sm:%s300]
                  %316 = vst [vmem:[%s308 + $0xc] sm:%s300] %v315
                  %v317 = vld [vmem:[%s307 + $0x20] sm:%s300]
                  %318 = vst [vmem:[%s308 + $0x10] sm:%s300] %v317
                  %v319 = vld [vmem:[%s307 + $0x28] sm:%s300]
                  %320 = vst [vmem:[%s308 + $0x14] sm:%s300] %v319
                  %v321 = vld [vmem:[%s307 + $0x30] sm:%s300]
                  %322 = vst [vmem:[%s308 + $0x18] sm:%s300] %v321
                  %v323 = vld [vmem:[%s307 + $0x38] sm:%s300]
                  %324 = vst [vmem:[%s308 + $0x1c] sm:%s300] %v323
                  %v325 = vld [vmem:[%s307 + $0x40] sm:%s300]
                  %326 = vst [vmem:[%s308 + $0x20] sm:%s300] %v325
                  %v327 = vld [vmem:[%s307 + $0x48] sm:%s300]
                  %328 = vst [vmem:[%s308 + $0x24] sm:%s300] %v327
                  %v329 = vld [vmem:[%s307 + $0x50] sm:%s300]
                  %330 = vst [vmem:[%s308 + $0x28] sm:%s300] %v329
                  %v331 = vld [vmem:[%s307 + $0x58] sm:%s300]
                  %332 = vst [vmem:[%s308 + $0x2c] sm:%s300] %v331
                  %v333 = vld [vmem:[%s307 + $0x60] sm:%s300]
                  %334 = vst [vmem:[%s308 + $0x30] sm:%s300] %v333
                  %v335 = vld [vmem:[%s307 + $0x68] sm:%s300]
                  %336 = vst [vmem:[%s308 + $0x34] sm:%s300] %v335
                  %v337 = vld [vmem:[%s307 + $0x70] sm:%s300]
                  %338 = vst [vmem:[%s308 + $0x38] sm:%s300] %v337
                  %v339 = vld [vmem:[%s307 + $0x78] sm:%s300]
                  %340 = vst [vmem:[%s308 + $0x3c] sm:%s300] %v339
                  %v341 = vld [vmem:[%s307 + $0x80] sm:%s300]
                  %342 = vst [vmem:[%s308 + $0x40] sm:%s300] %v341
                  %v343 = vld [vmem:[%s307 + $0x88] sm:%s300]
                  %344 = vst [vmem:[%s308 + $0x44] sm:%s300] %v343
                  %v345 = vld [vmem:[%s307 + $0x90] sm:%s300]
                  %346 = vst [vmem:[%s308 + $0x48] sm:%s300] %v345
                  %v347 = vld [vmem:[%s307 + $0x98] sm:%s300]
                  %348 = vst [vmem:[%s308 + $0x4c] sm:%s300] %v347
                  %v349 = vld [vmem:[%s307 + $0xa0] sm:%s300]
                  %350 = vst [vmem:[%s308 + $0x50] sm:%s300] %v349
                  %v351 = vld [vmem:[%s307 + $0xa8] sm:%s300]
                  %352 = vst [vmem:[%s308 + $0x54] sm:%s300] %v351
                  %v353 = vld [vmem:[%s307 + $0xb0] sm:%s300]
                  %354 = vst [vmem:[%s308 + $0x58] sm:%s300] %v353
                  %v355 = vld [vmem:[%s307 + $0xb8] sm:%s300]
                  %356 = vst [vmem:[%s308 + $0x5c] sm:%s300] %v355
                  %v357 = vld [vmem:[%s307 + $0xc0] sm:%s300]
                  %358 = vst [vmem:[%s308 + $0x60] sm:%s300] %v357
                  %v359 = vld [vmem:[%s307 + $0xc8] sm:%s300]
                  %360 = vst [vmem:[%s308 + $0x64] sm:%s300] %v359
                  %v361 = vld [vmem:[%s307 + $0xd0] sm:%s300]
                  %362 = vst [vmem:[%s308 + $0x68] sm:%s300] %v361
                  %v363 = vld [vmem:[%s307 + $0xd8] sm:%s300]
                  %364 = vst [vmem:[%s308 + $0x6c] sm:%s300] %v363
                $region67: #{residual_block.4} parent=54 // loop_footer
                  %s306 = sadd.s32 1, %s302
                $region68: #{residual_block.4} parent=54 // loop_footer_branch
                  %301 = sbr.rel target = $region64
                $region69: #{residual_block.4} parent=54 // loop_exit
                  _
              $region55: #{residual_block.4} parent=39 // pred_fallthru
                _
            $region40: #{residual_block.4} parent=35 // pred_fallthru
              _
            // Predicated region
            $region41: #{residual_block.4} parent=35 // pred_check
              _
            $region42: #{residual_block.4} parent=35 // pred_check_branch
              %222 = sbr.rel (0) target = $region44
            $region43: #{residual_block.4} parent=35 // pred_region
              %s224 = ssub.s32 16, 1
              loop: start=0, step=1, limit=1
              $region45: #{residual_block.4} parent=43 // loop_pre_header
                _
              $region46: #{residual_block.4} parent=43 // loop_header
                %s226 = sphi 0, %s230
                %p227 = scmp.ge.s32.totalorder %s226, 1
                %s231 = sphi %s216, %s216
                %s232 = sphi %s212, %s212
              $region47: #{residual_block.4} parent=43 // loop_header_branch
                %229 = sbr.rel (%p227) target = $region51
              $region48: #{residual_block.4} parent=43 // loop_body
                %v233 = vld [vmem:[%s231] sm:%s224]
                %234 = vst [vmem:[%s232] sm:%s224] %v233
                %v235 = vld [vmem:[%s231 + $0x8] sm:%s224]
                %236 = vst [vmem:[%s232 + $0x4] sm:%s224] %v235
                %v237 = vld [vmem:[%s231 + $0x10] sm:%s224]
                %238 = vst [vmem:[%s232 + $0x8] sm:%s224] %v237
                %v239 = vld [vmem:[%s231 + $0x18] sm:%s224]
                %240 = vst [vmem:[%s232 + $0xc] sm:%s224] %v239
                %v241 = vld [vmem:[%s231 + $0x20] sm:%s224]
                %242 = vst [vmem:[%s232 + $0x10] sm:%s224] %v241
                %v243 = vld [vmem:[%s231 + $0x28] sm:%s224]
                %244 = vst [vmem:[%s232 + $0x14] sm:%s224] %v243
                %v245 = vld [vmem:[%s231 + $0x30] sm:%s224]
                %246 = vst [vmem:[%s232 + $0x18] sm:%s224] %v245
                %v247 = vld [vmem:[%s231 + $0x38] sm:%s224]
                %248 = vst [vmem:[%s232 + $0x1c] sm:%s224] %v247
                %v249 = vld [vmem:[%s231 + $0x40] sm:%s224]
                %250 = vst [vmem:[%s232 + $0x20] sm:%s224] %v249
                %v251 = vld [vmem:[%s231 + $0x48] sm:%s224]
                %252 = vst [vmem:[%s232 + $0x24] sm:%s224] %v251
                %v253 = vld [vmem:[%s231 + $0x50] sm:%s224]
                %254 = vst [vmem:[%s232 + $0x28] sm:%s224] %v253
                %v255 = vld [vmem:[%s231 + $0x58] sm:%s224]
                %256 = vst [vmem:[%s232 + $0x2c] sm:%s224] %v255
                %v257 = vld [vmem:[%s231 + $0x60] sm:%s224]
                %258 = vst [vmem:[%s232 + $0x30] sm:%s224] %v257
                %v259 = vld [vmem:[%s231 + $0x68] sm:%s224]
                %260 = vst [vmem:[%s232 + $0x34] sm:%s224] %v259
                %v261 = vld [vmem:[%s231 + $0x70] sm:%s224]
                %262 = vst [vmem:[%s232 + $0x38] sm:%s224] %v261
                %v263 = vld [vmem:[%s231 + $0x78] sm:%s224]
                %264 = vst [vmem:[%s232 + $0x3c] sm:%s224] %v263
                %v265 = vld [vmem:[%s231 + $0x80] sm:%s224]
                %266 = vst [vmem:[%s232 + $0x40] sm:%s224] %v265
                %v267 = vld [vmem:[%s231 + $0x88] sm:%s224]
                %268 = vst [vmem:[%s232 + $0x44] sm:%s224] %v267
                %v269 = vld [vmem:[%s231 + $0x90] sm:%s224]
                %270 = vst [vmem:[%s232 + $0x48] sm:%s224] %v269
                %v271 = vld [vmem:[%s231 + $0x98] sm:%s224]
                %272 = vst [vmem:[%s232 + $0x4c] sm:%s224] %v271
                %v273 = vld [vmem:[%s231 + $0xa0] sm:%s224]
                %274 = vst [vmem:[%s232 + $0x50] sm:%s224] %v273
                %v275 = vld [vmem:[%s231 + $0xa8] sm:%s224]
                %276 = vst [vmem:[%s232 + $0x54] sm:%s224] %v275
                %v277 = vld [vmem:[%s231 + $0xb0] sm:%s224]
                %278 = vst [vmem:[%s232 + $0x58] sm:%s224] %v277
                %v279 = vld [vmem:[%s231 + $0xb8] sm:%s224]
                %280 = vst [vmem:[%s232 + $0x5c] sm:%s224] %v279
                %v281 = vld [vmem:[%s231 + $0xc0] sm:%s224]
                %282 = vst [vmem:[%s232 + $0x60] sm:%s224] %v281
                %v283 = vld [vmem:[%s231 + $0xc8] sm:%s224]
                %284 = vst [vmem:[%s232 + $0x64] sm:%s224] %v283
                %v285 = vld [vmem:[%s231 + $0xd0] sm:%s224]
                %286 = vst [vmem:[%s232 + $0x68] sm:%s224] %v285
                %v287 = vld [vmem:[%s231 + $0xd8] sm:%s224]
                %288 = vst [vmem:[%s232 + $0x6c] sm:%s224] %v287
              $region49: #{residual_block.4} parent=43 // loop_footer
                %s230 = sadd.s32 1, %s226
              $region50: #{residual_block.4} parent=43 // loop_footer_branch
                %225 = sbr.rel target = $region46
              $region51: #{residual_block.4} parent=43 // loop_exit
                _
            $region44: #{residual_block.4} parent=35 // pred_fallthru
              _
          $region36: #{residual_block.4} parent=31 // pred_fallthru
            _
          %365 = vnop
        $region32: #{residual_block.4} parent=27 // pred_fallthru
          _
      $region28: #{residual_block.4} parent=5 // pred_fallthru
        _
      %p366 = scmp.le.s32.totalorder 1, %s12
      %p367 = scmp.lt.s32.totalorder %s12, 3
      %p368 = pnand %p366, %p367
      %p369 = pneg %p368
      // Predicated region
      $region70: #{residual_block.4} parent=5 // pred_check
        _
      $region71: #{residual_block.4} parent=5 // pred_check_branch
        %371 = sbr.rel (%p368) target = $region73
      $region72: #{residual_block.4} parent=5 // pred_region
        %s372 = ssub.s32 %s12, 1
        %s373 = sand.u32 %s37, 1
        %s374 = sand.u32 %s37, 1
        %s375 = smul.addr %s374, 112
        %s376 = scalar_lea.vmem [#allocation3], %s375
        // Predicated region
        $region74: #{residual_block.4} parent=72 // pred_check
          %p377 = pneg %p50
        $region75: #{residual_block.4} parent=72 // pred_check_branch
          %379 = sbr.rel (%p377) target = $region77
        $region76: #{residual_block.4} parent=72 // pred_region
          _
        $region77: #{residual_block.4} parent=72 // pred_fallthru
          _
        %s380 = sand.u32 %s37, 1
        %s381 = sand.u32 %s37, 1
        %s382 = smul.addr %s381, 112
        %s383 = scalar_lea.vmem [#allocation3], %s382
        %p384 = pneg %p50
        %p385 = pneg %p47
        %p386 = pneg %p71
        %p387 = pneg %p68
        %p388 = pneg %p92
        %p389 = pneg %p89
        %p390 = scmp.lt.s32.totalorder %s21, 0
        %s391 = scalar_select %p390, %s21, 0
        %s392 = smul.addr %s391, 4
        %s393 = scalar_lea.vmem %s3, %s392
        %p394 = pneg %p118
        %p395 = pneg %p115
        %p396 = pneg %p146
        %p397 = pneg %p143
        %p398 = scmp.lt.s32.totalorder %s22, 1
        %s399 = scalar_select %p398, %s22, 1
        %p400 = scmp.lt.s32.totalorder %s21, 0
        %s401 = scalar_select %p400, %s21, 0
        %s402 = smul.addr %s399, 28
        %s403 = sadd.s32 %s401, %s402
        %s404 = smul.addr %s403, 4
        %s405 = scalar_lea.vmem %s4, %s404
        %p406 = pneg %p174
        %p407 = pneg %p171
        %p408 = scmp.lt.s32.totalorder %s22, 1
        %s409 = scalar_select %p408, %s22, 1
        %p410 = scmp.lt.s32.totalorder %s21, 0
        %s411 = scalar_select %p410, %s21, 0
        %s412 = sadd.s32 %s411, %s409
        %s413 = smul.addr %s412, 2
        %s414 = scalar_lea.vmem %s5, %s413
        %p415 = scmp.lt.s32.totalorder %s21, 0
        %s416 = scalar_select %p415, %s21, 0
        %s417 = smul.addr %s416, 4
        %s418 = scalar_lea.vmem %s3, %s417
        %p419 = scmp.lt.s32.totalorder %s22, 1
        %s420 = scalar_select %p419, %s22, 1
        %p421 = scmp.lt.s32.totalorder %s21, 0
        %s422 = scalar_select %p421, %s21, 0
        %s423 = smul.addr %s420, 28
        %s424 = sadd.s32 %s422, %s423
        %s425 = smul.addr %s424, 4
        %s426 = scalar_lea.vmem %s4, %s425
        %p427 = scmp.lt.s32.totalorder %s22, 1
        %s428 = scalar_select %p427, %s22, 1
        %p429 = scmp.lt.s32.totalorder %s21, 0
        %s430 = scalar_select %p429, %s21, 0
        %s431 = sadd.s32 %s430, %s428
        %s432 = smul.addr %s431, 2
        %s433 = scalar_lea.vmem %s5, %s432
        %v434 = vlaneseq
        %v435 = vshrl.u32 %v434, 7
        %v436 = vadd.s32 %v435, 8
        %v437 = vadd.s32 %v435, 16
        %v438 = vadd.s32 %v435, 24
        %v439 = vadd.s32 %v435, 32
        %v440 = vadd.s32 %v435, 40
        %v441 = vadd.s32 %v435, 48
        %v442 = vadd.s32 %v435, 56
        %v443 = vadd.s32 %v435, 64
        %v444 = vadd.s32 %v435, 72
        %v445 = vadd.s32 %v435, 80
        %v446 = vadd.s32 %v435, 88
        %v447 = vadd.s32 %v435, 96
        %v448 = vadd.s32 %v435, 104
        %v449 = vadd.s32 %v435, 112
        %v450 = vadd.s32 %v435, 120
        %v451 = vadd.s32 %v435, 128
        %v452 = vadd.s32 %v435, 136
        %v453 = vadd.s32 %v435, 144
        %v454 = vadd.s32 %v435, 152
        %v455 = vadd.s32 %v435, 160
        %v456 = vadd.s32 %v435, 168
        %v457 = vadd.s32 %v435, 176
        %v458 = vadd.s32 %v435, 184
        %v459 = vadd.s32 %v435, 192
        %v460 = vadd.s32 %v435, 200
        %v461 = vadd.s32 %v435, 208
        %v462 = vadd.s32 %v435, 216
        %vm463 = vcmp.lt.s32.totalorder %v435, 0
        %v464 = vsub.s32 0, %v435
        %v465 = vsel %vm463, %v464, %v435
        %v466 = vshrl.u32 %v465, 4
        %v467 = vand.u32 %v465, 15
        %v468 = vsub.s32 0, %v467
        %v469 = vsel %vm463, %v468, %v467
        %vm470 = vcmp.lt.s32.totalorder %v436, 0
        %v471 = vsub.s32 0, %v436
        %v472 = vsel %vm470, %v471, %v436
        %v473 = vshrl.u32 %v472, 4
        %v474 = vand.u32 %v472, 15
        %v475 = vsub.s32 0, %v474
        %v476 = vsel %vm470, %v475, %v474
        %vm477 = vcmp.lt.s32.totalorder %v437, 0
        %v478 = vsub.s32 0, %v437
        %v479 = vsel %vm477, %v478, %v437
        %v480 = vshrl.u32 %v479, 4
        %v481 = vand.u32 %v479, 15
        %v482 = vsub.s32 0, %v481
        %v483 = vsel %vm477, %v482, %v481
        %vm484 = vcmp.lt.s32.totalorder %v438, 0
        %v485 = vsub.s32 0, %v438
        %v486 = vsel %vm484, %v485, %v438
        %v487 = vshrl.u32 %v486, 4
        %v488 = vand.u32 %v486, 15
        %v489 = vsub.s32 0, %v488
        %v490 = vsel %vm484, %v489, %v488
        %vm491 = vcmp.lt.s32.totalorder %v439, 0
        %v492 = vsub.s32 0, %v439
        %v493 = vsel %vm491, %v492, %v439
        %v494 = vshrl.u32 %v493, 4
        %v495 = vand.u32 %v493, 15
        %v496 = vsub.s32 0, %v495
        %v497 = vsel %vm491, %v496, %v495
        %vm498 = vcmp.lt.s32.totalorder %v440, 0
        %v499 = vsub.s32 0, %v440
        %v500 = vsel %vm498, %v499, %v440
        %v501 = vshrl.u32 %v500, 4
        %v502 = vand.u32 %v500, 15
        %v503 = vsub.s32 0, %v502
        %v504 = vsel %vm498, %v503, %v502
        %vm505 = vcmp.lt.s32.totalorder %v441, 0
        %v506 = vsub.s32 0, %v441
        %v507 = vsel %vm505, %v506, %v441
        %v508 = vshrl.u32 %v507, 4
        %v509 = vand.u32 %v507, 15
        %v510 = vsub.s32 0, %v509
        %v511 = vsel %vm505, %v510, %v509
        %vm512 = vcmp.lt.s32.totalorder %v442, 0
        %v513 = vsub.s32 0, %v442
        %v514 = vsel %vm512, %v513, %v442
        %v515 = vshrl.u32 %v514, 4
        %v516 = vand.u32 %v514, 15
        %v517 = vsub.s32 0, %v516
        %v518 = vsel %vm512, %v517, %v516
        %vm519 = vcmp.lt.s32.totalorder %v443, 0
        %v520 = vsub.s32 0, %v443
        %v521 = vsel %vm519, %v520, %v443
        %v522 = vshrl.u32 %v521, 4
        %v523 = vand.u32 %v521, 15
        %v524 = vsub.s32 0, %v523
        %v525 = vsel %vm519, %v524, %v523
        %vm526 = vcmp.lt.s32.totalorder %v444, 0
        %v527 = vsub.s32 0, %v444
        %v528 = vsel %vm526, %v527, %v444
        %v529 = vshrl.u32 %v528, 4
        %v530 = vand.u32 %v528, 15
        %v531 = vsub.s32 0, %v530
        %v532 = vsel %vm526, %v531, %v530
        %vm533 = vcmp.lt.s32.totalorder %v445, 0
        %v534 = vsub.s32 0, %v445
        %v535 = vsel %vm533, %v534, %v445
        %v536 = vshrl.u32 %v535, 4
        %v537 = vand.u32 %v535, 15
        %v538 = vsub.s32 0, %v537
        %v539 = vsel %vm533, %v538, %v537
        %vm540 = vcmp.lt.s32.totalorder %v446, 0
        %v541 = vsub.s32 0, %v446
        %v542 = vsel %vm540, %v541, %v446
        %v543 = vshrl.u32 %v542, 4
        %v544 = vand.u32 %v542, 15
        %v545 = vsub.s32 0, %v544
        %v546 = vsel %vm540, %v545, %v544
        %vm547 = vcmp.lt.s32.totalorder %v447, 0
        %v548 = vsub.s32 0, %v447
        %v549 = vsel %vm547, %v548, %v447
        %v550 = vshrl.u32 %v549, 4
        %v551 = vand.u32 %v549, 15
        %v552 = vsub.s32 0, %v551
        %v553 = vsel %vm547, %v552, %v551
        %vm554 = vcmp.lt.s32.totalorder %v448, 0
        %v555 = vsub.s32 0, %v448
        %v556 = vsel %vm554, %v555, %v448
        %v557 = vshrl.u32 %v556, 4
        %v558 = vand.u32 %v556, 15
        %v559 = vsub.s32 0, %v558
        %v560 = vsel %vm554, %v559, %v558
        %vm561 = vcmp.lt.s32.totalorder %v449, 0
        %v562 = vsub.s32 0, %v449
        %v563 = vsel %vm561, %v562, %v449
        %v564 = vshrl.u32 %v563, 4
        %v565 = vand.u32 %v563, 15
        %v566 = vsub.s32 0, %v565
        %v567 = vsel %vm561, %v566, %v565
        %vm568 = vcmp.lt.s32.totalorder %v450, 0
        %v569 = vsub.s32 0, %v450
        %v570 = vsel %vm568, %v569, %v450
        %v571 = vshrl.u32 %v570, 4
        %v572 = vand.u32 %v570, 15
        %v573 = vsub.s32 0, %v572
        %v574 = vsel %vm568, %v573, %v572
        %vm575 = vcmp.lt.s32.totalorder %v451, 0
        %v576 = vsub.s32 0, %v451
        %v577 = vsel %vm575, %v576, %v451
        %v578 = vshrl.u32 %v577, 4
        %v579 = vand.u32 %v577, 15
        %v580 = vsub.s32 0, %v579
        %v581 = vsel %vm575, %v580, %v579
        %vm582 = vcmp.lt.s32.totalorder %v452, 0
        %v583 = vsub.s32 0, %v452
        %v584 = vsel %vm582, %v583, %v452
        %v585 = vshrl.u32 %v584, 4
        %v586 = vand.u32 %v584, 15
        %v587 = vsub.s32 0, %v586
        %v588 = vsel %vm582, %v587, %v586
        %vm589 = vcmp.lt.s32.totalorder %v453, 0
        %v590 = vsub.s32 0, %v453
        %v591 = vsel %vm589, %v590, %v453
        %v592 = vshrl.u32 %v591, 4
        %v593 = vand.u32 %v591, 15
        %v594 = vsub.s32 0, %v593
        %v595 = vsel %vm589, %v594, %v593
        %vm596 = vcmp.lt.s32.totalorder %v454, 0
        %v597 = vsub.s32 0, %v454
        %v598 = vsel %vm596, %v597, %v454
        %v599 = vshrl.u32 %v598, 4
        %v600 = vand.u32 %v598, 15
        %v601 = vsub.s32 0, %v600
        %v602 = vsel %vm596, %v601, %v600
        %vm603 = vcmp.lt.s32.totalorder %v455, 0
        %v604 = vsub.s32 0, %v455
        %v605 = vsel %vm603, %v604, %v455
        %v606 = vshrl.u32 %v605, 4
        %v607 = vand.u32 %v605, 15
        %v608 = vsub.s32 0, %v607
        %v609 = vsel %vm603, %v608, %v607
        %vm610 = vcmp.lt.s32.totalorder %v456, 0
        %v611 = vsub.s32 0, %v456
        %v612 = vsel %vm610, %v611, %v456
        %v613 = vshrl.u32 %v612, 4
        %v614 = vand.u32 %v612, 15
        %v615 = vsub.s32 0, %v614
        %v616 = vsel %vm610, %v615, %v614
        %vm617 = vcmp.lt.s32.totalorder %v457, 0
        %v618 = vsub.s32 0, %v457
        %v619 = vsel %vm617, %v618, %v457
        %v620 = vshrl.u32 %v619, 4
        %v621 = vand.u32 %v619, 15
        %v622 = vsub.s32 0, %v621
        %v623 = vsel %vm617, %v622, %v621
        %vm624 = vcmp.lt.s32.totalorder %v458, 0
        %v625 = vsub.s32 0, %v458
        %v626 = vsel %vm624, %v625, %v458
        %v627 = vshrl.u32 %v626, 4
        %v628 = vand.u32 %v626, 15
        %v629 = vsub.s32 0, %v628
        %v630 = vsel %vm624, %v629, %v628
        %vm631 = vcmp.lt.s32.totalorder %v459, 0
        %v632 = vsub.s32 0, %v459
        %v633 = vsel %vm631, %v632, %v459
        %v634 = vshrl.u32 %v633, 4
        %v635 = vand.u32 %v633, 15
        %v636 = vsub.s32 0, %v635
        %v637 = vsel %vm631, %v636, %v635
        %vm638 = vcmp.lt.s32.totalorder %v460, 0
        %v639 = vsub.s32 0, %v460
        %v640 = vsel %vm638, %v639, %v460
        %v641 = vshrl.u32 %v640, 4
        %v642 = vand.u32 %v640, 15
        %v643 = vsub.s32 0, %v642
        %v644 = vsel %vm638, %v643, %v642
        %vm645 = vcmp.lt.s32.totalorder %v461, 0
        %v646 = vsub.s32 0, %v461
        %v647 = vsel %vm645, %v646, %v461
        %v648 = vshrl.u32 %v647, 4
        %v649 = vand.u32 %v647, 15
        %v650 = vsub.s32 0, %v649
        %v651 = vsel %vm645, %v650, %v649
        %vm652 = vcmp.lt.s32.totalorder %v462, 0
        %v653 = vsub.s32 0, %v462
        %v654 = vsel %vm652, %v653, %v462
        %v655 = vshrl.u32 %v654, 4
        %v656 = vand.u32 %v654, 15
        %v657 = vsub.s32 0, %v656
        %v658 = vsel %vm652, %v657, %v656
        %vm659 = vcmp.ne.s32.totalorder %v469, 0
        %vm660 = vcmp.ne.s32.totalorder %v476, 0
        %vm661 = vcmp.ne.s32.totalorder %v483, 0
        %vm662 = vcmp.ne.s32.totalorder %v490, 0
        %vm663 = vcmp.ne.s32.totalorder %v497, 0
        %vm664 = vcmp.ne.s32.totalorder %v504, 0
        %vm665 = vcmp.ne.s32.totalorder %v511, 0
        %vm666 = vcmp.ne.s32.totalorder %v518, 0
        %vm667 = vcmp.ne.s32.totalorder %v525, 0
        %vm668 = vcmp.ne.s32.totalorder %v532, 0
        %vm669 = vcmp.ne.s32.totalorder %v539, 0
        %vm670 = vcmp.ne.s32.totalorder %v546, 0
        %vm671 = vcmp.ne.s32.totalorder %v553, 0
        %vm672 = vcmp.ne.s32.totalorder %v560, 0
        %vm673 = vcmp.ne.s32.totalorder %v567, 0
        %vm674 = vcmp.ne.s32.totalorder %v574, 0
        %vm675 = vcmp.ne.s32.totalorder %v581, 0
        %vm676 = vcmp.ne.s32.totalorder %v588, 0
        %vm677 = vcmp.ne.s32.totalorder %v595, 0
        %vm678 = vcmp.ne.s32.totalorder %v602, 0
        %vm679 = vcmp.ne.s32.totalorder %v609, 0
        %vm680 = vcmp.ne.s32.totalorder %v616, 0
        %vm681 = vcmp.ne.s32.totalorder %v623, 0
        %vm682 = vcmp.ne.s32.totalorder %v630, 0
        %vm683 = vcmp.ne.s32.totalorder %v637, 0
        %vm684 = vcmp.ne.s32.totalorder %v644, 0
        %vm685 = vcmp.ne.s32.totalorder %v651, 0
        %vm686 = vcmp.ne.s32.totalorder %v658, 0
        %vm687 = vcmp.lt.s32.totalorder %v469, 0
        %vm688 = vcmp.lt.s32.totalorder %v476, 0
        %vm689 = vcmp.lt.s32.totalorder %v483, 0
        %vm690 = vcmp.lt.s32.totalorder %v490, 0
        %vm691 = vcmp.lt.s32.totalorder %v497, 0
        %vm692 = vcmp.lt.s32.totalorder %v504, 0
        %vm693 = vcmp.lt.s32.totalorder %v511, 0
        %vm694 = vcmp.lt.s32.totalorder %v518, 0
        %vm695 = vcmp.lt.s32.totalorder %v525, 0
        %vm696 = vcmp.lt.s32.totalorder %v532, 0
        %vm697 = vcmp.lt.s32.totalorder %v539, 0
        %vm698 = vcmp.lt.s32.totalorder %v546, 0
        %vm699 = vcmp.lt.s32.totalorder %v553, 0
        %vm700 = vcmp.lt.s32.totalorder %v560, 0
        %vm701 = vcmp.lt.s32.totalorder %v567, 0
        %vm702 = vcmp.lt.s32.totalorder %v574, 0
        %vm703 = vcmp.lt.s32.totalorder %v581, 0
        %vm704 = vcmp.lt.s32.totalorder %v588, 0
        %vm705 = vcmp.lt.s32.totalorder %v595, 0
        %vm706 = vcmp.lt.s32.totalorder %v602, 0
        %vm707 = vcmp.lt.s32.totalorder %v609, 0
        %vm708 = vcmp.lt.s32.totalorder %v616, 0
        %vm709 = vcmp.lt.s32.totalorder %v623, 0
        %vm710 = vcmp.lt.s32.totalorder %v630, 0
        %vm711 = vcmp.lt.s32.totalorder %v637, 0
        %vm712 = vcmp.lt.s32.totalorder %v644, 0
        %vm713 = vcmp.lt.s32.totalorder %v651, 0
        %vm714 = vcmp.lt.s32.totalorder %v658, 0
        %vm715 = vmand %vm687, %vm659
        %vm716 = vmand %vm688, %vm660
        %vm717 = vmand %vm689, %vm661
        %vm718 = vmand %vm690, %vm662
        %vm719 = vmand %vm691, %vm663
        %vm720 = vmand %vm692, %vm664
        %vm721 = vmand %vm693, %vm665
        %vm722 = vmand %vm694, %vm666
        %vm723 = vmand %vm695, %vm667
        %vm724 = vmand %vm696, %vm668
        %vm725 = vmand %vm697, %vm669
        %vm726 = vmand %vm698, %vm670
        %vm727 = vmand %vm699, %vm671
        %vm728 = vmand %vm700, %vm672
        %vm729 = vmand %vm701, %vm673
        %vm730 = vmand %vm702, %vm674
        %vm731 = vmand %vm703, %vm675
        %vm732 = vmand %vm704, %vm676
        %vm733 = vmand %vm705, %vm677
        %vm734 = vmand %vm706, %vm678
        %vm735 = vmand %vm707, %vm679
        %vm736 = vmand %vm708, %vm680
        %vm737 = vmand %vm709, %vm681
        %vm738 = vmand %vm710, %vm682
        %vm739 = vmand %vm711, %vm683
        %vm740 = vmand %vm712, %vm684
        %vm741 = vmand %vm713, %vm685
        %vm742 = vmand %vm714, %vm686
        %v743 = vadd.s32 %v469, 16
        %v744 = vadd.s32 %v476, 16
        %v745 = vadd.s32 %v483, 16
        %v746 = vadd.s32 %v490, 16
        %v747 = vadd.s32 %v497, 16
        %v748 = vadd.s32 %v504, 16
        %v749 = vadd.s32 %v511, 16
        %v750 = vadd.s32 %v518, 16
        %v751 = vadd.s32 %v525, 16
        %v752 = vadd.s32 %v532, 16
        %v753 = vadd.s32 %v539, 16
        %v754 = vadd.s32 %v546, 16
        %v755 = vadd.s32 %v553, 16
        %v756 = vadd.s32 %v560, 16
        %v757 = vadd.s32 %v567, 16
        %v758 = vadd.s32 %v574, 16
        %v759 = vadd.s32 %v581, 16
        %v760 = vadd.s32 %v588, 16
        %v761 = vadd.s32 %v595, 16
        %v762 = vadd.s32 %v602, 16
        %v763 = vadd.s32 %v609, 16
        %v764 = vadd.s32 %v616, 16
        %v765 = vadd.s32 %v623, 16
        %v766 = vadd.s32 %v630, 16
        %v767 = vadd.s32 %v637, 16
        %v768 = vadd.s32 %v644, 16
        %v769 = vadd.s32 %v651, 16
        %v770 = vadd.s32 %v658, 16
        %v771 = vsel %vm715, %v743, %v469
        %v772 = vsel %vm716, %v744, %v476
        %v773 = vsel %vm717, %v745, %v483
        %v774 = vsel %vm718, %v746, %v490
        %v775 = vsel %vm719, %v747, %v497
        %v776 = vsel %vm720, %v748, %v504
        %v777 = vsel %vm721, %v749, %v511
        %v778 = vsel %vm722, %v750, %v518
        %v779 = vsel %vm723, %v751, %v525
        %v780 = vsel %vm724, %v752, %v532
        %v781 = vsel %vm725, %v753, %v539
        %v782 = vsel %vm726, %v754, %v546
        %v783 = vsel %vm727, %v755, %v553
        %v784 = vsel %vm728, %v756, %v560
        %v785 = vsel %vm729, %v757, %v567
        %v786 = vsel %vm730, %v758, %v574
        %v787 = vsel %vm731, %v759, %v581
        %v788 = vsel %vm732, %v760, %v588
        %v789 = vsel %vm733, %v761, %v595
        %v790 = vsel %vm734, %v762, %v602
        %v791 = vsel %vm735, %v763, %v609
        %v792 = vsel %vm736, %v764, %v616
        %v793 = vsel %vm737, %v765, %v623
        %v794 = vsel %vm738, %v766, %v630
        %v795 = vsel %vm739, %v767, %v637
        %v796 = vsel %vm740, %v768, %v644
        %v797 = vsel %vm741, %v769, %v651
        %v798 = vsel %vm742, %v770, %v658
        %vm799 = vcmp.lt.s32.totalorder %v771, 14
        %vm800 = vcmp.lt.s32.totalorder %v772, 14
        %vm801 = vcmp.lt.s32.totalorder %v773, 14
        %vm802 = vcmp.lt.s32.totalorder %v774, 14
        %vm803 = vcmp.lt.s32.totalorder %v775, 14
        %vm804 = vcmp.lt.s32.totalorder %v776, 14
        %vm805 = vcmp.lt.s32.totalorder %v777, 14
        %vm806 = vcmp.lt.s32.totalorder %v778, 14
        %vm807 = vcmp.lt.s32.totalorder %v779, 14
        %vm808 = vcmp.lt.s32.totalorder %v780, 14
        %vm809 = vcmp.lt.s32.totalorder %v781, 14
        %vm810 = vcmp.lt.s32.totalorder %v782, 14
        %vm811 = vcmp.lt.s32.totalorder %v783, 14
        %vm812 = vcmp.lt.s32.totalorder %v784, 14
        %vm813 = vcmp.lt.s32.totalorder %v785, 14
        %vm814 = vcmp.lt.s32.totalorder %v786, 14
        %vm815 = vcmp.lt.s32.totalorder %v787, 14
        %vm816 = vcmp.lt.s32.totalorder %v788, 14
        %vm817 = vcmp.lt.s32.totalorder %v789, 14
        %vm818 = vcmp.lt.s32.totalorder %v790, 14
        %vm819 = vcmp.lt.s32.totalorder %v791, 14
        %vm820 = vcmp.lt.s32.totalorder %v792, 14
        %vm821 = vcmp.lt.s32.totalorder %v793, 14
        %vm822 = vcmp.lt.s32.totalorder %v794, 14
        %vm823 = vcmp.lt.s32.totalorder %v795, 14
        %vm824 = vcmp.lt.s32.totalorder %v796, 14
        %vm825 = vcmp.lt.s32.totalorder %v797, 14
        %vm826 = vcmp.lt.s32.totalorder %v798, 14
        %v827 = vld [vmem:[%s376] sm:$0xf]
        %v828 = vld [vmem:[%s376 + $0x4] sm:$0xf]
        %v829 = vld [vmem:[%s376 + $0x8] sm:$0xf]
        %v830 = vld [vmem:[%s376 + $0xc] sm:$0xf]
        %v831 = vld [vmem:[%s376 + $0x10] sm:$0xf]
        %v832 = vld [vmem:[%s376 + $0x14] sm:$0xf]
        %v833 = vld [vmem:[%s376 + $0x18] sm:$0xf]
        %v834 = vld [vmem:[%s376 + $0x1c] sm:$0xf]
        %v835 = vld [vmem:[%s376 + $0x20] sm:$0xf]
        %v836 = vld [vmem:[%s376 + $0x24] sm:$0xf]
        %v837 = vld [vmem:[%s376 + $0x28] sm:$0xf]
        %v838 = vld [vmem:[%s376 + $0x2c] sm:$0xf]
        %v839 = vld [vmem:[%s376 + $0x30] sm:$0xf]
        %v840 = vld [vmem:[%s376 + $0x34] sm:$0xf]
        %v841 = vld [vmem:[%s376 + $0x38] sm:$0xf]
        %v842 = vld [vmem:[%s376 + $0x3c] sm:$0xf]
        %v843 = vld [vmem:[%s376 + $0x40] sm:$0xf]
        %v844 = vld [vmem:[%s376 + $0x44] sm:$0xf]
        %v845 = vld [vmem:[%s376 + $0x48] sm:$0xf]
        %v846 = vld [vmem:[%s376 + $0x4c] sm:$0xf]
        %v847 = vld [vmem:[%s376 + $0x50] sm:$0xf]
        %v848 = vld [vmem:[%s376 + $0x54] sm:$0xf]
        %v849 = vld [vmem:[%s376 + $0x58] sm:$0xf]
        %v850 = vld [vmem:[%s376 + $0x5c] sm:$0xf]
        %v851 = vld [vmem:[%s376 + $0x60] sm:$0xf]
        %v852 = vld [vmem:[%s376 + $0x64] sm:$0xf]
        %v853 = vld [vmem:[%s376 + $0x68] sm:$0xf]
        %v854 = vld [vmem:[%s376 + $0x6c] sm:$0xf]
        %v855 = vunpack.c.l.bf16 %v827
        %v856 = vunpack.c.l.bf16 %v828
        %v857 = vunpack.c.l.bf16 %v829
        %v858 = vunpack.c.l.bf16 %v830
        %v859 = vunpack.c.l.bf16 %v831
        %v860 = vunpack.c.l.bf16 %v832
        %v861 = vunpack.c.l.bf16 %v833
        %v862 = vunpack.c.l.bf16 %v834
        %v863 = vunpack.c.l.bf16 %v835
        %v864 = vunpack.c.l.bf16 %v836
        %v865 = vunpack.c.l.bf16 %v837
        %v866 = vunpack.c.l.bf16 %v838
        %v867 = vunpack.c.l.bf16 %v839
        %v868 = vunpack.c.l.bf16 %v840
        %v869 = vunpack.c.l.bf16 %v841
        %v870 = vunpack.c.l.bf16 %v842
        %v871 = vunpack.c.l.bf16 %v843
        %v872 = vunpack.c.l.bf16 %v844
        %v873 = vunpack.c.l.bf16 %v845
        %v874 = vunpack.c.l.bf16 %v846
        %v875 = vunpack.c.l.bf16 %v847
        %v876 = vunpack.c.l.bf16 %v848
        %v877 = vunpack.c.l.bf16 %v849
        %v878 = vunpack.c.l.bf16 %v850
        %v879 = vunpack.c.l.bf16 %v851
        %v880 = vunpack.c.l.bf16 %v852
        %v881 = vunpack.c.l.bf16 %v853
        %v882 = vunpack.c.l.bf16 %v854
        %v883 = vld [vmem:[%s1] sm:$0x1]
        %v885 = vperm.slane %v883, 0
        %v887 = vmul.f32 %v855, %v885
        %v888 = vmul.f32 %v856, %v885
        %v889 = vmul.f32 %v857, %v885
        %v890 = vmul.f32 %v858, %v885
        %v891 = vmul.f32 %v859, %v885
        %v892 = vmul.f32 %v860, %v885
        %v893 = vmul.f32 %v861, %v885
        %v894 = vmul.f32 %v862, %v885
        %v895 = vmul.f32 %v863, %v885
        %v896 = vmul.f32 %v864, %v885
        %v897 = vmul.f32 %v865, %v885
        %v898 = vmul.f32 %v866, %v885
        %v899 = vmul.f32 %v867, %v885
        %v900 = vmul.f32 %v868, %v885
        %v901 = vmul.f32 %v869, %v885
        %v902 = vmul.f32 %v870, %v885
        %v903 = vmul.f32 %v871, %v885
        %v904 = vmul.f32 %v872, %v885
        %v905 = vmul.f32 %v873, %v885
        %v906 = vmul.f32 %v874, %v885
        %v907 = vmul.f32 %v875, %v885
        %v908 = vmul.f32 %v876, %v885
        %v909 = vmul.f32 %v877, %v885
        %v910 = vmul.f32 %v878, %v885
        %v911 = vmul.f32 %v879, %v885
        %v912 = vmul.f32 %v880, %v885
        %v913 = vmul.f32 %v881, %v885
        %v914 = vmul.f32 %v882, %v885
        %v915 = vld [vmem:[%s2] sm:$0x1]
        %v917 = vperm.slane %v915, 0
        %v919 = vadd.f32 %v887, %v917
        %v920 = vadd.f32 %v888, %v917
        %v921 = vadd.f32 %v889, %v917
        %v922 = vadd.f32 %v890, %v917
        %v923 = vadd.f32 %v891, %v917
        %v924 = vadd.f32 %v892, %v917
        %v925 = vadd.f32 %v893, %v917
        %v926 = vadd.f32 %v894, %v917
        %v927 = vadd.f32 %v895, %v917
        %v928 = vadd.f32 %v896, %v917
        %v929 = vadd.f32 %v897, %v917
        %v930 = vadd.f32 %v898, %v917
        %v931 = vadd.f32 %v899, %v917
        %v932 = vadd.f32 %v900, %v917
        %v933 = vadd.f32 %v901, %v917
        %v934 = vadd.f32 %v902, %v917
        %v935 = vadd.f32 %v903, %v917
        %v936 = vadd.f32 %v904, %v917
        %v937 = vadd.f32 %v905, %v917
        %v938 = vadd.f32 %v906, %v917
        %v939 = vadd.f32 %v907, %v917
        %v940 = vadd.f32 %v908, %v917
        %v941 = vadd.f32 %v909, %v917
        %v942 = vadd.f32 %v910, %v917
        %v943 = vadd.f32 %v911, %v917
        %v944 = vadd.f32 %v912, %v917
        %v945 = vadd.f32 %v913, %v917
        %v946 = vadd.f32 %v914, %v917
        %v947 = vmax.f32 %v919, 0.0
        %v948 = vmax.f32 %v920, 0.0
        %v949 = vmax.f32 %v921, 0.0
        %v950 = vmax.f32 %v922, 0.0
        %v951 = vmax.f32 %v923, 0.0
        %v952 = vmax.f32 %v924, 0.0
        %v953 = vmax.f32 %v925, 0.0
        %v954 = vmax.f32 %v926, 0.0
        %v955 = vmax.f32 %v927, 0.0
        %v956 = vmax.f32 %v928, 0.0
        %v957 = vmax.f32 %v929, 0.0
        %v958 = vmax.f32 %v930, 0.0
        %v959 = vmax.f32 %v931, 0.0
        %v960 = vmax.f32 %v932, 0.0
        %v961 = vmax.f32 %v933, 0.0
        %v962 = vmax.f32 %v934, 0.0
        %v963 = vmax.f32 %v935, 0.0
        %v964 = vmax.f32 %v936, 0.0
        %v965 = vmax.f32 %v937, 0.0
        %v966 = vmax.f32 %v938, 0.0
        %v967 = vmax.f32 %v939, 0.0
        %v968 = vmax.f32 %v940, 0.0
        %v969 = vmax.f32 %v941, 0.0
        %v970 = vmax.f32 %v942, 0.0
        %v971 = vmax.f32 %v943, 0.0
        %v972 = vmax.f32 %v944, 0.0
        %v973 = vmax.f32 %v945, 0.0
        %v974 = vmax.f32 %v946, 0.0
        %v975 = vsel %vm799, 1, 0
        %v976 = vsel %vm800, 1, 0
        %v977 = vsel %vm801, 1, 0
        %v978 = vsel %vm802, 1, 0
        %v979 = vsel %vm803, 1, 0
        %v980 = vsel %vm804, 1, 0
        %v981 = vsel %vm805, 1, 0
        %v982 = vsel %vm806, 1, 0
        %v983 = vsel %vm807, 1, 0
        %v984 = vsel %vm808, 1, 0
        %v985 = vsel %vm809, 1, 0
        %v986 = vsel %vm810, 1, 0
        %v987 = vsel %vm811, 1, 0
        %v988 = vsel %vm812, 1, 0
        %v989 = vsel %vm813, 1, 0
        %v990 = vsel %vm814, 1, 0
        %v991 = vsel %vm815, 1, 0
        %v992 = vsel %vm816, 1, 0
        %v993 = vsel %vm817, 1, 0
        %v994 = vsel %vm818, 1, 0
        %v995 = vsel %vm819, 1, 0
        %v996 = vsel %vm820, 1, 0
        %v997 = vsel %vm821, 1, 0
        %v998 = vsel %vm822, 1, 0
        %v999 = vsel %vm823, 1, 0
        %v1000 = vsel %vm824, 1, 0
        %v1001 = vsel %vm825, 1, 0
        %v1002 = vsel %vm826, 1, 0
        %vm1003 = vcmp.eq.s32.totalorder %v975, 1
        %vm1004 = vcmp.eq.s32.totalorder %v976, 1
        %vm1005 = vcmp.eq.s32.totalorder %v977, 1
        %vm1006 = vcmp.eq.s32.totalorder %v978, 1
        %vm1007 = vcmp.eq.s32.totalorder %v979, 1
        %vm1008 = vcmp.eq.s32.totalorder %v980, 1
        %vm1009 = vcmp.eq.s32.totalorder %v981, 1
        %vm1010 = vcmp.eq.s32.totalorder %v982, 1
        %vm1011 = vcmp.eq.s32.totalorder %v983, 1
        %vm1012 = vcmp.eq.s32.totalorder %v984, 1
        %vm1013 = vcmp.eq.s32.totalorder %v985, 1
        %vm1014 = vcmp.eq.s32.totalorder %v986, 1
        %vm1015 = vcmp.eq.s32.totalorder %v987, 1
        %vm1016 = vcmp.eq.s32.totalorder %v988, 1
        %vm1017 = vcmp.eq.s32.totalorder %v989, 1
        %vm1018 = vcmp.eq.s32.totalorder %v990, 1
        %vm1019 = vcmp.eq.s32.totalorder %v991, 1
        %vm1020 = vcmp.eq.s32.totalorder %v992, 1
        %vm1021 = vcmp.eq.s32.totalorder %v993, 1
        %vm1022 = vcmp.eq.s32.totalorder %v994, 1
        %vm1023 = vcmp.eq.s32.totalorder %v995, 1
        %vm1024 = vcmp.eq.s32.totalorder %v996, 1
        %vm1025 = vcmp.eq.s32.totalorder %v997, 1
        %vm1026 = vcmp.eq.s32.totalorder %v998, 1
        %vm1027 = vcmp.eq.s32.totalorder %v999, 1
        %vm1028 = vcmp.eq.s32.totalorder %v1000, 1
        %vm1029 = vcmp.eq.s32.totalorder %v1001, 1
        %vm1030 = vcmp.eq.s32.totalorder %v1002, 1
        %v1031 = vsel %vm1003, %v947, 0.0
        %v1032 = vsel %vm1004, %v948, 0.0
        %v1033 = vsel %vm1005, %v949, 0.0
        %v1034 = vsel %vm1006, %v950, 0.0
        %v1035 = vsel %vm1007, %v951, 0.0
        %v1036 = vsel %vm1008, %v952, 0.0
        %v1037 = vsel %vm1009, %v953, 0.0
        %v1038 = vsel %vm1010, %v954, 0.0
        %v1039 = vsel %vm1011, %v955, 0.0
        %v1040 = vsel %vm1012, %v956, 0.0
        %v1041 = vsel %vm1013, %v957, 0.0
        %v1042 = vsel %vm1014, %v958, 0.0
        %v1043 = vsel %vm1015, %v959, 0.0
        %v1044 = vsel %vm1016, %v960, 0.0
        %v1045 = vsel %vm1017, %v961, 0.0
        %v1046 = vsel %vm1018, %v962, 0.0
        %v1047 = vsel %vm1019, %v963, 0.0
        %v1048 = vsel %vm1020, %v964, 0.0
        %v1049 = vsel %vm1021, %v965, 0.0
        %v1050 = vsel %vm1022, %v966, 0.0
        %v1051 = vsel %vm1023, %v967, 0.0
        %v1052 = vsel %vm1024, %v968, 0.0
        %v1053 = vsel %vm1025, %v969, 0.0
        %v1054 = vsel %vm1026, %v970, 0.0
        %v1055 = vsel %vm1027, %v971, 0.0
        %v1056 = vsel %vm1028, %v972, 0.0
        %v1057 = vsel %vm1029, %v973, 0.0
        %v1058 = vsel %vm1030, %v974, 0.0
        %1059 = vst [vmem:[#allocation2] sm:$0xff] 0.0
        %1060 = vst [vmem:[#allocation2 + $0x8] sm:$0xff] 0.0
        %1061 = vst [vmem:[#allocation2 + $0x10] sm:$0xff] 0.0
        %1062 = vst [vmem:[#allocation2 + $0x18] sm:$0xff] %v1031
        %1063 = vst [vmem:[#allocation2 + $0x20] sm:$0xff] %v1032
        %1064 = vst [vmem:[#allocation2 + $0x28] sm:$0xff] %v1033
        %1065 = vst [vmem:[#allocation2 + $0x30] sm:$0xff] %v1034
        %1066 = vst [vmem:[#allocation2 + $0x38] sm:$0xff] %v1035
        %1067 = vst [vmem:[#allocation2 + $0x40] sm:$0xff] %v1036
        %1068 = vst [vmem:[#allocation2 + $0x48] sm:$0xff] %v1037
        %1069 = vst [vmem:[#allocation2 + $0x50] sm:$0xff] %v1038
        %1070 = vst [vmem:[#allocation2 + $0x58] sm:$0xff] %v1039
        %1071 = vst [vmem:[#allocation2 + $0x60] sm:$0xff] %v1040
        %1072 = vst [vmem:[#allocation2 + $0x68] sm:$0xff] %v1041
        %1073 = vst [vmem:[#allocation2 + $0x70] sm:$0xff] %v1042
        %1074 = vst [vmem:[#allocation2 + $0x78] sm:$0xff] %v1043
        %1075 = vst [vmem:[#allocation2 + $0x80] sm:$0xff] %v1044
        %1076 = vst [vmem:[#allocation2 + $0x88] sm:$0xff] %v1045
        %1077 = vst [vmem:[#allocation2 + $0x90] sm:$0xff] %v1046
        %1078 = vst [vmem:[#allocation2 + $0x98] sm:$0xff] %v1047
        %1079 = vst [vmem:[#allocation2 + $0xa0] sm:$0xff] %v1048
        %1080 = vst [vmem:[#allocation2 + $0xa8] sm:$0xff] %v1049
        %1081 = vst [vmem:[#allocation2 + $0xb0] sm:$0xff] %v1050
        %1082 = vst [vmem:[#allocation2 + $0xb8] sm:$0xff] %v1051
        %1083 = vst [vmem:[#allocation2 + $0xc0] sm:$0xff] %v1052
        %1084 = vst [vmem:[#allocation2 + $0xc8] sm:$0xff] %v1053
        %1085 = vst [vmem:[#allocation2 + $0xd0] sm:$0xff] %v1054
        %1086 = vst [vmem:[#allocation2 + $0xd8] sm:$0xff] %v1055
        %1087 = vst [vmem:[#allocation2 + $0xe0] sm:$0xff] %v1056
        %1088 = vst [vmem:[#allocation2 + $0xe8] sm:$0xff] %v1057
        %1089 = vst [vmem:[#allocation2 + $0xf0] sm:$0xff] %v1058
        %1090 = vst [vmem:[#allocation2 + $0xf8] sm:$0xff] 0.0
        %1091 = vst [vmem:[#allocation2 + $0x100] sm:$0xff] 0.0
        %1092 = vst [vmem:[#allocation2 + $0x108] sm:$0xff] 0.0
        %v1093 = vld [vmem:[#allocation2 + $0x7] sm:$0xff]
        %v1094 = vld [vmem:[#allocation2 + $0xf] sm:$0xff]
        %v1095 = vld [vmem:[#allocation2 + $0x17] sm:$0xff]
        %v1096 = vld [vmem:[#allocation2 + $0x1f] sm:$0xff]
        %v1097 = vld [vmem:[#allocation2 + $0x27] sm:$0xff]
        %v1098 = vld [vmem:[#allocation2 + $0x2f] sm:$0xff]
        %v1099 = vld [vmem:[#allocation2 + $0x37] sm:$0xff]
        %v1100 = vld [vmem:[#allocation2 + $0x3f] sm:$0xff]
        %v1101 = vld [vmem:[#allocation2 + $0x47] sm:$0xff]
        %v1102 = vld [vmem:[#allocation2 + $0x4f] sm:$0xff]
        %v1103 = vld [vmem:[#allocation2 + $0x57] sm:$0xff]
        %v1104 = vld [vmem:[#allocation2 + $0x5f] sm:$0xff]
        %v1105 = vld [vmem:[#allocation2 + $0x67] sm:$0xff]
        %v1106 = vld [vmem:[#allocation2 + $0x6f] sm:$0xff]
        %v1107 = vld [vmem:[#allocation2 + $0x77] sm:$0xff]
        %v1108 = vld [vmem:[#allocation2 + $0x7f] sm:$0xff]
        %v1109 = vld [vmem:[#allocation2 + $0x87] sm:$0xff]
        %v1110 = vld [vmem:[#allocation2 + $0x8f] sm:$0xff]
        %v1111 = vld [vmem:[#allocation2 + $0x97] sm:$0xff]
        %v1112 = vld [vmem:[#allocation2 + $0x9f] sm:$0xff]
        %v1113 = vld [vmem:[#allocation2 + $0xa7] sm:$0xff]
        %v1114 = vld [vmem:[#allocation2 + $0xaf] sm:$0xff]
        %v1115 = vld [vmem:[#allocation2 + $0xb7] sm:$0xff]
        %v1116 = vld [vmem:[#allocation2 + $0xbf] sm:$0xff]
        %v1117 = vld [vmem:[#allocation2 + $0xc7] sm:$0xff]
        %v1118 = vld [vmem:[#allocation2 + $0xcf] sm:$0xff]
        %v1119 = vld [vmem:[#allocation2 + $0xd7] sm:$0xff]
        %v1120 = vld [vmem:[#allocation2 + $0xdf] sm:$0xff]
        %v1121 = vpack.c.bf16 %v1094, %v1093
        %v1122 = vpack.c.bf16 %v1096, %v1095
        %v1123 = vpack.c.bf16 %v1098, %v1097
        %v1124 = vpack.c.bf16 %v1100, %v1099
        %v1125 = vpack.c.bf16 %v1102, %v1101
        %v1126 = vpack.c.bf16 %v1104, %v1103
        %v1127 = vpack.c.bf16 %v1106, %v1105
        %v1128 = vpack.c.bf16 %v1108, %v1107
        %v1129 = vpack.c.bf16 %v1110, %v1109
        %v1130 = vpack.c.bf16 %v1112, %v1111
        %v1131 = vpack.c.bf16 %v1114, %v1113
        %v1132 = vpack.c.bf16 %v1116, %v1115
        %v1133 = vpack.c.bf16 %v1118, %v1117
        %v1134 = vpack.c.bf16 %v1120, %v1119
        %v1135 = vld [vmem:[%s418] sm:$0xf]
        %v1136 = vld [vmem:[%s418 + $0x4] sm:$0xf]
        %v1137 = vld [vmem:[%s418 + $0x8] sm:$0xf]
        %v1138 = vld [vmem:[%s418 + $0xc] sm:$0xf]
        %v1139 = vld [vmem:[%s418 + $0x10] sm:$0xf]
        %v1140 = vld [vmem:[%s418 + $0x14] sm:$0xf]
        %v1141 = vld [vmem:[%s418 + $0x18] sm:$0xf]
        %v1142 = vld [vmem:[%s418 + $0x1c] sm:$0xf]
        %v1143 = vld [vmem:[%s418 + $0x20] sm:$0xf]
        %v1144 = vld [vmem:[%s418 + $0x24] sm:$0xf]
        %v1145 = vld [vmem:[%s418 + $0x28] sm:$0xf]
        %v1146 = vld [vmem:[%s418 + $0x2c] sm:$0xf]
        %v1147 = vld [vmem:[%s418 + $0x30] sm:$0xf]
        %v1148 = vld [vmem:[%s418 + $0x34] sm:$0xf]
        %v1149 = vld [vmem:[%s418 + $0x38] sm:$0xf]
        %v1150 = vld [vmem:[%s418 + $0x3c] sm:$0xf]
        %v1151 = vld [vmem:[#allocation2 + $0x8] sm:$0xff]
        %v1152 = vld [vmem:[#allocation2 + $0x10] sm:$0xff]
        %v1153 = vld [vmem:[#allocation2 + $0x18] sm:$0xff]
        %v1154 = vld [vmem:[#allocation2 + $0x20] sm:$0xff]
        %v1155 = vld [vmem:[#allocation2 + $0x28] sm:$0xff]
        %v1156 = vld [vmem:[#allocation2 + $0x30] sm:$0xff]
        %v1157 = vld [vmem:[#allocation2 + $0x38] sm:$0xff]
        %v1158 = vld [vmem:[#allocation2 + $0x40] sm:$0xff]
        %v1159 = vld [vmem:[#allocation2 + $0x48] sm:$0xff]
        %v1160 = vld [vmem:[#allocation2 + $0x50] sm:$0xff]
        %v1161 = vld [vmem:[#allocation2 + $0x58] sm:$0xff]
        %v1162 = vld [vmem:[#allocation2 + $0x60] sm:$0xff]
        %v1163 = vld [vmem:[#allocation2 + $0x68] sm:$0xff]
        %v1164 = vld [vmem:[#allocation2 + $0x70] sm:$0xff]
        %v1165 = vld [vmem:[#allocation2 + $0x78] sm:$0xff]
        %v1166 = vld [vmem:[#allocation2 + $0x80] sm:$0xff]
        %v1167 = vld [vmem:[#allocation2 + $0x88] sm:$0xff]
        %v1168 = vld [vmem:[#allocation2 + $0x90] sm:$0xff]
        %v1169 = vld [vmem:[#allocation2 + $0x98] sm:$0xff]
        %v1170 = vld [vmem:[#allocation2 + $0xa0] sm:$0xff]
        %v1171 = vld [vmem:[#allocation2 + $0xa8] sm:$0xff]
        %v1172 = vld [vmem:[#allocation2 + $0xb0] sm:$0xff]
        %v1173 = vld [vmem:[#allocation2 + $0xb8] sm:$0xff]
        %v1174 = vld [vmem:[#allocation2 + $0xc0] sm:$0xff]
        %v1175 = vld [vmem:[#allocation2 + $0xc8] sm:$0xff]
        %v1176 = vld [vmem:[#allocation2 + $0xd0] sm:$0xff]
        %v1177 = vld [vmem:[#allocation2 + $0xd8] sm:$0xff]
        %v1178 = vld [vmem:[#allocation2 + $0xe0] sm:$0xff]
        %v1179 = vpack.c.bf16 %v1152, %v1151
        %v1180 = vpack.c.bf16 %v1154, %v1153
        %v1181 = vpack.c.bf16 %v1156, %v1155
        %v1182 = vpack.c.bf16 %v1158, %v1157
        %v1183 = vpack.c.bf16 %v1160, %v1159
        %v1184 = vpack.c.bf16 %v1162, %v1161
        %v1185 = vpack.c.bf16 %v1164, %v1163
        %v1186 = vpack.c.bf16 %v1166, %v1165
        %v1187 = vpack.c.bf16 %v1168, %v1167
        %v1188 = vpack.c.bf16 %v1170, %v1169
        %v1189 = vpack.c.bf16 %v1172, %v1171
        %v1190 = vpack.c.bf16 %v1174, %v1173
        %v1191 = vpack.c.bf16 %v1176, %v1175
        %v1192 = vpack.c.bf16 %v1178, %v1177
        %s1193 = scalar_lea.vmem %s418, 64
        %v1194 = vld [vmem:[%s1193] sm:$0xf]
        %v1195 = vld [vmem:[%s1193 + $0x4] sm:$0xf]
        %v1196 = vld [vmem:[%s1193 + $0x8] sm:$0xf]
        %v1197 = vld [vmem:[%s1193 + $0xc] sm:$0xf]
        %v1198 = vld [vmem:[%s1193 + $0x10] sm:$0xf]
        %v1199 = vld [vmem:[%s1193 + $0x14] sm:$0xf]
        %v1200 = vld [vmem:[%s1193 + $0x18] sm:$0xf]
        %v1201 = vld [vmem:[%s1193 + $0x1c] sm:$0xf]
        %v1202 = vld [vmem:[%s1193 + $0x20] sm:$0xf]
        %v1203 = vld [vmem:[%s1193 + $0x24] sm:$0xf]
        %v1204 = vld [vmem:[%s1193 + $0x28] sm:$0xf]
        %v1205 = vld [vmem:[%s1193 + $0x2c] sm:$0xf]
        %v1206 = vld [vmem:[%s1193 + $0x30] sm:$0xf]
        %v1207 = vld [vmem:[%s1193 + $0x34] sm:$0xf]
        %v1208 = vld [vmem:[%s1193 + $0x38] sm:$0xf]
        %v1209 = vld [vmem:[%s1193 + $0x3c] sm:$0xf]
        %v1226 = vunpack.c.l.b16 %v1194
        %v1227 = vunpack.c.l.b16 %v1195
        %v1228 = vunpack.c.l.b16 %v1196
        %v1229 = vunpack.c.l.b16 %v1197
        %v1230 = vunpack.c.l.b16 %v1198
        %v1231 = vunpack.c.l.b16 %v1199
        %v1232 = vunpack.c.l.b16 %v1200
        %v1233 = vunpack.c.l.b16 %v1201
        %v1234 = vunpack.c.l.b16 %v1202
        %v1235 = vunpack.c.l.b16 %v1203
        %v1236 = vunpack.c.l.b16 %v1204
        %v1237 = vunpack.c.l.b16 %v1205
        %v1238 = vunpack.c.l.b16 %v1206
        %v1239 = vunpack.c.l.b16 %v1207
        %v1240 = vunpack.c.l.b16 %v1208
        %v1241 = vunpack.c.l.b16 %v1209
        %v1242 = vpack.c.b16 %v1227, %v1226
        %v1243 = vpack.c.b16 %v1229, %v1228
        %v1244 = vpack.c.b16 %v1231, %v1230
        %v1245 = vpack.c.b16 %v1233, %v1232
        %v1246 = vpack.c.b16 %v1235, %v1234
        %v1247 = vpack.c.b16 %v1237, %v1236
        %v1248 = vpack.c.b16 %v1239, %v1238
        %v1249 = vpack.c.b16 %v1241, %v1240
        %1258 = vmatpush.bf16.msra.mxu0 %v1249
        %1259 = vmatpush.bf16.msra.mxu0 %v1248
        %1260 = vmatpush.bf16.msra.mxu0 %v1247
        %1261 = vmatpush.bf16.msra.mxu0 %v1246
        %1262 = vmatpush.bf16.msra.mxu0 %v1245
        %1263 = vmatpush.bf16.msra.mxu0 %v1244
        %1264 = vmatpush.bf16.msra.mxu0 %v1243
        %1265 = vmatpush.bf16.msra.mxu0 %v1242
        %1266 = vmatmul.bf16.gmra.mxu0 %v1179
        %v1267 = vpop.f32.mrf.mxu0
        %v1268 = vadd.f32 0.0, %v1267
        %v1269 = vpop.f32.mrf.mxu0
        %v1270 = vadd.f32 0.0, %v1269
        %1271 = vmatmul.bf16.gmra.mxu0 %v1180
        %v1272 = vpop.f32.mrf.mxu0
        %v1273 = vadd.f32 0.0, %v1272
        %v1274 = vpop.f32.mrf.mxu0
        %v1275 = vadd.f32 0.0, %v1274
        %1276 = vmatmul.bf16.gmra.mxu0 %v1181
        %v1277 = vpop.f32.mrf.mxu0
        %v1278 = vadd.f32 0.0, %v1277
        %v1279 = vpop.f32.mrf.mxu0
        %v1280 = vadd.f32 0.0, %v1279
        %1281 = vmatmul.bf16.gmra.mxu0 %v1182
        %v1282 = vpop.f32.mrf.mxu0
        %v1283 = vadd.f32 0.0, %v1282
        %v1284 = vpop.f32.mrf.mxu0
        %v1285 = vadd.f32 0.0, %v1284
        %1286 = vmatmul.bf16.gmra.mxu0 %v1183
        %v1287 = vpop.f32.mrf.mxu0
        %v1288 = vadd.f32 0.0, %v1287
        %v1289 = vpop.f32.mrf.mxu0
        %v1290 = vadd.f32 0.0, %v1289
        %1291 = vmatmul.bf16.gmra.mxu0 %v1184
        %v1292 = vpop.f32.mrf.mxu0
        %v1293 = vadd.f32 0.0, %v1292
        %v1294 = vpop.f32.mrf.mxu0
        %v1295 = vadd.f32 0.0, %v1294
        %1296 = vmatmul.bf16.gmra.mxu0 %v1185
        %v1297 = vpop.f32.mrf.mxu0
        %v1298 = vadd.f32 0.0, %v1297
        %v1299 = vpop.f32.mrf.mxu0
        %v1300 = vadd.f32 0.0, %v1299
        %1301 = vmatmul.bf16.gmra.mxu0 %v1186
        %v1302 = vpop.f32.mrf.mxu0
        %v1303 = vadd.f32 0.0, %v1302
        %v1304 = vpop.f32.mrf.mxu0
        %v1305 = vadd.f32 0.0, %v1304
        %1306 = vmatmul.bf16.gmra.mxu0 %v1187
        %v1307 = vpop.f32.mrf.mxu0
        %v1308 = vadd.f32 0.0, %v1307
        %v1309 = vpop.f32.mrf.mxu0
        %v1310 = vadd.f32 0.0, %v1309
        %1311 = vmatmul.bf16.gmra.mxu0 %v1188
        %v1312 = vpop.f32.mrf.mxu0
        %v1313 = vadd.f32 0.0, %v1312
        %v1314 = vpop.f32.mrf.mxu0
        %v1315 = vadd.f32 0.0, %v1314
        %1316 = vmatmul.bf16.gmra.mxu0 %v1189
        %v1317 = vpop.f32.mrf.mxu0
        %v1318 = vadd.f32 0.0, %v1317
        %v1319 = vpop.f32.mrf.mxu0
        %v1320 = vadd.f32 0.0, %v1319
        %1321 = vmatmul.bf16.gmra.mxu0 %v1190
        %v1322 = vpop.f32.mrf.mxu0
        %v1323 = vadd.f32 0.0, %v1322
        %v1324 = vpop.f32.mrf.mxu0
        %v1325 = vadd.f32 0.0, %v1324
        %1326 = vmatmul.bf16.gmra.mxu0 %v1191
        %v1327 = vpop.f32.mrf.mxu0
        %v1328 = vadd.f32 0.0, %v1327
        %v1329 = vpop.f32.mrf.mxu0
        %v1330 = vadd.f32 0.0, %v1329
        %1331 = vmatmul.bf16.gmra.mxu0 %v1192
        %v1332 = vpop.f32.mrf.mxu0
        %v1333 = vadd.f32 0.0, %v1332
        %v1334 = vpop.f32.mrf.mxu0
        %v1335 = vadd.f32 0.0, %v1334
        %1336 = vdwg.mxu0
        %v1353 = vunpack.c.l.b16 %v1135
        %v1354 = vunpack.c.l.b16 %v1136
        %v1355 = vunpack.c.l.b16 %v1137
        %v1356 = vunpack.c.l.b16 %v1138
        %v1357 = vunpack.c.l.b16 %v1139
        %v1358 = vunpack.c.l.b16 %v1140
        %v1359 = vunpack.c.l.b16 %v1141
        %v1360 = vunpack.c.l.b16 %v1142
        %v1361 = vunpack.c.l.b16 %v1143
        %v1362 = vunpack.c.l.b16 %v1144
        %v1363 = vunpack.c.l.b16 %v1145
        %v1364 = vunpack.c.l.b16 %v1146
        %v1365 = vunpack.c.l.b16 %v1147
        %v1366 = vunpack.c.l.b16 %v1148
        %v1367 = vunpack.c.l.b16 %v1149
        %v1368 = vunpack.c.l.b16 %v1150
        %v1369 = vpack.c.b16 %v1354, %v1353
        %v1370 = vpack.c.b16 %v1356, %v1355
        %v1371 = vpack.c.b16 %v1358, %v1357
        %v1372 = vpack.c.b16 %v1360, %v1359
        %v1373 = vpack.c.b16 %v1362, %v1361
        %v1374 = vpack.c.b16 %v1364, %v1363
        %v1375 = vpack.c.b16 %v1366, %v1365
        %v1376 = vpack.c.b16 %v1368, %v1367
        %1385 = vmatpush.bf16.msra.mxu0 %v1376
        %1386 = vmatpush.bf16.msra.mxu0 %v1375
        %1387 = vmatpush.bf16.msra.mxu0 %v1374
        %1388 = vmatpush.bf16.msra.mxu0 %v1373
        %1389 = vmatpush.bf16.msra.mxu0 %v1372
        %1390 = vmatpush.bf16.msra.mxu0 %v1371
        %1391 = vmatpush.bf16.msra.mxu0 %v1370
        %1392 = vmatpush.bf16.msra.mxu0 %v1369
        %1393 = vmatmul.bf16.gmra.mxu0 %v1121
        %v1394 = vpop.f32.mrf.mxu0
        %v1395 = vadd.f32 %v1268, %v1394
        %v1396 = vpop.f32.mrf.mxu0
        %v1397 = vadd.f32 %v1270, %v1396
        %1398 = vmatmul.bf16.gmra.mxu0 %v1122
        %v1399 = vpop.f32.mrf.mxu0
        %v1400 = vadd.f32 %v1273, %v1399
        %v1401 = vpop.f32.mrf.mxu0
        %v1402 = vadd.f32 %v1275, %v1401
        %1403 = vmatmul.bf16.gmra.mxu0 %v1123
        %v1404 = vpop.f32.mrf.mxu0
        %v1405 = vadd.f32 %v1278, %v1404
        %v1406 = vpop.f32.mrf.mxu0
        %v1407 = vadd.f32 %v1280, %v1406
        %1408 = vmatmul.bf16.gmra.mxu0 %v1124
        %v1409 = vpop.f32.mrf.mxu0
        %v1410 = vadd.f32 %v1283, %v1409
        %v1411 = vpop.f32.mrf.mxu0
        %v1412 = vadd.f32 %v1285, %v1411
        %1413 = vmatmul.bf16.gmra.mxu0 %v1125
        %v1414 = vpop.f32.mrf.mxu0
        %v1415 = vadd.f32 %v1288, %v1414
        %v1416 = vpop.f32.mrf.mxu0
        %v1417 = vadd.f32 %v1290, %v1416
        %1418 = vmatmul.bf16.gmra.mxu0 %v1126
        %v1419 = vpop.f32.mrf.mxu0
        %v1420 = vadd.f32 %v1293, %v1419
        %v1421 = vpop.f32.mrf.mxu0
        %v1422 = vadd.f32 %v1295, %v1421
        %1423 = vmatmul.bf16.gmra.mxu0 %v1127
        %v1424 = vpop.f32.mrf.mxu0
        %v1425 = vadd.f32 %v1298, %v1424
        %v1426 = vpop.f32.mrf.mxu0
        %v1427 = vadd.f32 %v1300, %v1426
        %1428 = vmatmul.bf16.gmra.mxu0 %v1128
        %v1429 = vpop.f32.mrf.mxu0
        %v1430 = vadd.f32 %v1303, %v1429
        %v1431 = vpop.f32.mrf.mxu0
        %v1432 = vadd.f32 %v1305, %v1431
        %1433 = vmatmul.bf16.gmra.mxu0 %v1129
        %v1434 = vpop.f32.mrf.mxu0
        %v1435 = vadd.f32 %v1308, %v1434
        %v1436 = vpop.f32.mrf.mxu0
        %v1437 = vadd.f32 %v1310, %v1436
        %1438 = vmatmul.bf16.gmra.mxu0 %v1130
        %v1439 = vpop.f32.mrf.mxu0
        %v1440 = vadd.f32 %v1313, %v1439
        %v1441 = vpop.f32.mrf.mxu0
        %v1442 = vadd.f32 %v1315, %v1441
        %1443 = vmatmul.bf16.gmra.mxu0 %v1131
        %v1444 = vpop.f32.mrf.mxu0
        %v1445 = vadd.f32 %v1318, %v1444
        %v1446 = vpop.f32.mrf.mxu0
        %v1447 = vadd.f32 %v1320, %v1446
        %1448 = vmatmul.bf16.gmra.mxu0 %v1132
        %v1449 = vpop.f32.mrf.mxu0
        %v1450 = vadd.f32 %v1323, %v1449
        %v1451 = vpop.f32.mrf.mxu0
        %v1452 = vadd.f32 %v1325, %v1451
        %1453 = vmatmul.bf16.gmra.mxu0 %v1133
        %v1454 = vpop.f32.mrf.mxu0
        %v1455 = vadd.f32 %v1328, %v1454
        %v1456 = vpop.f32.mrf.mxu0
        %v1457 = vadd.f32 %v1330, %v1456
        %1458 = vmatmul.bf16.gmra.mxu0 %v1134
        %v1459 = vpop.f32.mrf.mxu0
        %v1460 = vadd.f32 %v1333, %v1459
        %v1461 = vpop.f32.mrf.mxu0
        %v1462 = vadd.f32 %v1335, %v1461
        %1463 = vdwg.mxu0
        %v1464 = vld [vmem:[#allocation2 + $0x9] sm:$0xff]
        %v1465 = vld [vmem:[#allocation2 + $0x11] sm:$0xff]
        %v1466 = vld [vmem:[#allocation2 + $0x19] sm:$0xff]
        %v1467 = vld [vmem:[#allocation2 + $0x21] sm:$0xff]
        %v1468 = vld [vmem:[#allocation2 + $0x29] sm:$0xff]
        %v1469 = vld [vmem:[#allocation2 + $0x31] sm:$0xff]
        %v1470 = vld [vmem:[#allocation2 + $0x39] sm:$0xff]
        %v1471 = vld [vmem:[#allocation2 + $0x41] sm:$0xff]
        %v1472 = vld [vmem:[#allocation2 + $0x49] sm:$0xff]
        %v1473 = vld [vmem:[#allocation2 + $0x51] sm:$0xff]
        %v1474 = vld [vmem:[#allocation2 + $0x59] sm:$0xff]
        %v1475 = vld [vmem:[#allocation2 + $0x61] sm:$0xff]
        %v1476 = vld [vmem:[#allocation2 + $0x69] sm:$0xff]
        %v1477 = vld [vmem:[#allocation2 + $0x71] sm:$0xff]
        %v1478 = vld [vmem:[#allocation2 + $0x79] sm:$0xff]
        %v1479 = vld [vmem:[#allocation2 + $0x81] sm:$0xff]
        %v1480 = vld [vmem:[#allocation2 + $0x89] sm:$0xff]
        %v1481 = vld [vmem:[#allocation2 + $0x91] sm:$0xff]
        %v1482 = vld [vmem:[#allocation2 + $0x99] sm:$0xff]
        %v1483 = vld [vmem:[#allocation2 + $0xa1] sm:$0xff]
        %v1484 = vld [vmem:[#allocation2 + $0xa9] sm:$0xff]
        %v1485 = vld [vmem:[#allocation2 + $0xb1] sm:$0xff]
        %v1486 = vld [vmem:[#allocation2 + $0xb9] sm:$0xff]
        %v1487 = vld [vmem:[#allocation2 + $0xc1] sm:$0xff]
        %v1488 = vld [vmem:[#allocation2 + $0xc9] sm:$0xff]
        %v1489 = vld [vmem:[#allocation2 + $0xd1] sm:$0xff]
        %v1490 = vld [vmem:[#allocation2 + $0xd9] sm:$0xff]
        %v1491 = vld [vmem:[#allocation2 + $0xe1] sm:$0xff]
        %v1492 = vpack.c.bf16 %v1465, %v1464
        %v1493 = vpack.c.bf16 %v1467, %v1466
        %v1494 = vpack.c.bf16 %v1469, %v1468
        %v1495 = vpack.c.bf16 %v1471, %v1470
        %v1496 = vpack.c.bf16 %v1473, %v1472
        %v1497 = vpack.c.bf16 %v1475, %v1474
        %v1498 = vpack.c.bf16 %v1477, %v1476
        %v1499 = vpack.c.bf16 %v1479, %v1478
        %v1500 = vpack.c.bf16 %v1481, %v1480
        %v1501 = vpack.c.bf16 %v1483, %v1482
        %v1502 = vpack.c.bf16 %v1485, %v1484
        %v1503 = vpack.c.bf16 %v1487, %v1486
        %v1504 = vpack.c.bf16 %v1489, %v1488
        %v1505 = vpack.c.bf16 %v1491, %v1490
        %s1506 = scalar_lea.vmem %s418, 128
        %v1507 = vld [vmem:[%s1506] sm:$0xf]
        %v1508 = vld [vmem:[%s1506 + $0x4] sm:$0xf]
        %v1509 = vld [vmem:[%s1506 + $0x8] sm:$0xf]
        %v1510 = vld [vmem:[%s1506 + $0xc] sm:$0xf]
        %v1511 = vld [vmem:[%s1506 + $0x10] sm:$0xf]
        %v1512 = vld [vmem:[%s1506 + $0x14] sm:$0xf]
        %v1513 = vld [vmem:[%s1506 + $0x18] sm:$0xf]
        %v1514 = vld [vmem:[%s1506 + $0x1c] sm:$0xf]
        %v1515 = vld [vmem:[%s1506 + $0x20] sm:$0xf]
        %v1516 = vld [vmem:[%s1506 + $0x24] sm:$0xf]
        %v1517 = vld [vmem:[%s1506 + $0x28] sm:$0xf]
        %v1518 = vld [vmem:[%s1506 + $0x2c] sm:$0xf]
        %v1519 = vld [vmem:[%s1506 + $0x30] sm:$0xf]
        %v1520 = vld [vmem:[%s1506 + $0x34] sm:$0xf]
        %v1521 = vld [vmem:[%s1506 + $0x38] sm:$0xf]
        %v1522 = vld [vmem:[%s1506 + $0x3c] sm:$0xf]
        %v1539 = vunpack.c.l.b16 %v1507
        %v1540 = vunpack.c.l.b16 %v1508
        %v1541 = vunpack.c.l.b16 %v1509
        %v1542 = vunpack.c.l.b16 %v1510
        %v1543 = vunpack.c.l.b16 %v1511
        %v1544 = vunpack.c.l.b16 %v1512
        %v1545 = vunpack.c.l.b16 %v1513
        %v1546 = vunpack.c.l.b16 %v1514
        %v1547 = vunpack.c.l.b16 %v1515
        %v1548 = vunpack.c.l.b16 %v1516
        %v1549 = vunpack.c.l.b16 %v1517
        %v1550 = vunpack.c.l.b16 %v1518
        %v1551 = vunpack.c.l.b16 %v1519
        %v1552 = vunpack.c.l.b16 %v1520
        %v1553 = vunpack.c.l.b16 %v1521
        %v1554 = vunpack.c.l.b16 %v1522
        %v1555 = vpack.c.b16 %v1540, %v1539
        %v1556 = vpack.c.b16 %v1542, %v1541
        %v1557 = vpack.c.b16 %v1544, %v1543
        %v1558 = vpack.c.b16 %v1546, %v1545
        %v1559 = vpack.c.b16 %v1548, %v1547
        %v1560 = vpack.c.b16 %v1550, %v1549
        %v1561 = vpack.c.b16 %v1552, %v1551
        %v1562 = vpack.c.b16 %v1554, %v1553
        %1571 = vmatpush.bf16.msra.mxu0 %v1562
        %1572 = vmatpush.bf16.msra.mxu0 %v1561
        %1573 = vmatpush.bf16.msra.mxu0 %v1560
        %1574 = vmatpush.bf16.msra.mxu0 %v1559
        %1575 = vmatpush.bf16.msra.mxu0 %v1558
        %1576 = vmatpush.bf16.msra.mxu0 %v1557
        %1577 = vmatpush.bf16.msra.mxu0 %v1556
        %1578 = vmatpush.bf16.msra.mxu0 %v1555
        %1579 = vmatmul.bf16.gmra.mxu0 %v1492
        %v1580 = vpop.f32.mrf.mxu0
        %v1581 = vadd.f32 0.0, %v1580
        %v1582 = vpop.f32.mrf.mxu0
        %v1583 = vadd.f32 0.0, %v1582
        %1584 = vmatmul.bf16.gmra.mxu0 %v1493
        %v1585 = vpop.f32.mrf.mxu0
        %v1586 = vadd.f32 0.0, %v1585
        %v1587 = vpop.f32.mrf.mxu0
        %v1588 = vadd.f32 0.0, %v1587
        %1589 = vmatmul.bf16.gmra.mxu0 %v1494
        %v1590 = vpop.f32.mrf.mxu0
        %v1591 = vadd.f32 0.0, %v1590
        %v1592 = vpop.f32.mrf.mxu0
        %v1593 = vadd.f32 0.0, %v1592
        %1594 = vmatmul.bf16.gmra.mxu0 %v1495
        %v1595 = vpop.f32.mrf.mxu0
        %v1596 = vadd.f32 0.0, %v1595
        %v1597 = vpop.f32.mrf.mxu0
        %v1598 = vadd.f32 0.0, %v1597
        %1599 = vmatmul.bf16.gmra.mxu0 %v1496
        %v1600 = vpop.f32.mrf.mxu0
        %v1601 = vadd.f32 0.0, %v1600
        %v1602 = vpop.f32.mrf.mxu0
        %v1603 = vadd.f32 0.0, %v1602
        %1604 = vmatmul.bf16.gmra.mxu0 %v1497
        %v1605 = vpop.f32.mrf.mxu0
        %v1606 = vadd.f32 0.0, %v1605
        %v1607 = vpop.f32.mrf.mxu0
        %v1608 = vadd.f32 0.0, %v1607
        %1609 = vmatmul.bf16.gmra.mxu0 %v1498
        %v1610 = vpop.f32.mrf.mxu0
        %v1611 = vadd.f32 0.0, %v1610
        %v1612 = vpop.f32.mrf.mxu0
        %v1613 = vadd.f32 0.0, %v1612
        %1614 = vmatmul.bf16.gmra.mxu0 %v1499
        %v1615 = vpop.f32.mrf.mxu0
        %v1616 = vadd.f32 0.0, %v1615
        %v1617 = vpop.f32.mrf.mxu0
        %v1618 = vadd.f32 0.0, %v1617
        %1619 = vmatmul.bf16.gmra.mxu0 %v1500
        %v1620 = vpop.f32.mrf.mxu0
        %v1621 = vadd.f32 0.0, %v1620
        %v1622 = vpop.f32.mrf.mxu0
        %v1623 = vadd.f32 0.0, %v1622
        %1624 = vmatmul.bf16.gmra.mxu0 %v1501
        %v1625 = vpop.f32.mrf.mxu0
        %v1626 = vadd.f32 0.0, %v1625
        %v1627 = vpop.f32.mrf.mxu0
        %v1628 = vadd.f32 0.0, %v1627
        %1629 = vmatmul.bf16.gmra.mxu0 %v1502
        %v1630 = vpop.f32.mrf.mxu0
        %v1631 = vadd.f32 0.0, %v1630
        %v1632 = vpop.f32.mrf.mxu0
        %v1633 = vadd.f32 0.0, %v1632
        %1634 = vmatmul.bf16.gmra.mxu0 %v1503
        %v1635 = vpop.f32.mrf.mxu0
        %v1636 = vadd.f32 0.0, %v1635
        %v1637 = vpop.f32.mrf.mxu0
        %v1638 = vadd.f32 0.0, %v1637
        %1639 = vmatmul.bf16.gmra.mxu0 %v1504
        %v1640 = vpop.f32.mrf.mxu0
        %v1641 = vadd.f32 0.0, %v1640
        %v1642 = vpop.f32.mrf.mxu0
        %v1643 = vadd.f32 0.0, %v1642
        %1644 = vmatmul.bf16.gmra.mxu0 %v1505
        %v1645 = vpop.f32.mrf.mxu0
        %v1646 = vadd.f32 0.0, %v1645
        %v1647 = vpop.f32.mrf.mxu0
        %v1648 = vadd.f32 0.0, %v1647
        %1649 = vdwg.mxu0
        %v1650 = vadd.f32 %v1395, %v1581
        %v1651 = vadd.f32 %v1397, %v1583
        %v1652 = vadd.f32 %v1400, %v1586
        %v1653 = vadd.f32 %v1402, %v1588
        %v1654 = vadd.f32 %v1405, %v1591
        %v1655 = vadd.f32 %v1407, %v1593
        %v1656 = vadd.f32 %v1410, %v1596
        %v1657 = vadd.f32 %v1412, %v1598
        %v1658 = vadd.f32 %v1415, %v1601
        %v1659 = vadd.f32 %v1417, %v1603
        %v1660 = vadd.f32 %v1420, %v1606
        %v1661 = vadd.f32 %v1422, %v1608
        %v1662 = vadd.f32 %v1425, %v1611
        %v1663 = vadd.f32 %v1427, %v1613
        %v1664 = vadd.f32 %v1430, %v1616
        %v1665 = vadd.f32 %v1432, %v1618
        %v1666 = vadd.f32 %v1435, %v1621
        %v1667 = vadd.f32 %v1437, %v1623
        %v1668 = vadd.f32 %v1440, %v1626
        %v1669 = vadd.f32 %v1442, %v1628
        %v1670 = vadd.f32 %v1445, %v1631
        %v1671 = vadd.f32 %v1447, %v1633
        %v1672 = vadd.f32 %v1450, %v1636
        %v1673 = vadd.f32 %v1452, %v1638
        %v1674 = vadd.f32 %v1455, %v1641
        %v1675 = vadd.f32 %v1457, %v1643
        %v1676 = vadd.f32 %v1460, %v1646
        %v1677 = vadd.f32 %v1462, %v1648
        %v1678 = vld [vmem:[#allocation2 + $0x17] sm:$0xff]
        %v1679 = vld [vmem:[#allocation2 + $0x1f] sm:$0xff]
        %v1680 = vld [vmem:[#allocation2 + $0x27] sm:$0xff]
        %v1681 = vld [vmem:[#allocation2 + $0x2f] sm:$0xff]
        %v1682 = vld [vmem:[#allocation2 + $0x37] sm:$0xff]
        %v1683 = vld [vmem:[#allocation2 + $0x3f] sm:$0xff]
        %v1684 = vld [vmem:[#allocation2 + $0x47] sm:$0xff]
        %v1685 = vld [vmem:[#allocation2 + $0x4f] sm:$0xff]
        %v1686 = vld [vmem:[#allocation2 + $0x57] sm:$0xff]
        %v1687 = vld [vmem:[#allocation2 + $0x5f] sm:$0xff]
        %v1688 = vld [vmem:[#allocation2 + $0x67] sm:$0xff]
        %v1689 = vld [vmem:[#allocation2 + $0x6f] sm:$0xff]
        %v1690 = vld [vmem:[#allocation2 + $0x77] sm:$0xff]
        %v1691 = vld [vmem:[#allocation2 + $0x7f] sm:$0xff]
        %v1692 = vld [vmem:[#allocation2 + $0x87] sm:$0xff]
        %v1693 = vld [vmem:[#allocation2 + $0x8f] sm:$0xff]
        %v1694 = vld [vmem:[#allocation2 + $0x97] sm:$0xff]
        %v1695 = vld [vmem:[#allocation2 + $0x9f] sm:$0xff]
        %v1696 = vld [vmem:[#allocation2 + $0xa7] sm:$0xff]
        %v1697 = vld [vmem:[#allocation2 + $0xaf] sm:$0xff]
        %v1698 = vld [vmem:[#allocation2 + $0xb7] sm:$0xff]
        %v1699 = vld [vmem:[#allocation2 + $0xbf] sm:$0xff]
        %v1700 = vld [vmem:[#allocation2 + $0xc7] sm:$0xff]
        %v1701 = vld [vmem:[#allocation2 + $0xcf] sm:$0xff]
        %v1702 = vld [vmem:[#allocation2 + $0xd7] sm:$0xff]
        %v1703 = vld [vmem:[#allocation2 + $0xdf] sm:$0xff]
        %v1704 = vld [vmem:[#allocation2 + $0xe7] sm:$0xff]
        %v1705 = vld [vmem:[#allocation2 + $0xef] sm:$0xff]
        %v1706 = vpack.c.bf16 %v1679, %v1678
        %v1707 = vpack.c.bf16 %v1681, %v1680
        %v1708 = vpack.c.bf16 %v1683, %v1682
        %v1709 = vpack.c.bf16 %v1685, %v1684
        %v1710 = vpack.c.bf16 %v1687, %v1686
        %v1711 = vpack.c.bf16 %v1689, %v1688
        %v1712 = vpack.c.bf16 %v1691, %v1690
        %v1713 = vpack.c.bf16 %v1693, %v1692
        %v1714 = vpack.c.bf16 %v1695, %v1694
        %v1715 = vpack.c.bf16 %v1697, %v1696
        %v1716 = vpack.c.bf16 %v1699, %v1698
        %v1717 = vpack.c.bf16 %v1701, %v1700
        %v1718 = vpack.c.bf16 %v1703, %v1702
        %v1719 = vpack.c.bf16 %v1705, %v1704
        %s1720 = scalar_lea.vmem %s418, 192
        %v1721 = vld [vmem:[%s1720] sm:$0xf]
        %v1722 = vld [vmem:[%s1720 + $0x4] sm:$0xf]
        %v1723 = vld [vmem:[%s1720 + $0x8] sm:$0xf]
        %v1724 = vld [vmem:[%s1720 + $0xc] sm:$0xf]
        %v1725 = vld [vmem:[%s1720 + $0x10] sm:$0xf]
        %v1726 = vld [vmem:[%s1720 + $0x14] sm:$0xf]
        %v1727 = vld [vmem:[%s1720 + $0x18] sm:$0xf]
        %v1728 = vld [vmem:[%s1720 + $0x1c] sm:$0xf]
        %v1729 = vld [vmem:[%s1720 + $0x20] sm:$0xf]
        %v1730 = vld [vmem:[%s1720 + $0x24] sm:$0xf]
        %v1731 = vld [vmem:[%s1720 + $0x28] sm:$0xf]
        %v1732 = vld [vmem:[%s1720 + $0x2c] sm:$0xf]
        %v1733 = vld [vmem:[%s1720 + $0x30] sm:$0xf]
        %v1734 = vld [vmem:[%s1720 + $0x34] sm:$0xf]
        %v1735 = vld [vmem:[%s1720 + $0x38] sm:$0xf]
        %v1736 = vld [vmem:[%s1720 + $0x3c] sm:$0xf]
        %v1753 = vunpack.c.l.b16 %v1721
        %v1754 = vunpack.c.l.b16 %v1722
        %v1755 = vunpack.c.l.b16 %v1723
        %v1756 = vunpack.c.l.b16 %v1724
        %v1757 = vunpack.c.l.b16 %v1725
        %v1758 = vunpack.c.l.b16 %v1726
        %v1759 = vunpack.c.l.b16 %v1727
        %v1760 = vunpack.c.l.b16 %v1728
        %v1761 = vunpack.c.l.b16 %v1729
        %v1762 = vunpack.c.l.b16 %v1730
        %v1763 = vunpack.c.l.b16 %v1731
        %v1764 = vunpack.c.l.b16 %v1732
        %v1765 = vunpack.c.l.b16 %v1733
        %v1766 = vunpack.c.l.b16 %v1734
        %v1767 = vunpack.c.l.b16 %v1735
        %v1768 = vunpack.c.l.b16 %v1736
        %v1769 = vpack.c.b16 %v1754, %v1753
        %v1770 = vpack.c.b16 %v1756, %v1755
        %v1771 = vpack.c.b16 %v1758, %v1757
        %v1772 = vpack.c.b16 %v1760, %v1759
        %v1773 = vpack.c.b16 %v1762, %v1761
        %v1774 = vpack.c.b16 %v1764, %v1763
        %v1775 = vpack.c.b16 %v1766, %v1765
        %v1776 = vpack.c.b16 %v1768, %v1767
        %1785 = vmatpush.bf16.msra.mxu0 %v1776
        %1786 = vmatpush.bf16.msra.mxu0 %v1775
        %1787 = vmatpush.bf16.msra.mxu0 %v1774
        %1788 = vmatpush.bf16.msra.mxu0 %v1773
        %1789 = vmatpush.bf16.msra.mxu0 %v1772
        %1790 = vmatpush.bf16.msra.mxu0 %v1771
        %1791 = vmatpush.bf16.msra.mxu0 %v1770
        %1792 = vmatpush.bf16.msra.mxu0 %v1769
        %1793 = vmatmul.bf16.gmra.mxu0 %v1706
        %v1794 = vpop.f32.mrf.mxu0
        %v1795 = vadd.f32 0.0, %v1794
        %v1796 = vpop.f32.mrf.mxu0
        %v1797 = vadd.f32 0.0, %v1796
        %1798 = vmatmul.bf16.gmra.mxu0 %v1707
        %v1799 = vpop.f32.mrf.mxu0
        %v1800 = vadd.f32 0.0, %v1799
        %v1801 = vpop.f32.mrf.mxu0
        %v1802 = vadd.f32 0.0, %v1801
        %1803 = vmatmul.bf16.gmra.mxu0 %v1708
        %v1804 = vpop.f32.mrf.mxu0
        %v1805 = vadd.f32 0.0, %v1804
        %v1806 = vpop.f32.mrf.mxu0
        %v1807 = vadd.f32 0.0, %v1806
        %1808 = vmatmul.bf16.gmra.mxu0 %v1709
        %v1809 = vpop.f32.mrf.mxu0
        %v1810 = vadd.f32 0.0, %v1809
        %v1811 = vpop.f32.mrf.mxu0
        %v1812 = vadd.f32 0.0, %v1811
        %1813 = vmatmul.bf16.gmra.mxu0 %v1710
        %v1814 = vpop.f32.mrf.mxu0
        %v1815 = vadd.f32 0.0, %v1814
        %v1816 = vpop.f32.mrf.mxu0
        %v1817 = vadd.f32 0.0, %v1816
        %1818 = vmatmul.bf16.gmra.mxu0 %v1711
        %v1819 = vpop.f32.mrf.mxu0
        %v1820 = vadd.f32 0.0, %v1819
        %v1821 = vpop.f32.mrf.mxu0
        %v1822 = vadd.f32 0.0, %v1821
        %1823 = vmatmul.bf16.gmra.mxu0 %v1712
        %v1824 = vpop.f32.mrf.mxu0
        %v1825 = vadd.f32 0.0, %v1824
        %v1826 = vpop.f32.mrf.mxu0
        %v1827 = vadd.f32 0.0, %v1826
        %1828 = vmatmul.bf16.gmra.mxu0 %v1713
        %v1829 = vpop.f32.mrf.mxu0
        %v1830 = vadd.f32 0.0, %v1829
        %v1831 = vpop.f32.mrf.mxu0
        %v1832 = vadd.f32 0.0, %v1831
        %1833 = vmatmul.bf16.gmra.mxu0 %v1714
        %v1834 = vpop.f32.mrf.mxu0
        %v1835 = vadd.f32 0.0, %v1834
        %v1836 = vpop.f32.mrf.mxu0
        %v1837 = vadd.f32 0.0, %v1836
        %1838 = vmatmul.bf16.gmra.mxu0 %v1715
        %v1839 = vpop.f32.mrf.mxu0
        %v1840 = vadd.f32 0.0, %v1839
        %v1841 = vpop.f32.mrf.mxu0
        %v1842 = vadd.f32 0.0, %v1841
        %1843 = vmatmul.bf16.gmra.mxu0 %v1716
        %v1844 = vpop.f32.mrf.mxu0
        %v1845 = vadd.f32 0.0, %v1844
        %v1846 = vpop.f32.mrf.mxu0
        %v1847 = vadd.f32 0.0, %v1846
        %1848 = vmatmul.bf16.gmra.mxu0 %v1717
        %v1849 = vpop.f32.mrf.mxu0
        %v1850 = vadd.f32 0.0, %v1849
        %v1851 = vpop.f32.mrf.mxu0
        %v1852 = vadd.f32 0.0, %v1851
        %1853 = vmatmul.bf16.gmra.mxu0 %v1718
        %v1854 = vpop.f32.mrf.mxu0
        %v1855 = vadd.f32 0.0, %v1854
        %v1856 = vpop.f32.mrf.mxu0
        %v1857 = vadd.f32 0.0, %v1856
        %1858 = vmatmul.bf16.gmra.mxu0 %v1719
        %v1859 = vpop.f32.mrf.mxu0
        %v1860 = vadd.f32 0.0, %v1859
        %v1861 = vpop.f32.mrf.mxu0
        %v1862 = vadd.f32 0.0, %v1861
        %1863 = vdwg.mxu0
        %v1864 = vadd.f32 %v1650, %v1795
        %v1865 = vadd.f32 %v1651, %v1797
        %v1866 = vadd.f32 %v1652, %v1800
        %v1867 = vadd.f32 %v1653, %v1802
        %v1868 = vadd.f32 %v1654, %v1805
        %v1869 = vadd.f32 %v1655, %v1807
        %v1870 = vadd.f32 %v1656, %v1810
        %v1871 = vadd.f32 %v1657, %v1812
        %v1872 = vadd.f32 %v1658, %v1815
        %v1873 = vadd.f32 %v1659, %v1817
        %v1874 = vadd.f32 %v1660, %v1820
        %v1875 = vadd.f32 %v1661, %v1822
        %v1876 = vadd.f32 %v1662, %v1825
        %v1877 = vadd.f32 %v1663, %v1827
        %v1878 = vadd.f32 %v1664, %v1830
        %v1879 = vadd.f32 %v1665, %v1832
        %v1880 = vadd.f32 %v1666, %v1835
        %v1881 = vadd.f32 %v1667, %v1837
        %v1882 = vadd.f32 %v1668, %v1840
        %v1883 = vadd.f32 %v1669, %v1842
        %v1884 = vadd.f32 %v1670, %v1845
        %v1885 = vadd.f32 %v1671, %v1847
        %v1886 = vadd.f32 %v1672, %v1850
        %v1887 = vadd.f32 %v1673, %v1852
        %v1888 = vadd.f32 %v1674, %v1855
        %v1889 = vadd.f32 %v1675, %v1857
        %v1890 = vadd.f32 %v1676, %v1860
        %v1891 = vadd.f32 %v1677, %v1862
        %v1892 = vld [vmem:[#allocation2 + $0x18] sm:$0xff]
        %v1893 = vld [vmem:[#allocation2 + $0x20] sm:$0xff]
        %v1894 = vld [vmem:[#allocation2 + $0x28] sm:$0xff]
        %v1895 = vld [vmem:[#allocation2 + $0x30] sm:$0xff]
        %v1896 = vld [vmem:[#allocation2 + $0x38] sm:$0xff]
        %v1897 = vld [vmem:[#allocation2 + $0x40] sm:$0xff]
        %v1898 = vld [vmem:[#allocation2 + $0x48] sm:$0xff]
        %v1899 = vld [vmem:[#allocation2 + $0x50] sm:$0xff]
        %v1900 = vld [vmem:[#allocation2 + $0x58] sm:$0xff]
        %v1901 = vld [vmem:[#allocation2 + $0x60] sm:$0xff]
        %v1902 = vld [vmem:[#allocation2 + $0x68] sm:$0xff]
        %v1903 = vld [vmem:[#allocation2 + $0x70] sm:$0xff]
        %v1904 = vld [vmem:[#allocation2 + $0x78] sm:$0xff]
        %v1905 = vld [vmem:[#allocation2 + $0x80] sm:$0xff]
        %v1906 = vld [vmem:[#allocation2 + $0x88] sm:$0xff]
        %v1907 = vld [vmem:[#allocation2 + $0x90] sm:$0xff]
        %v1908 = vld [vmem:[#allocation2 + $0x98] sm:$0xff]
        %v1909 = vld [vmem:[#allocation2 + $0xa0] sm:$0xff]
        %v1910 = vld [vmem:[#allocation2 + $0xa8] sm:$0xff]
        %v1911 = vld [vmem:[#allocation2 + $0xb0] sm:$0xff]
        %v1912 = vld [vmem:[#allocation2 + $0xb8] sm:$0xff]
        %v1913 = vld [vmem:[#allocation2 + $0xc0] sm:$0xff]
        %v1914 = vld [vmem:[#allocation2 + $0xc8] sm:$0xff]
        %v1915 = vld [vmem:[#allocation2 + $0xd0] sm:$0xff]
        %v1916 = vld [vmem:[#allocation2 + $0xd8] sm:$0xff]
        %v1917 = vld [vmem:[#allocation2 + $0xe0] sm:$0xff]
        %v1918 = vld [vmem:[#allocation2 + $0xe8] sm:$0xff]
        %v1919 = vld [vmem:[#allocation2 + $0xf0] sm:$0xff]
        %v1920 = vpack.c.bf16 %v1893, %v1892
        %v1921 = vpack.c.bf16 %v1895, %v1894
        %v1922 = vpack.c.bf16 %v1897, %v1896
        %v1923 = vpack.c.bf16 %v1899, %v1898
        %v1924 = vpack.c.bf16 %v1901, %v1900
        %v1925 = vpack.c.bf16 %v1903, %v1902
        %v1926 = vpack.c.bf16 %v1905, %v1904
        %v1927 = vpack.c.bf16 %v1907, %v1906
        %v1928 = vpack.c.bf16 %v1909, %v1908
        %v1929 = vpack.c.bf16 %v1911, %v1910
        %v1930 = vpack.c.bf16 %v1913, %v1912
        %v1931 = vpack.c.bf16 %v1915, %v1914
        %v1932 = vpack.c.bf16 %v1917, %v1916
        %v1933 = vpack.c.bf16 %v1919, %v1918
        %s1934 = scalar_lea.vmem %s418, 256
        %v1935 = vld [vmem:[%s1934] sm:$0xf]
        %v1936 = vld [vmem:[%s1934 + $0x4] sm:$0xf]
        %v1937 = vld [vmem:[%s1934 + $0x8] sm:$0xf]
        %v1938 = vld [vmem:[%s1934 + $0xc] sm:$0xf]
        %v1939 = vld [vmem:[%s1934 + $0x10] sm:$0xf]
        %v1940 = vld [vmem:[%s1934 + $0x14] sm:$0xf]
        %v1941 = vld [vmem:[%s1934 + $0x18] sm:$0xf]
        %v1942 = vld [vmem:[%s1934 + $0x1c] sm:$0xf]
        %v1943 = vld [vmem:[%s1934 + $0x20] sm:$0xf]
        %v1944 = vld [vmem:[%s1934 + $0x24] sm:$0xf]
        %v1945 = vld [vmem:[%s1934 + $0x28] sm:$0xf]
        %v1946 = vld [vmem:[%s1934 + $0x2c] sm:$0xf]
        %v1947 = vld [vmem:[%s1934 + $0x30] sm:$0xf]
        %v1948 = vld [vmem:[%s1934 + $0x34] sm:$0xf]
        %v1949 = vld [vmem:[%s1934 + $0x38] sm:$0xf]
        %v1950 = vld [vmem:[%s1934 + $0x3c] sm:$0xf]
        %v1967 = vunpack.c.l.b16 %v1935
        %v1968 = vunpack.c.l.b16 %v1936
        %v1969 = vunpack.c.l.b16 %v1937
        %v1970 = vunpack.c.l.b16 %v1938
        %v1971 = vunpack.c.l.b16 %v1939
        %v1972 = vunpack.c.l.b16 %v1940
        %v1973 = vunpack.c.l.b16 %v1941
        %v1974 = vunpack.c.l.b16 %v1942
        %v1975 = vunpack.c.l.b16 %v1943
        %v1976 = vunpack.c.l.b16 %v1944
        %v1977 = vunpack.c.l.b16 %v1945
        %v1978 = vunpack.c.l.b16 %v1946
        %v1979 = vunpack.c.l.b16 %v1947
        %v1980 = vunpack.c.l.b16 %v1948
        %v1981 = vunpack.c.l.b16 %v1949
        %v1982 = vunpack.c.l.b16 %v1950
        %v1983 = vpack.c.b16 %v1968, %v1967
        %v1984 = vpack.c.b16 %v1970, %v1969
        %v1985 = vpack.c.b16 %v1972, %v1971
        %v1986 = vpack.c.b16 %v1974, %v1973
        %v1987 = vpack.c.b16 %v1976, %v1975
        %v1988 = vpack.c.b16 %v1978, %v1977
        %v1989 = vpack.c.b16 %v1980, %v1979
        %v1990 = vpack.c.b16 %v1982, %v1981
        %1999 = vmatpush.bf16.msra.mxu0 %v1990
        %2000 = vmatpush.bf16.msra.mxu0 %v1989
        %2001 = vmatpush.bf16.msra.mxu0 %v1988
        %2002 = vmatpush.bf16.msra.mxu0 %v1987
        %2003 = vmatpush.bf16.msra.mxu0 %v1986
        %2004 = vmatpush.bf16.msra.mxu0 %v1985
        %2005 = vmatpush.bf16.msra.mxu0 %v1984
        %2006 = vmatpush.bf16.msra.mxu0 %v1983
        %2007 = vmatmul.bf16.gmra.mxu0 %v1920
        %v2008 = vpop.f32.mrf.mxu0
        %v2009 = vadd.f32 0.0, %v2008
        %v2010 = vpop.f32.mrf.mxu0
        %v2011 = vadd.f32 0.0, %v2010
        %2012 = vmatmul.bf16.gmra.mxu0 %v1921
        %v2013 = vpop.f32.mrf.mxu0
        %v2014 = vadd.f32 0.0, %v2013
        %v2015 = vpop.f32.mrf.mxu0
        %v2016 = vadd.f32 0.0, %v2015
        %2017 = vmatmul.bf16.gmra.mxu0 %v1922
        %v2018 = vpop.f32.mrf.mxu0
        %v2019 = vadd.f32 0.0, %v2018
        %v2020 = vpop.f32.mrf.mxu0
        %v2021 = vadd.f32 0.0, %v2020
        %2022 = vmatmul.bf16.gmra.mxu0 %v1923
        %v2023 = vpop.f32.mrf.mxu0
        %v2024 = vadd.f32 0.0, %v2023
        %v2025 = vpop.f32.mrf.mxu0
        %v2026 = vadd.f32 0.0, %v2025
        %2027 = vmatmul.bf16.gmra.mxu0 %v1924
        %v2028 = vpop.f32.mrf.mxu0
        %v2029 = vadd.f32 0.0, %v2028
        %v2030 = vpop.f32.mrf.mxu0
        %v2031 = vadd.f32 0.0, %v2030
        %2032 = vmatmul.bf16.gmra.mxu0 %v1925
        %v2033 = vpop.f32.mrf.mxu0
        %v2034 = vadd.f32 0.0, %v2033
        %v2035 = vpop.f32.mrf.mxu0
        %v2036 = vadd.f32 0.0, %v2035
        %2037 = vmatmul.bf16.gmra.mxu0 %v1926
        %v2038 = vpop.f32.mrf.mxu0
        %v2039 = vadd.f32 0.0, %v2038
        %v2040 = vpop.f32.mrf.mxu0
        %v2041 = vadd.f32 0.0, %v2040
        %2042 = vmatmul.bf16.gmra.mxu0 %v1927
        %v2043 = vpop.f32.mrf.mxu0
        %v2044 = vadd.f32 0.0, %v2043
        %v2045 = vpop.f32.mrf.mxu0
        %v2046 = vadd.f32 0.0, %v2045
        %2047 = vmatmul.bf16.gmra.mxu0 %v1928
        %v2048 = vpop.f32.mrf.mxu0
        %v2049 = vadd.f32 0.0, %v2048
        %v2050 = vpop.f32.mrf.mxu0
        %v2051 = vadd.f32 0.0, %v2050
        %2052 = vmatmul.bf16.gmra.mxu0 %v1929
        %v2053 = vpop.f32.mrf.mxu0
        %v2054 = vadd.f32 0.0, %v2053
        %v2055 = vpop.f32.mrf.mxu0
        %v2056 = vadd.f32 0.0, %v2055
        %2057 = vmatmul.bf16.gmra.mxu0 %v1930
        %v2058 = vpop.f32.mrf.mxu0
        %v2059 = vadd.f32 0.0, %v2058
        %v2060 = vpop.f32.mrf.mxu0
        %v2061 = vadd.f32 0.0, %v2060
        %2062 = vmatmul.bf16.gmra.mxu0 %v1931
        %v2063 = vpop.f32.mrf.mxu0
        %v2064 = vadd.f32 0.0, %v2063
        %v2065 = vpop.f32.mrf.mxu0
        %v2066 = vadd.f32 0.0, %v2065
        %2067 = vmatmul.bf16.gmra.mxu0 %v1932
        %v2068 = vpop.f32.mrf.mxu0
        %v2069 = vadd.f32 0.0, %v2068
        %v2070 = vpop.f32.mrf.mxu0
        %v2071 = vadd.f32 0.0, %v2070
        %2072 = vmatmul.bf16.gmra.mxu0 %v1933
        %v2073 = vpop.f32.mrf.mxu0
        %v2074 = vadd.f32 0.0, %v2073
        %v2075 = vpop.f32.mrf.mxu0
        %v2076 = vadd.f32 0.0, %v2075
        %2077 = vdwg.mxu0
        %v2078 = vadd.f32 %v1864, %v2009
        %v2079 = vadd.f32 %v1865, %v2011
        %v2080 = vadd.f32 %v1866, %v2014
        %v2081 = vadd.f32 %v1867, %v2016
        %v2082 = vadd.f32 %v1868, %v2019
        %v2083 = vadd.f32 %v1869, %v2021
        %v2084 = vadd.f32 %v1870, %v2024
        %v2085 = vadd.f32 %v1871, %v2026
        %v2086 = vadd.f32 %v1872, %v2029
        %v2087 = vadd.f32 %v1873, %v2031
        %v2088 = vadd.f32 %v1874, %v2034
        %v2089 = vadd.f32 %v1875, %v2036
        %v2090 = vadd.f32 %v1876, %v2039
        %v2091 = vadd.f32 %v1877, %v2041
        %v2092 = vadd.f32 %v1878, %v2044
        %v2093 = vadd.f32 %v1879, %v2046
        %v2094 = vadd.f32 %v1880, %v2049
        %v2095 = vadd.f32 %v1881, %v2051
        %v2096 = vadd.f32 %v1882, %v2054
        %v2097 = vadd.f32 %v1883, %v2056
        %v2098 = vadd.f32 %v1884, %v2059
        %v2099 = vadd.f32 %v1885, %v2061
        %v2100 = vadd.f32 %v1886, %v2064
        %v2101 = vadd.f32 %v1887, %v2066
        %v2102 = vadd.f32 %v1888, %v2069
        %v2103 = vadd.f32 %v1889, %v2071
        %v2104 = vadd.f32 %v1890, %v2074
        %v2105 = vadd.f32 %v1891, %v2076
        %v2106 = vld [vmem:[#allocation2 + $0x19] sm:$0xff]
        %v2107 = vld [vmem:[#allocation2 + $0x21] sm:$0xff]
        %v2108 = vld [vmem:[#allocation2 + $0x29] sm:$0xff]
        %v2109 = vld [vmem:[#allocation2 + $0x31] sm:$0xff]
        %v2110 = vld [vmem:[#allocation2 + $0x39] sm:$0xff]
        %v2111 = vld [vmem:[#allocation2 + $0x41] sm:$0xff]
        %v2112 = vld [vmem:[#allocation2 + $0x49] sm:$0xff]
        %v2113 = vld [vmem:[#allocation2 + $0x51] sm:$0xff]
        %v2114 = vld [vmem:[#allocation2 + $0x59] sm:$0xff]
        %v2115 = vld [vmem:[#allocation2 + $0x61] sm:$0xff]
        %v2116 = vld [vmem:[#allocation2 + $0x69] sm:$0xff]
        %v2117 = vld [vmem:[#allocation2 + $0x71] sm:$0xff]
        %v2118 = vld [vmem:[#allocation2 + $0x79] sm:$0xff]
        %v2119 = vld [vmem:[#allocation2 + $0x81] sm:$0xff]
        %v2120 = vld [vmem:[#allocation2 + $0x89] sm:$0xff]
        %v2121 = vld [vmem:[#allocation2 + $0x91] sm:$0xff]
        %v2122 = vld [vmem:[#allocation2 + $0x99] sm:$0xff]
        %v2123 = vld [vmem:[#allocation2 + $0xa1] sm:$0xff]
        %v2124 = vld [vmem:[#allocation2 + $0xa9] sm:$0xff]
        %v2125 = vld [vmem:[#allocation2 + $0xb1] sm:$0xff]
        %v2126 = vld [vmem:[#allocation2 + $0xb9] sm:$0xff]
        %v2127 = vld [vmem:[#allocation2 + $0xc1] sm:$0xff]
        %v2128 = vld [vmem:[#allocation2 + $0xc9] sm:$0xff]
        %v2129 = vld [vmem:[#allocation2 + $0xd1] sm:$0xff]
        %v2130 = vld [vmem:[#allocation2 + $0xd9] sm:$0xff]
        %v2131 = vld [vmem:[#allocation2 + $0xe1] sm:$0xff]
        %v2132 = vld [vmem:[#allocation2 + $0xe9] sm:$0xff]
        %v2133 = vld [vmem:[#allocation2 + $0xf1] sm:$0xff]
        %v2134 = vpack.c.bf16 %v2107, %v2106
        %v2135 = vpack.c.bf16 %v2109, %v2108
        %v2136 = vpack.c.bf16 %v2111, %v2110
        %v2137 = vpack.c.bf16 %v2113, %v2112
        %v2138 = vpack.c.bf16 %v2115, %v2114
        %v2139 = vpack.c.bf16 %v2117, %v2116
        %v2140 = vpack.c.bf16 %v2119, %v2118
        %v2141 = vpack.c.bf16 %v2121, %v2120
        %v2142 = vpack.c.bf16 %v2123, %v2122
        %v2143 = vpack.c.bf16 %v2125, %v2124
        %v2144 = vpack.c.bf16 %v2127, %v2126
        %v2145 = vpack.c.bf16 %v2129, %v2128
        %v2146 = vpack.c.bf16 %v2131, %v2130
        %v2147 = vpack.c.bf16 %v2133, %v2132
        %s2148 = scalar_lea.vmem %s418, 320
        %v2149 = vld [vmem:[%s2148] sm:$0xf]
        %v2150 = vld [vmem:[%s2148 + $0x4] sm:$0xf]
        %v2151 = vld [vmem:[%s2148 + $0x8] sm:$0xf]
        %v2152 = vld [vmem:[%s2148 + $0xc] sm:$0xf]
        %v2153 = vld [vmem:[%s2148 + $0x10] sm:$0xf]
        %v2154 = vld [vmem:[%s2148 + $0x14] sm:$0xf]
        %v2155 = vld [vmem:[%s2148 + $0x18] sm:$0xf]
        %v2156 = vld [vmem:[%s2148 + $0x1c] sm:$0xf]
        %v2157 = vld [vmem:[%s2148 + $0x20] sm:$0xf]
        %v2158 = vld [vmem:[%s2148 + $0x24] sm:$0xf]
        %v2159 = vld [vmem:[%s2148 + $0x28] sm:$0xf]
        %v2160 = vld [vmem:[%s2148 + $0x2c] sm:$0xf]
        %v2161 = vld [vmem:[%s2148 + $0x30] sm:$0xf]
        %v2162 = vld [vmem:[%s2148 + $0x34] sm:$0xf]
        %v2163 = vld [vmem:[%s2148 + $0x38] sm:$0xf]
        %v2164 = vld [vmem:[%s2148 + $0x3c] sm:$0xf]
        %v2181 = vunpack.c.l.b16 %v2149
        %v2182 = vunpack.c.l.b16 %v2150
        %v2183 = vunpack.c.l.b16 %v2151
        %v2184 = vunpack.c.l.b16 %v2152
        %v2185 = vunpack.c.l.b16 %v2153
        %v2186 = vunpack.c.l.b16 %v2154
        %v2187 = vunpack.c.l.b16 %v2155
        %v2188 = vunpack.c.l.b16 %v2156
        %v2189 = vunpack.c.l.b16 %v2157
        %v2190 = vunpack.c.l.b16 %v2158
        %v2191 = vunpack.c.l.b16 %v2159
        %v2192 = vunpack.c.l.b16 %v2160
        %v2193 = vunpack.c.l.b16 %v2161
        %v2194 = vunpack.c.l.b16 %v2162
        %v2195 = vunpack.c.l.b16 %v2163
        %v2196 = vunpack.c.l.b16 %v2164
        %v2197 = vpack.c.b16 %v2182, %v2181
        %v2198 = vpack.c.b16 %v2184, %v2183
        %v2199 = vpack.c.b16 %v2186, %v2185
        %v2200 = vpack.c.b16 %v2188, %v2187
        %v2201 = vpack.c.b16 %v2190, %v2189
        %v2202 = vpack.c.b16 %v2192, %v2191
        %v2203 = vpack.c.b16 %v2194, %v2193
        %v2204 = vpack.c.b16 %v2196, %v2195
        %2213 = vmatpush.bf16.msra.mxu0 %v2204
        %2214 = vmatpush.bf16.msra.mxu0 %v2203
        %2215 = vmatpush.bf16.msra.mxu0 %v2202
        %2216 = vmatpush.bf16.msra.mxu0 %v2201
        %2217 = vmatpush.bf16.msra.mxu0 %v2200
        %2218 = vmatpush.bf16.msra.mxu0 %v2199
        %2219 = vmatpush.bf16.msra.mxu0 %v2198
        %2220 = vmatpush.bf16.msra.mxu0 %v2197
        %2221 = vmatmul.bf16.gmra.mxu0 %v2134
        %v2222 = vpop.f32.mrf.mxu0
        %v2223 = vadd.f32 0.0, %v2222
        %v2224 = vpop.f32.mrf.mxu0
        %v2225 = vadd.f32 0.0, %v2224
        %2226 = vmatmul.bf16.gmra.mxu0 %v2135
        %v2227 = vpop.f32.mrf.mxu0
        %v2228 = vadd.f32 0.0, %v2227
        %v2229 = vpop.f32.mrf.mxu0
        %v2230 = vadd.f32 0.0, %v2229
        %2231 = vmatmul.bf16.gmra.mxu0 %v2136
        %v2232 = vpop.f32.mrf.mxu0
        %v2233 = vadd.f32 0.0, %v2232
        %v2234 = vpop.f32.mrf.mxu0
        %v2235 = vadd.f32 0.0, %v2234
        %2236 = vmatmul.bf16.gmra.mxu0 %v2137
        %v2237 = vpop.f32.mrf.mxu0
        %v2238 = vadd.f32 0.0, %v2237
        %v2239 = vpop.f32.mrf.mxu0
        %v2240 = vadd.f32 0.0, %v2239
        %2241 = vmatmul.bf16.gmra.mxu0 %v2138
        %v2242 = vpop.f32.mrf.mxu0
        %v2243 = vadd.f32 0.0, %v2242
        %v2244 = vpop.f32.mrf.mxu0
        %v2245 = vadd.f32 0.0, %v2244
        %2246 = vmatmul.bf16.gmra.mxu0 %v2139
        %v2247 = vpop.f32.mrf.mxu0
        %v2248 = vadd.f32 0.0, %v2247
        %v2249 = vpop.f32.mrf.mxu0
        %v2250 = vadd.f32 0.0, %v2249
        %2251 = vmatmul.bf16.gmra.mxu0 %v2140
        %v2252 = vpop.f32.mrf.mxu0
        %v2253 = vadd.f32 0.0, %v2252
        %v2254 = vpop.f32.mrf.mxu0
        %v2255 = vadd.f32 0.0, %v2254
        %2256 = vmatmul.bf16.gmra.mxu0 %v2141
        %v2257 = vpop.f32.mrf.mxu0
        %v2258 = vadd.f32 0.0, %v2257
        %v2259 = vpop.f32.mrf.mxu0
        %v2260 = vadd.f32 0.0, %v2259
        %2261 = vmatmul.bf16.gmra.mxu0 %v2142
        %v2262 = vpop.f32.mrf.mxu0
        %v2263 = vadd.f32 0.0, %v2262
        %v2264 = vpop.f32.mrf.mxu0
        %v2265 = vadd.f32 0.0, %v2264
        %2266 = vmatmul.bf16.gmra.mxu0 %v2143
        %v2267 = vpop.f32.mrf.mxu0
        %v2268 = vadd.f32 0.0, %v2267
        %v2269 = vpop.f32.mrf.mxu0
        %v2270 = vadd.f32 0.0, %v2269
        %2271 = vmatmul.bf16.gmra.mxu0 %v2144
        %v2272 = vpop.f32.mrf.mxu0
        %v2273 = vadd.f32 0.0, %v2272
        %v2274 = vpop.f32.mrf.mxu0
        %v2275 = vadd.f32 0.0, %v2274
        %2276 = vmatmul.bf16.gmra.mxu0 %v2145
        %v2277 = vpop.f32.mrf.mxu0
        %v2278 = vadd.f32 0.0, %v2277
        %v2279 = vpop.f32.mrf.mxu0
        %v2280 = vadd.f32 0.0, %v2279
        %2281 = vmatmul.bf16.gmra.mxu0 %v2146
        %v2282 = vpop.f32.mrf.mxu0
        %v2283 = vadd.f32 0.0, %v2282
        %v2284 = vpop.f32.mrf.mxu0
        %v2285 = vadd.f32 0.0, %v2284
        %2286 = vmatmul.bf16.gmra.mxu0 %v2147
        %v2287 = vpop.f32.mrf.mxu0
        %v2288 = vadd.f32 0.0, %v2287
        %v2289 = vpop.f32.mrf.mxu0
        %v2290 = vadd.f32 0.0, %v2289
        %2291 = vdwg.mxu0
        %v2292 = vadd.f32 %v2078, %v2223
        %v2293 = vadd.f32 %v2079, %v2225
        %v2294 = vadd.f32 %v2080, %v2228
        %v2295 = vadd.f32 %v2081, %v2230
        %v2296 = vadd.f32 %v2082, %v2233
        %v2297 = vadd.f32 %v2083, %v2235
        %v2298 = vadd.f32 %v2084, %v2238
        %v2299 = vadd.f32 %v2085, %v2240
        %v2300 = vadd.f32 %v2086, %v2243
        %v2301 = vadd.f32 %v2087, %v2245
        %v2302 = vadd.f32 %v2088, %v2248
        %v2303 = vadd.f32 %v2089, %v2250
        %v2304 = vadd.f32 %v2090, %v2253
        %v2305 = vadd.f32 %v2091, %v2255
        %v2306 = vadd.f32 %v2092, %v2258
        %v2307 = vadd.f32 %v2093, %v2260
        %v2308 = vadd.f32 %v2094, %v2263
        %v2309 = vadd.f32 %v2095, %v2265
        %v2310 = vadd.f32 %v2096, %v2268
        %v2311 = vadd.f32 %v2097, %v2270
        %v2312 = vadd.f32 %v2098, %v2273
        %v2313 = vadd.f32 %v2099, %v2275
        %v2314 = vadd.f32 %v2100, %v2278
        %v2315 = vadd.f32 %v2101, %v2280
        %v2316 = vadd.f32 %v2102, %v2283
        %v2317 = vadd.f32 %v2103, %v2285
        %v2318 = vadd.f32 %v2104, %v2288
        %v2319 = vadd.f32 %v2105, %v2290
        %v2320 = vld [vmem:[#allocation2 + $0x27] sm:$0xff]
        %v2321 = vld [vmem:[#allocation2 + $0x2f] sm:$0xff]
        %v2322 = vld [vmem:[#allocation2 + $0x37] sm:$0xff]
        %v2323 = vld [vmem:[#allocation2 + $0x3f] sm:$0xff]
        %v2324 = vld [vmem:[#allocation2 + $0x47] sm:$0xff]
        %v2325 = vld [vmem:[#allocation2 + $0x4f] sm:$0xff]
        %v2326 = vld [vmem:[#allocation2 + $0x57] sm:$0xff]
        %v2327 = vld [vmem:[#allocation2 + $0x5f] sm:$0xff]
        %v2328 = vld [vmem:[#allocation2 + $0x67] sm:$0xff]
        %v2329 = vld [vmem:[#allocation2 + $0x6f] sm:$0xff]
        %v2330 = vld [vmem:[#allocation2 + $0x77] sm:$0xff]
        %v2331 = vld [vmem:[#allocation2 + $0x7f] sm:$0xff]
        %v2332 = vld [vmem:[#allocation2 + $0x87] sm:$0xff]
        %v2333 = vld [vmem:[#allocation2 + $0x8f] sm:$0xff]
        %v2334 = vld [vmem:[#allocation2 + $0x97] sm:$0xff]
        %v2335 = vld [vmem:[#allocation2 + $0x9f] sm:$0xff]
        %v2336 = vld [vmem:[#allocation2 + $0xa7] sm:$0xff]
        %v2337 = vld [vmem:[#allocation2 + $0xaf] sm:$0xff]
        %v2338 = vld [vmem:[#allocation2 + $0xb7] sm:$0xff]
        %v2339 = vld [vmem:[#allocation2 + $0xbf] sm:$0xff]
        %v2340 = vld [vmem:[#allocation2 + $0xc7] sm:$0xff]
        %v2341 = vld [vmem:[#allocation2 + $0xcf] sm:$0xff]
        %v2342 = vld [vmem:[#allocation2 + $0xd7] sm:$0xff]
        %v2343 = vld [vmem:[#allocation2 + $0xdf] sm:$0xff]
        %v2344 = vld [vmem:[#allocation2 + $0xe7] sm:$0xff]
        %v2345 = vld [vmem:[#allocation2 + $0xef] sm:$0xff]
        %v2346 = vld [vmem:[#allocation2 + $0xf7] sm:$0xff]
        %v2347 = vld [vmem:[#allocation2 + $0xff] sm:$0xff]
        %v2348 = vpack.c.bf16 %v2321, %v2320
        %v2349 = vpack.c.bf16 %v2323, %v2322
        %v2350 = vpack.c.bf16 %v2325, %v2324
        %v2351 = vpack.c.bf16 %v2327, %v2326
        %v2352 = vpack.c.bf16 %v2329, %v2328
        %v2353 = vpack.c.bf16 %v2331, %v2330
        %v2354 = vpack.c.bf16 %v2333, %v2332
        %v2355 = vpack.c.bf16 %v2335, %v2334
        %v2356 = vpack.c.bf16 %v2337, %v2336
        %v2357 = vpack.c.bf16 %v2339, %v2338
        %v2358 = vpack.c.bf16 %v2341, %v2340
        %v2359 = vpack.c.bf16 %v2343, %v2342
        %v2360 = vpack.c.bf16 %v2345, %v2344
        %v2361 = vpack.c.bf16 %v2347, %v2346
        %s2362 = scalar_lea.vmem %s418, 384
        %v2363 = vld [vmem:[%s2362] sm:$0xf]
        %v2364 = vld [vmem:[%s2362 + $0x4] sm:$0xf]
        %v2365 = vld [vmem:[%s2362 + $0x8] sm:$0xf]
        %v2366 = vld [vmem:[%s2362 + $0xc] sm:$0xf]
        %v2367 = vld [vmem:[%s2362 + $0x10] sm:$0xf]
        %v2368 = vld [vmem:[%s2362 + $0x14] sm:$0xf]
        %v2369 = vld [vmem:[%s2362 + $0x18] sm:$0xf]
        %v2370 = vld [vmem:[%s2362 + $0x1c] sm:$0xf]
        %v2371 = vld [vmem:[%s2362 + $0x20] sm:$0xf]
        %v2372 = vld [vmem:[%s2362 + $0x24] sm:$0xf]
        %v2373 = vld [vmem:[%s2362 + $0x28] sm:$0xf]
        %v2374 = vld [vmem:[%s2362 + $0x2c] sm:$0xf]
        %v2375 = vld [vmem:[%s2362 + $0x30] sm:$0xf]
        %v2376 = vld [vmem:[%s2362 + $0x34] sm:$0xf]
        %v2377 = vld [vmem:[%s2362 + $0x38] sm:$0xf]
        %v2378 = vld [vmem:[%s2362 + $0x3c] sm:$0xf]
        %v2395 = vunpack.c.l.b16 %v2363
        %v2396 = vunpack.c.l.b16 %v2364
        %v2397 = vunpack.c.l.b16 %v2365
        %v2398 = vunpack.c.l.b16 %v2366
        %v2399 = vunpack.c.l.b16 %v2367
        %v2400 = vunpack.c.l.b16 %v2368
        %v2401 = vunpack.c.l.b16 %v2369
        %v2402 = vunpack.c.l.b16 %v2370
        %v2403 = vunpack.c.l.b16 %v2371
        %v2404 = vunpack.c.l.b16 %v2372
        %v2405 = vunpack.c.l.b16 %v2373
        %v2406 = vunpack.c.l.b16 %v2374
        %v2407 = vunpack.c.l.b16 %v2375
        %v2408 = vunpack.c.l.b16 %v2376
        %v2409 = vunpack.c.l.b16 %v2377
        %v2410 = vunpack.c.l.b16 %v2378
        %v2411 = vpack.c.b16 %v2396, %v2395
        %v2412 = vpack.c.b16 %v2398, %v2397
        %v2413 = vpack.c.b16 %v2400, %v2399
        %v2414 = vpack.c.b16 %v2402, %v2401
        %v2415 = vpack.c.b16 %v2404, %v2403
        %v2416 = vpack.c.b16 %v2406, %v2405
        %v2417 = vpack.c.b16 %v2408, %v2407
        %v2418 = vpack.c.b16 %v2410, %v2409
        %2427 = vmatpush.bf16.msra.mxu0 %v2418
        %2428 = vmatpush.bf16.msra.mxu0 %v2417
        %2429 = vmatpush.bf16.msra.mxu0 %v2416
        %2430 = vmatpush.bf16.msra.mxu0 %v2415
        %2431 = vmatpush.bf16.msra.mxu0 %v2414
        %2432 = vmatpush.bf16.msra.mxu0 %v2413
        %2433 = vmatpush.bf16.msra.mxu0 %v2412
        %2434 = vmatpush.bf16.msra.mxu0 %v2411
        %2435 = vmatmul.bf16.gmra.mxu0 %v2348
        %v2436 = vpop.f32.mrf.mxu0
        %v2437 = vadd.f32 0.0, %v2436
        %v2438 = vpop.f32.mrf.mxu0
        %v2439 = vadd.f32 0.0, %v2438
        %2440 = vmatmul.bf16.gmra.mxu0 %v2349
        %v2441 = vpop.f32.mrf.mxu0
        %v2442 = vadd.f32 0.0, %v2441
        %v2443 = vpop.f32.mrf.mxu0
        %v2444 = vadd.f32 0.0, %v2443
        %2445 = vmatmul.bf16.gmra.mxu0 %v2350
        %v2446 = vpop.f32.mrf.mxu0
        %v2447 = vadd.f32 0.0, %v2446
        %v2448 = vpop.f32.mrf.mxu0
        %v2449 = vadd.f32 0.0, %v2448
        %2450 = vmatmul.bf16.gmra.mxu0 %v2351
        %v2451 = vpop.f32.mrf.mxu0
        %v2452 = vadd.f32 0.0, %v2451
        %v2453 = vpop.f32.mrf.mxu0
        %v2454 = vadd.f32 0.0, %v2453
        %2455 = vmatmul.bf16.gmra.mxu0 %v2352
        %v2456 = vpop.f32.mrf.mxu0
        %v2457 = vadd.f32 0.0, %v2456
        %v2458 = vpop.f32.mrf.mxu0
        %v2459 = vadd.f32 0.0, %v2458
        %2460 = vmatmul.bf16.gmra.mxu0 %v2353
        %v2461 = vpop.f32.mrf.mxu0
        %v2462 = vadd.f32 0.0, %v2461
        %v2463 = vpop.f32.mrf.mxu0
        %v2464 = vadd.f32 0.0, %v2463
        %2465 = vmatmul.bf16.gmra.mxu0 %v2354
        %v2466 = vpop.f32.mrf.mxu0
        %v2467 = vadd.f32 0.0, %v2466
        %v2468 = vpop.f32.mrf.mxu0
        %v2469 = vadd.f32 0.0, %v2468
        %2470 = vmatmul.bf16.gmra.mxu0 %v2355
        %v2471 = vpop.f32.mrf.mxu0
        %v2472 = vadd.f32 0.0, %v2471
        %v2473 = vpop.f32.mrf.mxu0
        %v2474 = vadd.f32 0.0, %v2473
        %2475 = vmatmul.bf16.gmra.mxu0 %v2356
        %v2476 = vpop.f32.mrf.mxu0
        %v2477 = vadd.f32 0.0, %v2476
        %v2478 = vpop.f32.mrf.mxu0
        %v2479 = vadd.f32 0.0, %v2478
        %2480 = vmatmul.bf16.gmra.mxu0 %v2357
        %v2481 = vpop.f32.mrf.mxu0
        %v2482 = vadd.f32 0.0, %v2481
        %v2483 = vpop.f32.mrf.mxu0
        %v2484 = vadd.f32 0.0, %v2483
        %2485 = vmatmul.bf16.gmra.mxu0 %v2358
        %v2486 = vpop.f32.mrf.mxu0
        %v2487 = vadd.f32 0.0, %v2486
        %v2488 = vpop.f32.mrf.mxu0
        %v2489 = vadd.f32 0.0, %v2488
        %2490 = vmatmul.bf16.gmra.mxu0 %v2359
        %v2491 = vpop.f32.mrf.mxu0
        %v2492 = vadd.f32 0.0, %v2491
        %v2493 = vpop.f32.mrf.mxu0
        %v2494 = vadd.f32 0.0, %v2493
        %2495 = vmatmul.bf16.gmra.mxu0 %v2360
        %v2496 = vpop.f32.mrf.mxu0
        %v2497 = vadd.f32 0.0, %v2496
        %v2498 = vpop.f32.mrf.mxu0
        %v2499 = vadd.f32 0.0, %v2498
        %2500 = vmatmul.bf16.gmra.mxu0 %v2361
        %v2501 = vpop.f32.mrf.mxu0
        %v2502 = vadd.f32 0.0, %v2501
        %v2503 = vpop.f32.mrf.mxu0
        %v2504 = vadd.f32 0.0, %v2503
        %2505 = vdwg.mxu0
        %v2506 = vadd.f32 %v2292, %v2437
        %v2507 = vadd.f32 %v2293, %v2439
        %v2508 = vadd.f32 %v2294, %v2442
        %v2509 = vadd.f32 %v2295, %v2444
        %v2510 = vadd.f32 %v2296, %v2447
        %v2511 = vadd.f32 %v2297, %v2449
        %v2512 = vadd.f32 %v2298, %v2452
        %v2513 = vadd.f32 %v2299, %v2454
        %v2514 = vadd.f32 %v2300, %v2457
        %v2515 = vadd.f32 %v2301, %v2459
        %v2516 = vadd.f32 %v2302, %v2462
        %v2517 = vadd.f32 %v2303, %v2464
        %v2518 = vadd.f32 %v2304, %v2467
        %v2519 = vadd.f32 %v2305, %v2469
        %v2520 = vadd.f32 %v2306, %v2472
        %v2521 = vadd.f32 %v2307, %v2474
        %v2522 = vadd.f32 %v2308, %v2477
        %v2523 = vadd.f32 %v2309, %v2479
        %v2524 = vadd.f32 %v2310, %v2482
        %v2525 = vadd.f32 %v2311, %v2484
        %v2526 = vadd.f32 %v2312, %v2487
        %v2527 = vadd.f32 %v2313, %v2489
        %v2528 = vadd.f32 %v2314, %v2492
        %v2529 = vadd.f32 %v2315, %v2494
        %v2530 = vadd.f32 %v2316, %v2497
        %v2531 = vadd.f32 %v2317, %v2499
        %v2532 = vadd.f32 %v2318, %v2502
        %v2533 = vadd.f32 %v2319, %v2504
        %v2534 = vld [vmem:[#allocation2 + $0x28] sm:$0xff]
        %v2535 = vld [vmem:[#allocation2 + $0x30] sm:$0xff]
        %v2536 = vld [vmem:[#allocation2 + $0x38] sm:$0xff]
        %v2537 = vld [vmem:[#allocation2 + $0x40] sm:$0xff]
        %v2538 = vld [vmem:[#allocation2 + $0x48] sm:$0xff]
        %v2539 = vld [vmem:[#allocation2 + $0x50] sm:$0xff]
        %v2540 = vld [vmem:[#allocation2 + $0x58] sm:$0xff]
        %v2541 = vld [vmem:[#allocation2 + $0x60] sm:$0xff]
        %v2542 = vld [vmem:[#allocation2 + $0x68] sm:$0xff]
        %v2543 = vld [vmem:[#allocation2 + $0x70] sm:$0xff]
        %v2544 = vld [vmem:[#allocation2 + $0x78] sm:$0xff]
        %v2545 = vld [vmem:[#allocation2 + $0x80] sm:$0xff]
        %v2546 = vld [vmem:[#allocation2 + $0x88] sm:$0xff]
        %v2547 = vld [vmem:[#allocation2 + $0x90] sm:$0xff]
        %v2548 = vld [vmem:[#allocation2 + $0x98] sm:$0xff]
        %v2549 = vld [vmem:[#allocation2 + $0xa0] sm:$0xff]
        %v2550 = vld [vmem:[#allocation2 + $0xa8] sm:$0xff]
        %v2551 = vld [vmem:[#allocation2 + $0xb0] sm:$0xff]
        %v2552 = vld [vmem:[#allocation2 + $0xb8] sm:$0xff]
        %v2553 = vld [vmem:[#allocation2 + $0xc0] sm:$0xff]
        %v2554 = vld [vmem:[#allocation2 + $0xc8] sm:$0xff]
        %v2555 = vld [vmem:[#allocation2 + $0xd0] sm:$0xff]
        %v2556 = vld [vmem:[#allocation2 + $0xd8] sm:$0xff]
        %v2557 = vld [vmem:[#allocation2 + $0xe0] sm:$0xff]
        %v2558 = vld [vmem:[#allocation2 + $0xe8] sm:$0xff]
        %v2559 = vld [vmem:[#allocation2 + $0xf0] sm:$0xff]
        %v2560 = vld [vmem:[#allocation2 + $0xf8] sm:$0xff]
        %v2561 = vld [vmem:[#allocation2 + $0x100] sm:$0xff]
        %v2562 = vpack.c.bf16 %v2535, %v2534
        %v2563 = vpack.c.bf16 %v2537, %v2536
        %v2564 = vpack.c.bf16 %v2539, %v2538
        %v2565 = vpack.c.bf16 %v2541, %v2540
        %v2566 = vpack.c.bf16 %v2543, %v2542
        %v2567 = vpack.c.bf16 %v2545, %v2544
        %v2568 = vpack.c.bf16 %v2547, %v2546
        %v2569 = vpack.c.bf16 %v2549, %v2548
        %v2570 = vpack.c.bf16 %v2551, %v2550
        %v2571 = vpack.c.bf16 %v2553, %v2552
        %v2572 = vpack.c.bf16 %v2555, %v2554
        %v2573 = vpack.c.bf16 %v2557, %v2556
        %v2574 = vpack.c.bf16 %v2559, %v2558
        %v2575 = vpack.c.bf16 %v2561, %v2560
        %s2576 = scalar_lea.vmem %s418, 448
        %v2577 = vld [vmem:[%s2576] sm:$0xf]
        %v2578 = vld [vmem:[%s2576 + $0x4] sm:$0xf]
        %v2579 = vld [vmem:[%s2576 + $0x8] sm:$0xf]
        %v2580 = vld [vmem:[%s2576 + $0xc] sm:$0xf]
        %v2581 = vld [vmem:[%s2576 + $0x10] sm:$0xf]
        %v2582 = vld [vmem:[%s2576 + $0x14] sm:$0xf]
        %v2583 = vld [vmem:[%s2576 + $0x18] sm:$0xf]
        %v2584 = vld [vmem:[%s2576 + $0x1c] sm:$0xf]
        %v2585 = vld [vmem:[%s2576 + $0x20] sm:$0xf]
        %v2586 = vld [vmem:[%s2576 + $0x24] sm:$0xf]
        %v2587 = vld [vmem:[%s2576 + $0x28] sm:$0xf]
        %v2588 = vld [vmem:[%s2576 + $0x2c] sm:$0xf]
        %v2589 = vld [vmem:[%s2576 + $0x30] sm:$0xf]
        %v2590 = vld [vmem:[%s2576 + $0x34] sm:$0xf]
        %v2591 = vld [vmem:[%s2576 + $0x38] sm:$0xf]
        %v2592 = vld [vmem:[%s2576 + $0x3c] sm:$0xf]
        %v2609 = vunpack.c.l.b16 %v2577
        %v2610 = vunpack.c.l.b16 %v2578
        %v2611 = vunpack.c.l.b16 %v2579
        %v2612 = vunpack.c.l.b16 %v2580
        %v2613 = vunpack.c.l.b16 %v2581
        %v2614 = vunpack.c.l.b16 %v2582
        %v2615 = vunpack.c.l.b16 %v2583
        %v2616 = vunpack.c.l.b16 %v2584
        %v2617 = vunpack.c.l.b16 %v2585
        %v2618 = vunpack.c.l.b16 %v2586
        %v2619 = vunpack.c.l.b16 %v2587
        %v2620 = vunpack.c.l.b16 %v2588
        %v2621 = vunpack.c.l.b16 %v2589
        %v2622 = vunpack.c.l.b16 %v2590
        %v2623 = vunpack.c.l.b16 %v2591
        %v2624 = vunpack.c.l.b16 %v2592
        %v2625 = vpack.c.b16 %v2610, %v2609
        %v2626 = vpack.c.b16 %v2612, %v2611
        %v2627 = vpack.c.b16 %v2614, %v2613
        %v2628 = vpack.c.b16 %v2616, %v2615
        %v2629 = vpack.c.b16 %v2618, %v2617
        %v2630 = vpack.c.b16 %v2620, %v2619
        %v2631 = vpack.c.b16 %v2622, %v2621
        %v2632 = vpack.c.b16 %v2624, %v2623
        %2641 = vmatpush.bf16.msra.mxu0 %v2632
        %2642 = vmatpush.bf16.msra.mxu0 %v2631
        %2643 = vmatpush.bf16.msra.mxu0 %v2630
        %2644 = vmatpush.bf16.msra.mxu0 %v2629
        %2645 = vmatpush.bf16.msra.mxu0 %v2628
        %2646 = vmatpush.bf16.msra.mxu0 %v2627
        %2647 = vmatpush.bf16.msra.mxu0 %v2626
        %2648 = vmatpush.bf16.msra.mxu0 %v2625
        %2649 = vmatmul.bf16.gmra.mxu0 %v2562
        %v2650 = vpop.f32.mrf.mxu0
        %v2651 = vadd.f32 0.0, %v2650
        %v2652 = vpop.f32.mrf.mxu0
        %v2653 = vadd.f32 0.0, %v2652
        %2654 = vmatmul.bf16.gmra.mxu0 %v2563
        %v2655 = vpop.f32.mrf.mxu0
        %v2656 = vadd.f32 0.0, %v2655
        %v2657 = vpop.f32.mrf.mxu0
        %v2658 = vadd.f32 0.0, %v2657
        %2659 = vmatmul.bf16.gmra.mxu0 %v2564
        %v2660 = vpop.f32.mrf.mxu0
        %v2661 = vadd.f32 0.0, %v2660
        %v2662 = vpop.f32.mrf.mxu0
        %v2663 = vadd.f32 0.0, %v2662
        %2664 = vmatmul.bf16.gmra.mxu0 %v2565
        %v2665 = vpop.f32.mrf.mxu0
        %v2666 = vadd.f32 0.0, %v2665
        %v2667 = vpop.f32.mrf.mxu0
        %v2668 = vadd.f32 0.0, %v2667
        %2669 = vmatmul.bf16.gmra.mxu0 %v2566
        %v2670 = vpop.f32.mrf.mxu0
        %v2671 = vadd.f32 0.0, %v2670
        %v2672 = vpop.f32.mrf.mxu0
        %v2673 = vadd.f32 0.0, %v2672
        %2674 = vmatmul.bf16.gmra.mxu0 %v2567
        %v2675 = vpop.f32.mrf.mxu0
        %v2676 = vadd.f32 0.0, %v2675
        %v2677 = vpop.f32.mrf.mxu0
        %v2678 = vadd.f32 0.0, %v2677
        %2679 = vmatmul.bf16.gmra.mxu0 %v2568
        %v2680 = vpop.f32.mrf.mxu0
        %v2681 = vadd.f32 0.0, %v2680
        %v2682 = vpop.f32.mrf.mxu0
        %v2683 = vadd.f32 0.0, %v2682
        %2684 = vmatmul.bf16.gmra.mxu0 %v2569
        %v2685 = vpop.f32.mrf.mxu0
        %v2686 = vadd.f32 0.0, %v2685
        %v2687 = vpop.f32.mrf.mxu0
        %v2688 = vadd.f32 0.0, %v2687
        %2689 = vmatmul.bf16.gmra.mxu0 %v2570
        %v2690 = vpop.f32.mrf.mxu0
        %v2691 = vadd.f32 0.0, %v2690
        %v2692 = vpop.f32.mrf.mxu0
        %v2693 = vadd.f32 0.0, %v2692
        %2694 = vmatmul.bf16.gmra.mxu0 %v2571
        %v2695 = vpop.f32.mrf.mxu0
        %v2696 = vadd.f32 0.0, %v2695
        %v2697 = vpop.f32.mrf.mxu0
        %v2698 = vadd.f32 0.0, %v2697
        %2699 = vmatmul.bf16.gmra.mxu0 %v2572
        %v2700 = vpop.f32.mrf.mxu0
        %v2701 = vadd.f32 0.0, %v2700
        %v2702 = vpop.f32.mrf.mxu0
        %v2703 = vadd.f32 0.0, %v2702
        %2704 = vmatmul.bf16.gmra.mxu0 %v2573
        %v2705 = vpop.f32.mrf.mxu0
        %v2706 = vadd.f32 0.0, %v2705
        %v2707 = vpop.f32.mrf.mxu0
        %v2708 = vadd.f32 0.0, %v2707
        %2709 = vmatmul.bf16.gmra.mxu0 %v2574
        %v2710 = vpop.f32.mrf.mxu0
        %v2711 = vadd.f32 0.0, %v2710
        %v2712 = vpop.f32.mrf.mxu0
        %v2713 = vadd.f32 0.0, %v2712
        %2714 = vmatmul.bf16.gmra.mxu0 %v2575
        %v2715 = vpop.f32.mrf.mxu0
        %v2716 = vadd.f32 0.0, %v2715
        %v2717 = vpop.f32.mrf.mxu0
        %v2718 = vadd.f32 0.0, %v2717
        %2719 = vdwg.mxu0
        %v2720 = vadd.f32 %v2506, %v2651
        %v2721 = vadd.f32 %v2507, %v2653
        %v2722 = vadd.f32 %v2508, %v2656
        %v2723 = vadd.f32 %v2509, %v2658
        %v2724 = vadd.f32 %v2510, %v2661
        %v2725 = vadd.f32 %v2511, %v2663
        %v2726 = vadd.f32 %v2512, %v2666
        %v2727 = vadd.f32 %v2513, %v2668
        %v2728 = vadd.f32 %v2514, %v2671
        %v2729 = vadd.f32 %v2515, %v2673
        %v2730 = vadd.f32 %v2516, %v2676
        %v2731 = vadd.f32 %v2517, %v2678
        %v2732 = vadd.f32 %v2518, %v2681
        %v2733 = vadd.f32 %v2519, %v2683
        %v2734 = vadd.f32 %v2520, %v2686
        %v2735 = vadd.f32 %v2521, %v2688
        %v2736 = vadd.f32 %v2522, %v2691
        %v2737 = vadd.f32 %v2523, %v2693
        %v2738 = vadd.f32 %v2524, %v2696
        %v2739 = vadd.f32 %v2525, %v2698
        %v2740 = vadd.f32 %v2526, %v2701
        %v2741 = vadd.f32 %v2527, %v2703
        %v2742 = vadd.f32 %v2528, %v2706
        %v2743 = vadd.f32 %v2529, %v2708
        %v2744 = vadd.f32 %v2530, %v2711
        %v2745 = vadd.f32 %v2531, %v2713
        %v2746 = vadd.f32 %v2532, %v2716
        %v2747 = vadd.f32 %v2533, %v2718
        %v2748 = vld [vmem:[#allocation2 + $0x29] sm:$0xff]
        %v2749 = vld [vmem:[#allocation2 + $0x31] sm:$0xff]
        %v2750 = vld [vmem:[#allocation2 + $0x39] sm:$0xff]
        %v2751 = vld [vmem:[#allocation2 + $0x41] sm:$0xff]
        %v2752 = vld [vmem:[#allocation2 + $0x49] sm:$0xff]
        %v2753 = vld [vmem:[#allocation2 + $0x51] sm:$0xff]
        %v2754 = vld [vmem:[#allocation2 + $0x59] sm:$0xff]
        %v2755 = vld [vmem:[#allocation2 + $0x61] sm:$0xff]
        %v2756 = vld [vmem:[#allocation2 + $0x69] sm:$0xff]
        %v2757 = vld [vmem:[#allocation2 + $0x71] sm:$0xff]
        %v2758 = vld [vmem:[#allocation2 + $0x79] sm:$0xff]
        %v2759 = vld [vmem:[#allocation2 + $0x81] sm:$0xff]
        %v2760 = vld [vmem:[#allocation2 + $0x89] sm:$0xff]
        %v2761 = vld [vmem:[#allocation2 + $0x91] sm:$0xff]
        %v2762 = vld [vmem:[#allocation2 + $0x99] sm:$0xff]
        %v2763 = vld [vmem:[#allocation2 + $0xa1] sm:$0xff]
        %v2764 = vld [vmem:[#allocation2 + $0xa9] sm:$0xff]
        %v2765 = vld [vmem:[#allocation2 + $0xb1] sm:$0xff]
        %v2766 = vld [vmem:[#allocation2 + $0xb9] sm:$0xff]
        %v2767 = vld [vmem:[#allocation2 + $0xc1] sm:$0xff]
        %v2768 = vld [vmem:[#allocation2 + $0xc9] sm:$0xff]
        %v2769 = vld [vmem:[#allocation2 + $0xd1] sm:$0xff]
        %v2770 = vld [vmem:[#allocation2 + $0xd9] sm:$0xff]
        %v2771 = vld [vmem:[#allocation2 + $0xe1] sm:$0xff]
        %v2772 = vld [vmem:[#allocation2 + $0xe9] sm:$0xff]
        %v2773 = vld [vmem:[#allocation2 + $0xf1] sm:$0xff]
        %v2774 = vld [vmem:[#allocation2 + $0xf9] sm:$0xff]
        %v2775 = vld [vmem:[#allocation2 + $0x101] sm:$0xff]
        %v2776 = vpack.c.bf16 %v2749, %v2748
        %v2777 = vpack.c.bf16 %v2751, %v2750
        %v2778 = vpack.c.bf16 %v2753, %v2752
        %v2779 = vpack.c.bf16 %v2755, %v2754
        %v2780 = vpack.c.bf16 %v2757, %v2756
        %v2781 = vpack.c.bf16 %v2759, %v2758
        %v2782 = vpack.c.bf16 %v2761, %v2760
        %v2783 = vpack.c.bf16 %v2763, %v2762
        %v2784 = vpack.c.bf16 %v2765, %v2764
        %v2785 = vpack.c.bf16 %v2767, %v2766
        %v2786 = vpack.c.bf16 %v2769, %v2768
        %v2787 = vpack.c.bf16 %v2771, %v2770
        %v2788 = vpack.c.bf16 %v2773, %v2772
        %v2789 = vpack.c.bf16 %v2775, %v2774
        %s2790 = scalar_lea.vmem %s418, 512
        %v2791 = vld [vmem:[%s2790] sm:$0xf]
        %v2792 = vld [vmem:[%s2790 + $0x4] sm:$0xf]
        %v2793 = vld [vmem:[%s2790 + $0x8] sm:$0xf]
        %v2794 = vld [vmem:[%s2790 + $0xc] sm:$0xf]
        %v2795 = vld [vmem:[%s2790 + $0x10] sm:$0xf]
        %v2796 = vld [vmem:[%s2790 + $0x14] sm:$0xf]
        %v2797 = vld [vmem:[%s2790 + $0x18] sm:$0xf]
        %v2798 = vld [vmem:[%s2790 + $0x1c] sm:$0xf]
        %v2799 = vld [vmem:[%s2790 + $0x20] sm:$0xf]
        %v2800 = vld [vmem:[%s2790 + $0x24] sm:$0xf]
        %v2801 = vld [vmem:[%s2790 + $0x28] sm:$0xf]
        %v2802 = vld [vmem:[%s2790 + $0x2c] sm:$0xf]
        %v2803 = vld [vmem:[%s2790 + $0x30] sm:$0xf]
        %v2804 = vld [vmem:[%s2790 + $0x34] sm:$0xf]
        %v2805 = vld [vmem:[%s2790 + $0x38] sm:$0xf]
        %v2806 = vld [vmem:[%s2790 + $0x3c] sm:$0xf]
        %v2823 = vunpack.c.l.b16 %v2791
        %v2824 = vunpack.c.l.b16 %v2792
        %v2825 = vunpack.c.l.b16 %v2793
        %v2826 = vunpack.c.l.b16 %v2794
        %v2827 = vunpack.c.l.b16 %v2795
        %v2828 = vunpack.c.l.b16 %v2796
        %v2829 = vunpack.c.l.b16 %v2797
        %v2830 = vunpack.c.l.b16 %v2798
        %v2831 = vunpack.c.l.b16 %v2799
        %v2832 = vunpack.c.l.b16 %v2800
        %v2833 = vunpack.c.l.b16 %v2801
        %v2834 = vunpack.c.l.b16 %v2802
        %v2835 = vunpack.c.l.b16 %v2803
        %v2836 = vunpack.c.l.b16 %v2804
        %v2837 = vunpack.c.l.b16 %v2805
        %v2838 = vunpack.c.l.b16 %v2806
        %v2839 = vpack.c.b16 %v2824, %v2823
        %v2840 = vpack.c.b16 %v2826, %v2825
        %v2841 = vpack.c.b16 %v2828, %v2827
        %v2842 = vpack.c.b16 %v2830, %v2829
        %v2843 = vpack.c.b16 %v2832, %v2831
        %v2844 = vpack.c.b16 %v2834, %v2833
        %v2845 = vpack.c.b16 %v2836, %v2835
        %v2846 = vpack.c.b16 %v2838, %v2837
        %2855 = vmatpush.bf16.msra.mxu0 %v2846
        %2856 = vmatpush.bf16.msra.mxu0 %v2845
        %2857 = vmatpush.bf16.msra.mxu0 %v2844
        %2858 = vmatpush.bf16.msra.mxu0 %v2843
        %2859 = vmatpush.bf16.msra.mxu0 %v2842
        %2860 = vmatpush.bf16.msra.mxu0 %v2841
        %2861 = vmatpush.bf16.msra.mxu0 %v2840
        %2862 = vmatpush.bf16.msra.mxu0 %v2839
        %2863 = vmatmul.bf16.gmra.mxu0 %v2776
        %v2864 = vpop.f32.mrf.mxu0
        %v2865 = vadd.f32 0.0, %v2864
        %v2866 = vpop.f32.mrf.mxu0
        %v2867 = vadd.f32 0.0, %v2866
        %2868 = vmatmul.bf16.gmra.mxu0 %v2777
        %v2869 = vpop.f32.mrf.mxu0
        %v2870 = vadd.f32 0.0, %v2869
        %v2871 = vpop.f32.mrf.mxu0
        %v2872 = vadd.f32 0.0, %v2871
        %2873 = vmatmul.bf16.gmra.mxu0 %v2778
        %v2874 = vpop.f32.mrf.mxu0
        %v2875 = vadd.f32 0.0, %v2874
        %v2876 = vpop.f32.mrf.mxu0
        %v2877 = vadd.f32 0.0, %v2876
        %2878 = vmatmul.bf16.gmra.mxu0 %v2779
        %v2879 = vpop.f32.mrf.mxu0
        %v2880 = vadd.f32 0.0, %v2879
        %v2881 = vpop.f32.mrf.mxu0
        %v2882 = vadd.f32 0.0, %v2881
        %2883 = vmatmul.bf16.gmra.mxu0 %v2780
        %v2884 = vpop.f32.mrf.mxu0
        %v2885 = vadd.f32 0.0, %v2884
        %v2886 = vpop.f32.mrf.mxu0
        %v2887 = vadd.f32 0.0, %v2886
        %2888 = vmatmul.bf16.gmra.mxu0 %v2781
        %v2889 = vpop.f32.mrf.mxu0
        %v2890 = vadd.f32 0.0, %v2889
        %v2891 = vpop.f32.mrf.mxu0
        %v2892 = vadd.f32 0.0, %v2891
        %2893 = vmatmul.bf16.gmra.mxu0 %v2782
        %v2894 = vpop.f32.mrf.mxu0
        %v2895 = vadd.f32 0.0, %v2894
        %v2896 = vpop.f32.mrf.mxu0
        %v2897 = vadd.f32 0.0, %v2896
        %2898 = vmatmul.bf16.gmra.mxu0 %v2783
        %v2899 = vpop.f32.mrf.mxu0
        %v2900 = vadd.f32 0.0, %v2899
        %v2901 = vpop.f32.mrf.mxu0
        %v2902 = vadd.f32 0.0, %v2901
        %2903 = vmatmul.bf16.gmra.mxu0 %v2784
        %v2904 = vpop.f32.mrf.mxu0
        %v2905 = vadd.f32 0.0, %v2904
        %v2906 = vpop.f32.mrf.mxu0
        %v2907 = vadd.f32 0.0, %v2906
        %2908 = vmatmul.bf16.gmra.mxu0 %v2785
        %v2909 = vpop.f32.mrf.mxu0
        %v2910 = vadd.f32 0.0, %v2909
        %v2911 = vpop.f32.mrf.mxu0
        %v2912 = vadd.f32 0.0, %v2911
        %2913 = vmatmul.bf16.gmra.mxu0 %v2786
        %v2914 = vpop.f32.mrf.mxu0
        %v2915 = vadd.f32 0.0, %v2914
        %v2916 = vpop.f32.mrf.mxu0
        %v2917 = vadd.f32 0.0, %v2916
        %2918 = vmatmul.bf16.gmra.mxu0 %v2787
        %v2919 = vpop.f32.mrf.mxu0
        %v2920 = vadd.f32 0.0, %v2919
        %v2921 = vpop.f32.mrf.mxu0
        %v2922 = vadd.f32 0.0, %v2921
        %2923 = vmatmul.bf16.gmra.mxu0 %v2788
        %v2924 = vpop.f32.mrf.mxu0
        %v2925 = vadd.f32 0.0, %v2924
        %v2926 = vpop.f32.mrf.mxu0
        %v2927 = vadd.f32 0.0, %v2926
        %2928 = vmatmul.bf16.gmra.mxu0 %v2789
        %v2929 = vpop.f32.mrf.mxu0
        %v2930 = vadd.f32 0.0, %v2929
        %v2931 = vpop.f32.mrf.mxu0
        %v2932 = vadd.f32 0.0, %v2931
        %2933 = vdwg.mxu0
        %v2934 = vadd.f32 %v2720, %v2865
        %v2935 = vadd.f32 %v2721, %v2867
        %v2936 = vadd.f32 %v2722, %v2870
        %v2937 = vadd.f32 %v2723, %v2872
        %v2938 = vadd.f32 %v2724, %v2875
        %v2939 = vadd.f32 %v2725, %v2877
        %v2940 = vadd.f32 %v2726, %v2880
        %v2941 = vadd.f32 %v2727, %v2882
        %v2942 = vadd.f32 %v2728, %v2885
        %v2943 = vadd.f32 %v2729, %v2887
        %v2944 = vadd.f32 %v2730, %v2890
        %v2945 = vadd.f32 %v2731, %v2892
        %v2946 = vadd.f32 %v2732, %v2895
        %v2947 = vadd.f32 %v2733, %v2897
        %v2948 = vadd.f32 %v2734, %v2900
        %v2949 = vadd.f32 %v2735, %v2902
        %v2950 = vadd.f32 %v2736, %v2905
        %v2951 = vadd.f32 %v2737, %v2907
        %v2952 = vadd.f32 %v2738, %v2910
        %v2953 = vadd.f32 %v2739, %v2912
        %v2954 = vadd.f32 %v2740, %v2915
        %v2955 = vadd.f32 %v2741, %v2917
        %v2956 = vadd.f32 %v2742, %v2920
        %v2957 = vadd.f32 %v2743, %v2922
        %v2958 = vadd.f32 %v2744, %v2925
        %v2959 = vadd.f32 %v2745, %v2927
        %v2960 = vadd.f32 %v2746, %v2930
        %v2961 = vadd.f32 %v2747, %v2932
        %v2962 = vpack.c.bf16 %v2934, %v2934
        %v2963 = vpack.c.bf16 %v2935, %v2935
        %v2964 = vpack.c.bf16 %v2936, %v2936
        %v2965 = vpack.c.bf16 %v2937, %v2937
        %v2966 = vpack.c.bf16 %v2938, %v2938
        %v2967 = vpack.c.bf16 %v2939, %v2939
        %v2968 = vpack.c.bf16 %v2940, %v2940
        %v2969 = vpack.c.bf16 %v2941, %v2941
        %v2970 = vpack.c.bf16 %v2942, %v2942
        %v2971 = vpack.c.bf16 %v2943, %v2943
        %v2972 = vpack.c.bf16 %v2944, %v2944
        %v2973 = vpack.c.bf16 %v2945, %v2945
        %v2974 = vpack.c.bf16 %v2946, %v2946
        %v2975 = vpack.c.bf16 %v2947, %v2947
        %v2976 = vpack.c.bf16 %v2948, %v2948
        %v2977 = vpack.c.bf16 %v2949, %v2949
        %v2978 = vpack.c.bf16 %v2950, %v2950
        %v2979 = vpack.c.bf16 %v2951, %v2951
        %v2980 = vpack.c.bf16 %v2952, %v2952
        %v2981 = vpack.c.bf16 %v2953, %v2953
        %v2982 = vpack.c.bf16 %v2954, %v2954
        %v2983 = vpack.c.bf16 %v2955, %v2955
        %v2984 = vpack.c.bf16 %v2956, %v2956
        %v2985 = vpack.c.bf16 %v2957, %v2957
        %v2986 = vpack.c.bf16 %v2958, %v2958
        %v2987 = vpack.c.bf16 %v2959, %v2959
        %v2988 = vpack.c.bf16 %v2960, %v2960
        %v2989 = vpack.c.bf16 %v2961, %v2961
        %2990 = vst [vmem:[%s426] sm:$0xf] %v2962
        %2991 = vst [vmem:[%s426 + $0x4] sm:$0xf] %v2963
        %2992 = vst [vmem:[%s426 + $0x8] sm:$0xf] %v2964
        %2993 = vst [vmem:[%s426 + $0xc] sm:$0xf] %v2965
        %2994 = vst [vmem:[%s426 + $0x10] sm:$0xf] %v2966
        %2995 = vst [vmem:[%s426 + $0x14] sm:$0xf] %v2967
        %2996 = vst [vmem:[%s426 + $0x18] sm:$0xf] %v2968
        %2997 = vst [vmem:[%s426 + $0x1c] sm:$0xf] %v2969
        %2998 = vst [vmem:[%s426 + $0x20] sm:$0xf] %v2970
        %2999 = vst [vmem:[%s426 + $0x24] sm:$0xf] %v2971
        %3000 = vst [vmem:[%s426 + $0x28] sm:$0xf] %v2972
        %3001 = vst [vmem:[%s426 + $0x2c] sm:$0xf] %v2973
        %3002 = vst [vmem:[%s426 + $0x30] sm:$0xf] %v2974
        %3003 = vst [vmem:[%s426 + $0x34] sm:$0xf] %v2975
        %3004 = vst [vmem:[%s426 + $0x38] sm:$0xf] %v2976
        %3005 = vst [vmem:[%s426 + $0x3c] sm:$0xf] %v2977
        %3006 = vst [vmem:[%s426 + $0x40] sm:$0xf] %v2978
        %3007 = vst [vmem:[%s426 + $0x44] sm:$0xf] %v2979
        %3008 = vst [vmem:[%s426 + $0x48] sm:$0xf] %v2980
        %3009 = vst [vmem:[%s426 + $0x4c] sm:$0xf] %v2981
        %3010 = vst [vmem:[%s426 + $0x50] sm:$0xf] %v2982
        %3011 = vst [vmem:[%s426 + $0x54] sm:$0xf] %v2983
        %3012 = vst [vmem:[%s426 + $0x58] sm:$0xf] %v2984
        %3013 = vst [vmem:[%s426 + $0x5c] sm:$0xf] %v2985
        %3014 = vst [vmem:[%s426 + $0x60] sm:$0xf] %v2986
        %3015 = vst [vmem:[%s426 + $0x64] sm:$0xf] %v2987
        %3016 = vst [vmem:[%s426 + $0x68] sm:$0xf] %v2988
        %3017 = vst [vmem:[%s426 + $0x6c] sm:$0xf] %v2989
        %v3018 = vsel %vm1003, %v2934, 0.0
        %v3019 = vsel %vm1004, %v2935, 0.0
        %v3020 = vsel %vm1005, %v2936, 0.0
        %v3021 = vsel %vm1006, %v2937, 0.0
        %v3022 = vsel %vm1007, %v2938, 0.0
        %v3023 = vsel %vm1008, %v2939, 0.0
        %v3024 = vsel %vm1009, %v2940, 0.0
        %v3025 = vsel %vm1010, %v2941, 0.0
        %v3026 = vsel %vm1011, %v2942, 0.0
        %v3027 = vsel %vm1012, %v2943, 0.0
        %v3028 = vsel %vm1013, %v2944, 0.0
        %v3029 = vsel %vm1014, %v2945, 0.0
        %v3030 = vsel %vm1015, %v2946, 0.0
        %v3031 = vsel %vm1016, %v2947, 0.0
        %v3032 = vsel %vm1017, %v2948, 0.0
        %v3033 = vsel %vm1018, %v2949, 0.0
        %v3034 = vsel %vm1019, %v2950, 0.0
        %v3035 = vsel %vm1020, %v2951, 0.0
        %v3036 = vsel %vm1021, %v2952, 0.0
        %v3037 = vsel %vm1022, %v2953, 0.0
        %v3038 = vsel %vm1023, %v2954, 0.0
        %v3039 = vsel %vm1024, %v2955, 0.0
        %v3040 = vsel %vm1025, %v2956, 0.0
        %v3041 = vsel %vm1026, %v2957, 0.0
        %v3042 = vsel %vm1027, %v2958, 0.0
        %v3043 = vsel %vm1028, %v2959, 0.0
        %v3044 = vsel %vm1029, %v2960, 0.0
        %v3045 = vsel %vm1030, %v2961, 0.0
        %v3046 = vadd.f32 %v3018, %v3019
        %v3047 = vadd.f32 %v3046, %v3020
        %v3048 = vadd.f32 %v3047, %v3021
        %v3049 = vadd.f32 %v3048, %v3022
        %v3050 = vadd.f32 %v3049, %v3023
        %v3051 = vadd.f32 %v3050, %v3024
        %v3052 = vadd.f32 %v3051, %v3025
        %v3053 = vadd.f32 %v3052, %v3026
        %v3054 = vadd.f32 %v3053, %v3027
        %v3055 = vadd.f32 %v3054, %v3028
        %v3056 = vadd.f32 %v3055, %v3029
        %v3057 = vadd.f32 %v3056, %v3030
        %v3058 = vadd.f32 %v3057, %v3031
        %v3059 = vadd.f32 %v3058, %v3032
        %v3060 = vadd.f32 %v3059, %v3033
        %v3061 = vadd.f32 %v3060, %v3034
        %v3062 = vadd.f32 %v3061, %v3035
        %v3063 = vadd.f32 %v3062, %v3036
        %v3064 = vadd.f32 %v3063, %v3037
        %v3065 = vadd.f32 %v3064, %v3038
        %v3066 = vadd.f32 %v3065, %v3039
        %v3067 = vadd.f32 %v3066, %v3040
        %v3068 = vadd.f32 %v3067, %v3041
        %v3069 = vadd.f32 %v3068, %v3042
        %v3070 = vadd.f32 %v3069, %v3043
        %v3071 = vadd.f32 %v3070, %v3044
        %v3072 = vadd.f32 %v3071, %v3045
        %v3073 = vrot.slane %v3072, 4
        %v3074 = vadd.f32 %v3072, %v3073
        %v3075 = vrot.slane %v3074, 2
        %v3076 = vadd.f32 %v3074, %v3075
        %v3077 = vrot.slane %v3076, 1
        %v3078 = vadd.f32 %v3076, %v3077
        %3079 = vst [vmem:[%s433] sm:$0x1] %v3078
        %v3080 = vmul.f32 %v3018, %v3018
        %v3081 = vmul.f32 %v3019, %v3019
        %v3082 = vmul.f32 %v3020, %v3020
        %v3083 = vmul.f32 %v3021, %v3021
        %v3084 = vmul.f32 %v3022, %v3022
        %v3085 = vmul.f32 %v3023, %v3023
        %v3086 = vmul.f32 %v3024, %v3024
        %v3087 = vmul.f32 %v3025, %v3025
        %v3088 = vmul.f32 %v3026, %v3026
        %v3089 = vmul.f32 %v3027, %v3027
        %v3090 = vmul.f32 %v3028, %v3028
        %v3091 = vmul.f32 %v3029, %v3029
        %v3092 = vmul.f32 %v3030, %v3030
        %v3093 = vmul.f32 %v3031, %v3031
        %v3094 = vmul.f32 %v3032, %v3032
        %v3095 = vmul.f32 %v3033, %v3033
        %v3096 = vmul.f32 %v3034, %v3034
        %v3097 = vmul.f32 %v3035, %v3035
        %v3098 = vmul.f32 %v3036, %v3036
        %v3099 = vmul.f32 %v3037, %v3037
        %v3100 = vmul.f32 %v3038, %v3038
        %v3101 = vmul.f32 %v3039, %v3039
        %v3102 = vmul.f32 %v3040, %v3040
        %v3103 = vmul.f32 %v3041, %v3041
        %v3104 = vmul.f32 %v3042, %v3042
        %v3105 = vmul.f32 %v3043, %v3043
        %v3106 = vmul.f32 %v3044, %v3044
        %v3107 = vmul.f32 %v3045, %v3045
        %v3108 = vadd.f32 %v3080, %v3081
        %v3109 = vadd.f32 %v3108, %v3082
        %v3110 = vadd.f32 %v3109, %v3083
        %v3111 = vadd.f32 %v3110, %v3084
        %v3112 = vadd.f32 %v3111, %v3085
        %v3113 = vadd.f32 %v3112, %v3086
        %v3114 = vadd.f32 %v3113, %v3087
        %v3115 = vadd.f32 %v3114, %v3088
        %v3116 = vadd.f32 %v3115, %v3089
        %v3117 = vadd.f32 %v3116, %v3090
        %v3118 = vadd.f32 %v3117, %v3091
        %v3119 = vadd.f32 %v3118, %v3092
        %v3120 = vadd.f32 %v3119, %v3093
        %v3121 = vadd.f32 %v3120, %v3094
        %v3122 = vadd.f32 %v3121, %v3095
        %v3123 = vadd.f32 %v3122, %v3096
        %v3124 = vadd.f32 %v3123, %v3097
        %v3125 = vadd.f32 %v3124, %v3098
        %v3126 = vadd.f32 %v3125, %v3099
        %v3127 = vadd.f32 %v3126, %v3100
        %v3128 = vadd.f32 %v3127, %v3101
        %v3129 = vadd.f32 %v3128, %v3102
        %v3130 = vadd.f32 %v3129, %v3103
        %v3131 = vadd.f32 %v3130, %v3104
        %v3132 = vadd.f32 %v3131, %v3105
        %v3133 = vadd.f32 %v3132, %v3106
        %v3134 = vadd.f32 %v3133, %v3107
        %v3135 = vrot.slane %v3134, 4
        %v3136 = vadd.f32 %v3134, %v3135
        %v3137 = vrot.slane %v3136, 2
        %v3138 = vadd.f32 %v3136, %v3137
        %v3139 = vrot.slane %v3138, 1
        %v3140 = vadd.f32 %v3138, %v3139
        %3141 = vst [vmem:[%s433 + $0x1] sm:$0x1] %v3140
        %p3142 = scmp.lt.s32.totalorder %s22, 1
        %s3143 = scalar_select %p3142, %s22, 1
        %p3144 = scmp.lt.s32.totalorder %s21, 0
        %s3145 = scalar_select %p3144, %s21, 0
        %s3146 = smul.addr %s3143, 28
        %s3147 = sadd.s32 %s3145, %s3146
        %s3148 = smul.addr %s3147, 4
        %s3149 = scalar_lea.vmem %s4, %s3148
        %p3150 = scmp.lt.s32.totalorder %s22, 1
        %s3151 = scalar_select %p3150, %s22, 1
        %p3152 = scmp.lt.s32.totalorder %s21, 0
        %s3153 = scalar_select %p3152, %s21, 0
        %s3154 = sadd.s32 %s3153, %s3151
        %s3155 = smul.addr %s3154, 2
        %s3156 = scalar_lea.vmem %s5, %s3155
        // Predicated region
        $region78: #{residual_block.4} parent=72 // pred_check
          %p3157 = pneg %p143
        $region79: #{residual_block.4} parent=72 // pred_check_branch
          %3159 = sbr.rel (%p3157) target = $region81
        $region80: #{residual_block.4} parent=72 // pred_region
          _
        $region81: #{residual_block.4} parent=72 // pred_fallthru
          _
        // Predicated region
        $region82: #{residual_block.4} parent=72 // pred_check
          %p3160 = pneg %p171
        $region83: #{residual_block.4} parent=72 // pred_check_branch
          %3162 = sbr.rel (%p3160) target = $region85
        $region84: #{residual_block.4} parent=72 // pred_region
          _
        $region85: #{residual_block.4} parent=72 // pred_fallthru
          _
      $region73: #{residual_block.4} parent=5 // pred_fallthru
        _
      %p3163 = scmp.le.s32.totalorder 2, %s12
      // Predicated region
      $region86: #{residual_block.4} parent=5 // pred_check
        %p3164 = pneg %p3163
      $region87: #{residual_block.4} parent=5 // pred_check_branch
        %3166 = sbr.rel (%p3164) target = $region89
      $region88: #{residual_block.4} parent=5 // pred_region
        %s3167 = ssub.s32 %s12, 2
        // Predicated region
        $region90: #{residual_block.4} parent=88 // pred_check
          %p3168 = pneg %p149
        $region91: #{residual_block.4} parent=88 // pred_check_branch
          %3170 = sbr.rel (%p3168) target = $region93
        $region92: #{residual_block.4} parent=88 // pred_region
          %p3171 = scmp.lt.s32.totalorder %s24, 1
          %s3172 = scalar_select %p3171, %s24, 1
          %p3173 = scmp.lt.s32.totalorder %s23, 0
          %s3174 = scalar_select %p3173, %s23, 0
          %s3175 = smul.addr %s3172, 28
          %s3176 = sadd.s32 %s3174, %s3175
          %s3177 = smul.addr %s3176, 4
          %s3178 = scalar_lea.vmem %s4, %s3177
        $region93: #{residual_block.4} parent=88 // pred_fallthru
          _
        // Predicated region
        $region94: #{residual_block.4} parent=88 // pred_check
          %p3179 = pneg %p177
        $region95: #{residual_block.4} parent=88 // pred_check_branch
          %3181 = sbr.rel (%p3179) target = $region97
        $region96: #{residual_block.4} parent=88 // pred_region
          %p3182 = scmp.lt.s32.totalorder %s24, 1
          %s3183 = scalar_select %p3182, %s24, 1
          %p3184 = scmp.lt.s32.totalorder %s23, 0
          %s3185 = scalar_select %p3184, %s23, 0
          %s3186 = sadd.s32 %s3185, %s3183
          %s3187 = smul.addr %s3186, 2
          %s3188 = scalar_lea.vmem %s5, %s3187
        $region97: #{residual_block.4} parent=88 // pred_fallthru
          _
      $region89: #{residual_block.4} parent=5 // pred_fallthru
        _
    $region6: #{residual_block.4} parent=1 // loop_footer
      %s16 = sadd.s32 1, %s12
    $region7: #{residual_block.4} parent=1 // loop_footer_branch
      %11 = sbr.rel target = $region3
    $region8: #{residual_block.4} parent=1 // loop_exit
      _

</llo_original>
